<compile_context>
chip_gen: v6e
topology: v6e:2x2x1
jax: 0.10.0
libtpu: 0.0.40
codegen_flags: <defaults>
</compile_context>

<pallas_src>
import jax
import jax.numpy as jnp
from jax.experimental import pallas as pl
from jax.experimental.pallas import tpu as pltpu

_BN_EPS = 1e-5


def _cout_tile(cout: int) -> int:
    """Output-channel tile: full C if small, else a 128-multiple that fits VMEM
    comfortably even at v5e's 16 MiB / v7x's 64 MiB budgets."""
    for t in (256, 128):
        if cout > t and cout % t == 0:
            return t
    return cout


def _make_conv_kernel(H, W, Cin, TCout, pre_bn):
    """3x3 conv (pad=1) + bias; optionally fuses BN+ReLU of the *input* tile."""

    def kernel(*refs):
        if pre_bn:
            (x_ref, scale_ref, shift_ref, w_ref, b_ref,
             y_ref, ps_ref, xpad_ref, acc_ref) = refs
        else:
            (x_ref, w_ref, b_ref,
             y_ref, ps_ref, xpad_ref, acc_ref) = refs

        # Build the zero-padded (and, for block 2, BN+ReLU-normalized) input
        # once per batch element.  It lives in VMEM scratch and stays resident
        # across the Cout-tile grid axis (marked "arbitrary" so the ct=0 init
        # always runs first for each image, also under megacore batch split).
        @pl.when(pl.program_id(1) == 0)
        def _build_padded_input():
            xpad_ref[...] = jnp.zeros_like(xpad_ref)
            xin = x_ref[0].astype(jnp.float32)                     # (H, W, Cin)
            if pre_bn:
                xin = jnp.maximum(xin * scale_ref[...] + shift_ref[...], 0.0)
            xpad_ref[1:H + 1, 1:W + 1, :] = xin

        # 3x3 conv as 9 shifted (H*W, Cin) @ (Cin, TCout) bf16 MXU matmuls,
        # accumulated in an f32 VMEM scratch (keeps the accumulator out of the
        # vreg live range across the 9 taps).
        acc_ref[...] = jnp.zeros_like(acc_ref)
        for dy in range(3):
            for dx in range(3):
                patch = xpad_ref[dy:dy + H, dx:dx + W, :].reshape(H * W, Cin)
                acc_ref[...] += jnp.dot(patch.astype(jnp.bfloat16),
                                        w_ref[dy * 3 + dx],
                                        preferred_element_type=jnp.float32)

        yb = acc_ref[...] + b_ref[...]                             # (H*W, TCout) f32
        y_ref[...] = yb.reshape(1, H, W, TCout)

        # Per-(image, Cout-tile) partial sums for the two-pass BatchNorm.
        s1 = jnp.sum(yb, axis=0, keepdims=True)
        s2 = jnp.sum(yb * yb, axis=0, keepdims=True)
        ps_ref[...] = jnp.concatenate([s1, s2], axis=0).reshape(1, 2, TCout)

    return kernel


def _conv_pass(x_nhwc, w9, bias, scale_in=None, shift_in=None):
    """One conv3x3+bias pass over NHWC input.

    If scale_in/shift_in are given, relu(x*scale + shift) (= BN+ReLU of the
    previous block) is applied to the input tile in-kernel before convolving.
    Returns (pre-BN output y in f32, per-channel sum, per-channel sum-of-sq).
    """
    N, H, W, Cin = x_nhwc.shape
    Cout = w9.shape[-1]
    tc = _cout_tile(Cout)
    n_ct = Cout // tc
    pre_bn = scale_in is not None

    kernel = _make_conv_kernel(H, W, Cin, tc, pre_bn)

    in_specs = [pl.BlockSpec((1, H, W, Cin), lambda n, c: (n, 0, 0, 0))]
    inputs = [x_nhwc]
    if pre_bn:
        in_specs += [pl.BlockSpec((1, Cin), lambda n, c: (0, 0)),
                     pl.BlockSpec((1, Cin), lambda n, c: (0, 0))]
        inputs += [scale_in, shift_in]
    in_specs += [pl.BlockSpec((9, Cin, tc), lambda n, c: (0, 0, c)),
                 pl.BlockSpec((1, tc), lambda n, c: (0, c))]
    inputs += [w9, bias]

    y, ps = pl.pallas_call(
        kernel,
        out_shape=(jax.ShapeDtypeStruct((N, H, W, Cout), jnp.float32),
                   jax.ShapeDtypeStruct((N, 2, Cout), jnp.float32)),
        grid_spec=pltpu.PrefetchScalarGridSpec(
            num_scalar_prefetch=0,
            grid=(N, n_ct),
            in_specs=in_specs,
            out_specs=(pl.BlockSpec((1, H, W, tc), lambda n, c: (n, 0, 0, c)),
                       pl.BlockSpec((1, 2, tc), lambda n, c: (n, 0, c))),
            scratch_shapes=[pltpu.VMEM((H + 2, W + 2, Cin), jnp.float32),
                            pltpu.VMEM((H * W, tc), jnp.float32)]),
        compiler_params=pltpu.CompilerParams(
            dimension_semantics=("parallel", "arbitrary")),
    )(*inputs)

    return y, jnp.sum(ps[:, 0, :], axis=0), jnp.sum(ps[:, 1, :], axis=0)


def _bn_fold(sum_c, sumsq_c, count, gamma, beta):
    """Fold batch statistics + affine params into per-channel (scale, shift)."""
    mean = sum_c / count
    var = jnp.maximum(sumsq_c / count - mean * mean, 0.0)   # biased variance
    inv = jax.lax.rsqrt(var + _BN_EPS)
    scale = gamma.astype(jnp.float32) * inv
    shift = beta.astype(jnp.float32) - mean * scale
    return scale.reshape(1, -1), shift.reshape(1, -1)


def _bn_relu_kernel(y_ref, scale_ref, shift_ref, o_ref):
    o_ref[...] = jnp.maximum(y_ref[...] * scale_ref[...] + shift_ref[...], 0.0)


def _bn_relu_pass(y, scale, shift):
    """Tiled, fully parallel BN+ReLU epilogue: out = relu(y*scale + shift)."""
    N, H, W, C = y.shape
    tc = _cout_tile(C)
    return pl.pallas_call(
        _bn_relu_kernel,
        out_shape=jax.ShapeDtypeStruct((N, H, W, C), jnp.float32),
        grid_spec=pltpu.PrefetchScalarGridSpec(
            num_scalar_prefetch=0,
            grid=(N, C // tc),
            in_specs=[pl.BlockSpec((1, H, W, tc), lambda n, c: (n, 0, 0, c)),
                      pl.BlockSpec((1, tc), lambda n, c: (0, c)),
                      pl.BlockSpec((1, tc), lambda n, c: (0, c))],
            out_specs=pl.BlockSpec((1, H, W, tc), lambda n, c: (n, 0, 0, c))),
        compiler_params=pltpu.CompilerParams(
            dimension_semantics=("parallel", "parallel")),
    )(y, scale, shift)


@jax.jit
def bridgeconv_forward(x_nchw, w1, b1, g1, bt1, w2, b2, g2, bt2):
    """BridgeConv forward: (conv3x3+bias -> BN(batch stats) -> ReLU) x 2."""
    N, Cin, H, W = x_nchw.shape
    C1, C2 = w1.shape[0], w2.shape[0]
    count = N * H * W

    # NCHW -> NHWC; activations fed to the MXU in bf16 (halves HBM/VMEM bytes).
    x = jnp.transpose(x_nchw, (0, 2, 3, 1)).astype(jnp.bfloat16)

    def taps(w):  # (Cout, Cin, 3, 3) -> (9, Cin, Cout), tap-major (ky*3+kx), bf16
        co, ci = w.shape[0], w.shape[1]
        return jnp.transpose(w, (2, 3, 1, 0)).reshape(9, ci, co).astype(jnp.bfloat16)

    # ---- block 1: conv1 + bias1 (pre-BN output + channel partial sums) ------
    y1, s1, ss1 = _conv_pass(x, taps(w1), b1.reshape(1, C1).astype(jnp.float32))
    scale1, shift1 = _bn_fold(s1, ss1, count, g1, bt1)

    # ---- block 2: fused BN1+ReLU1 (in-kernel on the input) + conv2 + bias2 ---
    y2, s2, ss2 = _conv_pass(y1, taps(w2), b2.reshape(1, C2).astype(jnp.float32),
                             scale_in=scale1, shift_in=shift1)
    scale2, shift2 = _bn_fold(s2, ss2, count, g2, bt2)

    # ---- BN2 + ReLU2 epilogue ------------------------------------------------
    out = _bn_relu_pass(y2, scale2, shift2)
    return jnp.transpose(out, (0, 3, 1, 2))        # NHWC -> NCHW


def _reference_forward(x, w1, b1, g1, bt1, w2, b2, g2, bt2):
    """Pure-JAX reference matching nn.Conv2d + training-mode BatchNorm2d + ReLU."""
    def block(x, w, b, g, bt):
        y = jax.lax.conv_general_dilated(
            x, w, window_strides=(1, 1), padding="SAME",
            dimension_numbers=("NCHW", "OIHW", "NCHW"))
        y = y + b.reshape(1, -1, 1, 1)
        mean = jnp.mean(y, axis=(0, 2, 3), keepdims=True)
        var = jnp.mean((y - mean) ** 2, axis=(0, 2, 3), keepdims=True)
        yhat = (y - mean) * jax.lax.rsqrt(var + _BN_EPS)
        yhat = yhat * g.reshape(1, -1, 1, 1) + bt.reshape(1, -1, 1, 1)
        return jnp.maximum(yhat, 0.0)
    return block(block(x, w1, b1, g1, bt1), w2, b2, g2, bt2)


if __name__ == "__main__":
    key = jax.random.PRNGKey(0)
    kx, kw1, kb1, kg1, kt1, kw2, kb2, kg2, kt2 = jax.random.split(key, 9)

    N, Cin, H, W = 2, 4, 16, 16
    Cout = 8

    x = jax.random.normal(kx, (N, Cin, H, W), dtype=jnp.float32)
    w1 = 0.1 * jax.random.normal(kw1, (Cout, Cin, 3, 3), dtype=jnp.float32)
    b1 = 0.1 * jax.random.normal(kb1, (Cout,), dtype=jnp.float32)
    g1 = 1.0 + 0.1 * jax.random.normal(kg1, (Cout,), dtype=jnp.float32)
    bt1 = 0.1 * jax.random.normal(kt1, (Cout,), dtype=jnp.float32)
    w2 = 0.1 * jax.random.normal(kw2, (Cout, Cout, 3, 3), dtype=jnp.float32)
    b2 = 0.1 * jax.random.normal(kb2, (Cout,), dtype=jnp.float32)
    g2 = 1.0 + 0.1 * jax.random.normal(kg2, (Cout,), dtype=jnp.float32)
    bt2 = 0.1 * jax.random.normal(kt2, (Cout,), dtype=jnp.float32)

    out = bridgeconv_forward(x, w1, b1, g1, bt1, w2, b2, g2, bt2)
    out = jax.block_until_ready(out)

    assert out.shape == (N, Cout, H, W), out.shape
    assert bool(jnp.all(jnp.isfinite(out)))
    assert bool(jnp.all(out >= 0.0))          # ReLU output

    # Structural-correctness check vs a pure-JAX f32 reference (generous
    # tolerance to absorb the intentional bf16 matmul inputs).
    ref = _reference_forward(x, w1, b1, g1, bt1, w2, b2, g2, bt2)
    err = float(jnp.max(jnp.abs(out - ref)))
    assert err < 0.2, f"max |out - ref| = {err}"

    print("KERNEL_OK")
</pallas_src>

<mosaic_0001>
module attributes {stable_mosaic.version = 11 : i64} {
  func.func @kernel(%arg0: i32, %arg1: i32, %arg2: memref<1x16x16x4xbf16, #tpu.memory_space<vmem>>, %arg3: memref<9x4x8xbf16, #tpu.memory_space<vmem>>, %arg4: memref<1x8xf32, #tpu.memory_space<vmem>>, %arg5: memref<1x16x16x8xf32, #tpu.memory_space<vmem>>, %arg6: memref<1x2x8xf32, #tpu.memory_space<vmem>>, %arg7: memref<18x18x4xf32, #tpu.memory_space<vmem>>, %arg8: memref<256x8xf32, #tpu.memory_space<vmem>>) attributes {dimension_semantics = [#tpu.dimension_semantics<parallel>, #tpu.dimension_semantics<arbitrary>], iteration_bounds = array<i64: 2, 1>, scalar_prefetch = 0 : i64, scratch_operands = 2 : i64, tpu.core_type = #tpu.core_type<tc>, window_params = [{transform_indices = @transform_0, window_bounds = array<i64: 1, 16, 16, 4>}, {transform_indices = @transform_1, window_bounds = array<i64: 9, 4, 8>}, {transform_indices = @transform_2, window_bounds = array<i64: 1, 8>}, {transform_indices = @transform_3, window_bounds = array<i64: 1, 16, 16, 8>}, {transform_indices = @transform_4, window_bounds = array<i64: 1, 2, 8>}]} {
    %c0_i32 = arith.constant 0 : i32
    %0 = arith.cmpi eq, %arg1, %c0_i32 : i32
    %1 = arith.extui %0 : i1 to i32
    %c0_i32_0 = arith.constant 0 : i32
    %2 = arith.cmpi ne, %1, %c0_i32_0 : i32
    scf.if %2 {
      %cst_106 = arith.constant 0.000000e+00 : f32
      %100 = vector.broadcast %cst_106 : f32 to vector<18x18x4xf32>
      %c0_107 = arith.constant 0 : index
      %c0_108 = arith.constant 0 : index
      %c0_109 = arith.constant 0 : index
      %101 = vector.load %arg7[%c0_107, %c0_108, %c0_109] : memref<18x18x4xf32, #tpu.memory_space<vmem>>, vector<18x18x4xf32>
      tpu.vector_store %arg7[%c0_107, %c0_108, %c0_109], %100 {strides = array<i32>} : memref<18x18x4xf32, #tpu.memory_space<vmem>>, vector<18x18x4xf32>,
      %c0_110 = arith.constant 0 : index
      %c0_111 = arith.constant 0 : index
      %c0_112 = arith.constant 0 : index
      %c0_113 = arith.constant 0 : index
      %102 = vector.load %arg2[%c0_110, %c0_111, %c0_112, %c0_113] : memref<1x16x16x4xbf16, #tpu.memory_space<vmem>>, vector<1x16x16x4xbf16>
      %103 = vector.shape_cast %102 : vector<1x16x16x4xbf16> to vector<16x16x4xbf16>
      %104 = arith.extf %103 : vector<16x16x4xbf16> to vector<16x16x4xf32>
      %c1_114 = arith.constant 1 : index
      %c1_115 = arith.constant 1 : index
      %c0_116 = arith.constant 0 : index
      %105 = vector.load %arg7[%c1_114, %c1_115, %c0_116] : memref<18x18x4xf32, #tpu.memory_space<vmem>>, vector<16x16x4xf32>
      tpu.vector_store %arg7[%c1_114, %c1_115, %c0_116], %104 {strides = array<i32>} : memref<18x18x4xf32, #tpu.memory_space<vmem>>, vector<16x16x4xf32>,
    } else {
    }
    %cst = arith.constant 0.000000e+00 : f32
    %3 = vector.broadcast %cst : f32 to vector<256x8xf32>
    %c0 = arith.constant 0 : index
    %c0_1 = arith.constant 0 : index
    %4 = vector.load %arg8[%c0, %c0_1] : memref<256x8xf32, #tpu.memory_space<vmem>>, vector<256x8xf32>
    tpu.vector_store %arg8[%c0, %c0_1], %3 {strides = array<i32>} : memref<256x8xf32, #tpu.memory_space<vmem>>, vector<256x8xf32>,
    %c0_2 = arith.constant 0 : index
    %c0_3 = arith.constant 0 : index
    %c0_4 = arith.constant 0 : index
    %5 = vector.load %arg7[%c0_2, %c0_3, %c0_4] : memref<18x18x4xf32, #tpu.memory_space<vmem>>, vector<16x16x4xf32>
    %6 = vector.shape_cast %5 : vector<16x16x4xf32> to vector<256x4xf32>
    %c0_5 = arith.constant 0 : index
    %c0_6 = arith.constant 0 : index
    %7 = vector.load %arg8[%c0_5, %c0_6] : memref<256x8xf32, #tpu.memory_space<vmem>>, vector<256x8xf32>
    %8 = arith.truncf %6 : vector<256x4xf32> to vector<256x4xbf16>
    %c0_7 = arith.constant 0 : index
    %c0_8 = arith.constant 0 : index
    %c0_9 = arith.constant 0 : index
    %9 = vector.load %arg3[%c0_7, %c0_8, %c0_9] : memref<9x4x8xbf16, #tpu.memory_space<vmem>>, vector<1x4x8xbf16>
    %10 = vector.shape_cast %9 : vector<1x4x8xbf16> to vector<4x8xbf16>
    %cst_10 = arith.constant dense<0.000000e+00> : vector<256x8xf32>
    %11 = tpu.matmul %8, %10, %cst_10 {dimension_numbers = #tpu.dot_dimension_numbers<[1], [0], [0], [1], [0, 0, 1, 1], [], []>} : vector<256x4xbf16>, vector<4x8xbf16>, vector<256x8xf32> -> vector<256x8xf32>
    %12 = arith.addf %7, %11 : vector<256x8xf32>
    %c0_11 = arith.constant 0 : index
    %c0_12 = arith.constant 0 : index
    %13 = vector.load %arg8[%c0_11, %c0_12] : memref<256x8xf32, #tpu.memory_space<vmem>>, vector<256x8xf32>
    tpu.vector_store %arg8[%c0_11, %c0_12], %12 {strides = array<i32>} : memref<256x8xf32, #tpu.memory_space<vmem>>, vector<256x8xf32>,
    %c0_13 = arith.constant 0 : index
    %c1 = arith.constant 1 : index
    %c0_14 = arith.constant 0 : index
    %14 = vector.load %arg7[%c0_13, %c1, %c0_14] : memref<18x18x4xf32, #tpu.memory_space<vmem>>, vector<16x16x4xf32>
    %15 = vector.shape_cast %14 : vector<16x16x4xf32> to vector<256x4xf32>
    %c0_15 = arith.constant 0 : index
    %c0_16 = arith.constant 0 : index
    %16 = vector.load %arg8[%c0_15, %c0_16] : memref<256x8xf32, #tpu.memory_space<vmem>>, vector<256x8xf32>
    %17 = arith.truncf %15 : vector<256x4xf32> to vector<256x4xbf16>
    %c1_17 = arith.constant 1 : index
    %c0_18 = arith.constant 0 : index
    %c0_19 = arith.constant 0 : index
    %18 = vector.load %arg3[%c1_17, %c0_18, %c0_19] : memref<9x4x8xbf16, #tpu.memory_space<vmem>>, vector<1x4x8xbf16>
    %19 = vector.shape_cast %18 : vector<1x4x8xbf16> to vector<4x8xbf16>
    %cst_20 = arith.constant dense<0.000000e+00> : vector<256x8xf32>
    %20 = tpu.matmul %17, %19, %cst_20 {dimension_numbers = #tpu.dot_dimension_numbers<[1], [0], [0], [1], [0, 0, 1, 1], [], []>} : vector<256x4xbf16>, vector<4x8xbf16>, vector<256x8xf32> -> vector<256x8xf32>
    %21 = arith.addf %16, %20 : vector<256x8xf32>
    %c0_21 = arith.constant 0 : index
    %c0_22 = arith.constant 0 : index
    %22 = vector.load %arg8[%c0_21, %c0_22] : memref<256x8xf32, #tpu.memory_space<vmem>>, vector<256x8xf32>
    tpu.vector_store %arg8[%c0_21, %c0_22], %21 {strides = array<i32>} : memref<256x8xf32, #tpu.memory_space<vmem>>, vector<256x8xf32>,
    %c0_23 = arith.constant 0 : index
    %c2 = arith.constant 2 : index
    %c0_24 = arith.constant 0 : index
    %23 = vector.load %arg7[%c0_23, %c2, %c0_24] : memref<18x18x4xf32, #tpu.memory_space<vmem>>, vector<16x16x4xf32>
    %24 = vector.shape_cast %23 : vector<16x16x4xf32> to vector<256x4xf32>
    %c0_25 = arith.constant 0 : index
    %c0_26 = arith.constant 0 : index
    %25 = vector.load %arg8[%c0_25, %c0_26] : memref<256x8xf32, #tpu.memory_space<vmem>>, vector<256x8xf32>
    %26 = arith.truncf %24 : vector<256x4xf32> to vector<256x4xbf16>
    %c2_27 = arith.constant 2 : index
    %c0_28 = arith.constant 0 : index
    %c0_29 = arith.constant 0 : index
    %27 = vector.load %arg3[%c2_27, %c0_28, %c0_29] : memref<9x4x8xbf16, #tpu.memory_space<vmem>>, vector<1x4x8xbf16>
    %28 = vector.shape_cast %27 : vector<1x4x8xbf16> to vector<4x8xbf16>
    %cst_30 = arith.constant dense<0.000000e+00> : vector<256x8xf32>
    %29 = tpu.matmul %26, %28, %cst_30 {dimension_numbers = #tpu.dot_dimension_numbers<[1], [0], [0], [1], [0, 0, 1, 1], [], []>} : vector<256x4xbf16>, vector<4x8xbf16>, vector<256x8xf32> -> vector<256x8xf32>
    %30 = arith.addf %25, %29 : vector<256x8xf32>
    %c0_31 = arith.constant 0 : index
    %c0_32 = arith.constant 0 : index
    %31 = vector.load %arg8[%c0_31, %c0_32] : memref<256x8xf32, #tpu.memory_space<vmem>>, vector<256x8xf32>
    tpu.vector_store %arg8[%c0_31, %c0_32], %30 {strides = array<i32>} : memref<256x8xf32, #tpu.memory_space<vmem>>, vector<256x8xf32>,
    %c1_33 = arith.constant 1 : index
    %c0_34 = arith.constant 0 : index
    %c0_35 = arith.constant 0 : index
    %32 = vector.load %arg7[%c1_33, %c0_34, %c0_35] : memref<18x18x4xf32, #tpu.memory_space<vmem>>, vector<16x16x4xf32>
    %33 = vector.shape_cast %32 : vector<16x16x4xf32> to vector<256x4xf32>
    %c0_36 = arith.constant 0 : index
    %c0_37 = arith.constant 0 : index
    %34 = vector.load %arg8[%c0_36, %c0_37] : memref<256x8xf32, #tpu.memory_space<vmem>>, vector<256x8xf32>
    %35 = arith.truncf %33 : vector<256x4xf32> to vector<256x4xbf16>
    %c3 = arith.constant 3 : index
    %c0_38 = arith.constant 0 : index
    %c0_39 = arith.constant 0 : index
    %36 = vector.load %arg3[%c3, %c0_38, %c0_39] : memref<9x4x8xbf16, #tpu.memory_space<vmem>>, vector<1x4x8xbf16>
    %37 = vector.shape_cast %36 : vector<1x4x8xbf16> to vector<4x8xbf16>
    %cst_40 = arith.constant dense<0.000000e+00> : vector<256x8xf32>
    %38 = tpu.matmul %35, %37, %cst_40 {dimension_numbers = #tpu.dot_dimension_numbers<[1], [0], [0], [1], [0, 0, 1, 1], [], []>} : vector<256x4xbf16>, vector<4x8xbf16>, vector<256x8xf32> -> vector<256x8xf32>
    %39 = arith.addf %34, %38 : vector<256x8xf32>
    %c0_41 = arith.constant 0 : index
    %c0_42 = arith.constant 0 : index
    %40 = vector.load %arg8[%c0_41, %c0_42] : memref<256x8xf32, #tpu.memory_space<vmem>>, vector<256x8xf32>
    tpu.vector_store %arg8[%c0_41, %c0_42], %39 {strides = array<i32>} : memref<256x8xf32, #tpu.memory_space<vmem>>, vector<256x8xf32>,
    %c1_43 = arith.constant 1 : index
    %c1_44 = arith.constant 1 : index
    %c0_45 = arith.constant 0 : index
    %41 = vector.load %arg7[%c1_43, %c1_44, %c0_45] : memref<18x18x4xf32, #tpu.memory_space<vmem>>, vector<16x16x4xf32>
    %42 = vector.shape_cast %41 : vector<16x16x4xf32> to vector<256x4xf32>
    %c0_46 = arith.constant 0 : index
    %c0_47 = arith.constant 0 : index
    %43 = vector.load %arg8[%c0_46, %c0_47] : memref<256x8xf32, #tpu.memory_space<vmem>>, vector<256x8xf32>
    %44 = arith.truncf %42 : vector<256x4xf32> to vector<256x4xbf16>
    %c4 = arith.constant 4 : index
    %c0_48 = arith.constant 0 : index
    %c0_49 = arith.constant 0 : index
    %45 = vector.load %arg3[%c4, %c0_48, %c0_49] : memref<9x4x8xbf16, #tpu.memory_space<vmem>>, vector<1x4x8xbf16>
    %46 = vector.shape_cast %45 : vector<1x4x8xbf16> to vector<4x8xbf16>
    %cst_50 = arith.constant dense<0.000000e+00> : vector<256x8xf32>
    %47 = tpu.matmul %44, %46, %cst_50 {dimension_numbers = #tpu.dot_dimension_numbers<[1], [0], [0], [1], [0, 0, 1, 1], [], []>} : vector<256x4xbf16>, vector<4x8xbf16>, vector<256x8xf32> -> vector<256x8xf32>
    %48 = arith.addf %43, %47 : vector<256x8xf32>
    %c0_51 = arith.constant 0 : index
    %c0_52 = arith.constant 0 : index
    %49 = vector.load %arg8[%c0_51, %c0_52] : memref<256x8xf32, #tpu.memory_space<vmem>>, vector<256x8xf32>
    tpu.vector_store %arg8[%c0_51, %c0_52], %48 {strides = array<i32>} : memref<256x8xf32, #tpu.memory_space<vmem>>, vector<256x8xf32>,
    %c1_53 = arith.constant 1 : index
    %c2_54 = arith.constant 2 : index
    %c0_55 = arith.constant 0 : index
    %50 = vector.load %arg7[%c1_53, %c2_54, %c0_55] : memref<18x18x4xf32, #tpu.memory_space<vmem>>, vector<16x16x4xf32>
    %51 = vector.shape_cast %50 : vector<16x16x4xf32> to vector<256x4xf32>
    %c0_56 = arith.constant 0 : index
    %c0_57 = arith.constant 0 : index
    %52 = vector.load %arg8[%c0_56, %c0_57] : memref<256x8xf32, #tpu.memory_space<vmem>>, vector<256x8xf32>
    %53 = arith.truncf %51 : vector<256x4xf32> to vector<256x4xbf16>
    %c5 = arith.constant 5 : index
    %c0_58 = arith.constant 0 : index
    %c0_59 = arith.constant 0 : index
    %54 = vector.load %arg3[%c5, %c0_58, %c0_59] : memref<9x4x8xbf16, #tpu.memory_space<vmem>>, vector<1x4x8xbf16>
    %55 = vector.shape_cast %54 : vector<1x4x8xbf16> to vector<4x8xbf16>
    %cst_60 = arith.constant dense<0.000000e+00> : vector<256x8xf32>
    %56 = tpu.matmul %53, %55, %cst_60 {dimension_numbers = #tpu.dot_dimension_numbers<[1], [0], [0], [1], [0, 0, 1, 1], [], []>} : vector<256x4xbf16>, vector<4x8xbf16>, vector<256x8xf32> -> vector<256x8xf32>
    %57 = arith.addf %52, %56 : vector<256x8xf32>
    %c0_61 = arith.constant 0 : index
    %c0_62 = arith.constant 0 : index
    %58 = vector.load %arg8[%c0_61, %c0_62] : memref<256x8xf32, #tpu.memory_space<vmem>>, vector<256x8xf32>
    tpu.vector_store %arg8[%c0_61, %c0_62], %57 {strides = array<i32>} : memref<256x8xf32, #tpu.memory_space<vmem>>, vector<256x8xf32>,
    %c2_63 = arith.constant 2 : index
    %c0_64 = arith.constant 0 : index
    %c0_65 = arith.constant 0 : index
    %59 = vector.load %arg7[%c2_63, %c0_64, %c0_65] : memref<18x18x4xf32, #tpu.memory_space<vmem>>, vector<16x16x4xf32>
    %60 = vector.shape_cast %59 : vector<16x16x4xf32> to vector<256x4xf32>
    %c0_66 = arith.constant 0 : index
    %c0_67 = arith.constant 0 : index
    %61 = vector.load %arg8[%c0_66, %c0_67] : memref<256x8xf32, #tpu.memory_space<vmem>>, vector<256x8xf32>
    %62 = arith.truncf %60 : vector<256x4xf32> to vector<256x4xbf16>
    %c6 = arith.constant 6 : index
    %c0_68 = arith.constant 0 : index
    %c0_69 = arith.constant 0 : index
    %63 = vector.load %arg3[%c6, %c0_68, %c0_69] : memref<9x4x8xbf16, #tpu.memory_space<vmem>>, vector<1x4x8xbf16>
    %64 = vector.shape_cast %63 : vector<1x4x8xbf16> to vector<4x8xbf16>
    %cst_70 = arith.constant dense<0.000000e+00> : vector<256x8xf32>
    %65 = tpu.matmul %62, %64, %cst_70 {dimension_numbers = #tpu.dot_dimension_numbers<[1], [0], [0], [1], [0, 0, 1, 1], [], []>} : vector<256x4xbf16>, vector<4x8xbf16>, vector<256x8xf32> -> vector<256x8xf32>
    %66 = arith.addf %61, %65 : vector<256x8xf32>
    %c0_71 = arith.constant 0 : index
    %c0_72 = arith.constant 0 : index
    %67 = vector.load %arg8[%c0_71, %c0_72] : memref<256x8xf32, #tpu.memory_space<vmem>>, vector<256x8xf32>
    tpu.vector_store %arg8[%c0_71, %c0_72], %66 {strides = array<i32>} : memref<256x8xf32, #tpu.memory_space<vmem>>, vector<256x8xf32>,
    %c2_73 = arith.constant 2 : index
    %c1_74 = arith.constant 1 : index
    %c0_75 = arith.constant 0 : index
    %68 = vector.load %arg7[%c2_73, %c1_74, %c0_75] : memref<18x18x4xf32, #tpu.memory_space<vmem>>, vector<16x16x4xf32>
    %69 = vector.shape_cast %68 : vector<16x16x4xf32> to vector<256x4xf32>
    %c0_76 = arith.constant 0 : index
    %c0_77 = arith.constant 0 : index
    %70 = vector.load %arg8[%c0_76, %c0_77] : memref<256x8xf32, #tpu.memory_space<vmem>>, vector<256x8xf32>
    %71 = arith.truncf %69 : vector<256x4xf32> to vector<256x4xbf16>
    %c7 = arith.constant 7 : index
    %c0_78 = arith.constant 0 : index
    %c0_79 = arith.constant 0 : index
    %72 = vector.load %arg3[%c7, %c0_78, %c0_79] : memref<9x4x8xbf16, #tpu.memory_space<vmem>>, vector<1x4x8xbf16>
    %73 = vector.shape_cast %72 : vector<1x4x8xbf16> to vector<4x8xbf16>
    %cst_80 = arith.constant dense<0.000000e+00> : vector<256x8xf32>
    %74 = tpu.matmul %71, %73, %cst_80 {dimension_numbers = #tpu.dot_dimension_numbers<[1], [0], [0], [1], [0, 0, 1, 1], [], []>} : vector<256x4xbf16>, vector<4x8xbf16>, vector<256x8xf32> -> vector<256x8xf32>
    %75 = arith.addf %70, %74 : vector<256x8xf32>
    %c0_81 = arith.constant 0 : index
    %c0_82 = arith.constant 0 : index
    %76 = vector.load %arg8[%c0_81, %c0_82] : memref<256x8xf32, #tpu.memory_space<vmem>>, vector<256x8xf32>
    tpu.vector_store %arg8[%c0_81, %c0_82], %75 {strides = array<i32>} : memref<256x8xf32, #tpu.memory_space<vmem>>, vector<256x8xf32>,
    %c2_83 = arith.constant 2 : index
    %c2_84 = arith.constant 2 : index
    %c0_85 = arith.constant 0 : index
    %77 = vector.load %arg7[%c2_83, %c2_84, %c0_85] : memref<18x18x4xf32, #tpu.memory_space<vmem>>, vector<16x16x4xf32>
    %78 = vector.shape_cast %77 : vector<16x16x4xf32> to vector<256x4xf32>
    %c0_86 = arith.constant 0 : index
    %c0_87 = arith.constant 0 : index
    %79 = vector.load %arg8[%c0_86, %c0_87] : memref<256x8xf32, #tpu.memory_space<vmem>>, vector<256x8xf32>
    %80 = arith.truncf %78 : vector<256x4xf32> to vector<256x4xbf16>
    %c8 = arith.constant 8 : index
    %c0_88 = arith.constant 0 : index
    %c0_89 = arith.constant 0 : index
    %81 = vector.load %arg3[%c8, %c0_88, %c0_89] : memref<9x4x8xbf16, #tpu.memory_space<vmem>>, vector<1x4x8xbf16>
    %82 = vector.shape_cast %81 : vector<1x4x8xbf16> to vector<4x8xbf16>
    %cst_90 = arith.constant dense<0.000000e+00> : vector<256x8xf32>
    %83 = tpu.matmul %80, %82, %cst_90 {dimension_numbers = #tpu.dot_dimension_numbers<[1], [0], [0], [1], [0, 0, 1, 1], [], []>} : vector<256x4xbf16>, vector<4x8xbf16>, vector<256x8xf32> -> vector<256x8xf32>
    %84 = arith.addf %79, %83 : vector<256x8xf32>
    %c0_91 = arith.constant 0 : index
    %c0_92 = arith.constant 0 : index
    %85 = vector.load %arg8[%c0_91, %c0_92] : memref<256x8xf32, #tpu.memory_space<vmem>>, vector<256x8xf32>
    tpu.vector_store %arg8[%c0_91, %c0_92], %84 {strides = array<i32>} : memref<256x8xf32, #tpu.memory_space<vmem>>, vector<256x8xf32>,
    %c0_93 = arith.constant 0 : index
    %c0_94 = arith.constant 0 : index
    %86 = vector.load %arg8[%c0_93, %c0_94] : memref<256x8xf32, #tpu.memory_space<vmem>>, vector<256x8xf32>
    %c0_95 = arith.constant 0 : index
    %c0_96 = arith.constant 0 : index
    %87 = vector.load %arg4[%c0_95, %c0_96] : memref<1x8xf32, #tpu.memory_space<vmem>>, vector<1x8xf32>
    %88 = vector.broadcast %87 : vector<1x8xf32> to vector<256x8xf32>
    %89 = arith.addf %86, %88 : vector<256x8xf32>
    %90 = vector.shape_cast %89 : vector<256x8xf32> to vector<1x16x16x8xf32>
    %c0_97 = arith.constant 0 : index
    %c0_98 = arith.constant 0 : index
    %c0_99 = arith.constant 0 : index
    %c0_100 = arith.constant 0 : index
    %91 = vector.load %arg5[%c0_97, %c0_98, %c0_99, %c0_100] : memref<1x16x16x8xf32, #tpu.memory_space<vmem>>, vector<1x16x16x8xf32>
    tpu.vector_store %arg5[%c0_97, %c0_98, %c0_99, %c0_100], %90 {strides = array<i32>} : memref<1x16x16x8xf32, #tpu.memory_space<vmem>>, vector<1x16x16x8xf32>,
    %cst_101 = arith.constant dense<0.000000e+00> : vector<8xf32>
    %92 = vector.multi_reduction <add>, %89, %cst_101 [0] : vector<256x8xf32> to vector<8xf32>
    %93 = vector.shape_cast %92 : vector<8xf32> to vector<1x8xf32>
    %94 = arith.mulf %89, %89 : vector<256x8xf32>
    %cst_102 = arith.constant dense<0.000000e+00> : vector<8xf32>
    %95 = vector.multi_reduction <add>, %94, %cst_102 [0] : vector<256x8xf32> to vector<8xf32>
    %96 = vector.shape_cast %95 : vector<8xf32> to vector<1x8xf32>
    %97 = tpu.concatenate %93, %96 in 0 : vector<1x8xf32>, vector<1x8xf32> -> vector<2x8xf32>
    %98 = vector.shape_cast %97 : vector<2x8xf32> to vector<1x2x8xf32>
    %c0_103 = arith.constant 0 : index
    %c0_104 = arith.constant 0 : index
    %c0_105 = arith.constant 0 : index
    %99 = vector.load %arg6[%c0_103, %c0_104, %c0_105] : memref<1x2x8xf32, #tpu.memory_space<vmem>>, vector<1x2x8xf32>
    tpu.vector_store %arg6[%c0_103, %c0_104, %c0_105], %98 {strides = array<i32>} : memref<1x2x8xf32, #tpu.memory_space<vmem>>, vector<1x2x8xf32>,
    return
  }
  func.func @transform_0(%arg0: i32, %arg1: i32) -> (i32, i32, i32, i32) {
    %c0_i32 = arith.constant 0 : i32
    %c0_i32_0 = arith.constant 0 : i32
    %c0_i32_1 = arith.constant 0 : i32
    %c0_i32_2 = arith.constant 0 : i32
    return %arg0, %c0_i32, %c0_i32_0, %c0_i32_1 : i32, i32, i32, i32
  }
  func.func @transform_1(%arg0: i32, %arg1: i32) -> (i32, i32, i32) {
    %c0_i32 = arith.constant 0 : i32
    %c0_i32_0 = arith.constant 0 : i32
    %c0_i32_1 = arith.constant 0 : i32
    return %c0_i32, %c0_i32_0, %arg1 : i32, i32, i32
  }
  func.func @transform_2(%arg0: i32, %arg1: i32) -> (i32, i32) {
    %c0_i32 = arith.constant 0 : i32
    %c0_i32_0 = arith.constant 0 : i32
    return %c0_i32, %arg1 : i32, i32
  }
  func.func @transform_3(%arg0: i32, %arg1: i32) -> (i32, i32, i32, i32) {
    %c0_i32 = arith.constant 0 : i32
    %c0_i32_0 = arith.constant 0 : i32
    %c0_i32_1 = arith.constant 0 : i32
    return %arg0, %c0_i32, %c0_i32_0, %arg1 : i32, i32, i32, i32
  }
  func.func @transform_4(%arg0: i32, %arg1: i32) -> (i32, i32, i32) {
    %c0_i32 = arith.constant 0 : i32
    %c0_i32_0 = arith.constant 0 : i32
    return %arg0, %c0_i32, %arg1 : i32, i32, i32
  }
}

module attributes {stable_mosaic.version = 11 : i64} {
  func.func @_bn_relu_kernel(%arg0: i32, %arg1: i32, %arg2: memref<1x16x16x8xf32, #tpu.memory_space<vmem>>, %arg3: memref<1x8xf32, #tpu.memory_space<vmem>>, %arg4: memref<1x8xf32, #tpu.memory_space<vmem>>, %arg5: memref<1x16x16x8xf32, #tpu.memory_space<vmem>>) attributes {dimension_semantics = [#tpu.dimension_semantics<parallel>, #tpu.dimension_semantics<parallel>], iteration_bounds = array<i64: 2, 1>, scalar_prefetch = 0 : i64, scratch_operands = 0 : i64, tpu.core_type = #tpu.core_type<tc>, window_params = [{transform_indices = @transform_0, window_bounds = array<i64: 1, 16, 16, 8>}, {transform_indices = @transform_1, window_bounds = array<i64: 1, 8>}, {transform_indices = @transform_2, window_bounds = array<i64: 1, 8>}, {transform_indices = @transform_3, window_bounds = array<i64: 1, 16, 16, 8>}]} {
    %c0 = arith.constant 0 : index
    %c0_0 = arith.constant 0 : index
    %c0_1 = arith.constant 0 : index
    %c0_2 = arith.constant 0 : index
    %0 = vector.load %arg2[%c0, %c0_0, %c0_1, %c0_2] : memref<1x16x16x8xf32, #tpu.memory_space<vmem>>, vector<1x16x16x8xf32>
    %c0_3 = arith.constant 0 : index
    %c0_4 = arith.constant 0 : index
    %1 = vector.load %arg3[%c0_3, %c0_4] : memref<1x8xf32, #tpu.memory_space<vmem>>, vector<1x8xf32>
    %2 = vector.shape_cast %1 : vector<1x8xf32> to vector<1x1x1x8xf32>
    %3 = vector.broadcast %2 : vector<1x1x1x8xf32> to vector<1x16x16x8xf32>
    %4 = arith.mulf %0, %3 : vector<1x16x16x8xf32>
    %c0_5 = arith.constant 0 : index
    %c0_6 = arith.constant 0 : index
    %5 = vector.load %arg4[%c0_5, %c0_6] : memref<1x8xf32, #tpu.memory_space<vmem>>, vector<1x8xf32>
    %6 = vector.shape_cast %5 : vector<1x8xf32> to vector<1x1x1x8xf32>
    %7 = vector.broadcast %6 : vector<1x1x1x8xf32> to vector<1x16x16x8xf32>
    %8 = arith.addf %4, %7 : vector<1x16x16x8xf32>
    %cst = arith.constant 0.000000e+00 : f32
    %9 = vector.broadcast %cst : f32 to vector<1x16x16x8xf32>
    %10 = arith.maximumf %8, %9 : vector<1x16x16x8xf32>
    %c0_7 = arith.constant 0 : index
    %c0_8 = arith.constant 0 : index
    %c0_9 = arith.constant 0 : index
    %c0_10 = arith.constant 0 : index
    %11 = vector.load %arg5[%c0_7, %c0_8, %c0_9, %c0_10] : memref<1x16x16x8xf32, #tpu.memory_space<vmem>>, vector<1x16x16x8xf32>
    tpu.vector_store %arg5[%c0_7, %c0_8, %c0_9, %c0_10], %10 {strides = array<i32>} : memref<1x16x16x8xf32, #tpu.memory_space<vmem>>, vector<1x16x16x8xf32>,
    return
  }
  func.func @transform_0(%arg0: i32, %arg1: i32) -> (i32, i32, i32, i32) {
    %c0_i32 = arith.constant 0 : i32
    %c0_i32_0 = arith.constant 0 : i32
    %c0_i32_1 = arith.constant 0 : i32
    return %arg0, %c0_i32, %c0_i32_0, %arg1 : i32, i32, i32, i32
  }
  func.func @transform_1(%arg0: i32, %arg1: i32) -> (i32, i32) {
    %c0_i32 = arith.constant 0 : i32
    %c0_i32_0 = arith.constant 0 : i32
    return %c0_i32, %arg1 : i32, i32
  }
  func.func @transform_2(%arg0: i32, %arg1: i32) -> (i32, i32) {
    %c0_i32 = arith.constant 0 : i32
    %c0_i32_0 = arith.constant 0 : i32
    return %c0_i32, %arg1 : i32, i32
  }
  func.func @transform_3(%arg0: i32, %arg1: i32) -> (i32, i32, i32, i32) {
    %c0_i32 = arith.constant 0 : i32
    %c0_i32_0 = arith.constant 0 : i32
    %c0_i32_1 = arith.constant 0 : i32
    return %arg0, %c0_i32, %c0_i32_0, %arg1 : i32, i32, i32, i32
  }
}

module attributes {stable_mosaic.version = 11 : i64} {
  func.func @kernel(%arg0: i32, %arg1: i32, %arg2: memref<1x16x16x8xf32, #tpu.memory_space<vmem>>, %arg3: memref<1x8xf32, #tpu.memory_space<vmem>>, %arg4: memref<1x8xf32, #tpu.memory_space<vmem>>, %arg5: memref<9x8x8xbf16, #tpu.memory_space<vmem>>, %arg6: memref<1x8xf32, #tpu.memory_space<vmem>>, %arg7: memref<1x16x16x8xf32, #tpu.memory_space<vmem>>, %arg8: memref<1x2x8xf32, #tpu.memory_space<vmem>>, %arg9: memref<18x18x8xf32, #tpu.memory_space<vmem>>, %arg10: memref<256x8xf32, #tpu.memory_space<vmem>>) attributes {dimension_semantics = [#tpu.dimension_semantics<parallel>, #tpu.dimension_semantics<arbitrary>], iteration_bounds = array<i64: 2, 1>, scalar_prefetch = 0 : i64, scratch_operands = 2 : i64, tpu.core_type = #tpu.core_type<tc>, window_params = [{transform_indices = @transform_0, window_bounds = array<i64: 1, 16, 16, 8>}, {pipeline_mode = #tpu.pipeline_mode<synchronous>, transform_indices = @transform_1, window_bounds = array<i64: 1, 8>}, {pipeline_mode = #tpu.pipeline_mode<synchronous>, transform_indices = @transform_2, window_bounds = array<i64: 1, 8>}, {transform_indices = @transform_3, window_bounds = array<i64: 9, 8, 8>}, {transform_indices = @transform_4, window_bounds = array<i64: 1, 8>}, {transform_indices = @transform_5, window_bounds = array<i64: 1, 16, 16, 8>}, {transform_indices = @transform_6, window_bounds = array<i64: 1, 2, 8>}]} {
    %c0_i32 = arith.constant 0 : i32
    %0 = arith.cmpi eq, %arg1, %c0_i32 : i32
    %1 = arith.extui %0 : i1 to i32
    %c0_i32_0 = arith.constant 0 : i32
    %2 = arith.cmpi ne, %1, %c0_i32_0 : i32
    scf.if %2 {
      %cst_106 = arith.constant 0.000000e+00 : f32
      %100 = vector.broadcast %cst_106 : f32 to vector<18x18x8xf32>
      %c0_107 = arith.constant 0 : index
      %c0_108 = arith.constant 0 : index
      %c0_109 = arith.constant 0 : index
      %101 = vector.load %arg9[%c0_107, %c0_108, %c0_109] : memref<18x18x8xf32, #tpu.memory_space<vmem>>, vector<18x18x8xf32>
      tpu.vector_store %arg9[%c0_107, %c0_108, %c0_109], %100 {strides = array<i32>} : memref<18x18x8xf32, #tpu.memory_space<vmem>>, vector<18x18x8xf32>,
      %c0_110 = arith.constant 0 : index
      %c0_111 = arith.constant 0 : index
      %c0_112 = arith.constant 0 : index
      %c0_113 = arith.constant 0 : index
      %102 = vector.load %arg2[%c0_110, %c0_111, %c0_112, %c0_113] : memref<1x16x16x8xf32, #tpu.memory_space<vmem>>, vector<1x16x16x8xf32>
      %103 = vector.shape_cast %102 : vector<1x16x16x8xf32> to vector<16x16x8xf32>
      %c0_114 = arith.constant 0 : index
      %c0_115 = arith.constant 0 : index
      %104 = vector.load %arg3[%c0_114, %c0_115] : memref<1x8xf32, #tpu.memory_space<vmem>>, vector<1x8xf32>
      %105 = vector.shape_cast %104 : vector<1x8xf32> to vector<1x1x8xf32>
      %106 = vector.broadcast %105 : vector<1x1x8xf32> to vector<16x16x8xf32>
      %107 = arith.mulf %103, %106 : vector<16x16x8xf32>
      %c0_116 = arith.constant 0 : index
      %c0_117 = arith.constant 0 : index
      %108 = vector.load %arg4[%c0_116, %c0_117] : memref<1x8xf32, #tpu.memory_space<vmem>>, vector<1x8xf32>
      %109 = vector.shape_cast %108 : vector<1x8xf32> to vector<1x1x8xf32>
      %110 = vector.broadcast %109 : vector<1x1x8xf32> to vector<16x16x8xf32>
      %111 = arith.addf %107, %110 : vector<16x16x8xf32>
      %cst_118 = arith.constant 0.000000e+00 : f32
      %112 = vector.broadcast %cst_118 : f32 to vector<16x16x8xf32>
      %113 = arith.maximumf %111, %112 : vector<16x16x8xf32>
      %c1_119 = arith.constant 1 : index
      %c1_120 = arith.constant 1 : index
      %c0_121 = arith.constant 0 : index
      %114 = vector.load %arg9[%c1_119, %c1_120, %c0_121] : memref<18x18x8xf32, #tpu.memory_space<vmem>>, vector<16x16x8xf32>
      tpu.vector_store %arg9[%c1_119, %c1_120, %c0_121], %113 {strides = array<i32>} : memref<18x18x8xf32, #tpu.memory_space<vmem>>, vector<16x16x8xf32>,
    } else {
    }
    %cst = arith.constant 0.000000e+00 : f32
    %3 = vector.broadcast %cst : f32 to vector<256x8xf32>
    %c0 = arith.constant 0 : index
    %c0_1 = arith.constant 0 : index
    %4 = vector.load %arg10[%c0, %c0_1] : memref<256x8xf32, #tpu.memory_space<vmem>>, vector<256x8xf32>
    tpu.vector_store %arg10[%c0, %c0_1], %3 {strides = array<i32>} : memref<256x8xf32, #tpu.memory_space<vmem>>, vector<256x8xf32>,
    %c0_2 = arith.constant 0 : index
    %c0_3 = arith.constant 0 : index
    %c0_4 = arith.constant 0 : index
    %5 = vector.load %arg9[%c0_2, %c0_3, %c0_4] : memref<18x18x8xf32, #tpu.memory_space<vmem>>, vector<16x16x8xf32>
    %6 = vector.shape_cast %5 : vector<16x16x8xf32> to vector<256x8xf32>
    %c0_5 = arith.constant 0 : index
    %c0_6 = arith.constant 0 : index
    %7 = vector.load %arg10[%c0_5, %c0_6] : memref<256x8xf32, #tpu.memory_space<vmem>>, vector<256x8xf32>
    %8 = arith.truncf %6 : vector<256x8xf32> to vector<256x8xbf16>
    %c0_7 = arith.constant 0 : index
    %c0_8 = arith.constant 0 : index
    %c0_9 = arith.constant 0 : index
    %9 = vector.load %arg5[%c0_7, %c0_8, %c0_9] : memref<9x8x8xbf16, #tpu.memory_space<vmem>>, vector<1x8x8xbf16>
    %10 = vector.shape_cast %9 : vector<1x8x8xbf16> to vector<8x8xbf16>
    %cst_10 = arith.constant dense<0.000000e+00> : vector<256x8xf32>
    %11 = tpu.matmul %8, %10, %cst_10 {dimension_numbers = #tpu.dot_dimension_numbers<[1], [0], [0], [1], [0, 0, 1, 1], [], []>} : vector<256x8xbf16>, vector<8x8xbf16>, vector<256x8xf32> -> vector<256x8xf32>
    %12 = arith.addf %7, %11 : vector<256x8xf32>
    %c0_11 = arith.constant 0 : index
    %c0_12 = arith.constant 0 : index
    %13 = vector.load %arg10[%c0_11, %c0_12] : memref<256x8xf32, #tpu.memory_space<vmem>>, vector<256x8xf32>
    tpu.vector_store %arg10[%c0_11, %c0_12], %12 {strides = array<i32>} : memref<256x8xf32, #tpu.memory_space<vmem>>, vector<256x8xf32>,
    %c0_13 = arith.constant 0 : index
    %c1 = arith.constant 1 : index
    %c0_14 = arith.constant 0 : index
    %14 = vector.load %arg9[%c0_13, %c1, %c0_14] : memref<18x18x8xf32, #tpu.memory_space<vmem>>, vector<16x16x8xf32>
    %15 = vector.shape_cast %14 : vector<16x16x8xf32> to vector<256x8xf32>
    %c0_15 = arith.constant 0 : index
    %c0_16 = arith.constant 0 : index
    %16 = vector.load %arg10[%c0_15, %c0_16] : memref<256x8xf32, #tpu.memory_space<vmem>>, vector<256x8xf32>
    %17 = arith.truncf %15 : vector<256x8xf32> to vector<256x8xbf16>
    %c1_17 = arith.constant 1 : index
    %c0_18 = arith.constant 0 : index
    %c0_19 = arith.constant 0 : index
    %18 = vector.load %arg5[%c1_17, %c0_18, %c0_19] : memref<9x8x8xbf16, #tpu.memory_space<vmem>>, vector<1x8x8xbf16>
    %19 = vector.shape_cast %18 : vector<1x8x8xbf16> to vector<8x8xbf16>
    %cst_20 = arith.constant dense<0.000000e+00> : vector<256x8xf32>
    %20 = tpu.matmul %17, %19, %cst_20 {dimension_numbers = #tpu.dot_dimension_numbers<[1], [0], [0], [1], [0, 0, 1, 1], [], []>} : vector<256x8xbf16>, vector<8x8xbf16>, vector<256x8xf32> -> vector<256x8xf32>
    %21 = arith.addf %16, %20 : vector<256x8xf32>
    %c0_21 = arith.constant 0 : index
    %c0_22 = arith.constant 0 : index
    %22 = vector.load %arg10[%c0_21, %c0_22] : memref<256x8xf32, #tpu.memory_space<vmem>>, vector<256x8xf32>
    tpu.vector_store %arg10[%c0_21, %c0_22], %21 {strides = array<i32>} : memref<256x8xf32, #tpu.memory_space<vmem>>, vector<256x8xf32>,
    %c0_23 = arith.constant 0 : index
    %c2 = arith.constant 2 : index
    %c0_24 = arith.constant 0 : index
    %23 = vector.load %arg9[%c0_23, %c2, %c0_24] : memref<18x18x8xf32, #tpu.memory_space<vmem>>, vector<16x16x8xf32>
    %24 = vector.shape_cast %23 : vector<16x16x8xf32> to vector<256x8xf32>
    %c0_25 = arith.constant 0 : index
    %c0_26 = arith.constant 0 : index
    %25 = vector.load %arg10[%c0_25, %c0_26] : memref<256x8xf32, #tpu.memory_space<vmem>>, vector<256x8xf32>
    %26 = arith.truncf %24 : vector<256x8xf32> to vector<256x8xbf16>
    %c2_27 = arith.constant 2 : index
    %c0_28 = arith.constant 0 : index
    %c0_29 = arith.constant 0 : index
    %27 = vector.load %arg5[%c2_27, %c0_28, %c0_29] : memref<9x8x8xbf16, #tpu.memory_space<vmem>>, vector<1x8x8xbf16>
    %28 = vector.shape_cast %27 : vector<1x8x8xbf16> to vector<8x8xbf16>
    %cst_30 = arith.constant dense<0.000000e+00> : vector<256x8xf32>
    %29 = tpu.matmul %26, %28, %cst_30 {dimension_numbers = #tpu.dot_dimension_numbers<[1], [0], [0], [1], [0, 0, 1, 1], [], []>} : vector<256x8xbf16>, vector<8x8xbf16>, vector<256x8xf32> -> vector<256x8xf32>
    %30 = arith.addf %25, %29 : vector<256x8xf32>
    %c0_31 = arith.constant 0 : index
    %c0_32 = arith.constant 0 : index
    %31 = vector.load %arg10[%c0_31, %c0_32] : memref<256x8xf32, #tpu.memory_space<vmem>>, vector<256x8xf32>
    tpu.vector_store %arg10[%c0_31, %c0_32], %30 {strides = array<i32>} : memref<256x8xf32, #tpu.memory_space<vmem>>, vector<256x8xf32>,
    %c1_33 = arith.constant 1 : index
    %c0_34 = arith.constant 0 : index
    %c0_35 = arith.constant 0 : index
    %32 = vector.load %arg9[%c1_33, %c0_34, %c0_35] : memref<18x18x8xf32, #tpu.memory_space<vmem>>, vector<16x16x8xf32>
    %33 = vector.shape_cast %32 : vector<16x16x8xf32> to vector<256x8xf32>
    %c0_36 = arith.constant 0 : index
    %c0_37 = arith.constant 0 : index
    %34 = vector.load %arg10[%c0_36, %c0_37] : memref<256x8xf32, #tpu.memory_space<vmem>>, vector<256x8xf32>
    %35 = arith.truncf %33 : vector<256x8xf32> to vector<256x8xbf16>
    %c3 = arith.constant 3 : index
    %c0_38 = arith.constant 0 : index
    %c0_39 = arith.constant 0 : index
    %36 = vector.load %arg5[%c3, %c0_38, %c0_39] : memref<9x8x8xbf16, #tpu.memory_space<vmem>>, vector<1x8x8xbf16>
    %37 = vector.shape_cast %36 : vector<1x8x8xbf16> to vector<8x8xbf16>
    %cst_40 = arith.constant dense<0.000000e+00> : vector<256x8xf32>
    %38 = tpu.matmul %35, %37, %cst_40 {dimension_numbers = #tpu.dot_dimension_numbers<[1], [0], [0], [1], [0, 0, 1, 1], [], []>} : vector<256x8xbf16>, vector<8x8xbf16>, vector<256x8xf32> -> vector<256x8xf32>
    %39 = arith.addf %34, %38 : vector<256x8xf32>
    %c0_41 = arith.constant 0 : index
    %c0_42 = arith.constant 0 : index
    %40 = vector.load %arg10[%c0_41, %c0_42] : memref<256x8xf32, #tpu.memory_space<vmem>>, vector<256x8xf32>
    tpu.vector_store %arg10[%c0_41, %c0_42], %39 {strides = array<i32>} : memref<256x8xf32, #tpu.memory_space<vmem>>, vector<256x8xf32>,
    %c1_43 = arith.constant 1 : index
    %c1_44 = arith.constant 1 : index
    %c0_45 = arith.constant 0 : index
    %41 = vector.load %arg9[%c1_43, %c1_44, %c0_45] : memref<18x18x8xf32, #tpu.memory_space<vmem>>, vector<16x16x8xf32>
    %42 = vector.shape_cast %41 : vector<16x16x8xf32> to vector<256x8xf32>
    %c0_46 = arith.constant 0 : index
    %c0_47 = arith.constant 0 : index
    %43 = vector.load %arg10[%c0_46, %c0_47] : memref<256x8xf32, #tpu.memory_space<vmem>>, vector<256x8xf32>
    %44 = arith.truncf %42 : vector<256x8xf32> to vector<256x8xbf16>
    %c4 = arith.constant 4 : index
    %c0_48 = arith.constant 0 : index
    %c0_49 = arith.constant 0 : index
    %45 = vector.load %arg5[%c4, %c0_48, %c0_49] : memref<9x8x8xbf16, #tpu.memory_space<vmem>>, vector<1x8x8xbf16>
    %46 = vector.shape_cast %45 : vector<1x8x8xbf16> to vector<8x8xbf16>
    %cst_50 = arith.constant dense<0.000000e+00> : vector<256x8xf32>
    %47 = tpu.matmul %44, %46, %cst_50 {dimension_numbers = #tpu.dot_dimension_numbers<[1], [0], [0], [1], [0, 0, 1, 1], [], []>} : vector<256x8xbf16>, vector<8x8xbf16>, vector<256x8xf32> -> vector<256x8xf32>
    %48 = arith.addf %43, %47 : vector<256x8xf32>
    %c0_51 = arith.constant 0 : index
    %c0_52 = arith.constant 0 : index
    %49 = vector.load %arg10[%c0_51, %c0_52] : memref<256x8xf32, #tpu.memory_space<vmem>>, vector<256x8xf32>
    tpu.vector_store %arg10[%c0_51, %c0_52], %48 {strides = array<i32>} : memref<256x8xf32, #tpu.memory_space<vmem>>, vector<256x8xf32>,
    %c1_53 = arith.constant 1 : index
    %c2_54 = arith.constant 2 : index
    %c0_55 = arith.constant 0 : index
    %50 = vector.load %arg9[%c1_53, %c2_54, %c0_55] : memref<18x18x8xf32, #tpu.memory_space<vmem>>, vector<16x16x8xf32>
    %51 = vector.shape_cast %50 : vector<16x16x8xf32> to vector<256x8xf32>
    %c0_56 = arith.constant 0 : index
    %c0_57 = arith.constant 0 : index
    %52 = vector.load %arg10[%c0_56, %c0_57] : memref<256x8xf32, #tpu.memory_space<vmem>>, vector<256x8xf32>
    %53 = arith.truncf %51 : vector<256x8xf32> to vector<256x8xbf16>
    %c5 = arith.constant 5 : index
    %c0_58 = arith.constant 0 : index
    %c0_59 = arith.constant 0 : index
    %54 = vector.load %arg5[%c5, %c0_58, %c0_59] : memref<9x8x8xbf16, #tpu.memory_space<vmem>>, vector<1x8x8xbf16>
    %55 = vector.shape_cast %54 : vector<1x8x8xbf16> to vector<8x8xbf16>
    %cst_60 = arith.constant dense<0.000000e+00> : vector<256x8xf32>
    %56 = tpu.matmul %53, %55, %cst_60 {dimension_numbers = #tpu.dot_dimension_numbers<[1], [0], [0], [1], [0, 0, 1, 1], [], []>} : vector<256x8xbf16>, vector<8x8xbf16>, vector<256x8xf32> -> vector<256x8xf32>
    %57 = arith.addf %52, %56 : vector<256x8xf32>
    %c0_61 = arith.constant 0 : index
    %c0_62 = arith.constant 0 : index
    %58 = vector.load %arg10[%c0_61, %c0_62] : memref<256x8xf32, #tpu.memory_space<vmem>>, vector<256x8xf32>
    tpu.vector_store %arg10[%c0_61, %c0_62], %57 {strides = array<i32>} : memref<256x8xf32, #tpu.memory_space<vmem>>, vector<256x8xf32>,
    %c2_63 = arith.constant 2 : index
    %c0_64 = arith.constant 0 : index
    %c0_65 = arith.constant 0 : index
    %59 = vector.load %arg9[%c2_63, %c0_64, %c0_65] : memref<18x18x8xf32, #tpu.memory_space<vmem>>, vector<16x16x8xf32>
    %60 = vector.shape_cast %59 : vector<16x16x8xf32> to vector<256x8xf32>
    %c0_66 = arith.constant 0 : index
    %c0_67 = arith.constant 0 : index
    %61 = vector.load %arg10[%c0_66, %c0_67] : memref<256x8xf32, #tpu.memory_space<vmem>>, vector<256x8xf32>
    %62 = arith.truncf %60 : vector<256x8xf32> to vector<256x8xbf16>
    %c6 = arith.constant 6 : index
    %c0_68 = arith.constant 0 : index
    %c0_69 = arith.constant 0 : index
    %63 = vector.load %arg5[%c6, %c0_68, %c0_69] : memref<9x8x8xbf16, #tpu.memory_space<vmem>>, vector<1x8x8xbf16>
    %64 = vector.shape_cast %63 : vector<1x8x8xbf16> to vector<8x8xbf16>
    %cst_70 = arith.constant dense<0.000000e+00> : vector<256x8xf32>
    %65 = tpu.matmul %62, %64, %cst_70 {dimension_numbers = #tpu.dot_dimension_numbers<[1], [0], [0], [1], [0, 0, 1, 1], [], []>} : vector<256x8xbf16>, vector<8x8xbf16>, vector<256x8xf32> -> vector<256x8xf32>
    %66 = arith.addf %61, %65 : vector<256x8xf32>
    %c0_71 = arith.constant 0 : index
    %c0_72 = arith.constant 0 : index
    %67 = vector.load %arg10[%c0_71, %c0_72] : memref<256x8xf32, #tpu.memory_space<vmem>>, vector<256x8xf32>
    tpu.vector_store %arg10[%c0_71, %c0_72], %66 {strides = array<i32>} : memref<256x8xf32, #tpu.memory_space<vmem>>, vector<256x8xf32>,
    %c2_73 = arith.constant 2 : index
    %c1_74 = arith.constant 1 : index
    %c0_75 = arith.constant 0 : index
    %68 = vector.load %arg9[%c2_73, %c1_74, %c0_75] : memref<18x18x8xf32, #tpu.memory_space<vmem>>, vector<16x16x8xf32>
    %69 = vector.shape_cast %68 : vector<16x16x8xf32> to vector<256x8xf32>
    %c0_76 = arith.constant 0 : index
    %c0_77 = arith.constant 0 : index
    %70 = vector.load %arg10[%c0_76, %c0_77] : memref<256x8xf32, #tpu.memory_space<vmem>>, vector<256x8xf32>
    %71 = arith.truncf %69 : vector<256x8xf32> to vector<256x8xbf16>
    %c7 = arith.constant 7 : index
    %c0_78 = arith.constant 0 : index
    %c0_79 = arith.constant 0 : index
    %72 = vector.load %arg5[%c7, %c0_78, %c0_79] : memref<9x8x8xbf16, #tpu.memory_space<vmem>>, vector<1x8x8xbf16>
    %73 = vector.shape_cast %72 : vector<1x8x8xbf16> to vector<8x8xbf16>
    %cst_80 = arith.constant dense<0.000000e+00> : vector<256x8xf32>
    %74 = tpu.matmul %71, %73, %cst_80 {dimension_numbers = #tpu.dot_dimension_numbers<[1], [0], [0], [1], [0, 0, 1, 1], [], []>} : vector<256x8xbf16>, vector<8x8xbf16>, vector<256x8xf32> -> vector<256x8xf32>
    %75 = arith.addf %70, %74 : vector<256x8xf32>
    %c0_81 = arith.constant 0 : index
    %c0_82 = arith.constant 0 : index
    %76 = vector.load %arg10[%c0_81, %c0_82] : memref<256x8xf32, #tpu.memory_space<vmem>>, vector<256x8xf32>
    tpu.vector_store %arg10[%c0_81, %c0_82], %75 {strides = array<i32>} : memref<256x8xf32, #tpu.memory_space<vmem>>, vector<256x8xf32>,
    %c2_83 = arith.constant 2 : index
    %c2_84 = arith.constant 2 : index
    %c0_85 = arith.constant 0 : index
    %77 = vector.load %arg9[%c2_83, %c2_84, %c0_85] : memref<18x18x8xf32, #tpu.memory_space<vmem>>, vector<16x16x8xf32>
    %78 = vector.shape_cast %77 : vector<16x16x8xf32> to vector<256x8xf32>
    %c0_86 = arith.constant 0 : index
    %c0_87 = arith.constant 0 : index
    %79 = vector.load %arg10[%c0_86, %c0_87] : memref<256x8xf32, #tpu.memory_space<vmem>>, vector<256x8xf32>
    %80 = arith.truncf %78 : vector<256x8xf32> to vector<256x8xbf16>
    %c8 = arith.constant 8 : index
    %c0_88 = arith.constant 0 : index
    %c0_89 = arith.constant 0 : index
    %81 = vector.load %arg5[%c8, %c0_88, %c0_89] : memref<9x8x8xbf16, #tpu.memory_space<vmem>>, vector<1x8x8xbf16>
    %82 = vector.shape_cast %81 : vector<1x8x8xbf16> to vector<8x8xbf16>
    %cst_90 = arith.constant dense<0.000000e+00> : vector<256x8xf32>
    %83 = tpu.matmul %80, %82, %cst_90 {dimension_numbers = #tpu.dot_dimension_numbers<[1], [0], [0], [1], [0, 0, 1, 1], [], []>} : vector<256x8xbf16>, vector<8x8xbf16>, vector<256x8xf32> -> vector<256x8xf32>
    %84 = arith.addf %79, %83 : vector<256x8xf32>
    %c0_91 = arith.constant 0 : index
    %c0_92 = arith.constant 0 : index
    %85 = vector.load %arg10[%c0_91, %c0_92] : memref<256x8xf32, #tpu.memory_space<vmem>>, vector<256x8xf32>
    tpu.vector_store %arg10[%c0_91, %c0_92], %84 {strides = array<i32>} : memref<256x8xf32, #tpu.memory_space<vmem>>, vector<256x8xf32>,
    %c0_93 = arith.constant 0 : index
    %c0_94 = arith.constant 0 : index
    %86 = vector.load %arg10[%c0_93, %c0_94] : memref<256x8xf32, #tpu.memory_space<vmem>>, vector<256x8xf32>
    %c0_95 = arith.constant 0 : index
    %c0_96 = arith.constant 0 : index
    %87 = vector.load %arg6[%c0_95, %c0_96] : memref<1x8xf32, #tpu.memory_space<vmem>>, vector<1x8xf32>
    %88 = vector.broadcast %87 : vector<1x8xf32> to vector<256x8xf32>
    %89 = arith.addf %86, %88 : vector<256x8xf32>
    %90 = vector.shape_cast %89 : vector<256x8xf32> to vector<1x16x16x8xf32>
    %c0_97 = arith.constant 0 : index
    %c0_98 = arith.constant 0 : index
    %c0_99 = arith.constant 0 : index
    %c0_100 = arith.constant 0 : index
    %91 = vector.load %arg7[%c0_97, %c0_98, %c0_99, %c0_100] : memref<1x16x16x8xf32, #tpu.memory_space<vmem>>, vector<1x16x16x8xf32>
    tpu.vector_store %arg7[%c0_97, %c0_98, %c0_99, %c0_100], %90 {strides = array<i32>} : memref<1x16x16x8xf32, #tpu.memory_space<vmem>>, vector<1x16x16x8xf32>,
    %cst_101 = arith.constant dense<0.000000e+00> : vector<8xf32>
    %92 = vector.multi_reduction <add>, %89, %cst_101 [0] : vector<256x8xf32> to vector<8xf32>
    %93 = vector.shape_cast %92 : vector<8xf32> to vector<1x8xf32>
    %94 = arith.mulf %89, %89 : vector<256x8xf32>
    %cst_102 = arith.constant dense<0.000000e+00> : vector<8xf32>
    %95 = vector.multi_reduction <add>, %94, %cst_102 [0] : vector<256x8xf32> to vector<8xf32>
    %96 = vector.shape_cast %95 : vector<8xf32> to vector<1x8xf32>
    %97 = tpu.concatenate %93, %96 in 0 : vector<1x8xf32>, vector<1x8xf32> -> vector<2x8xf32>
    %98 = vector.shape_cast %97 : vector<2x8xf32> to vector<1x2x8xf32>
    %c0_103 = arith.constant 0 : index
    %c0_104 = arith.constant 0 : index
    %c0_105 = arith.constant 0 : index
    %99 = vector.load %arg8[%c0_103, %c0_104, %c0_105] : memref<1x2x8xf32, #tpu.memory_space<vmem>>, vector<1x2x8xf32>
    tpu.vector_store %arg8[%c0_103, %c0_104, %c0_105], %98 {strides = array<i32>} : memref<1x2x8xf32, #tpu.memory_space<vmem>>, vector<1x2x8xf32>,
    return
  }
  func.func @transform_0(%arg0: i32, %arg1: i32) -> (i32, i32, i32, i32) {
    %c0_i32 = arith.constant 0 : i32
    %c0_i32_0 = arith.constant 0 : i32
    %c0_i32_1 = arith.constant 0 : i32
    %c0_i32_2 = arith.constant 0 : i32
    return %arg0, %c0_i32, %c0_i32_0, %c0_i32_1 : i32, i32, i32, i32
  }
  func.func @transform_1(%arg0: i32, %arg1: i32) -> (i32, i32) {
    %c0_i32 = arith.constant 0 : i32
    %c0_i32_0 = arith.constant 0 : i32
    %c0_i32_1 = arith.constant 0 : i32
    return %c0_i32, %c0_i32_0 : i32, i32
  }
  func.func @transform_2(%arg0: i32, %arg1: i32) -> (i32, i32) {
    %c0_i32 = arith.constant 0 : i32
    %c0_i32_0 = arith.constant 0 : i32
    %c0_i32_1 = arith.constant 0 : i32
    return %c0_i32, %c0_i32_0 : i32, i32
  }
  func.func @transform_3(%arg0: i32, %arg1: i32) -> (i32, i32, i32) {
    %c0_i32 = arith.constant 0 : i32
    %c0_i32_0 = arith.constant 0 : i32
    %c0_i32_1 = arith.constant 0 : i32
    return %c0_i32, %c0_i32_0, %arg1 : i32, i32, i32
  }
  func.func @transform_4(%arg0: i32, %arg1: i32) -> (i32, i32) {
    %c0_i32 = arith.constant 0 : i32
    %c0_i32_0 = arith.constant 0 : i32
    return %c0_i32, %arg1 : i32, i32
  }
  func.func @transform_5(%arg0: i32, %arg1: i32) -> (i32, i32, i32, i32) {
    %c0_i32 = arith.constant 0 : i32
    %c0_i32_0 = arith.constant 0 : i32
    %c0_i32_1 = arith.constant 0 : i32
    return %arg0, %c0_i32, %c0_i32_0, %arg1 : i32, i32, i32, i32
  }
  func.func @transform_6(%arg0: i32, %arg1: i32) -> (i32, i32, i32) {
    %c0_i32 = arith.constant 0 : i32
    %c0_i32_0 = arith.constant 0 : i32
    return %arg0, %c0_i32, %arg1 : i32, i32, i32
  }
}

</mosaic_0001>

<llo_original>
// kernel: bridgeconv_forward.5
$region0: #{bridgeconv_forward.5}
  #allocation0 [shape = 'u32[]', space=smem, size = 0x4, offset = 0x4, fixed_abs, tag = 'smem constant byte address 0x4 - core index']
  #allocation1 [shape = 'u32[144,128]{1,0:T(1,128)}', space=vmem, size = 0x12000, scoped, tag = 'internal scratch']
  %s0 = inlined_call_operand.vmem [shape: f32[2,16,16,8], index: 0, kind: input, shape index: {}]
  %s1 = inlined_call_operand.vmem [shape: f32[1,8], index: 1, kind: input, shape index: {}]
  %s2 = inlined_call_operand.vmem [shape: f32[1,8], index: 2, kind: input, shape index: {}]
  %s3 = inlined_call_operand.vmem [shape: f32[2,16,16,8], index: 3, kind: output, shape index: {}]
  %s4 = sld [smem:[#allocation0]]
  $region45: #{bridgeconv_forward.5} parent=0
    _
  %s6 = ssub.s32 1, %s4
  %s7 = scalar_select 0, %s6, %s4
  loop: start=0, step=1, limit=4
  $region2: #{bridgeconv_forward.5} parent=0 // loop_pre_header
    _
  $region3: #{bridgeconv_forward.5} parent=0 // loop_header
    %s9 = sphi 0, %s13
    %p10 = scmp.ge.s32.totalorder %s9, 4
    %s16 = sphi 0, %s28
    %s17 = sphi 0, %s24
    %s18 = sphi 0, %s16
    %s19 = sphi 0, %s17
    %s20 = sphi 0, %s18
    %s21 = sphi 0, %s19
    %s33 = sphi 0, %s35
    %s36 = sphi 0, %s33
    %s37 = sphi 0, %s36
    %s53 = sphi 0, %s37
    %s59 = sphi 0, %s61
    %s62 = sphi 0, %s59
    %s63 = sphi 0, %s62
    %s79 = sphi 0, %s63
    %s85 = sphi 0, %s87
    %s88 = sphi 0, %s85
    %s89 = sphi 0, %s88
    %s105 = sphi 0, %s89
    %s113 = sphi 0, %s115
    %s116 = sphi 0, %s113
    %s117 = sphi 0, %s116
    %s133 = sphi 0, %s117
  $region4: #{bridgeconv_forward.5} parent=0 // loop_header_branch
    %12 = sbr.rel (%p10) target = $region8
  $region5: #{bridgeconv_forward.5} parent=0 // loop_body
    %s14 = ssub.s32 %s9, 1
    %s15 = ssub.s32 %s9, 2
    %s22 = sadd.s32 1, %s17
    %p23 = scmp.ge.s32.totalorder %s22, 1
    %s24 = scalar_select %p23, 0, %s22
    %s25 = sadd.s32 1, %s16
    %s26 = scalar_select %p23, %s25, %s16
    %p27 = scmp.ge.s32.totalorder %s26, 2
    %s28 = scalar_select %p27, 0, %s26
    %s29 = ssub.s32 %s16, %s28
    %s30 = ssub.s32 %s17, %s24
    %s31 = sor.u32 %s29, %s30
    %p32 = scmp.eq.s32.totalorder %s31, 0
    %s34 = sadd.s32 %s33, 1
    %s35 = scalar_select %p32, %s33, %s34
    %p38 = pneg %p32
    %p39 = scmp.eq.s32.totalorder %s9, 1
    %p40 = por %p38, %p39
    %p41 = scmp.ne.s32.totalorder %s33, %s36
    %p42 = scmp.eq.s32.totalorder %s9, 0
    %p43 = por %p41, %p42
    %p44 = scmp.ne.s32.totalorder %s33, %s36
    %p45 = scmp.eq.s32.totalorder %s14, 1
    %p46 = por %p44, %p45
    %p47 = scmp.ne.s32.totalorder %s36, %s37
    %p48 = scmp.eq.s32.totalorder %s14, 0
    %p49 = por %p47, %p48
    %p50 = scmp.ne.s32.totalorder %s36, %s37
    %p51 = scmp.eq.s32.totalorder %s15, 1
    %p52 = por %p50, %p51
    %p54 = scmp.ne.s32.totalorder %s37, %s53
    %p55 = scmp.eq.s32.totalorder %s15, 0
    %p56 = por %p54, %p55
    %s57 = ssub.s32 %s17, %s24
    %p58 = scmp.eq.s32.totalorder %s57, 0
    %s60 = sadd.s32 %s59, 1
    %s61 = scalar_select %p58, %s59, %s60
    %p64 = pneg %p58
    %p65 = scmp.eq.s32.totalorder %s9, 1
    %p66 = por %p64, %p65
    %p67 = scmp.ne.s32.totalorder %s59, %s62
    %p68 = scmp.eq.s32.totalorder %s9, 0
    %p69 = por %p67, %p68
    %p70 = scmp.ne.s32.totalorder %s59, %s62
    %p71 = scmp.eq.s32.totalorder %s14, 1
    %p72 = por %p70, %p71
    %p73 = scmp.ne.s32.totalorder %s62, %s63
    %p74 = scmp.eq.s32.totalorder %s14, 0
    %p75 = por %p73, %p74
    %p76 = scmp.ne.s32.totalorder %s62, %s63
    %p77 = scmp.eq.s32.totalorder %s15, 1
    %p78 = por %p76, %p77
    %p80 = scmp.ne.s32.totalorder %s63, %s79
    %p81 = scmp.eq.s32.totalorder %s15, 0
    %p82 = por %p80, %p81
    %s83 = ssub.s32 %s17, %s24
    %p84 = scmp.eq.s32.totalorder %s83, 0
    %s86 = sadd.s32 %s85, 1
    %s87 = scalar_select %p84, %s85, %s86
    %p90 = pneg %p84
    %p91 = scmp.eq.s32.totalorder %s9, 1
    %p92 = por %p90, %p91
    %p93 = scmp.ne.s32.totalorder %s85, %s88
    %p94 = scmp.eq.s32.totalorder %s9, 0
    %p95 = por %p93, %p94
    %p96 = scmp.ne.s32.totalorder %s85, %s88
    %p97 = scmp.eq.s32.totalorder %s14, 1
    %p98 = por %p96, %p97
    %p99 = scmp.ne.s32.totalorder %s88, %s89
    %p100 = scmp.eq.s32.totalorder %s14, 0
    %p101 = por %p99, %p100
    %p102 = scmp.ne.s32.totalorder %s88, %s89
    %p103 = scmp.eq.s32.totalorder %s15, 1
    %p104 = por %p102, %p103
    %p106 = scmp.ne.s32.totalorder %s89, %s105
    %p107 = scmp.eq.s32.totalorder %s15, 0
    %p108 = por %p106, %p107
    %s109 = ssub.s32 %s16, %s28
    %s110 = ssub.s32 %s17, %s24
    %s111 = sor.u32 %s109, %s110
    %p112 = scmp.eq.s32.totalorder %s111, 0
    %s114 = sadd.s32 %s113, 1
    %s115 = scalar_select %p112, %s113, %s114
    %p118 = pneg %p112
    %p119 = scmp.eq.s32.totalorder %s9, 1
    %p120 = por %p118, %p119
    %p121 = scmp.ne.s32.totalorder %s113, %s116
    %p122 = scmp.eq.s32.totalorder %s9, 0
    %p123 = por %p121, %p122
    %p124 = scmp.ne.s32.totalorder %s113, %s116
    %p125 = scmp.eq.s32.totalorder %s14, 1
    %p126 = por %p124, %p125
    %p127 = scmp.ne.s32.totalorder %s116, %s117
    %p128 = scmp.eq.s32.totalorder %s14, 0
    %p129 = por %p127, %p128
    %p130 = scmp.ne.s32.totalorder %s116, %s117
    %p131 = scmp.eq.s32.totalorder %s15, 1
    %p132 = por %p130, %p131
    %p134 = scmp.ne.s32.totalorder %s117, %s133
    %p135 = scmp.eq.s32.totalorder %s15, 0
    %p136 = por %p134, %p135
    %p137 = scmp.le.s32.totalorder 1, %s9
    %p138 = scmp.lt.s32.totalorder %s9, 3
    %p139 = pnand %p137, %p138
    %p140 = pneg %p139
    // Predicated region
    $region9: #{bridgeconv_forward.5} parent=5 // pred_check
      _
    $region10: #{bridgeconv_forward.5} parent=5 // pred_check_branch
      %142 = sbr.rel (%p139) target = $region12
    $region11: #{bridgeconv_forward.5} parent=5 // pred_region
      %s143 = ssub.s32 %s9, 1
      // Predicated region
      $region13: #{bridgeconv_forward.5} parent=11 // pred_check
        %p144 = pneg %p75
      $region14: #{bridgeconv_forward.5} parent=11 // pred_check_branch
        %146 = sbr.rel (%p144) target = $region16
      $region15: #{bridgeconv_forward.5} parent=11 // pred_region
        %p147 = scmp.lt.s32.totalorder %s19, 0
        %s148 = scalar_select %p147, %s19, 0
        %s149 = scalar_lea.vmem %s1, %s148
      $region16: #{bridgeconv_forward.5} parent=11 // pred_fallthru
        _
      // Predicated region
      $region17: #{bridgeconv_forward.5} parent=11 // pred_check
        %p150 = pneg %p101
      $region18: #{bridgeconv_forward.5} parent=11 // pred_check_branch
        %152 = sbr.rel (%p150) target = $region20
      $region19: #{bridgeconv_forward.5} parent=11 // pred_region
        %p153 = scmp.lt.s32.totalorder %s19, 0
        %s154 = scalar_select %p153, %s19, 0
        %s155 = scalar_lea.vmem %s2, %s154
      $region20: #{bridgeconv_forward.5} parent=11 // pred_fallthru
        _
    $region12: #{bridgeconv_forward.5} parent=5 // pred_fallthru
      _
    %p156 = scmp.lt.s32.totalorder %s9, 2
    // Predicated region
    $region21: #{bridgeconv_forward.5} parent=5 // pred_check
      %p157 = pneg %p156
    $region22: #{bridgeconv_forward.5} parent=5 // pred_check_branch
      %159 = sbr.rel (%p157) target = $region24
    $region23: #{bridgeconv_forward.5} parent=5 // pred_region
      // Predicated region
      $region25: #{bridgeconv_forward.5} parent=23 // pred_check
        %p160 = pneg %p43
      $region26: #{bridgeconv_forward.5} parent=23 // pred_check_branch
        %162 = sbr.rel (%p160) target = $region28
      $region27: #{bridgeconv_forward.5} parent=23 // pred_region
        %p163 = scmp.lt.s32.totalorder %s16, 1
        %s164 = scalar_select %p163, %s16, 1
        %p165 = scmp.lt.s32.totalorder %s17, 0
        %s166 = scalar_select %p165, %s17, 0
        %s167 = smul.addr %s164, 32
        %s168 = sadd.s32 %s166, %s167
        %s169 = smul.addr %s168, 8
        %s170 = scalar_lea.vmem %s0, %s169
      $region28: #{bridgeconv_forward.5} parent=23 // pred_fallthru
        _
    $region24: #{bridgeconv_forward.5} parent=5 // pred_fallthru
      _
    %p171 = scmp.le.s32.totalorder 1, %s9
    %p172 = scmp.lt.s32.totalorder %s9, 3
    %p173 = pnand %p171, %p172
    %p174 = pneg %p173
    // Predicated region
    $region29: #{bridgeconv_forward.5} parent=5 // pred_check
      _
    $region30: #{bridgeconv_forward.5} parent=5 // pred_check_branch
      %176 = sbr.rel (%p173) target = $region32
    $region31: #{bridgeconv_forward.5} parent=5 // pred_region
      %s177 = ssub.s32 %s9, 1
      %p178 = scmp.lt.s32.totalorder %s18, 1
      %s179 = scalar_select %p178, %s18, 1
      %p180 = scmp.lt.s32.totalorder %s19, 0
      %s181 = scalar_select %p180, %s19, 0
      %s182 = smul.addr %s179, 32
      %s183 = sadd.s32 %s181, %s182
      %s184 = smul.addr %s183, 8
      %s185 = scalar_lea.vmem %s0, %s184
      %p186 = pneg %p49
      %p187 = pneg %p46
      %p188 = scmp.lt.s32.totalorder %s19, 0
      %s189 = scalar_select %p188, %s19, 0
      %s190 = scalar_lea.vmem %s1, %s189
      %p191 = pneg %p75
      %p192 = pneg %p72
      %p193 = scmp.lt.s32.totalorder %s19, 0
      %s194 = scalar_select %p193, %s19, 0
      %s195 = scalar_lea.vmem %s2, %s194
      %p196 = pneg %p101
      %p197 = pneg %p98
      %p198 = pneg %p129
      %p199 = pneg %p126
      %p200 = scmp.lt.s32.totalorder %s18, 1
      %s201 = scalar_select %p200, %s18, 1
      %p202 = scmp.lt.s32.totalorder %s19, 0
      %s203 = scalar_select %p202, %s19, 0
      %s204 = smul.addr %s201, 32
      %s205 = sadd.s32 %s203, %s204
      %s206 = smul.addr %s205, 8
      %s207 = scalar_lea.vmem %s3, %s206
      %p208 = scmp.lt.s32.totalorder %s18, 1
      %s209 = scalar_select %p208, %s18, 1
      %p210 = scmp.lt.s32.totalorder %s19, 0
      %s211 = scalar_select %p210, %s19, 0
      %s212 = smul.addr %s209, 32
      %s213 = sadd.s32 %s211, %s212
      %s214 = smul.addr %s213, 8
      %s215 = scalar_lea.vmem %s0, %s214
      %p216 = scmp.lt.s32.totalorder %s19, 0
      %s217 = scalar_select %p216, %s19, 0
      %s218 = scalar_lea.vmem %s1, %s217
      %p219 = scmp.lt.s32.totalorder %s19, 0
      %s220 = scalar_select %p219, %s19, 0
      %s221 = scalar_lea.vmem %s2, %s220
      %p222 = scmp.lt.s32.totalorder %s18, 1
      %s223 = scalar_select %p222, %s18, 1
      %p224 = scmp.lt.s32.totalorder %s19, 0
      %s225 = scalar_select %p224, %s19, 0
      %s226 = smul.addr %s223, 32
      %s227 = sadd.s32 %s225, %s226
      %s228 = smul.addr %s227, 8
      %s229 = scalar_lea.vmem %s3, %s228
      %v230 = vld [vmem:[%s215] sm:$0xff]
      %v231 = vld [vmem:[%s215 + $0x8] sm:$0xff]
      %v232 = vld [vmem:[%s215 + $0x10] sm:$0xff]
      %v233 = vld [vmem:[%s215 + $0x18] sm:$0xff]
      %v234 = vld [vmem:[%s215 + $0x20] sm:$0xff]
      %v235 = vld [vmem:[%s215 + $0x28] sm:$0xff]
      %v236 = vld [vmem:[%s215 + $0x30] sm:$0xff]
      %v237 = vld [vmem:[%s215 + $0x38] sm:$0xff]
      %v238 = vld [vmem:[%s215 + $0x40] sm:$0xff]
      %v239 = vld [vmem:[%s215 + $0x48] sm:$0xff]
      %v240 = vld [vmem:[%s215 + $0x50] sm:$0xff]
      %v241 = vld [vmem:[%s215 + $0x58] sm:$0xff]
      %v242 = vld [vmem:[%s215 + $0x60] sm:$0xff]
      %v243 = vld [vmem:[%s215 + $0x68] sm:$0xff]
      %v244 = vld [vmem:[%s215 + $0x70] sm:$0xff]
      %v245 = vld [vmem:[%s215 + $0x78] sm:$0xff]
      %v246 = vld [vmem:[%s215 + $0x80] sm:$0xff]
      %v247 = vld [vmem:[%s215 + $0x88] sm:$0xff]
      %v248 = vld [vmem:[%s215 + $0x90] sm:$0xff]
      %v249 = vld [vmem:[%s215 + $0x98] sm:$0xff]
      %v250 = vld [vmem:[%s215 + $0xa0] sm:$0xff]
      %v251 = vld [vmem:[%s215 + $0xa8] sm:$0xff]
      %v252 = vld [vmem:[%s215 + $0xb0] sm:$0xff]
      %v253 = vld [vmem:[%s215 + $0xb8] sm:$0xff]
      %v254 = vld [vmem:[%s215 + $0xc0] sm:$0xff]
      %v255 = vld [vmem:[%s215 + $0xc8] sm:$0xff]
      %v256 = vld [vmem:[%s215 + $0xd0] sm:$0xff]
      %v257 = vld [vmem:[%s215 + $0xd8] sm:$0xff]
      %v258 = vld [vmem:[%s215 + $0xe0] sm:$0xff]
      %v259 = vld [vmem:[%s215 + $0xe8] sm:$0xff]
      %v260 = vld [vmem:[%s215 + $0xf0] sm:$0xff]
      %v261 = vld [vmem:[%s215 + $0xf8] sm:$0xff]
      %v262 = vld [vmem:[%s218] sm:$0x1]
      %v264 = vlaneseq
      %v265 = vshrl.u32 %v264, 7
      %v266 = vsub.s32 0, %v265
      %v267 = vrot.slane %v262, %v266
      %v269 = vmul.f32 %v230, %v267
      %v270 = vmul.f32 %v231, %v267
      %v271 = vmul.f32 %v232, %v267
      %v272 = vmul.f32 %v233, %v267
      %v273 = vmul.f32 %v234, %v267
      %v274 = vmul.f32 %v235, %v267
      %v275 = vmul.f32 %v236, %v267
      %v276 = vmul.f32 %v237, %v267
      %v277 = vmul.f32 %v238, %v267
      %v278 = vmul.f32 %v239, %v267
      %v279 = vmul.f32 %v240, %v267
      %v280 = vmul.f32 %v241, %v267
      %v281 = vmul.f32 %v242, %v267
      %v282 = vmul.f32 %v243, %v267
      %v283 = vmul.f32 %v244, %v267
      %v284 = vmul.f32 %v245, %v267
      %v285 = vmul.f32 %v246, %v267
      %v286 = vmul.f32 %v247, %v267
      %v287 = vmul.f32 %v248, %v267
      %v288 = vmul.f32 %v249, %v267
      %v289 = vmul.f32 %v250, %v267
      %v290 = vmul.f32 %v251, %v267
      %v291 = vmul.f32 %v252, %v267
      %v292 = vmul.f32 %v253, %v267
      %v293 = vmul.f32 %v254, %v267
      %v294 = vmul.f32 %v255, %v267
      %v295 = vmul.f32 %v256, %v267
      %v296 = vmul.f32 %v257, %v267
      %v297 = vmul.f32 %v258, %v267
      %v298 = vmul.f32 %v259, %v267
      %v299 = vmul.f32 %v260, %v267
      %v300 = vmul.f32 %v261, %v267
      %v301 = vld [vmem:[%s221] sm:$0x1]
      %v303 = vlaneseq
      %v304 = vshrl.u32 %v303, 7
      %v305 = vsub.s32 0, %v304
      %v306 = vrot.slane %v301, %v305
      %v308 = vadd.f32 %v269, %v306
      %v309 = vadd.f32 %v270, %v306
      %v310 = vadd.f32 %v271, %v306
      %v311 = vadd.f32 %v272, %v306
      %v312 = vadd.f32 %v273, %v306
      %v313 = vadd.f32 %v274, %v306
      %v314 = vadd.f32 %v275, %v306
      %v315 = vadd.f32 %v276, %v306
      %v316 = vadd.f32 %v277, %v306
      %v317 = vadd.f32 %v278, %v306
      %v318 = vadd.f32 %v279, %v306
      %v319 = vadd.f32 %v280, %v306
      %v320 = vadd.f32 %v281, %v306
      %v321 = vadd.f32 %v282, %v306
      %v322 = vadd.f32 %v283, %v306
      %v323 = vadd.f32 %v284, %v306
      %v324 = vadd.f32 %v285, %v306
      %v325 = vadd.f32 %v286, %v306
      %v326 = vadd.f32 %v287, %v306
      %v327 = vadd.f32 %v288, %v306
      %v328 = vadd.f32 %v289, %v306
      %v329 = vadd.f32 %v290, %v306
      %v330 = vadd.f32 %v291, %v306
      %v331 = vadd.f32 %v292, %v306
      %v332 = vadd.f32 %v293, %v306
      %v333 = vadd.f32 %v294, %v306
      %v334 = vadd.f32 %v295, %v306
      %v335 = vadd.f32 %v296, %v306
      %v336 = vadd.f32 %v297, %v306
      %v337 = vadd.f32 %v298, %v306
      %v338 = vadd.f32 %v299, %v306
      %v339 = vadd.f32 %v300, %v306
      %v340 = vmax.f32 %v308, 0.0
      %v341 = vmax.f32 %v309, 0.0
      %v342 = vmax.f32 %v310, 0.0
      %v343 = vmax.f32 %v311, 0.0
      %v344 = vmax.f32 %v312, 0.0
      %v345 = vmax.f32 %v313, 0.0
      %v346 = vmax.f32 %v314, 0.0
      %v347 = vmax.f32 %v315, 0.0
      %v348 = vmax.f32 %v316, 0.0
      %v349 = vmax.f32 %v317, 0.0
      %v350 = vmax.f32 %v318, 0.0
      %v351 = vmax.f32 %v319, 0.0
      %v352 = vmax.f32 %v320, 0.0
      %v353 = vmax.f32 %v321, 0.0
      %v354 = vmax.f32 %v322, 0.0
      %v355 = vmax.f32 %v323, 0.0
      %v356 = vmax.f32 %v324, 0.0
      %v357 = vmax.f32 %v325, 0.0
      %v358 = vmax.f32 %v326, 0.0
      %v359 = vmax.f32 %v327, 0.0
      %v360 = vmax.f32 %v328, 0.0
      %v361 = vmax.f32 %v329, 0.0
      %v362 = vmax.f32 %v330, 0.0
      %v363 = vmax.f32 %v331, 0.0
      %v364 = vmax.f32 %v332, 0.0
      %v365 = vmax.f32 %v333, 0.0
      %v366 = vmax.f32 %v334, 0.0
      %v367 = vmax.f32 %v335, 0.0
      %v368 = vmax.f32 %v336, 0.0
      %v369 = vmax.f32 %v337, 0.0
      %v370 = vmax.f32 %v338, 0.0
      %v371 = vmax.f32 %v339, 0.0
      %vm372 = vcmask 64512
      %373 = vst.msk [vmem:[%s229] sm:$0xff] %vm372, %v340
      %374 = vst.msk [vmem:[%s229 + $0x8] sm:$0xff] %vm372, %v341
      %375 = vst.msk [vmem:[%s229 + $0x10] sm:$0xff] %vm372, %v342
      %376 = vst.msk [vmem:[%s229 + $0x18] sm:$0xff] %vm372, %v343
      %377 = vst.msk [vmem:[%s229 + $0x20] sm:$0xff] %vm372, %v344
      %378 = vst.msk [vmem:[%s229 + $0x28] sm:$0xff] %vm372, %v345
      %379 = vst.msk [vmem:[%s229 + $0x30] sm:$0xff] %vm372, %v346
      %380 = vst.msk [vmem:[%s229 + $0x38] sm:$0xff] %vm372, %v347
      %381 = vst.msk [vmem:[%s229 + $0x40] sm:$0xff] %vm372, %v348
      %382 = vst.msk [vmem:[%s229 + $0x48] sm:$0xff] %vm372, %v349
      %383 = vst.msk [vmem:[%s229 + $0x50] sm:$0xff] %vm372, %v350
      %384 = vst.msk [vmem:[%s229 + $0x58] sm:$0xff] %vm372, %v351
      %385 = vst.msk [vmem:[%s229 + $0x60] sm:$0xff] %vm372, %v352
      %386 = vst.msk [vmem:[%s229 + $0x68] sm:$0xff] %vm372, %v353
      %387 = vst.msk [vmem:[%s229 + $0x70] sm:$0xff] %vm372, %v354
      %388 = vst.msk [vmem:[%s229 + $0x78] sm:$0xff] %vm372, %v355
      %389 = vst.msk [vmem:[%s229 + $0x80] sm:$0xff] %vm372, %v356
      %390 = vst.msk [vmem:[%s229 + $0x88] sm:$0xff] %vm372, %v357
      %391 = vst.msk [vmem:[%s229 + $0x90] sm:$0xff] %vm372, %v358
      %392 = vst.msk [vmem:[%s229 + $0x98] sm:$0xff] %vm372, %v359
      %393 = vst.msk [vmem:[%s229 + $0xa0] sm:$0xff] %vm372, %v360
      %394 = vst.msk [vmem:[%s229 + $0xa8] sm:$0xff] %vm372, %v361
      %395 = vst.msk [vmem:[%s229 + $0xb0] sm:$0xff] %vm372, %v362
      %396 = vst.msk [vmem:[%s229 + $0xb8] sm:$0xff] %vm372, %v363
      %397 = vst.msk [vmem:[%s229 + $0xc0] sm:$0xff] %vm372, %v364
      %398 = vst.msk [vmem:[%s229 + $0xc8] sm:$0xff] %vm372, %v365
      %399 = vst.msk [vmem:[%s229 + $0xd0] sm:$0xff] %vm372, %v366
      %400 = vst.msk [vmem:[%s229 + $0xd8] sm:$0xff] %vm372, %v367
      %401 = vst.msk [vmem:[%s229 + $0xe0] sm:$0xff] %vm372, %v368
      %402 = vst.msk [vmem:[%s229 + $0xe8] sm:$0xff] %vm372, %v369
      %403 = vst.msk [vmem:[%s229 + $0xf0] sm:$0xff] %vm372, %v370
      %404 = vst.msk [vmem:[%s229 + $0xf8] sm:$0xff] %vm372, %v371
      %p405 = scmp.lt.s32.totalorder %s18, 1
      %s406 = scalar_select %p405, %s18, 1
      %p407 = scmp.lt.s32.totalorder %s19, 0
      %s408 = scalar_select %p407, %s19, 0
      %s409 = smul.addr %s406, 32
      %s410 = sadd.s32 %s408, %s409
      %s411 = smul.addr %s410, 8
      %s412 = scalar_lea.vmem %s3, %s411
      // Predicated region
      $region33: #{bridgeconv_forward.5} parent=31 // pred_check
        %p413 = pneg %p126
      $region34: #{bridgeconv_forward.5} parent=31 // pred_check_branch
        %415 = sbr.rel (%p413) target = $region36
      $region35: #{bridgeconv_forward.5} parent=31 // pred_region
        _
      $region36: #{bridgeconv_forward.5} parent=31 // pred_fallthru
        _
    $region32: #{bridgeconv_forward.5} parent=5 // pred_fallthru
      _
    %p416 = scmp.le.s32.totalorder 2, %s9
    // Predicated region
    $region37: #{bridgeconv_forward.5} parent=5 // pred_check
      %p417 = pneg %p416
    $region38: #{bridgeconv_forward.5} parent=5 // pred_check_branch
      %419 = sbr.rel (%p417) target = $region40
    $region39: #{bridgeconv_forward.5} parent=5 // pred_region
      %s420 = ssub.s32 %s9, 2
      // Predicated region
      $region41: #{bridgeconv_forward.5} parent=39 // pred_check
        %p421 = pneg %p132
      $region42: #{bridgeconv_forward.5} parent=39 // pred_check_branch
        %423 = sbr.rel (%p421) target = $region44
      $region43: #{bridgeconv_forward.5} parent=39 // pred_region
        %p424 = scmp.lt.s32.totalorder %s20, 1
        %s425 = scalar_select %p424, %s20, 1
        %p426 = scmp.lt.s32.totalorder %s21, 0
        %s427 = scalar_select %p426, %s21, 0
        %s428 = smul.addr %s425, 32
        %s429 = sadd.s32 %s427, %s428
        %s430 = smul.addr %s429, 8
        %s431 = scalar_lea.vmem %s3, %s430
      $region44: #{bridgeconv_forward.5} parent=39 // pred_fallthru
        _
    $region40: #{bridgeconv_forward.5} parent=5 // pred_fallthru
      _
  $region6: #{bridgeconv_forward.5} parent=0 // loop_footer
    %s13 = sadd.s32 1, %s9
  $region7: #{bridgeconv_forward.5} parent=0 // loop_footer_branch
    %8 = sbr.rel target = $region3
  $region8: #{bridgeconv_forward.5} parent=0 // loop_exit
    _

// kernel: bridgeconv_forward.3
$region0: #{bridgeconv_forward.3}
  #allocation0 [shape = 'u32[]', space=smem, size = 0x4, offset = 0x4, fixed_abs, tag = 'smem constant byte address 0x4 - core index']
  #allocation1 [shape = 'u32[144,128]{1,0:T(1,128)}', space=vmem, size = 0x12000, scoped, tag = 'internal scratch']
  #allocation2 [shape = 'f32[18,18,4]{2,1,0:T(8,128)}', space=vmem, size = 0x36000, scoped, tag = 'scratch operand']
  #allocation3 [shape = 'f32[256,8]{1,0:T(8,128)}', space=vmem, size = 0x20000, scoped, tag = 'scratch operand']
  %s0 = inlined_call_operand.vmem [shape: bf16[2,16,16,4], index: 0, kind: input, shape index: {}]
  %s1 = inlined_call_operand.vmem [shape: bf16[9,4,8], index: 1, kind: input, shape index: {}]
  %s2 = inlined_call_operand.vmem [shape: f32[1,8], index: 2, kind: input, shape index: {}]
  %s3 = inlined_call_operand.vmem [shape: f32[2,16,16,8], index: 3, kind: output, shape index: {0}]
  %s4 = inlined_call_operand.vmem [shape: f32[2,2,8], index: 4, kind: output, shape index: {1}]
  %5 = xla_tuple %s3, %s4
  %s6 = sld [smem:[#allocation0]]
  $region57: #{bridgeconv_forward.3} parent=0
    _
  %s8 = ssub.s32 1, %s6
  %s9 = scalar_select 0, %s8, %s6
  loop: start=0, step=1, limit=4
  $region2: #{bridgeconv_forward.3} parent=0 // loop_pre_header
    _
  $region3: #{bridgeconv_forward.3} parent=0 // loop_header
    %s11 = sphi 0, %s15
    %p12 = scmp.ge.s32.totalorder %s11, 4
    %s18 = sphi 0, %s30
    %s19 = sphi 0, %s26
    %s20 = sphi 0, %s18
    %s21 = sphi 0, %s19
    %s22 = sphi 0, %s20
    %s23 = sphi 0, %s21
    %s33 = sphi 0, %s35
    %s36 = sphi 0, %s33
    %s37 = sphi 0, %s36
    %s53 = sphi 0, %s37
    %s59 = sphi 0, %s61
    %s62 = sphi 0, %s59
    %s63 = sphi 0, %s62
    %s79 = sphi 0, %s63
    %s85 = sphi 0, %s87
    %s88 = sphi 0, %s85
    %s89 = sphi 0, %s88
    %s105 = sphi 0, %s89
    %s113 = sphi 0, %s115
    %s116 = sphi 0, %s113
    %s117 = sphi 0, %s116
    %s133 = sphi 0, %s117
    %s141 = sphi 0, %s143
    %s144 = sphi 0, %s141
    %s145 = sphi 0, %s144
    %s161 = sphi 0, %s145
  $region4: #{bridgeconv_forward.3} parent=0 // loop_header_branch
    %14 = sbr.rel (%p12) target = $region8
  $region5: #{bridgeconv_forward.3} parent=0 // loop_body
    %s16 = ssub.s32 %s11, 1
    %s17 = ssub.s32 %s11, 2
    %s24 = sadd.s32 1, %s19
    %p25 = scmp.ge.s32.totalorder %s24, 1
    %s26 = scalar_select %p25, 0, %s24
    %s27 = sadd.s32 1, %s18
    %s28 = scalar_select %p25, %s27, %s18
    %p29 = scmp.ge.s32.totalorder %s28, 2
    %s30 = scalar_select %p29, 0, %s28
    %s31 = ssub.s32 %s18, %s30
    %p32 = scmp.eq.s32.totalorder %s31, 0
    %s34 = sadd.s32 %s33, 1
    %s35 = scalar_select %p32, %s33, %s34
    %p38 = pneg %p32
    %p39 = scmp.eq.s32.totalorder %s11, 1
    %p40 = por %p38, %p39
    %p41 = scmp.ne.s32.totalorder %s33, %s36
    %p42 = scmp.eq.s32.totalorder %s11, 0
    %p43 = por %p41, %p42
    %p44 = scmp.ne.s32.totalorder %s33, %s36
    %p45 = scmp.eq.s32.totalorder %s16, 1
    %p46 = por %p44, %p45
    %p47 = scmp.ne.s32.totalorder %s36, %s37
    %p48 = scmp.eq.s32.totalorder %s16, 0
    %p49 = por %p47, %p48
    %p50 = scmp.ne.s32.totalorder %s36, %s37
    %p51 = scmp.eq.s32.totalorder %s17, 1
    %p52 = por %p50, %p51
    %p54 = scmp.ne.s32.totalorder %s37, %s53
    %p55 = scmp.eq.s32.totalorder %s17, 0
    %p56 = por %p54, %p55
    %s57 = ssub.s32 %s19, %s26
    %p58 = scmp.eq.s32.totalorder %s57, 0
    %s60 = sadd.s32 %s59, 1
    %s61 = scalar_select %p58, %s59, %s60
    %p64 = pneg %p58
    %p65 = scmp.eq.s32.totalorder %s11, 1
    %p66 = por %p64, %p65
    %p67 = scmp.ne.s32.totalorder %s59, %s62
    %p68 = scmp.eq.s32.totalorder %s11, 0
    %p69 = por %p67, %p68
    %p70 = scmp.ne.s32.totalorder %s59, %s62
    %p71 = scmp.eq.s32.totalorder %s16, 1
    %p72 = por %p70, %p71
    %p73 = scmp.ne.s32.totalorder %s62, %s63
    %p74 = scmp.eq.s32.totalorder %s16, 0
    %p75 = por %p73, %p74
    %p76 = scmp.ne.s32.totalorder %s62, %s63
    %p77 = scmp.eq.s32.totalorder %s17, 1
    %p78 = por %p76, %p77
    %p80 = scmp.ne.s32.totalorder %s63, %s79
    %p81 = scmp.eq.s32.totalorder %s17, 0
    %p82 = por %p80, %p81
    %s83 = ssub.s32 %s19, %s26
    %p84 = scmp.eq.s32.totalorder %s83, 0
    %s86 = sadd.s32 %s85, 1
    %s87 = scalar_select %p84, %s85, %s86
    %p90 = pneg %p84
    %p91 = scmp.eq.s32.totalorder %s11, 1
    %p92 = por %p90, %p91
    %p93 = scmp.ne.s32.totalorder %s85, %s88
    %p94 = scmp.eq.s32.totalorder %s11, 0
    %p95 = por %p93, %p94
    %p96 = scmp.ne.s32.totalorder %s85, %s88
    %p97 = scmp.eq.s32.totalorder %s16, 1
    %p98 = por %p96, %p97
    %p99 = scmp.ne.s32.totalorder %s88, %s89
    %p100 = scmp.eq.s32.totalorder %s16, 0
    %p101 = por %p99, %p100
    %p102 = scmp.ne.s32.totalorder %s88, %s89
    %p103 = scmp.eq.s32.totalorder %s17, 1
    %p104 = por %p102, %p103
    %p106 = scmp.ne.s32.totalorder %s89, %s105
    %p107 = scmp.eq.s32.totalorder %s17, 0
    %p108 = por %p106, %p107
    %s109 = ssub.s32 %s18, %s30
    %s110 = ssub.s32 %s19, %s26
    %s111 = sor.u32 %s109, %s110
    %p112 = scmp.eq.s32.totalorder %s111, 0
    %s114 = sadd.s32 %s113, 1
    %s115 = scalar_select %p112, %s113, %s114
    %p118 = pneg %p112
    %p119 = scmp.eq.s32.totalorder %s11, 1
    %p120 = por %p118, %p119
    %p121 = scmp.ne.s32.totalorder %s113, %s116
    %p122 = scmp.eq.s32.totalorder %s11, 0
    %p123 = por %p121, %p122
    %p124 = scmp.ne.s32.totalorder %s113, %s116
    %p125 = scmp.eq.s32.totalorder %s16, 1
    %p126 = por %p124, %p125
    %p127 = scmp.ne.s32.totalorder %s116, %s117
    %p128 = scmp.eq.s32.totalorder %s16, 0
    %p129 = por %p127, %p128
    %p130 = scmp.ne.s32.totalorder %s116, %s117
    %p131 = scmp.eq.s32.totalorder %s17, 1
    %p132 = por %p130, %p131
    %p134 = scmp.ne.s32.totalorder %s117, %s133
    %p135 = scmp.eq.s32.totalorder %s17, 0
    %p136 = por %p134, %p135
    %s137 = ssub.s32 %s18, %s30
    %s138 = ssub.s32 %s19, %s26
    %s139 = sor.u32 %s137, %s138
    %p140 = scmp.eq.s32.totalorder %s139, 0
    %s142 = sadd.s32 %s141, 1
    %s143 = scalar_select %p140, %s141, %s142
    %p146 = pneg %p140
    %p147 = scmp.eq.s32.totalorder %s11, 1
    %p148 = por %p146, %p147
    %p149 = scmp.ne.s32.totalorder %s141, %s144
    %p150 = scmp.eq.s32.totalorder %s11, 0
    %p151 = por %p149, %p150
    %p152 = scmp.ne.s32.totalorder %s141, %s144
    %p153 = scmp.eq.s32.totalorder %s16, 1
    %p154 = por %p152, %p153
    %p155 = scmp.ne.s32.totalorder %s144, %s145
    %p156 = scmp.eq.s32.totalorder %s16, 0
    %p157 = por %p155, %p156
    %p158 = scmp.ne.s32.totalorder %s144, %s145
    %p159 = scmp.eq.s32.totalorder %s17, 1
    %p160 = por %p158, %p159
    %p162 = scmp.ne.s32.totalorder %s145, %s161
    %p163 = scmp.eq.s32.totalorder %s17, 0
    %p164 = por %p162, %p163
    %p165 = scmp.le.s32.totalorder 1, %s11
    %p166 = scmp.lt.s32.totalorder %s11, 3
    %p167 = pnand %p165, %p166
    %p168 = pneg %p167
    // Predicated region
    $region9: #{bridgeconv_forward.3} parent=5 // pred_check
      _
    $region10: #{bridgeconv_forward.3} parent=5 // pred_check_branch
      %170 = sbr.rel (%p167) target = $region12
    $region11: #{bridgeconv_forward.3} parent=5 // pred_region
      %s171 = ssub.s32 %s11, 1
      // Predicated region
      $region13: #{bridgeconv_forward.3} parent=11 // pred_check
        %p172 = pneg %p75
      $region14: #{bridgeconv_forward.3} parent=11 // pred_check_branch
        %174 = sbr.rel (%p172) target = $region16
      $region15: #{bridgeconv_forward.3} parent=11 // pred_region
        %p175 = scmp.lt.s32.totalorder %s21, 0
        %s176 = scalar_select %p175, %s21, 0
        %s177 = smul.addr %s176, 2
        %s178 = scalar_lea.vmem %s1, %s177
      $region16: #{bridgeconv_forward.3} parent=11 // pred_fallthru
        _
      // Predicated region
      $region17: #{bridgeconv_forward.3} parent=11 // pred_check
        %p179 = pneg %p101
      $region18: #{bridgeconv_forward.3} parent=11 // pred_check_branch
        %181 = sbr.rel (%p179) target = $region20
      $region19: #{bridgeconv_forward.3} parent=11 // pred_region
        %p182 = scmp.lt.s32.totalorder %s21, 0
        %s183 = scalar_select %p182, %s21, 0
        %s184 = scalar_lea.vmem %s2, %s183
      $region20: #{bridgeconv_forward.3} parent=11 // pred_fallthru
        _
    $region12: #{bridgeconv_forward.3} parent=5 // pred_fallthru
      _
    %p185 = scmp.lt.s32.totalorder %s11, 2
    // Predicated region
    $region21: #{bridgeconv_forward.3} parent=5 // pred_check
      %p186 = pneg %p185
    $region22: #{bridgeconv_forward.3} parent=5 // pred_check_branch
      %188 = sbr.rel (%p186) target = $region24
    $region23: #{bridgeconv_forward.3} parent=5 // pred_region
      // Predicated region
      $region25: #{bridgeconv_forward.3} parent=23 // pred_check
        %p189 = pneg %p43
      $region26: #{bridgeconv_forward.3} parent=23 // pred_check_branch
        %191 = sbr.rel (%p189) target = $region28
      $region27: #{bridgeconv_forward.3} parent=23 // pred_region
        %p192 = scmp.lt.s32.totalorder %s18, 1
        %s193 = scalar_select %p192, %s18, 1
        %s194 = smul.addr %s193, 32
        %s195 = smul.addr %s194, 4
        %s196 = scalar_lea.vmem %s0, %s195
      $region28: #{bridgeconv_forward.3} parent=23 // pred_fallthru
        _
    $region24: #{bridgeconv_forward.3} parent=5 // pred_fallthru
      _
    %p197 = scmp.le.s32.totalorder 1, %s11
    %p198 = scmp.lt.s32.totalorder %s11, 3
    %p199 = pnand %p197, %p198
    %p200 = pneg %p199
    // Predicated region
    $region29: #{bridgeconv_forward.3} parent=5 // pred_check
      _
    $region30: #{bridgeconv_forward.3} parent=5 // pred_check_branch
      %202 = sbr.rel (%p199) target = $region32
    $region31: #{bridgeconv_forward.3} parent=5 // pred_region
      %s203 = ssub.s32 %s11, 1
      %p204 = scmp.lt.s32.totalorder %s20, 1
      %s205 = scalar_select %p204, %s20, 1
      %s206 = smul.addr %s205, 32
      %s207 = smul.addr %s206, 4
      %s208 = scalar_lea.vmem %s0, %s207
      %p209 = pneg %p49
      %p210 = pneg %p46
      %p211 = scmp.lt.s32.totalorder %s21, 0
      %s212 = scalar_select %p211, %s21, 0
      %s213 = smul.addr %s212, 2
      %s214 = scalar_lea.vmem %s1, %s213
      %p215 = pneg %p75
      %p216 = pneg %p72
      %p217 = scmp.lt.s32.totalorder %s21, 0
      %s218 = scalar_select %p217, %s21, 0
      %s219 = scalar_lea.vmem %s2, %s218
      %p220 = pneg %p101
      %p221 = pneg %p98
      %p222 = pneg %p129
      %p223 = pneg %p126
      %p224 = scmp.lt.s32.totalorder %s20, 1
      %s225 = scalar_select %p224, %s20, 1
      %p226 = scmp.lt.s32.totalorder %s21, 0
      %s227 = scalar_select %p226, %s21, 0
      %s228 = smul.addr %s225, 32
      %s229 = sadd.s32 %s227, %s228
      %s230 = smul.addr %s229, 8
      %s231 = scalar_lea.vmem %s3, %s230
      %p232 = pneg %p157
      %p233 = pneg %p154
      %p234 = scmp.lt.s32.totalorder %s20, 1
      %s235 = scalar_select %p234, %s20, 1
      %p236 = scmp.lt.s32.totalorder %s21, 0
      %s237 = scalar_select %p236, %s21, 0
      %s238 = sadd.s32 %s237, %s235
      %s239 = smul.addr %s238, 2
      %s240 = scalar_lea.vmem %s4, %s239
      %p241 = scmp.lt.s32.totalorder %s20, 1
      %s242 = scalar_select %p241, %s20, 1
      %s243 = smul.addr %s242, 32
      %s244 = smul.addr %s243, 4
      %s245 = scalar_lea.vmem %s0, %s244
      %p246 = scmp.lt.s32.totalorder %s21, 0
      %s247 = scalar_select %p246, %s21, 0
      %s248 = smul.addr %s247, 2
      %s249 = scalar_lea.vmem %s1, %s248
      %p250 = scmp.lt.s32.totalorder %s21, 0
      %s251 = scalar_select %p250, %s21, 0
      %s252 = scalar_lea.vmem %s2, %s251
      %p253 = scmp.lt.s32.totalorder %s20, 1
      %s254 = scalar_select %p253, %s20, 1
      %p255 = scmp.lt.s32.totalorder %s21, 0
      %s256 = scalar_select %p255, %s21, 0
      %s257 = smul.addr %s254, 32
      %s258 = sadd.s32 %s256, %s257
      %s259 = smul.addr %s258, 8
      %s260 = scalar_lea.vmem %s3, %s259
      %p261 = scmp.lt.s32.totalorder %s20, 1
      %s262 = scalar_select %p261, %s20, 1
      %p263 = scmp.lt.s32.totalorder %s21, 0
      %s264 = scalar_select %p263, %s21, 0
      %s265 = sadd.s32 %s264, %s262
      %s266 = smul.addr %s265, 2
      %s267 = scalar_lea.vmem %s4, %s266
      %p269 = scmp.eq.s32.totalorder %s21, 0
      // Predicated region
      $region33: #{bridgeconv_forward.3} parent=31 // pred_check
        %p270 = pneg %p269
      $region34: #{bridgeconv_forward.3} parent=31 // pred_check_branch
        %272 = sbr.rel (%p270) target = $region36
      $region35: #{bridgeconv_forward.3} parent=31 // pred_region
        %vm273 = vcmask 31744
        %274 = vst.msk [vmem:[#allocation2] sm:$0xff] %vm273, 0.0
        %275 = vst.msk [vmem:[#allocation2 + $0x8] sm:$0xff] %vm273, 0.0
        %vm276 = vcmask 25600
        %277 = vst.msk [vmem:[#allocation2 + $0x10] sm:$0x3] %vm276, 0.0
        %278 = vst.msk [vmem:[#allocation2 + $0x18] sm:$0xff] %vm273, 0.0
        %279 = vst.msk [vmem:[#allocation2 + $0x20] sm:$0xff] %vm273, 0.0
        %280 = vst.msk [vmem:[#allocation2 + $0x28] sm:$0x3] %vm276, 0.0
        %281 = vst.msk [vmem:[#allocation2 + $0x30] sm:$0xff] %vm273, 0.0
        %282 = vst.msk [vmem:[#allocation2 + $0x38] sm:$0xff] %vm273, 0.0
        %283 = vst.msk [vmem:[#allocation2 + $0x40] sm:$0x3] %vm276, 0.0
        %284 = vst.msk [vmem:[#allocation2 + $0x48] sm:$0xff] %vm273, 0.0
        %285 = vst.msk [vmem:[#allocation2 + $0x50] sm:$0xff] %vm273, 0.0
        %286 = vst.msk [vmem:[#allocation2 + $0x58] sm:$0x3] %vm276, 0.0
        %287 = vst.msk [vmem:[#allocation2 + $0x60] sm:$0xff] %vm273, 0.0
        %288 = vst.msk [vmem:[#allocation2 + $0x68] sm:$0xff] %vm273, 0.0
        %289 = vst.msk [vmem:[#allocation2 + $0x70] sm:$0x3] %vm276, 0.0
        %290 = vst.msk [vmem:[#allocation2 + $0x78] sm:$0xff] %vm273, 0.0
        %291 = vst.msk [vmem:[#allocation2 + $0x80] sm:$0xff] %vm273, 0.0
        %292 = vst.msk [vmem:[#allocation2 + $0x88] sm:$0x3] %vm276, 0.0
        %293 = vst.msk [vmem:[#allocation2 + $0x90] sm:$0xff] %vm273, 0.0
        %294 = vst.msk [vmem:[#allocation2 + $0x98] sm:$0xff] %vm273, 0.0
        %295 = vst.msk [vmem:[#allocation2 + $0xa0] sm:$0x3] %vm276, 0.0
        %296 = vst.msk [vmem:[#allocation2 + $0xa8] sm:$0xff] %vm273, 0.0
        %297 = vst.msk [vmem:[#allocation2 + $0xb0] sm:$0xff] %vm273, 0.0
        %298 = vst.msk [vmem:[#allocation2 + $0xb8] sm:$0x3] %vm276, 0.0
        %299 = vst.msk [vmem:[#allocation2 + $0xc0] sm:$0xff] %vm273, 0.0
        %300 = vst.msk [vmem:[#allocation2 + $0xc8] sm:$0xff] %vm273, 0.0
        %301 = vst.msk [vmem:[#allocation2 + $0xd0] sm:$0x3] %vm276, 0.0
        %302 = vst.msk [vmem:[#allocation2 + $0xd8] sm:$0xff] %vm273, 0.0
        %303 = vst.msk [vmem:[#allocation2 + $0xe0] sm:$0xff] %vm273, 0.0
        %304 = vst.msk [vmem:[#allocation2 + $0xe8] sm:$0x3] %vm276, 0.0
        %305 = vst.msk [vmem:[#allocation2 + $0xf0] sm:$0xff] %vm273, 0.0
        %306 = vst.msk [vmem:[#allocation2 + $0xf8] sm:$0xff] %vm273, 0.0
        %307 = vst.msk [vmem:[#allocation2 + $0x100] sm:$0x3] %vm276, 0.0
        %308 = vst.msk [vmem:[#allocation2 + $0x108] sm:$0xff] %vm273, 0.0
        %309 = vst.msk [vmem:[#allocation2 + $0x110] sm:$0xff] %vm273, 0.0
        %310 = vst.msk [vmem:[#allocation2 + $0x118] sm:$0x3] %vm276, 0.0
        %311 = vst.msk [vmem:[#allocation2 + $0x120] sm:$0xff] %vm273, 0.0
        %312 = vst.msk [vmem:[#allocation2 + $0x128] sm:$0xff] %vm273, 0.0
        %313 = vst.msk [vmem:[#allocation2 + $0x130] sm:$0x3] %vm276, 0.0
        %314 = vst.msk [vmem:[#allocation2 + $0x138] sm:$0xff] %vm273, 0.0
        %315 = vst.msk [vmem:[#allocation2 + $0x140] sm:$0xff] %vm273, 0.0
        %316 = vst.msk [vmem:[#allocation2 + $0x148] sm:$0x3] %vm276, 0.0
        %317 = vst.msk [vmem:[#allocation2 + $0x150] sm:$0xff] %vm273, 0.0
        %318 = vst.msk [vmem:[#allocation2 + $0x158] sm:$0xff] %vm273, 0.0
        %319 = vst.msk [vmem:[#allocation2 + $0x160] sm:$0x3] %vm276, 0.0
        %320 = vst.msk [vmem:[#allocation2 + $0x168] sm:$0xff] %vm273, 0.0
        %321 = vst.msk [vmem:[#allocation2 + $0x170] sm:$0xff] %vm273, 0.0
        %322 = vst.msk [vmem:[#allocation2 + $0x178] sm:$0x3] %vm276, 0.0
        %323 = vst.msk [vmem:[#allocation2 + $0x180] sm:$0xff] %vm273, 0.0
        %324 = vst.msk [vmem:[#allocation2 + $0x188] sm:$0xff] %vm273, 0.0
        %325 = vst.msk [vmem:[#allocation2 + $0x190] sm:$0x3] %vm276, 0.0
        %326 = vst.msk [vmem:[#allocation2 + $0x198] sm:$0xff] %vm273, 0.0
        %327 = vst.msk [vmem:[#allocation2 + $0x1a0] sm:$0xff] %vm273, 0.0
        %328 = vst.msk [vmem:[#allocation2 + $0x1a8] sm:$0x3] %vm276, 0.0
        %v329 = vld [vmem:[%s245] sm:$0xf]
        %v330 = vld [vmem:[%s245 + $0x4] sm:$0xf]
        %v331 = vld [vmem:[%s245 + $0x8] sm:$0xf]
        %v332 = vld [vmem:[%s245 + $0xc] sm:$0xf]
        %v333 = vld [vmem:[%s245 + $0x10] sm:$0xf]
        %v334 = vld [vmem:[%s245 + $0x14] sm:$0xf]
        %v335 = vld [vmem:[%s245 + $0x18] sm:$0xf]
        %v336 = vld [vmem:[%s245 + $0x1c] sm:$0xf]
        %v337 = vld [vmem:[%s245 + $0x20] sm:$0xf]
        %v338 = vld [vmem:[%s245 + $0x24] sm:$0xf]
        %v339 = vld [vmem:[%s245 + $0x28] sm:$0xf]
        %v340 = vld [vmem:[%s245 + $0x2c] sm:$0xf]
        %v341 = vld [vmem:[%s245 + $0x30] sm:$0xf]
        %v342 = vld [vmem:[%s245 + $0x34] sm:$0xf]
        %v343 = vld [vmem:[%s245 + $0x38] sm:$0xf]
        %v344 = vld [vmem:[%s245 + $0x3c] sm:$0xf]
        %v345 = vld [vmem:[%s245 + $0x40] sm:$0xf]
        %v346 = vld [vmem:[%s245 + $0x44] sm:$0xf]
        %v347 = vld [vmem:[%s245 + $0x48] sm:$0xf]
        %v348 = vld [vmem:[%s245 + $0x4c] sm:$0xf]
        %v349 = vld [vmem:[%s245 + $0x50] sm:$0xf]
        %v350 = vld [vmem:[%s245 + $0x54] sm:$0xf]
        %v351 = vld [vmem:[%s245 + $0x58] sm:$0xf]
        %v352 = vld [vmem:[%s245 + $0x5c] sm:$0xf]
        %v353 = vld [vmem:[%s245 + $0x60] sm:$0xf]
        %v354 = vld [vmem:[%s245 + $0x64] sm:$0xf]
        %v355 = vld [vmem:[%s245 + $0x68] sm:$0xf]
        %v356 = vld [vmem:[%s245 + $0x6c] sm:$0xf]
        %v357 = vld [vmem:[%s245 + $0x70] sm:$0xf]
        %v358 = vld [vmem:[%s245 + $0x74] sm:$0xf]
        %v359 = vld [vmem:[%s245 + $0x78] sm:$0xf]
        %v360 = vld [vmem:[%s245 + $0x7c] sm:$0xf]
        %v361 = vunpack.c.l.bf16 %v329
        %v362 = vunpack.c.l.bf16 %v330
        %v363 = vunpack.c.l.bf16 %v331
        %v364 = vunpack.c.l.bf16 %v332
        %v365 = vunpack.c.l.bf16 %v333
        %v366 = vunpack.c.l.bf16 %v334
        %v367 = vunpack.c.l.bf16 %v335
        %v368 = vunpack.c.l.bf16 %v336
        %v369 = vunpack.c.l.bf16 %v337
        %v370 = vunpack.c.l.bf16 %v338
        %v371 = vunpack.c.l.bf16 %v339
        %v372 = vunpack.c.l.bf16 %v340
        %v373 = vunpack.c.l.bf16 %v341
        %v374 = vunpack.c.l.bf16 %v342
        %v375 = vunpack.c.l.bf16 %v343
        %v376 = vunpack.c.l.bf16 %v344
        %v377 = vunpack.c.l.bf16 %v345
        %v378 = vunpack.c.l.bf16 %v346
        %v379 = vunpack.c.l.bf16 %v347
        %v380 = vunpack.c.l.bf16 %v348
        %v381 = vunpack.c.l.bf16 %v349
        %v382 = vunpack.c.l.bf16 %v350
        %v383 = vunpack.c.l.bf16 %v351
        %v384 = vunpack.c.l.bf16 %v352
        %v385 = vunpack.c.l.bf16 %v353
        %v386 = vunpack.c.l.bf16 %v354
        %v387 = vunpack.c.l.bf16 %v355
        %v388 = vunpack.c.l.bf16 %v356
        %v389 = vunpack.c.l.bf16 %v357
        %v390 = vunpack.c.l.bf16 %v358
        %v391 = vunpack.c.l.bf16 %v359
        %v392 = vunpack.c.l.bf16 %v360
        %s393 = scalar_lea.vmem [#allocation2], 24
        %394 = vst.msk [vmem:[%s393 + $0x1] sm:$0xff] %vm273, %v361
        %395 = vst.msk [vmem:[%s393 + $0x9] sm:$0xff] %vm273, %v362
        %396 = vst.msk [vmem:[%s393 + $0x19] sm:$0xff] %vm273, %v363
        %397 = vst.msk [vmem:[%s393 + $0x21] sm:$0xff] %vm273, %v364
        %398 = vst.msk [vmem:[%s393 + $0x31] sm:$0xff] %vm273, %v365
        %399 = vst.msk [vmem:[%s393 + $0x39] sm:$0xff] %vm273, %v366
        %400 = vst.msk [vmem:[%s393 + $0x49] sm:$0xff] %vm273, %v367
        %401 = vst.msk [vmem:[%s393 + $0x51] sm:$0xff] %vm273, %v368
        %402 = vst.msk [vmem:[%s393 + $0x61] sm:$0xff] %vm273, %v369
        %403 = vst.msk [vmem:[%s393 + $0x69] sm:$0xff] %vm273, %v370
        %404 = vst.msk [vmem:[%s393 + $0x79] sm:$0xff] %vm273, %v371
        %405 = vst.msk [vmem:[%s393 + $0x81] sm:$0xff] %vm273, %v372
        %406 = vst.msk [vmem:[%s393 + $0x91] sm:$0xff] %vm273, %v373
        %407 = vst.msk [vmem:[%s393 + $0x99] sm:$0xff] %vm273, %v374
        %408 = vst.msk [vmem:[%s393 + $0xa9] sm:$0xff] %vm273, %v375
        %409 = vst.msk [vmem:[%s393 + $0xb1] sm:$0xff] %vm273, %v376
        %410 = vst.msk [vmem:[%s393 + $0xc1] sm:$0xff] %vm273, %v377
        %411 = vst.msk [vmem:[%s393 + $0xc9] sm:$0xff] %vm273, %v378
        %412 = vst.msk [vmem:[%s393 + $0xd9] sm:$0xff] %vm273, %v379
        %413 = vst.msk [vmem:[%s393 + $0xe1] sm:$0xff] %vm273, %v380
        %414 = vst.msk [vmem:[%s393 + $0xf1] sm:$0xff] %vm273, %v381
        %415 = vst.msk [vmem:[%s393 + $0xf9] sm:$0xff] %vm273, %v382
        %416 = vst.msk [vmem:[%s393 + $0x109] sm:$0xff] %vm273, %v383
        %417 = vst.msk [vmem:[%s393 + $0x111] sm:$0xff] %vm273, %v384
        %418 = vst.msk [vmem:[%s393 + $0x121] sm:$0xff] %vm273, %v385
        %419 = vst.msk [vmem:[%s393 + $0x129] sm:$0xff] %vm273, %v386
        %420 = vst.msk [vmem:[%s393 + $0x139] sm:$0xff] %vm273, %v387
        %421 = vst.msk [vmem:[%s393 + $0x141] sm:$0xff] %vm273, %v388
        %422 = vst.msk [vmem:[%s393 + $0x151] sm:$0xff] %vm273, %v389
        %423 = vst.msk [vmem:[%s393 + $0x159] sm:$0xff] %vm273, %v390
        %424 = vst.msk [vmem:[%s393 + $0x169] sm:$0xff] %vm273, %v391
        %425 = vst.msk [vmem:[%s393 + $0x171] sm:$0xff] %vm273, %v392
      $region36: #{bridgeconv_forward.3} parent=31 // pred_fallthru
        _
      %vm426 = vcmask 64512
      %427 = vst.msk [vmem:[#allocation3] sm:$0xff] %vm426, 0.0
      %428 = vst.msk [vmem:[#allocation3 + $0x8] sm:$0xff] %vm426, 0.0
      %429 = vst.msk [vmem:[#allocation3 + $0x10] sm:$0xff] %vm426, 0.0
      %430 = vst.msk [vmem:[#allocation3 + $0x18] sm:$0xff] %vm426, 0.0
      %431 = vst.msk [vmem:[#allocation3 + $0x20] sm:$0xff] %vm426, 0.0
      %432 = vst.msk [vmem:[#allocation3 + $0x28] sm:$0xff] %vm426, 0.0
      %433 = vst.msk [vmem:[#allocation3 + $0x30] sm:$0xff] %vm426, 0.0
      %434 = vst.msk [vmem:[#allocation3 + $0x38] sm:$0xff] %vm426, 0.0
      %435 = vst.msk [vmem:[#allocation3 + $0x40] sm:$0xff] %vm426, 0.0
      %436 = vst.msk [vmem:[#allocation3 + $0x48] sm:$0xff] %vm426, 0.0
      %437 = vst.msk [vmem:[#allocation3 + $0x50] sm:$0xff] %vm426, 0.0
      %438 = vst.msk [vmem:[#allocation3 + $0x58] sm:$0xff] %vm426, 0.0
      %439 = vst.msk [vmem:[#allocation3 + $0x60] sm:$0xff] %vm426, 0.0
      %440 = vst.msk [vmem:[#allocation3 + $0x68] sm:$0xff] %vm426, 0.0
      %441 = vst.msk [vmem:[#allocation3 + $0x70] sm:$0xff] %vm426, 0.0
      %442 = vst.msk [vmem:[#allocation3 + $0x78] sm:$0xff] %vm426, 0.0
      %443 = vst.msk [vmem:[#allocation3 + $0x80] sm:$0xff] %vm426, 0.0
      %444 = vst.msk [vmem:[#allocation3 + $0x88] sm:$0xff] %vm426, 0.0
      %445 = vst.msk [vmem:[#allocation3 + $0x90] sm:$0xff] %vm426, 0.0
      %446 = vst.msk [vmem:[#allocation3 + $0x98] sm:$0xff] %vm426, 0.0
      %447 = vst.msk [vmem:[#allocation3 + $0xa0] sm:$0xff] %vm426, 0.0
      %448 = vst.msk [vmem:[#allocation3 + $0xa8] sm:$0xff] %vm426, 0.0
      %449 = vst.msk [vmem:[#allocation3 + $0xb0] sm:$0xff] %vm426, 0.0
      %450 = vst.msk [vmem:[#allocation3 + $0xb8] sm:$0xff] %vm426, 0.0
      %451 = vst.msk [vmem:[#allocation3 + $0xc0] sm:$0xff] %vm426, 0.0
      %452 = vst.msk [vmem:[#allocation3 + $0xc8] sm:$0xff] %vm426, 0.0
      %453 = vst.msk [vmem:[#allocation3 + $0xd0] sm:$0xff] %vm426, 0.0
      %454 = vst.msk [vmem:[#allocation3 + $0xd8] sm:$0xff] %vm426, 0.0
      %455 = vst.msk [vmem:[#allocation3 + $0xe0] sm:$0xff] %vm426, 0.0
      %456 = vst.msk [vmem:[#allocation3 + $0xe8] sm:$0xff] %vm426, 0.0
      %457 = vst.msk [vmem:[#allocation3 + $0xf0] sm:$0xff] %vm426, 0.0
      %458 = vst.msk [vmem:[#allocation3 + $0xf8] sm:$0xff] %vm426, 0.0
      %v459 = vld [vmem:[#allocation2] sm:$0xff]
      %v460 = vld [vmem:[#allocation2 + $0x8] sm:$0xff]
      %v461 = vld [vmem:[#allocation2 + $0x18] sm:$0xff]
      %v462 = vld [vmem:[#allocation2 + $0x20] sm:$0xff]
      %v463 = vld [vmem:[#allocation2 + $0x30] sm:$0xff]
      %v464 = vld [vmem:[#allocation2 + $0x38] sm:$0xff]
      %v465 = vld [vmem:[#allocation2 + $0x48] sm:$0xff]
      %v466 = vld [vmem:[#allocation2 + $0x50] sm:$0xff]
      %v467 = vld [vmem:[#allocation2 + $0x60] sm:$0xff]
      %v468 = vld [vmem:[#allocation2 + $0x68] sm:$0xff]
      %v469 = vld [vmem:[#allocation2 + $0x78] sm:$0xff]
      %v470 = vld [vmem:[#allocation2 + $0x80] sm:$0xff]
      %v471 = vld [vmem:[#allocation2 + $0x90] sm:$0xff]
      %v472 = vld [vmem:[#allocation2 + $0x98] sm:$0xff]
      %v473 = vld [vmem:[#allocation2 + $0xa8] sm:$0xff]
      %v474 = vld [vmem:[#allocation2 + $0xb0] sm:$0xff]
      %v475 = vld [vmem:[#allocation2 + $0xc0] sm:$0xff]
      %v476 = vld [vmem:[#allocation2 + $0xc8] sm:$0xff]
      %v477 = vld [vmem:[#allocation2 + $0xd8] sm:$0xff]
      %v478 = vld [vmem:[#allocation2 + $0xe0] sm:$0xff]
      %v479 = vld [vmem:[#allocation2 + $0xf0] sm:$0xff]
      %v480 = vld [vmem:[#allocation2 + $0xf8] sm:$0xff]
      %v481 = vld [vmem:[#allocation2 + $0x108] sm:$0xff]
      %v482 = vld [vmem:[#allocation2 + $0x110] sm:$0xff]
      %v483 = vld [vmem:[#allocation2 + $0x120] sm:$0xff]
      %v484 = vld [vmem:[#allocation2 + $0x128] sm:$0xff]
      %v485 = vld [vmem:[#allocation2 + $0x138] sm:$0xff]
      %v486 = vld [vmem:[#allocation2 + $0x140] sm:$0xff]
      %v487 = vld [vmem:[#allocation2 + $0x150] sm:$0xff]
      %v488 = vld [vmem:[#allocation2 + $0x158] sm:$0xff]
      %v489 = vld [vmem:[#allocation2 + $0x168] sm:$0xff]
      %v490 = vld [vmem:[#allocation2 + $0x170] sm:$0xff]
      %v491 = vld [vmem:[#allocation3] sm:$0xff]
      %v492 = vld [vmem:[#allocation3 + $0x8] sm:$0xff]
      %v493 = vld [vmem:[#allocation3 + $0x10] sm:$0xff]
      %v494 = vld [vmem:[#allocation3 + $0x18] sm:$0xff]
      %v495 = vld [vmem:[#allocation3 + $0x20] sm:$0xff]
      %v496 = vld [vmem:[#allocation3 + $0x28] sm:$0xff]
      %v497 = vld [vmem:[#allocation3 + $0x30] sm:$0xff]
      %v498 = vld [vmem:[#allocation3 + $0x38] sm:$0xff]
      %v499 = vld [vmem:[#allocation3 + $0x40] sm:$0xff]
      %v500 = vld [vmem:[#allocation3 + $0x48] sm:$0xff]
      %v501 = vld [vmem:[#allocation3 + $0x50] sm:$0xff]
      %v502 = vld [vmem:[#allocation3 + $0x58] sm:$0xff]
      %v503 = vld [vmem:[#allocation3 + $0x60] sm:$0xff]
      %v504 = vld [vmem:[#allocation3 + $0x68] sm:$0xff]
      %v505 = vld [vmem:[#allocation3 + $0x70] sm:$0xff]
      %v506 = vld [vmem:[#allocation3 + $0x78] sm:$0xff]
      %v507 = vld [vmem:[#allocation3 + $0x80] sm:$0xff]
      %v508 = vld [vmem:[#allocation3 + $0x88] sm:$0xff]
      %v509 = vld [vmem:[#allocation3 + $0x90] sm:$0xff]
      %v510 = vld [vmem:[#allocation3 + $0x98] sm:$0xff]
      %v511 = vld [vmem:[#allocation3 + $0xa0] sm:$0xff]
      %v512 = vld [vmem:[#allocation3 + $0xa8] sm:$0xff]
      %v513 = vld [vmem:[#allocation3 + $0xb0] sm:$0xff]
      %v514 = vld [vmem:[#allocation3 + $0xb8] sm:$0xff]
      %v515 = vld [vmem:[#allocation3 + $0xc0] sm:$0xff]
      %v516 = vld [vmem:[#allocation3 + $0xc8] sm:$0xff]
      %v517 = vld [vmem:[#allocation3 + $0xd0] sm:$0xff]
      %v518 = vld [vmem:[#allocation3 + $0xd8] sm:$0xff]
      %v519 = vld [vmem:[#allocation3 + $0xe0] sm:$0xff]
      %v520 = vld [vmem:[#allocation3 + $0xe8] sm:$0xff]
      %v521 = vld [vmem:[#allocation3 + $0xf0] sm:$0xff]
      %v522 = vld [vmem:[#allocation3 + $0xf8] sm:$0xff]
      %v523 = vpack.c.bf16 %v460, %v459
      %v524 = vpack.c.bf16 %v462, %v461
      %v525 = vpack.c.bf16 %v464, %v463
      %v526 = vpack.c.bf16 %v466, %v465
      %v527 = vpack.c.bf16 %v468, %v467
      %v528 = vpack.c.bf16 %v470, %v469
      %v529 = vpack.c.bf16 %v472, %v471
      %v530 = vpack.c.bf16 %v474, %v473
      %v531 = vpack.c.bf16 %v476, %v475
      %v532 = vpack.c.bf16 %v478, %v477
      %v533 = vpack.c.bf16 %v480, %v479
      %v534 = vpack.c.bf16 %v482, %v481
      %v535 = vpack.c.bf16 %v484, %v483
      %v536 = vpack.c.bf16 %v486, %v485
      %v537 = vpack.c.bf16 %v488, %v487
      %v538 = vpack.c.bf16 %v490, %v489
      %v539 = vld [vmem:[%s249] sm:$0x3]
      %vm540 = vcmask 31744
      %v542 = vsel %vm540, %v523, 0
      %v545 = vsel %vm540, %v524, 0
      %v548 = vsel %vm540, %v525, 0
      %v551 = vsel %vm540, %v526, 0
      %v554 = vsel %vm540, %v527, 0
      %v557 = vsel %vm540, %v528, 0
      %v560 = vsel %vm540, %v529, 0
      %v563 = vsel %vm540, %v530, 0
      %v566 = vsel %vm540, %v531, 0
      %v569 = vsel %vm540, %v532, 0
      %v572 = vsel %vm540, %v533, 0
      %v575 = vsel %vm540, %v534, 0
      %v578 = vsel %vm540, %v535, 0
      %v581 = vsel %vm540, %v536, 0
      %v584 = vsel %vm540, %v537, 0
      %v587 = vsel %vm540, %v538, 0
      %vm589 = vcmask 1041408
      %v591 = vsel %vm589, %v539, 0
      %593 = vmatprep.subr.bf16.mxu0 0
      %594 = vmatpush1.bf16.msra.mxu0 0
      %595 = vmatprep.subr.bf16.mxu0 0
      %596 = vmatpush1.bf16.msra.mxu0 0
      %597 = vmatprep.subr.bf16.mxu0 0
      %598 = vmatpush1.bf16.msra.mxu0 0
      %599 = vmatprep.subr.bf16.mxu0 0
      %600 = vmatpush1.bf16.msra.mxu0 0
      %601 = vmatprep.subr.bf16.mxu0 0
      %602 = vmatpush1.bf16.msra.mxu0 0
      %603 = vmatprep.subr.bf16.mxu0 0
      %604 = vmatpush1.bf16.msra.mxu0 0
      %605 = vmatprep.subr.bf16.mxu0 0
      %606 = vmatpush1.bf16.msra.mxu0 0
      %607 = vmatprep.subr.bf16.mxu0 0
      %608 = vmatpush1.bf16.msra.mxu0 %v591
      %609 = vmatprep.subr.bf16.mxu0 0
      %610 = vmatpush2.bf16.msra.mxu0 0
      %611 = vmatprep.subr.bf16.mxu0 0
      %612 = vmatpush2.bf16.msra.mxu0 0
      %613 = vmatprep.subr.bf16.mxu0 0
      %614 = vmatpush2.bf16.msra.mxu0 0
      %615 = vmatprep.subr.bf16.mxu0 0
      %616 = vmatpush2.bf16.msra.mxu0 0
      %617 = vmatprep.subr.bf16.mxu0 0
      %618 = vmatpush2.bf16.msra.mxu0 0
      %619 = vmatprep.subr.bf16.mxu0 0
      %620 = vmatpush2.bf16.msra.mxu0 0
      %621 = vmatprep.subr.bf16.mxu0 0
      %622 = vmatpush2.bf16.msra.mxu0 0
      %623 = vmatprep.subr.bf16.mxu0 0
      %624 = vmatpush2.bf16.msra.mxu0 0
      %625 = vmatprep.mubr.bf16.mxu0 0
      %626 = vmatmul.mubr.bf16.gmra.mxu0 %v542
      %v627 = vpop.f32.mrf.mxu0
      %v628 = vadd.f32 0.0, %v627
      %v629 = vpop.f32.mrf.mxu0
      %v630 = vpop.f32.mrf.mxu0
      %v631 = vadd.f32 0.0, %v630
      %v632 = vpop.f32.mrf.mxu0
      %633 = vmatprep.mubr.bf16.mxu0 0
      %634 = vmatmul.mubr.bf16.gmra.mxu0 %v545
      %v635 = vpop.f32.mrf.mxu0
      %v636 = vadd.f32 0.0, %v635
      %v637 = vpop.f32.mrf.mxu0
      %v638 = vpop.f32.mrf.mxu0
      %v639 = vadd.f32 0.0, %v638
      %v640 = vpop.f32.mrf.mxu0
      %641 = vmatprep.mubr.bf16.mxu0 0
      %642 = vmatmul.mubr.bf16.gmra.mxu0 %v548
      %v643 = vpop.f32.mrf.mxu0
      %v644 = vadd.f32 0.0, %v643
      %v645 = vpop.f32.mrf.mxu0
      %v646 = vpop.f32.mrf.mxu0
      %v647 = vadd.f32 0.0, %v646
      %v648 = vpop.f32.mrf.mxu0
      %649 = vmatprep.mubr.bf16.mxu0 0
      %650 = vmatmul.mubr.bf16.gmra.mxu0 %v551
      %v651 = vpop.f32.mrf.mxu0
      %v652 = vadd.f32 0.0, %v651
      %v653 = vpop.f32.mrf.mxu0
      %v654 = vpop.f32.mrf.mxu0
      %v655 = vadd.f32 0.0, %v654
      %v656 = vpop.f32.mrf.mxu0
      %657 = vmatprep.mubr.bf16.mxu0 0
      %658 = vmatmul.mubr.bf16.gmra.mxu0 %v554
      %v659 = vpop.f32.mrf.mxu0
      %v660 = vadd.f32 0.0, %v659
      %v661 = vpop.f32.mrf.mxu0
      %v662 = vpop.f32.mrf.mxu0
      %v663 = vadd.f32 0.0, %v662
      %v664 = vpop.f32.mrf.mxu0
      %665 = vmatprep.mubr.bf16.mxu0 0
      %666 = vmatmul.mubr.bf16.gmra.mxu0 %v557
      %v667 = vpop.f32.mrf.mxu0
      %v668 = vadd.f32 0.0, %v667
      %v669 = vpop.f32.mrf.mxu0
      %v670 = vpop.f32.mrf.mxu0
      %v671 = vadd.f32 0.0, %v670
      %v672 = vpop.f32.mrf.mxu0
      %673 = vmatprep.mubr.bf16.mxu0 0
      %674 = vmatmul.mubr.bf16.gmra.mxu0 %v560
      %v675 = vpop.f32.mrf.mxu0
      %v676 = vadd.f32 0.0, %v675
      %v677 = vpop.f32.mrf.mxu0
      %v678 = vpop.f32.mrf.mxu0
      %v679 = vadd.f32 0.0, %v678
      %v680 = vpop.f32.mrf.mxu0
      %681 = vmatprep.mubr.bf16.mxu0 0
      %682 = vmatmul.mubr.bf16.gmra.mxu0 %v563
      %v683 = vpop.f32.mrf.mxu0
      %v684 = vadd.f32 0.0, %v683
      %v685 = vpop.f32.mrf.mxu0
      %v686 = vpop.f32.mrf.mxu0
      %v687 = vadd.f32 0.0, %v686
      %v688 = vpop.f32.mrf.mxu0
      %689 = vmatprep.mubr.bf16.mxu0 0
      %690 = vmatmul.mubr.bf16.gmra.mxu0 %v566
      %v691 = vpop.f32.mrf.mxu0
      %v692 = vadd.f32 0.0, %v691
      %v693 = vpop.f32.mrf.mxu0
      %v694 = vpop.f32.mrf.mxu0
      %v695 = vadd.f32 0.0, %v694
      %v696 = vpop.f32.mrf.mxu0
      %697 = vmatprep.mubr.bf16.mxu0 0
      %698 = vmatmul.mubr.bf16.gmra.mxu0 %v569
      %v699 = vpop.f32.mrf.mxu0
      %v700 = vadd.f32 0.0, %v699
      %v701 = vpop.f32.mrf.mxu0
      %v702 = vpop.f32.mrf.mxu0
      %v703 = vadd.f32 0.0, %v702
      %v704 = vpop.f32.mrf.mxu0
      %705 = vmatprep.mubr.bf16.mxu0 0
      %706 = vmatmul.mubr.bf16.gmra.mxu0 %v572
      %v707 = vpop.f32.mrf.mxu0
      %v708 = vadd.f32 0.0, %v707
      %v709 = vpop.f32.mrf.mxu0
      %v710 = vpop.f32.mrf.mxu0
      %v711 = vadd.f32 0.0, %v710
      %v712 = vpop.f32.mrf.mxu0
      %713 = vmatprep.mubr.bf16.mxu0 0
      %714 = vmatmul.mubr.bf16.gmra.mxu0 %v575
      %v715 = vpop.f32.mrf.mxu0
      %v716 = vadd.f32 0.0, %v715
      %v717 = vpop.f32.mrf.mxu0
      %v718 = vpop.f32.mrf.mxu0
      %v719 = vadd.f32 0.0, %v718
      %v720 = vpop.f32.mrf.mxu0
      %721 = vmatprep.mubr.bf16.mxu0 0
      %722 = vmatmul.mubr.bf16.gmra.mxu0 %v578
      %v723 = vpop.f32.mrf.mxu0
      %v724 = vadd.f32 0.0, %v723
      %v725 = vpop.f32.mrf.mxu0
      %v726 = vpop.f32.mrf.mxu0
      %v727 = vadd.f32 0.0, %v726
      %v728 = vpop.f32.mrf.mxu0
      %729 = vmatprep.mubr.bf16.mxu0 0
      %730 = vmatmul.mubr.bf16.gmra.mxu0 %v581
      %v731 = vpop.f32.mrf.mxu0
      %v732 = vadd.f32 0.0, %v731
      %v733 = vpop.f32.mrf.mxu0
      %v734 = vpop.f32.mrf.mxu0
      %v735 = vadd.f32 0.0, %v734
      %v736 = vpop.f32.mrf.mxu0
      %737 = vmatprep.mubr.bf16.mxu0 0
      %738 = vmatmul.mubr.bf16.gmra.mxu0 %v584
      %v739 = vpop.f32.mrf.mxu0
      %v740 = vadd.f32 0.0, %v739
      %v741 = vpop.f32.mrf.mxu0
      %v742 = vpop.f32.mrf.mxu0
      %v743 = vadd.f32 0.0, %v742
      %v744 = vpop.f32.mrf.mxu0
      %745 = vmatprep.mubr.bf16.mxu0 0
      %746 = vmatmul.mubr.bf16.gmra.mxu0 %v587
      %v747 = vpop.f32.mrf.mxu0
      %v748 = vadd.f32 0.0, %v747
      %v749 = vpop.f32.mrf.mxu0
      %v750 = vpop.f32.mrf.mxu0
      %v751 = vadd.f32 0.0, %v750
      %v752 = vpop.f32.mrf.mxu0
      %753 = vdwg.mxu0
      %v754 = vadd.f32 %v491, %v628
      %v755 = vadd.f32 %v492, %v631
      %v756 = vadd.f32 %v493, %v636
      %v757 = vadd.f32 %v494, %v639
      %v758 = vadd.f32 %v495, %v644
      %v759 = vadd.f32 %v496, %v647
      %v760 = vadd.f32 %v497, %v652
      %v761 = vadd.f32 %v498, %v655
      %v762 = vadd.f32 %v499, %v660
      %v763 = vadd.f32 %v500, %v663
      %v764 = vadd.f32 %v501, %v668
      %v765 = vadd.f32 %v502, %v671
      %v766 = vadd.f32 %v503, %v676
      %v767 = vadd.f32 %v504, %v679
      %v768 = vadd.f32 %v505, %v684
      %v769 = vadd.f32 %v506, %v687
      %v770 = vadd.f32 %v507, %v692
      %v771 = vadd.f32 %v508, %v695
      %v772 = vadd.f32 %v509, %v700
      %v773 = vadd.f32 %v510, %v703
      %v774 = vadd.f32 %v511, %v708
      %v775 = vadd.f32 %v512, %v711
      %v776 = vadd.f32 %v513, %v716
      %v777 = vadd.f32 %v514, %v719
      %v778 = vadd.f32 %v515, %v724
      %v779 = vadd.f32 %v516, %v727
      %v780 = vadd.f32 %v517, %v732
      %v781 = vadd.f32 %v518, %v735
      %v782 = vadd.f32 %v519, %v740
      %v783 = vadd.f32 %v520, %v743
      %v784 = vadd.f32 %v521, %v748
      %v785 = vadd.f32 %v522, %v751
      %786 = vst.msk [vmem:[#allocation3] sm:$0xff] %vm426, %v754
      %787 = vst.msk [vmem:[#allocation3 + $0x8] sm:$0xff] %vm426, %v755
      %788 = vst.msk [vmem:[#allocation3 + $0x10] sm:$0xff] %vm426, %v756
      %789 = vst.msk [vmem:[#allocation3 + $0x18] sm:$0xff] %vm426, %v757
      %790 = vst.msk [vmem:[#allocation3 + $0x20] sm:$0xff] %vm426, %v758
      %791 = vst.msk [vmem:[#allocation3 + $0x28] sm:$0xff] %vm426, %v759
      %792 = vst.msk [vmem:[#allocation3 + $0x30] sm:$0xff] %vm426, %v760
      %793 = vst.msk [vmem:[#allocation3 + $0x38] sm:$0xff] %vm426, %v761
      %794 = vst.msk [vmem:[#allocation3 + $0x40] sm:$0xff] %vm426, %v762
      %795 = vst.msk [vmem:[#allocation3 + $0x48] sm:$0xff] %vm426, %v763
      %796 = vst.msk [vmem:[#allocation3 + $0x50] sm:$0xff] %vm426, %v764
      %797 = vst.msk [vmem:[#allocation3 + $0x58] sm:$0xff] %vm426, %v765
      %798 = vst.msk [vmem:[#allocation3 + $0x60] sm:$0xff] %vm426, %v766
      %799 = vst.msk [vmem:[#allocation3 + $0x68] sm:$0xff] %vm426, %v767
      %800 = vst.msk [vmem:[#allocation3 + $0x70] sm:$0xff] %vm426, %v768
      %801 = vst.msk [vmem:[#allocation3 + $0x78] sm:$0xff] %vm426, %v769
      %802 = vst.msk [vmem:[#allocation3 + $0x80] sm:$0xff] %vm426, %v770
      %803 = vst.msk [vmem:[#allocation3 + $0x88] sm:$0xff] %vm426, %v771
      %804 = vst.msk [vmem:[#allocation3 + $0x90] sm:$0xff] %vm426, %v772
      %805 = vst.msk [vmem:[#allocation3 + $0x98] sm:$0xff] %vm426, %v773
      %806 = vst.msk [vmem:[#allocation3 + $0xa0] sm:$0xff] %vm426, %v774
      %807 = vst.msk [vmem:[#allocation3 + $0xa8] sm:$0xff] %vm426, %v775
      %808 = vst.msk [vmem:[#allocation3 + $0xb0] sm:$0xff] %vm426, %v776
      %809 = vst.msk [vmem:[#allocation3 + $0xb8] sm:$0xff] %vm426, %v777
      %810 = vst.msk [vmem:[#allocation3 + $0xc0] sm:$0xff] %vm426, %v778
      %811 = vst.msk [vmem:[#allocation3 + $0xc8] sm:$0xff] %vm426, %v779
      %812 = vst.msk [vmem:[#allocation3 + $0xd0] sm:$0xff] %vm426, %v780
      %813 = vst.msk [vmem:[#allocation3 + $0xd8] sm:$0xff] %vm426, %v781
      %814 = vst.msk [vmem:[#allocation3 + $0xe0] sm:$0xff] %vm426, %v782
      %815 = vst.msk [vmem:[#allocation3 + $0xe8] sm:$0xff] %vm426, %v783
      %816 = vst.msk [vmem:[#allocation3 + $0xf0] sm:$0xff] %vm426, %v784
      %817 = vst.msk [vmem:[#allocation3 + $0xf8] sm:$0xff] %vm426, %v785
      %v818 = vld [vmem:[#allocation2 + $0x1] sm:$0xff]
      %v819 = vld [vmem:[#allocation2 + $0x9] sm:$0xff]
      %v820 = vld [vmem:[#allocation2 + $0x19] sm:$0xff]
      %v821 = vld [vmem:[#allocation2 + $0x21] sm:$0xff]
      %v822 = vld [vmem:[#allocation2 + $0x31] sm:$0xff]
      %v823 = vld [vmem:[#allocation2 + $0x39] sm:$0xff]
      %v824 = vld [vmem:[#allocation2 + $0x49] sm:$0xff]
      %v825 = vld [vmem:[#allocation2 + $0x51] sm:$0xff]
      %v826 = vld [vmem:[#allocation2 + $0x61] sm:$0xff]
      %v827 = vld [vmem:[#allocation2 + $0x69] sm:$0xff]
      %v828 = vld [vmem:[#allocation2 + $0x79] sm:$0xff]
      %v829 = vld [vmem:[#allocation2 + $0x81] sm:$0xff]
      %v830 = vld [vmem:[#allocation2 + $0x91] sm:$0xff]
      %v831 = vld [vmem:[#allocation2 + $0x99] sm:$0xff]
      %v832 = vld [vmem:[#allocation2 + $0xa9] sm:$0xff]
      %v833 = vld [vmem:[#allocation2 + $0xb1] sm:$0xff]
      %v834 = vld [vmem:[#allocation2 + $0xc1] sm:$0xff]
      %v835 = vld [vmem:[#allocation2 + $0xc9] sm:$0xff]
      %v836 = vld [vmem:[#allocation2 + $0xd9] sm:$0xff]
      %v837 = vld [vmem:[#allocation2 + $0xe1] sm:$0xff]
      %v838 = vld [vmem:[#allocation2 + $0xf1] sm:$0xff]
      %v839 = vld [vmem:[#allocation2 + $0xf9] sm:$0xff]
      %v840 = vld [vmem:[#allocation2 + $0x109] sm:$0xff]
      %v841 = vld [vmem:[#allocation2 + $0x111] sm:$0xff]
      %v842 = vld [vmem:[#allocation2 + $0x121] sm:$0xff]
      %v843 = vld [vmem:[#allocation2 + $0x129] sm:$0xff]
      %v844 = vld [vmem:[#allocation2 + $0x139] sm:$0xff]
      %v845 = vld [vmem:[#allocation2 + $0x141] sm:$0xff]
      %v846 = vld [vmem:[#allocation2 + $0x151] sm:$0xff]
      %v847 = vld [vmem:[#allocation2 + $0x159] sm:$0xff]
      %v848 = vld [vmem:[#allocation2 + $0x169] sm:$0xff]
      %v849 = vld [vmem:[#allocation2 + $0x171] sm:$0xff]
      %v850 = vld [vmem:[#allocation3] sm:$0xff]
      %v851 = vld [vmem:[#allocation3 + $0x8] sm:$0xff]
      %v852 = vld [vmem:[#allocation3 + $0x10] sm:$0xff]
      %v853 = vld [vmem:[#allocation3 + $0x18] sm:$0xff]
      %v854 = vld [vmem:[#allocation3 + $0x20] sm:$0xff]
      %v855 = vld [vmem:[#allocation3 + $0x28] sm:$0xff]
      %v856 = vld [vmem:[#allocation3 + $0x30] sm:$0xff]
      %v857 = vld [vmem:[#allocation3 + $0x38] sm:$0xff]
      %v858 = vld [vmem:[#allocation3 + $0x40] sm:$0xff]
      %v859 = vld [vmem:[#allocation3 + $0x48] sm:$0xff]
      %v860 = vld [vmem:[#allocation3 + $0x50] sm:$0xff]
      %v861 = vld [vmem:[#allocation3 + $0x58] sm:$0xff]
      %v862 = vld [vmem:[#allocation3 + $0x60] sm:$0xff]
      %v863 = vld [vmem:[#allocation3 + $0x68] sm:$0xff]
      %v864 = vld [vmem:[#allocation3 + $0x70] sm:$0xff]
      %v865 = vld [vmem:[#allocation3 + $0x78] sm:$0xff]
      %v866 = vld [vmem:[#allocation3 + $0x80] sm:$0xff]
      %v867 = vld [vmem:[#allocation3 + $0x88] sm:$0xff]
      %v868 = vld [vmem:[#allocation3 + $0x90] sm:$0xff]
      %v869 = vld [vmem:[#allocation3 + $0x98] sm:$0xff]
      %v870 = vld [vmem:[#allocation3 + $0xa0] sm:$0xff]
      %v871 = vld [vmem:[#allocation3 + $0xa8] sm:$0xff]
      %v872 = vld [vmem:[#allocation3 + $0xb0] sm:$0xff]
      %v873 = vld [vmem:[#allocation3 + $0xb8] sm:$0xff]
      %v874 = vld [vmem:[#allocation3 + $0xc0] sm:$0xff]
      %v875 = vld [vmem:[#allocation3 + $0xc8] sm:$0xff]
      %v876 = vld [vmem:[#allocation3 + $0xd0] sm:$0xff]
      %v877 = vld [vmem:[#allocation3 + $0xd8] sm:$0xff]
      %v878 = vld [vmem:[#allocation3 + $0xe0] sm:$0xff]
      %v879 = vld [vmem:[#allocation3 + $0xe8] sm:$0xff]
      %v880 = vld [vmem:[#allocation3 + $0xf0] sm:$0xff]
      %v881 = vld [vmem:[#allocation3 + $0xf8] sm:$0xff]
      %v882 = vpack.c.bf16 %v819, %v818
      %v883 = vpack.c.bf16 %v821, %v820
      %v884 = vpack.c.bf16 %v823, %v822
      %v885 = vpack.c.bf16 %v825, %v824
      %v886 = vpack.c.bf16 %v827, %v826
      %v887 = vpack.c.bf16 %v829, %v828
      %v888 = vpack.c.bf16 %v831, %v830
      %v889 = vpack.c.bf16 %v833, %v832
      %v890 = vpack.c.bf16 %v835, %v834
      %v891 = vpack.c.bf16 %v837, %v836
      %v892 = vpack.c.bf16 %v839, %v838
      %v893 = vpack.c.bf16 %v841, %v840
      %v894 = vpack.c.bf16 %v843, %v842
      %v895 = vpack.c.bf16 %v845, %v844
      %v896 = vpack.c.bf16 %v847, %v846
      %v897 = vpack.c.bf16 %v849, %v848
      %s898 = scalar_lea.vmem %s249, 2
      %v899 = vld [vmem:[%s898] sm:$0x3]
      %v901 = vsel %vm540, %v882, 0
      %v904 = vsel %vm540, %v883, 0
      %v907 = vsel %vm540, %v884, 0
      %v910 = vsel %vm540, %v885, 0
      %v913 = vsel %vm540, %v886, 0
      %v916 = vsel %vm540, %v887, 0
      %v919 = vsel %vm540, %v888, 0
      %v922 = vsel %vm540, %v889, 0
      %v925 = vsel %vm540, %v890, 0
      %v928 = vsel %vm540, %v891, 0
      %v931 = vsel %vm540, %v892, 0
      %v934 = vsel %vm540, %v893, 0
      %v937 = vsel %vm540, %v894, 0
      %v940 = vsel %vm540, %v895, 0
      %v943 = vsel %vm540, %v896, 0
      %v946 = vsel %vm540, %v897, 0
      %v949 = vsel %vm589, %v899, 0
      %951 = vmatprep.subr.bf16.mxu0 0
      %952 = vmatpush1.bf16.msra.mxu0 0
      %953 = vmatprep.subr.bf16.mxu0 0
      %954 = vmatpush1.bf16.msra.mxu0 0
      %955 = vmatprep.subr.bf16.mxu0 0
      %956 = vmatpush1.bf16.msra.mxu0 0
      %957 = vmatprep.subr.bf16.mxu0 0
      %958 = vmatpush1.bf16.msra.mxu0 0
      %959 = vmatprep.subr.bf16.mxu0 0
      %960 = vmatpush1.bf16.msra.mxu0 0
      %961 = vmatprep.subr.bf16.mxu0 0
      %962 = vmatpush1.bf16.msra.mxu0 0
      %963 = vmatprep.subr.bf16.mxu0 0
      %964 = vmatpush1.bf16.msra.mxu0 0
      %965 = vmatprep.subr.bf16.mxu0 0
      %966 = vmatpush1.bf16.msra.mxu0 %v949
      %967 = vmatprep.subr.bf16.mxu0 0
      %968 = vmatpush2.bf16.msra.mxu0 0
      %969 = vmatprep.subr.bf16.mxu0 0
      %970 = vmatpush2.bf16.msra.mxu0 0
      %971 = vmatprep.subr.bf16.mxu0 0
      %972 = vmatpush2.bf16.msra.mxu0 0
      %973 = vmatprep.subr.bf16.mxu0 0
      %974 = vmatpush2.bf16.msra.mxu0 0
      %975 = vmatprep.subr.bf16.mxu0 0
      %976 = vmatpush2.bf16.msra.mxu0 0
      %977 = vmatprep.subr.bf16.mxu0 0
      %978 = vmatpush2.bf16.msra.mxu0 0
      %979 = vmatprep.subr.bf16.mxu0 0
      %980 = vmatpush2.bf16.msra.mxu0 0
      %981 = vmatprep.subr.bf16.mxu0 0
      %982 = vmatpush2.bf16.msra.mxu0 0
      %983 = vmatprep.mubr.bf16.mxu0 0
      %984 = vmatmul.mubr.bf16.gmra.mxu0 %v901
      %v985 = vpop.f32.mrf.mxu0
      %v986 = vadd.f32 0.0, %v985
      %v987 = vpop.f32.mrf.mxu0
      %v988 = vpop.f32.mrf.mxu0
      %v989 = vadd.f32 0.0, %v988
      %v990 = vpop.f32.mrf.mxu0
      %991 = vmatprep.mubr.bf16.mxu0 0
      %992 = vmatmul.mubr.bf16.gmra.mxu0 %v904
      %v993 = vpop.f32.mrf.mxu0
      %v994 = vadd.f32 0.0, %v993
      %v995 = vpop.f32.mrf.mxu0
      %v996 = vpop.f32.mrf.mxu0
      %v997 = vadd.f32 0.0, %v996
      %v998 = vpop.f32.mrf.mxu0
      %999 = vmatprep.mubr.bf16.mxu0 0
      %1000 = vmatmul.mubr.bf16.gmra.mxu0 %v907
      %v1001 = vpop.f32.mrf.mxu0
      %v1002 = vadd.f32 0.0, %v1001
      %v1003 = vpop.f32.mrf.mxu0
      %v1004 = vpop.f32.mrf.mxu0
      %v1005 = vadd.f32 0.0, %v1004
      %v1006 = vpop.f32.mrf.mxu0
      %1007 = vmatprep.mubr.bf16.mxu0 0
      %1008 = vmatmul.mubr.bf16.gmra.mxu0 %v910
      %v1009 = vpop.f32.mrf.mxu0
      %v1010 = vadd.f32 0.0, %v1009
      %v1011 = vpop.f32.mrf.mxu0
      %v1012 = vpop.f32.mrf.mxu0
      %v1013 = vadd.f32 0.0, %v1012
      %v1014 = vpop.f32.mrf.mxu0
      %1015 = vmatprep.mubr.bf16.mxu0 0
      %1016 = vmatmul.mubr.bf16.gmra.mxu0 %v913
      %v1017 = vpop.f32.mrf.mxu0
      %v1018 = vadd.f32 0.0, %v1017
      %v1019 = vpop.f32.mrf.mxu0
      %v1020 = vpop.f32.mrf.mxu0
      %v1021 = vadd.f32 0.0, %v1020
      %v1022 = vpop.f32.mrf.mxu0
      %1023 = vmatprep.mubr.bf16.mxu0 0
      %1024 = vmatmul.mubr.bf16.gmra.mxu0 %v916
      %v1025 = vpop.f32.mrf.mxu0
      %v1026 = vadd.f32 0.0, %v1025
      %v1027 = vpop.f32.mrf.mxu0
      %v1028 = vpop.f32.mrf.mxu0
      %v1029 = vadd.f32 0.0, %v1028
      %v1030 = vpop.f32.mrf.mxu0
      %1031 = vmatprep.mubr.bf16.mxu0 0
      %1032 = vmatmul.mubr.bf16.gmra.mxu0 %v919
      %v1033 = vpop.f32.mrf.mxu0
      %v1034 = vadd.f32 0.0, %v1033
      %v1035 = vpop.f32.mrf.mxu0
      %v1036 = vpop.f32.mrf.mxu0
      %v1037 = vadd.f32 0.0, %v1036
      %v1038 = vpop.f32.mrf.mxu0
      %1039 = vmatprep.mubr.bf16.mxu0 0
      %1040 = vmatmul.mubr.bf16.gmra.mxu0 %v922
      %v1041 = vpop.f32.mrf.mxu0
      %v1042 = vadd.f32 0.0, %v1041
      %v1043 = vpop.f32.mrf.mxu0
      %v1044 = vpop.f32.mrf.mxu0
      %v1045 = vadd.f32 0.0, %v1044
      %v1046 = vpop.f32.mrf.mxu0
      %1047 = vmatprep.mubr.bf16.mxu0 0
      %1048 = vmatmul.mubr.bf16.gmra.mxu0 %v925
      %v1049 = vpop.f32.mrf.mxu0
      %v1050 = vadd.f32 0.0, %v1049
      %v1051 = vpop.f32.mrf.mxu0
      %v1052 = vpop.f32.mrf.mxu0
      %v1053 = vadd.f32 0.0, %v1052
      %v1054 = vpop.f32.mrf.mxu0
      %1055 = vmatprep.mubr.bf16.mxu0 0
      %1056 = vmatmul.mubr.bf16.gmra.mxu0 %v928
      %v1057 = vpop.f32.mrf.mxu0
      %v1058 = vadd.f32 0.0, %v1057
      %v1059 = vpop.f32.mrf.mxu0
      %v1060 = vpop.f32.mrf.mxu0
      %v1061 = vadd.f32 0.0, %v1060
      %v1062 = vpop.f32.mrf.mxu0
      %1063 = vmatprep.mubr.bf16.mxu0 0
      %1064 = vmatmul.mubr.bf16.gmra.mxu0 %v931
      %v1065 = vpop.f32.mrf.mxu0
      %v1066 = vadd.f32 0.0, %v1065
      %v1067 = vpop.f32.mrf.mxu0
      %v1068 = vpop.f32.mrf.mxu0
      %v1069 = vadd.f32 0.0, %v1068
      %v1070 = vpop.f32.mrf.mxu0
      %1071 = vmatprep.mubr.bf16.mxu0 0
      %1072 = vmatmul.mubr.bf16.gmra.mxu0 %v934
      %v1073 = vpop.f32.mrf.mxu0
      %v1074 = vadd.f32 0.0, %v1073
      %v1075 = vpop.f32.mrf.mxu0
      %v1076 = vpop.f32.mrf.mxu0
      %v1077 = vadd.f32 0.0, %v1076
      %v1078 = vpop.f32.mrf.mxu0
      %1079 = vmatprep.mubr.bf16.mxu0 0
      %1080 = vmatmul.mubr.bf16.gmra.mxu0 %v937
      %v1081 = vpop.f32.mrf.mxu0
      %v1082 = vadd.f32 0.0, %v1081
      %v1083 = vpop.f32.mrf.mxu0
      %v1084 = vpop.f32.mrf.mxu0
      %v1085 = vadd.f32 0.0, %v1084
      %v1086 = vpop.f32.mrf.mxu0
      %1087 = vmatprep.mubr.bf16.mxu0 0
      %1088 = vmatmul.mubr.bf16.gmra.mxu0 %v940
      %v1089 = vpop.f32.mrf.mxu0
      %v1090 = vadd.f32 0.0, %v1089
      %v1091 = vpop.f32.mrf.mxu0
      %v1092 = vpop.f32.mrf.mxu0
      %v1093 = vadd.f32 0.0, %v1092
      %v1094 = vpop.f32.mrf.mxu0
      %1095 = vmatprep.mubr.bf16.mxu0 0
      %1096 = vmatmul.mubr.bf16.gmra.mxu0 %v943
      %v1097 = vpop.f32.mrf.mxu0
      %v1098 = vadd.f32 0.0, %v1097
      %v1099 = vpop.f32.mrf.mxu0
      %v1100 = vpop.f32.mrf.mxu0
      %v1101 = vadd.f32 0.0, %v1100
      %v1102 = vpop.f32.mrf.mxu0
      %1103 = vmatprep.mubr.bf16.mxu0 0
      %1104 = vmatmul.mubr.bf16.gmra.mxu0 %v946
      %v1105 = vpop.f32.mrf.mxu0
      %v1106 = vadd.f32 0.0, %v1105
      %v1107 = vpop.f32.mrf.mxu0
      %v1108 = vpop.f32.mrf.mxu0
      %v1109 = vadd.f32 0.0, %v1108
      %v1110 = vpop.f32.mrf.mxu0
      %1111 = vdwg.mxu0
      %v1112 = vadd.f32 %v850, %v986
      %v1113 = vadd.f32 %v851, %v989
      %v1114 = vadd.f32 %v852, %v994
      %v1115 = vadd.f32 %v853, %v997
      %v1116 = vadd.f32 %v854, %v1002
      %v1117 = vadd.f32 %v855, %v1005
      %v1118 = vadd.f32 %v856, %v1010
      %v1119 = vadd.f32 %v857, %v1013
      %v1120 = vadd.f32 %v858, %v1018
      %v1121 = vadd.f32 %v859, %v1021
      %v1122 = vadd.f32 %v860, %v1026
      %v1123 = vadd.f32 %v861, %v1029
      %v1124 = vadd.f32 %v862, %v1034
      %v1125 = vadd.f32 %v863, %v1037
      %v1126 = vadd.f32 %v864, %v1042
      %v1127 = vadd.f32 %v865, %v1045
      %v1128 = vadd.f32 %v866, %v1050
      %v1129 = vadd.f32 %v867, %v1053
      %v1130 = vadd.f32 %v868, %v1058
      %v1131 = vadd.f32 %v869, %v1061
      %v1132 = vadd.f32 %v870, %v1066
      %v1133 = vadd.f32 %v871, %v1069
      %v1134 = vadd.f32 %v872, %v1074
      %v1135 = vadd.f32 %v873, %v1077
      %v1136 = vadd.f32 %v874, %v1082
      %v1137 = vadd.f32 %v875, %v1085
      %v1138 = vadd.f32 %v876, %v1090
      %v1139 = vadd.f32 %v877, %v1093
      %v1140 = vadd.f32 %v878, %v1098
      %v1141 = vadd.f32 %v879, %v1101
      %v1142 = vadd.f32 %v880, %v1106
      %v1143 = vadd.f32 %v881, %v1109
      %1144 = vst.msk [vmem:[#allocation3] sm:$0xff] %vm426, %v1112
      %1145 = vst.msk [vmem:[#allocation3 + $0x8] sm:$0xff] %vm426, %v1113
      %1146 = vst.msk [vmem:[#allocation3 + $0x10] sm:$0xff] %vm426, %v1114
      %1147 = vst.msk [vmem:[#allocation3 + $0x18] sm:$0xff] %vm426, %v1115
      %1148 = vst.msk [vmem:[#allocation3 + $0x20] sm:$0xff] %vm426, %v1116
      %1149 = vst.msk [vmem:[#allocation3 + $0x28] sm:$0xff] %vm426, %v1117
      %1150 = vst.msk [vmem:[#allocation3 + $0x30] sm:$0xff] %vm426, %v1118
      %1151 = vst.msk [vmem:[#allocation3 + $0x38] sm:$0xff] %vm426, %v1119
      %1152 = vst.msk [vmem:[#allocation3 + $0x40] sm:$0xff] %vm426, %v1120
      %1153 = vst.msk [vmem:[#allocation3 + $0x48] sm:$0xff] %vm426, %v1121
      %1154 = vst.msk [vmem:[#allocation3 + $0x50] sm:$0xff] %vm426, %v1122
      %1155 = vst.msk [vmem:[#allocation3 + $0x58] sm:$0xff] %vm426, %v1123
      %1156 = vst.msk [vmem:[#allocation3 + $0x60] sm:$0xff] %vm426, %v1124
      %1157 = vst.msk [vmem:[#allocation3 + $0x68] sm:$0xff] %vm426, %v1125
      %1158 = vst.msk [vmem:[#allocation3 + $0x70] sm:$0xff] %vm426, %v1126
      %1159 = vst.msk [vmem:[#allocation3 + $0x78] sm:$0xff] %vm426, %v1127
      %1160 = vst.msk [vmem:[#allocation3 + $0x80] sm:$0xff] %vm426, %v1128
      %1161 = vst.msk [vmem:[#allocation3 + $0x88] sm:$0xff] %vm426, %v1129
      %1162 = vst.msk [vmem:[#allocation3 + $0x90] sm:$0xff] %vm426, %v1130
      %1163 = vst.msk [vmem:[#allocation3 + $0x98] sm:$0xff] %vm426, %v1131
      %1164 = vst.msk [vmem:[#allocation3 + $0xa0] sm:$0xff] %vm426, %v1132
      %1165 = vst.msk [vmem:[#allocation3 + $0xa8] sm:$0xff] %vm426, %v1133
      %1166 = vst.msk [vmem:[#allocation3 + $0xb0] sm:$0xff] %vm426, %v1134
      %1167 = vst.msk [vmem:[#allocation3 + $0xb8] sm:$0xff] %vm426, %v1135
      %1168 = vst.msk [vmem:[#allocation3 + $0xc0] sm:$0xff] %vm426, %v1136
      %1169 = vst.msk [vmem:[#allocation3 + $0xc8] sm:$0xff] %vm426, %v1137
      %1170 = vst.msk [vmem:[#allocation3 + $0xd0] sm:$0xff] %vm426, %v1138
      %1171 = vst.msk [vmem:[#allocation3 + $0xd8] sm:$0xff] %vm426, %v1139
      %1172 = vst.msk [vmem:[#allocation3 + $0xe0] sm:$0xff] %vm426, %v1140
      %1173 = vst.msk [vmem:[#allocation3 + $0xe8] sm:$0xff] %vm426, %v1141
      %1174 = vst.msk [vmem:[#allocation3 + $0xf0] sm:$0xff] %vm426, %v1142
      %1175 = vst.msk [vmem:[#allocation3 + $0xf8] sm:$0xff] %vm426, %v1143
      %v1176 = vld [vmem:[#allocation2 + $0x2] sm:$0xff]
      %v1177 = vld [vmem:[#allocation2 + $0xa] sm:$0xff]
      %v1178 = vld [vmem:[#allocation2 + $0x1a] sm:$0xff]
      %v1179 = vld [vmem:[#allocation2 + $0x22] sm:$0xff]
      %v1180 = vld [vmem:[#allocation2 + $0x32] sm:$0xff]
      %v1181 = vld [vmem:[#allocation2 + $0x3a] sm:$0xff]
      %v1182 = vld [vmem:[#allocation2 + $0x4a] sm:$0xff]
      %v1183 = vld [vmem:[#allocation2 + $0x52] sm:$0xff]
      %v1184 = vld [vmem:[#allocation2 + $0x62] sm:$0xff]
      %v1185 = vld [vmem:[#allocation2 + $0x6a] sm:$0xff]
      %v1186 = vld [vmem:[#allocation2 + $0x7a] sm:$0xff]
      %v1187 = vld [vmem:[#allocation2 + $0x82] sm:$0xff]
      %v1188 = vld [vmem:[#allocation2 + $0x92] sm:$0xff]
      %v1189 = vld [vmem:[#allocation2 + $0x9a] sm:$0xff]
      %v1190 = vld [vmem:[#allocation2 + $0xaa] sm:$0xff]
      %v1191 = vld [vmem:[#allocation2 + $0xb2] sm:$0xff]
      %v1192 = vld [vmem:[#allocation2 + $0xc2] sm:$0xff]
      %v1193 = vld [vmem:[#allocation2 + $0xca] sm:$0xff]
      %v1194 = vld [vmem:[#allocation2 + $0xda] sm:$0xff]
      %v1195 = vld [vmem:[#allocation2 + $0xe2] sm:$0xff]
      %v1196 = vld [vmem:[#allocation2 + $0xf2] sm:$0xff]
      %v1197 = vld [vmem:[#allocation2 + $0xfa] sm:$0xff]
      %v1198 = vld [vmem:[#allocation2 + $0x10a] sm:$0xff]
      %v1199 = vld [vmem:[#allocation2 + $0x112] sm:$0xff]
      %v1200 = vld [vmem:[#allocation2 + $0x122] sm:$0xff]
      %v1201 = vld [vmem:[#allocation2 + $0x12a] sm:$0xff]
      %v1202 = vld [vmem:[#allocation2 + $0x13a] sm:$0xff]
      %v1203 = vld [vmem:[#allocation2 + $0x142] sm:$0xff]
      %v1204 = vld [vmem:[#allocation2 + $0x152] sm:$0xff]
      %v1205 = vld [vmem:[#allocation2 + $0x15a] sm:$0xff]
      %v1206 = vld [vmem:[#allocation2 + $0x16a] sm:$0xff]
      %v1207 = vld [vmem:[#allocation2 + $0x172] sm:$0xff]
      %v1208 = vld [vmem:[#allocation3] sm:$0xff]
      %v1209 = vld [vmem:[#allocation3 + $0x8] sm:$0xff]
      %v1210 = vld [vmem:[#allocation3 + $0x10] sm:$0xff]
      %v1211 = vld [vmem:[#allocation3 + $0x18] sm:$0xff]
      %v1212 = vld [vmem:[#allocation3 + $0x20] sm:$0xff]
      %v1213 = vld [vmem:[#allocation3 + $0x28] sm:$0xff]
      %v1214 = vld [vmem:[#allocation3 + $0x30] sm:$0xff]
      %v1215 = vld [vmem:[#allocation3 + $0x38] sm:$0xff]
      %v1216 = vld [vmem:[#allocation3 + $0x40] sm:$0xff]
      %v1217 = vld [vmem:[#allocation3 + $0x48] sm:$0xff]
      %v1218 = vld [vmem:[#allocation3 + $0x50] sm:$0xff]
      %v1219 = vld [vmem:[#allocation3 + $0x58] sm:$0xff]
      %v1220 = vld [vmem:[#allocation3 + $0x60] sm:$0xff]
      %v1221 = vld [vmem:[#allocation3 + $0x68] sm:$0xff]
      %v1222 = vld [vmem:[#allocation3 + $0x70] sm:$0xff]
      %v1223 = vld [vmem:[#allocation3 + $0x78] sm:$0xff]
      %v1224 = vld [vmem:[#allocation3 + $0x80] sm:$0xff]
      %v1225 = vld [vmem:[#allocation3 + $0x88] sm:$0xff]
      %v1226 = vld [vmem:[#allocation3 + $0x90] sm:$0xff]
      %v1227 = vld [vmem:[#allocation3 + $0x98] sm:$0xff]
      %v1228 = vld [vmem:[#allocation3 + $0xa0] sm:$0xff]
      %v1229 = vld [vmem:[#allocation3 + $0xa8] sm:$0xff]
      %v1230 = vld [vmem:[#allocation3 + $0xb0] sm:$0xff]
      %v1231 = vld [vmem:[#allocation3 + $0xb8] sm:$0xff]
      %v1232 = vld [vmem:[#allocation3 + $0xc0] sm:$0xff]
      %v1233 = vld [vmem:[#allocation3 + $0xc8] sm:$0xff]
      %v1234 = vld [vmem:[#allocation3 + $0xd0] sm:$0xff]
      %v1235 = vld [vmem:[#allocation3 + $0xd8] sm:$0xff]
      %v1236 = vld [vmem:[#allocation3 + $0xe0] sm:$0xff]
      %v1237 = vld [vmem:[#allocation3 + $0xe8] sm:$0xff]
      %v1238 = vld [vmem:[#allocation3 + $0xf0] sm:$0xff]
      %v1239 = vld [vmem:[#allocation3 + $0xf8] sm:$0xff]
      %v1240 = vpack.c.bf16 %v1177, %v1176
      %v1241 = vpack.c.bf16 %v1179, %v1178
      %v1242 = vpack.c.bf16 %v1181, %v1180
      %v1243 = vpack.c.bf16 %v1183, %v1182
      %v1244 = vpack.c.bf16 %v1185, %v1184
      %v1245 = vpack.c.bf16 %v1187, %v1186
      %v1246 = vpack.c.bf16 %v1189, %v1188
      %v1247 = vpack.c.bf16 %v1191, %v1190
      %v1248 = vpack.c.bf16 %v1193, %v1192
      %v1249 = vpack.c.bf16 %v1195, %v1194
      %v1250 = vpack.c.bf16 %v1197, %v1196
      %v1251 = vpack.c.bf16 %v1199, %v1198
      %v1252 = vpack.c.bf16 %v1201, %v1200
      %v1253 = vpack.c.bf16 %v1203, %v1202
      %v1254 = vpack.c.bf16 %v1205, %v1204
      %v1255 = vpack.c.bf16 %v1207, %v1206
      %s1256 = scalar_lea.vmem %s249, 4
      %v1257 = vld [vmem:[%s1256] sm:$0x3]
      %v1259 = vsel %vm540, %v1240, 0
      %v1262 = vsel %vm540, %v1241, 0
      %v1265 = vsel %vm540, %v1242, 0
      %v1268 = vsel %vm540, %v1243, 0
      %v1271 = vsel %vm540, %v1244, 0
      %v1274 = vsel %vm540, %v1245, 0
      %v1277 = vsel %vm540, %v1246, 0
      %v1280 = vsel %vm540, %v1247, 0
      %v1283 = vsel %vm540, %v1248, 0
      %v1286 = vsel %vm540, %v1249, 0
      %v1289 = vsel %vm540, %v1250, 0
      %v1292 = vsel %vm540, %v1251, 0
      %v1295 = vsel %vm540, %v1252, 0
      %v1298 = vsel %vm540, %v1253, 0
      %v1301 = vsel %vm540, %v1254, 0
      %v1304 = vsel %vm540, %v1255, 0
      %v1307 = vsel %vm589, %v1257, 0
      %1309 = vmatprep.subr.bf16.mxu0 0
      %1310 = vmatpush1.bf16.msra.mxu0 0
      %1311 = vmatprep.subr.bf16.mxu0 0
      %1312 = vmatpush1.bf16.msra.mxu0 0
      %1313 = vmatprep.subr.bf16.mxu0 0
      %1314 = vmatpush1.bf16.msra.mxu0 0
      %1315 = vmatprep.subr.bf16.mxu0 0
      %1316 = vmatpush1.bf16.msra.mxu0 0
      %1317 = vmatprep.subr.bf16.mxu0 0
      %1318 = vmatpush1.bf16.msra.mxu0 0
      %1319 = vmatprep.subr.bf16.mxu0 0
      %1320 = vmatpush1.bf16.msra.mxu0 0
      %1321 = vmatprep.subr.bf16.mxu0 0
      %1322 = vmatpush1.bf16.msra.mxu0 0
      %1323 = vmatprep.subr.bf16.mxu0 0
      %1324 = vmatpush1.bf16.msra.mxu0 %v1307
      %1325 = vmatprep.subr.bf16.mxu0 0
      %1326 = vmatpush2.bf16.msra.mxu0 0
      %1327 = vmatprep.subr.bf16.mxu0 0
      %1328 = vmatpush2.bf16.msra.mxu0 0
      %1329 = vmatprep.subr.bf16.mxu0 0
      %1330 = vmatpush2.bf16.msra.mxu0 0
      %1331 = vmatprep.subr.bf16.mxu0 0
      %1332 = vmatpush2.bf16.msra.mxu0 0
      %1333 = vmatprep.subr.bf16.mxu0 0
      %1334 = vmatpush2.bf16.msra.mxu0 0
      %1335 = vmatprep.subr.bf16.mxu0 0
      %1336 = vmatpush2.bf16.msra.mxu0 0
      %1337 = vmatprep.subr.bf16.mxu0 0
      %1338 = vmatpush2.bf16.msra.mxu0 0
      %1339 = vmatprep.subr.bf16.mxu0 0
      %1340 = vmatpush2.bf16.msra.mxu0 0
      %1341 = vmatprep.mubr.bf16.mxu0 0
      %1342 = vmatmul.mubr.bf16.gmra.mxu0 %v1259
      %v1343 = vpop.f32.mrf.mxu0
      %v1344 = vadd.f32 0.0, %v1343
      %v1345 = vpop.f32.mrf.mxu0
      %v1346 = vpop.f32.mrf.mxu0
      %v1347 = vadd.f32 0.0, %v1346
      %v1348 = vpop.f32.mrf.mxu0
      %1349 = vmatprep.mubr.bf16.mxu0 0
      %1350 = vmatmul.mubr.bf16.gmra.mxu0 %v1262
      %v1351 = vpop.f32.mrf.mxu0
      %v1352 = vadd.f32 0.0, %v1351
      %v1353 = vpop.f32.mrf.mxu0
      %v1354 = vpop.f32.mrf.mxu0
      %v1355 = vadd.f32 0.0, %v1354
      %v1356 = vpop.f32.mrf.mxu0
      %1357 = vmatprep.mubr.bf16.mxu0 0
      %1358 = vmatmul.mubr.bf16.gmra.mxu0 %v1265
      %v1359 = vpop.f32.mrf.mxu0
      %v1360 = vadd.f32 0.0, %v1359
      %v1361 = vpop.f32.mrf.mxu0
      %v1362 = vpop.f32.mrf.mxu0
      %v1363 = vadd.f32 0.0, %v1362
      %v1364 = vpop.f32.mrf.mxu0
      %1365 = vmatprep.mubr.bf16.mxu0 0
      %1366 = vmatmul.mubr.bf16.gmra.mxu0 %v1268
      %v1367 = vpop.f32.mrf.mxu0
      %v1368 = vadd.f32 0.0, %v1367
      %v1369 = vpop.f32.mrf.mxu0
      %v1370 = vpop.f32.mrf.mxu0
      %v1371 = vadd.f32 0.0, %v1370
      %v1372 = vpop.f32.mrf.mxu0
      %1373 = vmatprep.mubr.bf16.mxu0 0
      %1374 = vmatmul.mubr.bf16.gmra.mxu0 %v1271
      %v1375 = vpop.f32.mrf.mxu0
      %v1376 = vadd.f32 0.0, %v1375
      %v1377 = vpop.f32.mrf.mxu0
      %v1378 = vpop.f32.mrf.mxu0
      %v1379 = vadd.f32 0.0, %v1378
      %v1380 = vpop.f32.mrf.mxu0
      %1381 = vmatprep.mubr.bf16.mxu0 0
      %1382 = vmatmul.mubr.bf16.gmra.mxu0 %v1274
      %v1383 = vpop.f32.mrf.mxu0
      %v1384 = vadd.f32 0.0, %v1383
      %v1385 = vpop.f32.mrf.mxu0
      %v1386 = vpop.f32.mrf.mxu0
      %v1387 = vadd.f32 0.0, %v1386
      %v1388 = vpop.f32.mrf.mxu0
      %1389 = vmatprep.mubr.bf16.mxu0 0
      %1390 = vmatmul.mubr.bf16.gmra.mxu0 %v1277
      %v1391 = vpop.f32.mrf.mxu0
      %v1392 = vadd.f32 0.0, %v1391
      %v1393 = vpop.f32.mrf.mxu0
      %v1394 = vpop.f32.mrf.mxu0
      %v1395 = vadd.f32 0.0, %v1394
      %v1396 = vpop.f32.mrf.mxu0
      %1397 = vmatprep.mubr.bf16.mxu0 0
      %1398 = vmatmul.mubr.bf16.gmra.mxu0 %v1280
      %v1399 = vpop.f32.mrf.mxu0
      %v1400 = vadd.f32 0.0, %v1399
      %v1401 = vpop.f32.mrf.mxu0
      %v1402 = vpop.f32.mrf.mxu0
      %v1403 = vadd.f32 0.0, %v1402
      %v1404 = vpop.f32.mrf.mxu0
      %1405 = vmatprep.mubr.bf16.mxu0 0
      %1406 = vmatmul.mubr.bf16.gmra.mxu0 %v1283
      %v1407 = vpop.f32.mrf.mxu0
      %v1408 = vadd.f32 0.0, %v1407
      %v1409 = vpop.f32.mrf.mxu0
      %v1410 = vpop.f32.mrf.mxu0
      %v1411 = vadd.f32 0.0, %v1410
      %v1412 = vpop.f32.mrf.mxu0
      %1413 = vmatprep.mubr.bf16.mxu0 0
      %1414 = vmatmul.mubr.bf16.gmra.mxu0 %v1286
      %v1415 = vpop.f32.mrf.mxu0
      %v1416 = vadd.f32 0.0, %v1415
      %v1417 = vpop.f32.mrf.mxu0
      %v1418 = vpop.f32.mrf.mxu0
      %v1419 = vadd.f32 0.0, %v1418
      %v1420 = vpop.f32.mrf.mxu0
      %1421 = vmatprep.mubr.bf16.mxu0 0
      %1422 = vmatmul.mubr.bf16.gmra.mxu0 %v1289
      %v1423 = vpop.f32.mrf.mxu0
      %v1424 = vadd.f32 0.0, %v1423
      %v1425 = vpop.f32.mrf.mxu0
      %v1426 = vpop.f32.mrf.mxu0
      %v1427 = vadd.f32 0.0, %v1426
      %v1428 = vpop.f32.mrf.mxu0
      %1429 = vmatprep.mubr.bf16.mxu0 0
      %1430 = vmatmul.mubr.bf16.gmra.mxu0 %v1292
      %v1431 = vpop.f32.mrf.mxu0
      %v1432 = vadd.f32 0.0, %v1431
      %v1433 = vpop.f32.mrf.mxu0
      %v1434 = vpop.f32.mrf.mxu0
      %v1435 = vadd.f32 0.0, %v1434
      %v1436 = vpop.f32.mrf.mxu0
      %1437 = vmatprep.mubr.bf16.mxu0 0
      %1438 = vmatmul.mubr.bf16.gmra.mxu0 %v1295
      %v1439 = vpop.f32.mrf.mxu0
      %v1440 = vadd.f32 0.0, %v1439
      %v1441 = vpop.f32.mrf.mxu0
      %v1442 = vpop.f32.mrf.mxu0
      %v1443 = vadd.f32 0.0, %v1442
      %v1444 = vpop.f32.mrf.mxu0
      %1445 = vmatprep.mubr.bf16.mxu0 0
      %1446 = vmatmul.mubr.bf16.gmra.mxu0 %v1298
      %v1447 = vpop.f32.mrf.mxu0
      %v1448 = vadd.f32 0.0, %v1447
      %v1449 = vpop.f32.mrf.mxu0
      %v1450 = vpop.f32.mrf.mxu0
      %v1451 = vadd.f32 0.0, %v1450
      %v1452 = vpop.f32.mrf.mxu0
      %1453 = vmatprep.mubr.bf16.mxu0 0
      %1454 = vmatmul.mubr.bf16.gmra.mxu0 %v1301
      %v1455 = vpop.f32.mrf.mxu0
      %v1456 = vadd.f32 0.0, %v1455
      %v1457 = vpop.f32.mrf.mxu0
      %v1458 = vpop.f32.mrf.mxu0
      %v1459 = vadd.f32 0.0, %v1458
      %v1460 = vpop.f32.mrf.mxu0
      %1461 = vmatprep.mubr.bf16.mxu0 0
      %1462 = vmatmul.mubr.bf16.gmra.mxu0 %v1304
      %v1463 = vpop.f32.mrf.mxu0
      %v1464 = vadd.f32 0.0, %v1463
      %v1465 = vpop.f32.mrf.mxu0
      %v1466 = vpop.f32.mrf.mxu0
      %v1467 = vadd.f32 0.0, %v1466
      %v1468 = vpop.f32.mrf.mxu0
      %1469 = vdwg.mxu0
      %v1470 = vadd.f32 %v1208, %v1344
      %v1471 = vadd.f32 %v1209, %v1347
      %v1472 = vadd.f32 %v1210, %v1352
      %v1473 = vadd.f32 %v1211, %v1355
      %v1474 = vadd.f32 %v1212, %v1360
      %v1475 = vadd.f32 %v1213, %v1363
      %v1476 = vadd.f32 %v1214, %v1368
      %v1477 = vadd.f32 %v1215, %v1371
      %v1478 = vadd.f32 %v1216, %v1376
      %v1479 = vadd.f32 %v1217, %v1379
      %v1480 = vadd.f32 %v1218, %v1384
      %v1481 = vadd.f32 %v1219, %v1387
      %v1482 = vadd.f32 %v1220, %v1392
      %v1483 = vadd.f32 %v1221, %v1395
      %v1484 = vadd.f32 %v1222, %v1400
      %v1485 = vadd.f32 %v1223, %v1403
      %v1486 = vadd.f32 %v1224, %v1408
      %v1487 = vadd.f32 %v1225, %v1411
      %v1488 = vadd.f32 %v1226, %v1416
      %v1489 = vadd.f32 %v1227, %v1419
      %v1490 = vadd.f32 %v1228, %v1424
      %v1491 = vadd.f32 %v1229, %v1427
      %v1492 = vadd.f32 %v1230, %v1432
      %v1493 = vadd.f32 %v1231, %v1435
      %v1494 = vadd.f32 %v1232, %v1440
      %v1495 = vadd.f32 %v1233, %v1443
      %v1496 = vadd.f32 %v1234, %v1448
      %v1497 = vadd.f32 %v1235, %v1451
      %v1498 = vadd.f32 %v1236, %v1456
      %v1499 = vadd.f32 %v1237, %v1459
      %v1500 = vadd.f32 %v1238, %v1464
      %v1501 = vadd.f32 %v1239, %v1467
      %1502 = vst.msk [vmem:[#allocation3] sm:$0xff] %vm426, %v1470
      %1503 = vst.msk [vmem:[#allocation3 + $0x8] sm:$0xff] %vm426, %v1471
      %1504 = vst.msk [vmem:[#allocation3 + $0x10] sm:$0xff] %vm426, %v1472
      %1505 = vst.msk [vmem:[#allocation3 + $0x18] sm:$0xff] %vm426, %v1473
      %1506 = vst.msk [vmem:[#allocation3 + $0x20] sm:$0xff] %vm426, %v1474
      %1507 = vst.msk [vmem:[#allocation3 + $0x28] sm:$0xff] %vm426, %v1475
      %1508 = vst.msk [vmem:[#allocation3 + $0x30] sm:$0xff] %vm426, %v1476
      %1509 = vst.msk [vmem:[#allocation3 + $0x38] sm:$0xff] %vm426, %v1477
      %1510 = vst.msk [vmem:[#allocation3 + $0x40] sm:$0xff] %vm426, %v1478
      %1511 = vst.msk [vmem:[#allocation3 + $0x48] sm:$0xff] %vm426, %v1479
      %1512 = vst.msk [vmem:[#allocation3 + $0x50] sm:$0xff] %vm426, %v1480
      %1513 = vst.msk [vmem:[#allocation3 + $0x58] sm:$0xff] %vm426, %v1481
      %1514 = vst.msk [vmem:[#allocation3 + $0x60] sm:$0xff] %vm426, %v1482
      %1515 = vst.msk [vmem:[#allocation3 + $0x68] sm:$0xff] %vm426, %v1483
      %1516 = vst.msk [vmem:[#allocation3 + $0x70] sm:$0xff] %vm426, %v1484
      %1517 = vst.msk [vmem:[#allocation3 + $0x78] sm:$0xff] %vm426, %v1485
      %1518 = vst.msk [vmem:[#allocation3 + $0x80] sm:$0xff] %vm426, %v1486
      %1519 = vst.msk [vmem:[#allocation3 + $0x88] sm:$0xff] %vm426, %v1487
      %1520 = vst.msk [vmem:[#allocation3 + $0x90] sm:$0xff] %vm426, %v1488
      %1521 = vst.msk [vmem:[#allocation3 + $0x98] sm:$0xff] %vm426, %v1489
      %1522 = vst.msk [vmem:[#allocation3 + $0xa0] sm:$0xff] %vm426, %v1490
      %1523 = vst.msk [vmem:[#allocation3 + $0xa8] sm:$0xff] %vm426, %v1491
      %1524 = vst.msk [vmem:[#allocation3 + $0xb0] sm:$0xff] %vm426, %v1492
      %1525 = vst.msk [vmem:[#allocation3 + $0xb8] sm:$0xff] %vm426, %v1493
      %1526 = vst.msk [vmem:[#allocation3 + $0xc0] sm:$0xff] %vm426, %v1494
      %1527 = vst.msk [vmem:[#allocation3 + $0xc8] sm:$0xff] %vm426, %v1495
      %1528 = vst.msk [vmem:[#allocation3 + $0xd0] sm:$0xff] %vm426, %v1496
      %1529 = vst.msk [vmem:[#allocation3 + $0xd8] sm:$0xff] %vm426, %v1497
      %1530 = vst.msk [vmem:[#allocation3 + $0xe0] sm:$0xff] %vm426, %v1498
      %1531 = vst.msk [vmem:[#allocation3 + $0xe8] sm:$0xff] %vm426, %v1499
      %1532 = vst.msk [vmem:[#allocation3 + $0xf0] sm:$0xff] %vm426, %v1500
      %1533 = vst.msk [vmem:[#allocation3 + $0xf8] sm:$0xff] %vm426, %v1501
      %s1534 = scalar_lea.vmem [#allocation2], 24
      %v1535 = vld [vmem:[%s1534] sm:$0xff]
      %v1536 = vld [vmem:[%s1534 + $0x8] sm:$0xff]
      %v1537 = vld [vmem:[%s1534 + $0x18] sm:$0xff]
      %v1538 = vld [vmem:[%s1534 + $0x20] sm:$0xff]
      %v1539 = vld [vmem:[%s1534 + $0x30] sm:$0xff]
      %v1540 = vld [vmem:[%s1534 + $0x38] sm:$0xff]
      %v1541 = vld [vmem:[%s1534 + $0x48] sm:$0xff]
      %v1542 = vld [vmem:[%s1534 + $0x50] sm:$0xff]
      %v1543 = vld [vmem:[%s1534 + $0x60] sm:$0xff]
      %v1544 = vld [vmem:[%s1534 + $0x68] sm:$0xff]
      %v1545 = vld [vmem:[%s1534 + $0x78] sm:$0xff]
      %v1546 = vld [vmem:[%s1534 + $0x80] sm:$0xff]
      %v1547 = vld [vmem:[%s1534 + $0x90] sm:$0xff]
      %v1548 = vld [vmem:[%s1534 + $0x98] sm:$0xff]
      %v1549 = vld [vmem:[%s1534 + $0xa8] sm:$0xff]
      %v1550 = vld [vmem:[%s1534 + $0xb0] sm:$0xff]
      %v1551 = vld [vmem:[%s1534 + $0xc0] sm:$0xff]
      %v1552 = vld [vmem:[%s1534 + $0xc8] sm:$0xff]
      %v1553 = vld [vmem:[%s1534 + $0xd8] sm:$0xff]
      %v1554 = vld [vmem:[%s1534 + $0xe0] sm:$0xff]
      %v1555 = vld [vmem:[%s1534 + $0xf0] sm:$0xff]
      %v1556 = vld [vmem:[%s1534 + $0xf8] sm:$0xff]
      %v1557 = vld [vmem:[%s1534 + $0x108] sm:$0xff]
      %v1558 = vld [vmem:[%s1534 + $0x110] sm:$0xff]
      %v1559 = vld [vmem:[%s1534 + $0x120] sm:$0xff]
      %v1560 = vld [vmem:[%s1534 + $0x128] sm:$0xff]
      %v1561 = vld [vmem:[%s1534 + $0x138] sm:$0xff]
      %v1562 = vld [vmem:[%s1534 + $0x140] sm:$0xff]
      %v1563 = vld [vmem:[%s1534 + $0x150] sm:$0xff]
      %v1564 = vld [vmem:[%s1534 + $0x158] sm:$0xff]
      %v1565 = vld [vmem:[%s1534 + $0x168] sm:$0xff]
      %v1566 = vld [vmem:[%s1534 + $0x170] sm:$0xff]
      %v1567 = vld [vmem:[#allocation3] sm:$0xff]
      %v1568 = vld [vmem:[#allocation3 + $0x8] sm:$0xff]
      %v1569 = vld [vmem:[#allocation3 + $0x10] sm:$0xff]
      %v1570 = vld [vmem:[#allocation3 + $0x18] sm:$0xff]
      %v1571 = vld [vmem:[#allocation3 + $0x20] sm:$0xff]
      %v1572 = vld [vmem:[#allocation3 + $0x28] sm:$0xff]
      %v1573 = vld [vmem:[#allocation3 + $0x30] sm:$0xff]
      %v1574 = vld [vmem:[#allocation3 + $0x38] sm:$0xff]
      %v1575 = vld [vmem:[#allocation3 + $0x40] sm:$0xff]
      %v1576 = vld [vmem:[#allocation3 + $0x48] sm:$0xff]
      %v1577 = vld [vmem:[#allocation3 + $0x50] sm:$0xff]
      %v1578 = vld [vmem:[#allocation3 + $0x58] sm:$0xff]
      %v1579 = vld [vmem:[#allocation3 + $0x60] sm:$0xff]
      %v1580 = vld [vmem:[#allocation3 + $0x68] sm:$0xff]
      %v1581 = vld [vmem:[#allocation3 + $0x70] sm:$0xff]
      %v1582 = vld [vmem:[#allocation3 + $0x78] sm:$0xff]
      %v1583 = vld [vmem:[#allocation3 + $0x80] sm:$0xff]
      %v1584 = vld [vmem:[#allocation3 + $0x88] sm:$0xff]
      %v1585 = vld [vmem:[#allocation3 + $0x90] sm:$0xff]
      %v1586 = vld [vmem:[#allocation3 + $0x98] sm:$0xff]
      %v1587 = vld [vmem:[#allocation3 + $0xa0] sm:$0xff]
      %v1588 = vld [vmem:[#allocation3 + $0xa8] sm:$0xff]
      %v1589 = vld [vmem:[#allocation3 + $0xb0] sm:$0xff]
      %v1590 = vld [vmem:[#allocation3 + $0xb8] sm:$0xff]
      %v1591 = vld [vmem:[#allocation3 + $0xc0] sm:$0xff]
      %v1592 = vld [vmem:[#allocation3 + $0xc8] sm:$0xff]
      %v1593 = vld [vmem:[#allocation3 + $0xd0] sm:$0xff]
      %v1594 = vld [vmem:[#allocation3 + $0xd8] sm:$0xff]
      %v1595 = vld [vmem:[#allocation3 + $0xe0] sm:$0xff]
      %v1596 = vld [vmem:[#allocation3 + $0xe8] sm:$0xff]
      %v1597 = vld [vmem:[#allocation3 + $0xf0] sm:$0xff]
      %v1598 = vld [vmem:[#allocation3 + $0xf8] sm:$0xff]
      %v1599 = vpack.c.bf16 %v1536, %v1535
      %v1600 = vpack.c.bf16 %v1538, %v1537
      %v1601 = vpack.c.bf16 %v1540, %v1539
      %v1602 = vpack.c.bf16 %v1542, %v1541
      %v1603 = vpack.c.bf16 %v1544, %v1543
      %v1604 = vpack.c.bf16 %v1546, %v1545
      %v1605 = vpack.c.bf16 %v1548, %v1547
      %v1606 = vpack.c.bf16 %v1550, %v1549
      %v1607 = vpack.c.bf16 %v1552, %v1551
      %v1608 = vpack.c.bf16 %v1554, %v1553
      %v1609 = vpack.c.bf16 %v1556, %v1555
      %v1610 = vpack.c.bf16 %v1558, %v1557
      %v1611 = vpack.c.bf16 %v1560, %v1559
      %v1612 = vpack.c.bf16 %v1562, %v1561
      %v1613 = vpack.c.bf16 %v1564, %v1563
      %v1614 = vpack.c.bf16 %v1566, %v1565
      %s1615 = scalar_lea.vmem %s249, 6
      %v1616 = vld [vmem:[%s1615] sm:$0x3]
      %v1618 = vsel %vm540, %v1599, 0
      %v1621 = vsel %vm540, %v1600, 0
      %v1624 = vsel %vm540, %v1601, 0
      %v1627 = vsel %vm540, %v1602, 0
      %v1630 = vsel %vm540, %v1603, 0
      %v1633 = vsel %vm540, %v1604, 0
      %v1636 = vsel %vm540, %v1605, 0
      %v1639 = vsel %vm540, %v1606, 0
      %v1642 = vsel %vm540, %v1607, 0
      %v1645 = vsel %vm540, %v1608, 0
      %v1648 = vsel %vm540, %v1609, 0
      %v1651 = vsel %vm540, %v1610, 0
      %v1654 = vsel %vm540, %v1611, 0
      %v1657 = vsel %vm540, %v1612, 0
      %v1660 = vsel %vm540, %v1613, 0
      %v1663 = vsel %vm540, %v1614, 0
      %v1666 = vsel %vm589, %v1616, 0
      %1668 = vmatprep.subr.bf16.mxu0 0
      %1669 = vmatpush1.bf16.msra.mxu0 0
      %1670 = vmatprep.subr.bf16.mxu0 0
      %1671 = vmatpush1.bf16.msra.mxu0 0
      %1672 = vmatprep.subr.bf16.mxu0 0
      %1673 = vmatpush1.bf16.msra.mxu0 0
      %1674 = vmatprep.subr.bf16.mxu0 0
      %1675 = vmatpush1.bf16.msra.mxu0 0
      %1676 = vmatprep.subr.bf16.mxu0 0
      %1677 = vmatpush1.bf16.msra.mxu0 0
      %1678 = vmatprep.subr.bf16.mxu0 0
      %1679 = vmatpush1.bf16.msra.mxu0 0
      %1680 = vmatprep.subr.bf16.mxu0 0
      %1681 = vmatpush1.bf16.msra.mxu0 0
      %1682 = vmatprep.subr.bf16.mxu0 0
      %1683 = vmatpush1.bf16.msra.mxu0 %v1666
      %1684 = vmatprep.subr.bf16.mxu0 0
      %1685 = vmatpush2.bf16.msra.mxu0 0
      %1686 = vmatprep.subr.bf16.mxu0 0
      %1687 = vmatpush2.bf16.msra.mxu0 0
      %1688 = vmatprep.subr.bf16.mxu0 0
      %1689 = vmatpush2.bf16.msra.mxu0 0
      %1690 = vmatprep.subr.bf16.mxu0 0
      %1691 = vmatpush2.bf16.msra.mxu0 0
      %1692 = vmatprep.subr.bf16.mxu0 0
      %1693 = vmatpush2.bf16.msra.mxu0 0
      %1694 = vmatprep.subr.bf16.mxu0 0
      %1695 = vmatpush2.bf16.msra.mxu0 0
      %1696 = vmatprep.subr.bf16.mxu0 0
      %1697 = vmatpush2.bf16.msra.mxu0 0
      %1698 = vmatprep.subr.bf16.mxu0 0
      %1699 = vmatpush2.bf16.msra.mxu0 0
      %1700 = vmatprep.mubr.bf16.mxu0 0
      %1701 = vmatmul.mubr.bf16.gmra.mxu0 %v1618
      %v1702 = vpop.f32.mrf.mxu0
      %v1703 = vadd.f32 0.0, %v1702
      %v1704 = vpop.f32.mrf.mxu0
      %v1705 = vpop.f32.mrf.mxu0
      %v1706 = vadd.f32 0.0, %v1705
      %v1707 = vpop.f32.mrf.mxu0
      %1708 = vmatprep.mubr.bf16.mxu0 0
      %1709 = vmatmul.mubr.bf16.gmra.mxu0 %v1621
      %v1710 = vpop.f32.mrf.mxu0
      %v1711 = vadd.f32 0.0, %v1710
      %v1712 = vpop.f32.mrf.mxu0
      %v1713 = vpop.f32.mrf.mxu0
      %v1714 = vadd.f32 0.0, %v1713
      %v1715 = vpop.f32.mrf.mxu0
      %1716 = vmatprep.mubr.bf16.mxu0 0
      %1717 = vmatmul.mubr.bf16.gmra.mxu0 %v1624
      %v1718 = vpop.f32.mrf.mxu0
      %v1719 = vadd.f32 0.0, %v1718
      %v1720 = vpop.f32.mrf.mxu0
      %v1721 = vpop.f32.mrf.mxu0
      %v1722 = vadd.f32 0.0, %v1721
      %v1723 = vpop.f32.mrf.mxu0
      %1724 = vmatprep.mubr.bf16.mxu0 0
      %1725 = vmatmul.mubr.bf16.gmra.mxu0 %v1627
      %v1726 = vpop.f32.mrf.mxu0
      %v1727 = vadd.f32 0.0, %v1726
      %v1728 = vpop.f32.mrf.mxu0
      %v1729 = vpop.f32.mrf.mxu0
      %v1730 = vadd.f32 0.0, %v1729
      %v1731 = vpop.f32.mrf.mxu0
      %1732 = vmatprep.mubr.bf16.mxu0 0
      %1733 = vmatmul.mubr.bf16.gmra.mxu0 %v1630
      %v1734 = vpop.f32.mrf.mxu0
      %v1735 = vadd.f32 0.0, %v1734
      %v1736 = vpop.f32.mrf.mxu0
      %v1737 = vpop.f32.mrf.mxu0
      %v1738 = vadd.f32 0.0, %v1737
      %v1739 = vpop.f32.mrf.mxu0
      %1740 = vmatprep.mubr.bf16.mxu0 0
      %1741 = vmatmul.mubr.bf16.gmra.mxu0 %v1633
      %v1742 = vpop.f32.mrf.mxu0
      %v1743 = vadd.f32 0.0, %v1742
      %v1744 = vpop.f32.mrf.mxu0
      %v1745 = vpop.f32.mrf.mxu0
      %v1746 = vadd.f32 0.0, %v1745
      %v1747 = vpop.f32.mrf.mxu0
      %1748 = vmatprep.mubr.bf16.mxu0 0
      %1749 = vmatmul.mubr.bf16.gmra.mxu0 %v1636
      %v1750 = vpop.f32.mrf.mxu0
      %v1751 = vadd.f32 0.0, %v1750
      %v1752 = vpop.f32.mrf.mxu0
      %v1753 = vpop.f32.mrf.mxu0
      %v1754 = vadd.f32 0.0, %v1753
      %v1755 = vpop.f32.mrf.mxu0
      %1756 = vmatprep.mubr.bf16.mxu0 0
      %1757 = vmatmul.mubr.bf16.gmra.mxu0 %v1639
      %v1758 = vpop.f32.mrf.mxu0
      %v1759 = vadd.f32 0.0, %v1758
      %v1760 = vpop.f32.mrf.mxu0
      %v1761 = vpop.f32.mrf.mxu0
      %v1762 = vadd.f32 0.0, %v1761
      %v1763 = vpop.f32.mrf.mxu0
      %1764 = vmatprep.mubr.bf16.mxu0 0
      %1765 = vmatmul.mubr.bf16.gmra.mxu0 %v1642
      %v1766 = vpop.f32.mrf.mxu0
      %v1767 = vadd.f32 0.0, %v1766
      %v1768 = vpop.f32.mrf.mxu0
      %v1769 = vpop.f32.mrf.mxu0
      %v1770 = vadd.f32 0.0, %v1769
      %v1771 = vpop.f32.mrf.mxu0
      %1772 = vmatprep.mubr.bf16.mxu0 0
      %1773 = vmatmul.mubr.bf16.gmra.mxu0 %v1645
      %v1774 = vpop.f32.mrf.mxu0
      %v1775 = vadd.f32 0.0, %v1774
      %v1776 = vpop.f32.mrf.mxu0
      %v1777 = vpop.f32.mrf.mxu0
      %v1778 = vadd.f32 0.0, %v1777
      %v1779 = vpop.f32.mrf.mxu0
      %1780 = vmatprep.mubr.bf16.mxu0 0
      %1781 = vmatmul.mubr.bf16.gmra.mxu0 %v1648
      %v1782 = vpop.f32.mrf.mxu0
      %v1783 = vadd.f32 0.0, %v1782
      %v1784 = vpop.f32.mrf.mxu0
      %v1785 = vpop.f32.mrf.mxu0
      %v1786 = vadd.f32 0.0, %v1785
      %v1787 = vpop.f32.mrf.mxu0
      %1788 = vmatprep.mubr.bf16.mxu0 0
      %1789 = vmatmul.mubr.bf16.gmra.mxu0 %v1651
      %v1790 = vpop.f32.mrf.mxu0
      %v1791 = vadd.f32 0.0, %v1790
      %v1792 = vpop.f32.mrf.mxu0
      %v1793 = vpop.f32.mrf.mxu0
      %v1794 = vadd.f32 0.0, %v1793
      %v1795 = vpop.f32.mrf.mxu0
      %1796 = vmatprep.mubr.bf16.mxu0 0
      %1797 = vmatmul.mubr.bf16.gmra.mxu0 %v1654
      %v1798 = vpop.f32.mrf.mxu0
      %v1799 = vadd.f32 0.0, %v1798
      %v1800 = vpop.f32.mrf.mxu0
      %v1801 = vpop.f32.mrf.mxu0
      %v1802 = vadd.f32 0.0, %v1801
      %v1803 = vpop.f32.mrf.mxu0
      %1804 = vmatprep.mubr.bf16.mxu0 0
      %1805 = vmatmul.mubr.bf16.gmra.mxu0 %v1657
      %v1806 = vpop.f32.mrf.mxu0
      %v1807 = vadd.f32 0.0, %v1806
      %v1808 = vpop.f32.mrf.mxu0
      %v1809 = vpop.f32.mrf.mxu0
      %v1810 = vadd.f32 0.0, %v1809
      %v1811 = vpop.f32.mrf.mxu0
      %1812 = vmatprep.mubr.bf16.mxu0 0
      %1813 = vmatmul.mubr.bf16.gmra.mxu0 %v1660
      %v1814 = vpop.f32.mrf.mxu0
      %v1815 = vadd.f32 0.0, %v1814
      %v1816 = vpop.f32.mrf.mxu0
      %v1817 = vpop.f32.mrf.mxu0
      %v1818 = vadd.f32 0.0, %v1817
      %v1819 = vpop.f32.mrf.mxu0
      %1820 = vmatprep.mubr.bf16.mxu0 0
      %1821 = vmatmul.mubr.bf16.gmra.mxu0 %v1663
      %v1822 = vpop.f32.mrf.mxu0
      %v1823 = vadd.f32 0.0, %v1822
      %v1824 = vpop.f32.mrf.mxu0
      %v1825 = vpop.f32.mrf.mxu0
      %v1826 = vadd.f32 0.0, %v1825
      %v1827 = vpop.f32.mrf.mxu0
      %1828 = vdwg.mxu0
      %v1829 = vadd.f32 %v1567, %v1703
      %v1830 = vadd.f32 %v1568, %v1706
      %v1831 = vadd.f32 %v1569, %v1711
      %v1832 = vadd.f32 %v1570, %v1714
      %v1833 = vadd.f32 %v1571, %v1719
      %v1834 = vadd.f32 %v1572, %v1722
      %v1835 = vadd.f32 %v1573, %v1727
      %v1836 = vadd.f32 %v1574, %v1730
      %v1837 = vadd.f32 %v1575, %v1735
      %v1838 = vadd.f32 %v1576, %v1738
      %v1839 = vadd.f32 %v1577, %v1743
      %v1840 = vadd.f32 %v1578, %v1746
      %v1841 = vadd.f32 %v1579, %v1751
      %v1842 = vadd.f32 %v1580, %v1754
      %v1843 = vadd.f32 %v1581, %v1759
      %v1844 = vadd.f32 %v1582, %v1762
      %v1845 = vadd.f32 %v1583, %v1767
      %v1846 = vadd.f32 %v1584, %v1770
      %v1847 = vadd.f32 %v1585, %v1775
      %v1848 = vadd.f32 %v1586, %v1778
      %v1849 = vadd.f32 %v1587, %v1783
      %v1850 = vadd.f32 %v1588, %v1786
      %v1851 = vadd.f32 %v1589, %v1791
      %v1852 = vadd.f32 %v1590, %v1794
      %v1853 = vadd.f32 %v1591, %v1799
      %v1854 = vadd.f32 %v1592, %v1802
      %v1855 = vadd.f32 %v1593, %v1807
      %v1856 = vadd.f32 %v1594, %v1810
      %v1857 = vadd.f32 %v1595, %v1815
      %v1858 = vadd.f32 %v1596, %v1818
      %v1859 = vadd.f32 %v1597, %v1823
      %v1860 = vadd.f32 %v1598, %v1826
      %1861 = vst.msk [vmem:[#allocation3] sm:$0xff] %vm426, %v1829
      %1862 = vst.msk [vmem:[#allocation3 + $0x8] sm:$0xff] %vm426, %v1830
      %1863 = vst.msk [vmem:[#allocation3 + $0x10] sm:$0xff] %vm426, %v1831
      %1864 = vst.msk [vmem:[#allocation3 + $0x18] sm:$0xff] %vm426, %v1832
      %1865 = vst.msk [vmem:[#allocation3 + $0x20] sm:$0xff] %vm426, %v1833
      %1866 = vst.msk [vmem:[#allocation3 + $0x28] sm:$0xff] %vm426, %v1834
      %1867 = vst.msk [vmem:[#allocation3 + $0x30] sm:$0xff] %vm426, %v1835
      %1868 = vst.msk [vmem:[#allocation3 + $0x38] sm:$0xff] %vm426, %v1836
      %1869 = vst.msk [vmem:[#allocation3 + $0x40] sm:$0xff] %vm426, %v1837
      %1870 = vst.msk [vmem:[#allocation3 + $0x48] sm:$0xff] %vm426, %v1838
      %1871 = vst.msk [vmem:[#allocation3 + $0x50] sm:$0xff] %vm426, %v1839
      %1872 = vst.msk [vmem:[#allocation3 + $0x58] sm:$0xff] %vm426, %v1840
      %1873 = vst.msk [vmem:[#allocation3 + $0x60] sm:$0xff] %vm426, %v1841
      %1874 = vst.msk [vmem:[#allocation3 + $0x68] sm:$0xff] %vm426, %v1842
      %1875 = vst.msk [vmem:[#allocation3 + $0x70] sm:$0xff] %vm426, %v1843
      %1876 = vst.msk [vmem:[#allocation3 + $0x78] sm:$0xff] %vm426, %v1844
      %1877 = vst.msk [vmem:[#allocation3 + $0x80] sm:$0xff] %vm426, %v1845
      %1878 = vst.msk [vmem:[#allocation3 + $0x88] sm:$0xff] %vm426, %v1846
      %1879 = vst.msk [vmem:[#allocation3 + $0x90] sm:$0xff] %vm426, %v1847
      %1880 = vst.msk [vmem:[#allocation3 + $0x98] sm:$0xff] %vm426, %v1848
      %1881 = vst.msk [vmem:[#allocation3 + $0xa0] sm:$0xff] %vm426, %v1849
      %1882 = vst.msk [vmem:[#allocation3 + $0xa8] sm:$0xff] %vm426, %v1850
      %1883 = vst.msk [vmem:[#allocation3 + $0xb0] sm:$0xff] %vm426, %v1851
      %1884 = vst.msk [vmem:[#allocation3 + $0xb8] sm:$0xff] %vm426, %v1852
      %1885 = vst.msk [vmem:[#allocation3 + $0xc0] sm:$0xff] %vm426, %v1853
      %1886 = vst.msk [vmem:[#allocation3 + $0xc8] sm:$0xff] %vm426, %v1854
      %1887 = vst.msk [vmem:[#allocation3 + $0xd0] sm:$0xff] %vm426, %v1855
      %1888 = vst.msk [vmem:[#allocation3 + $0xd8] sm:$0xff] %vm426, %v1856
      %1889 = vst.msk [vmem:[#allocation3 + $0xe0] sm:$0xff] %vm426, %v1857
      %1890 = vst.msk [vmem:[#allocation3 + $0xe8] sm:$0xff] %vm426, %v1858
      %1891 = vst.msk [vmem:[#allocation3 + $0xf0] sm:$0xff] %vm426, %v1859
      %1892 = vst.msk [vmem:[#allocation3 + $0xf8] sm:$0xff] %vm426, %v1860
      %v1893 = vld [vmem:[%s1534 + $0x1] sm:$0xff]
      %v1894 = vld [vmem:[%s1534 + $0x9] sm:$0xff]
      %v1895 = vld [vmem:[%s1534 + $0x19] sm:$0xff]
      %v1896 = vld [vmem:[%s1534 + $0x21] sm:$0xff]
      %v1897 = vld [vmem:[%s1534 + $0x31] sm:$0xff]
      %v1898 = vld [vmem:[%s1534 + $0x39] sm:$0xff]
      %v1899 = vld [vmem:[%s1534 + $0x49] sm:$0xff]
      %v1900 = vld [vmem:[%s1534 + $0x51] sm:$0xff]
      %v1901 = vld [vmem:[%s1534 + $0x61] sm:$0xff]
      %v1902 = vld [vmem:[%s1534 + $0x69] sm:$0xff]
      %v1903 = vld [vmem:[%s1534 + $0x79] sm:$0xff]
      %v1904 = vld [vmem:[%s1534 + $0x81] sm:$0xff]
      %v1905 = vld [vmem:[%s1534 + $0x91] sm:$0xff]
      %v1906 = vld [vmem:[%s1534 + $0x99] sm:$0xff]
      %v1907 = vld [vmem:[%s1534 + $0xa9] sm:$0xff]
      %v1908 = vld [vmem:[%s1534 + $0xb1] sm:$0xff]
      %v1909 = vld [vmem:[%s1534 + $0xc1] sm:$0xff]
      %v1910 = vld [vmem:[%s1534 + $0xc9] sm:$0xff]
      %v1911 = vld [vmem:[%s1534 + $0xd9] sm:$0xff]
      %v1912 = vld [vmem:[%s1534 + $0xe1] sm:$0xff]
      %v1913 = vld [vmem:[%s1534 + $0xf1] sm:$0xff]
      %v1914 = vld [vmem:[%s1534 + $0xf9] sm:$0xff]
      %v1915 = vld [vmem:[%s1534 + $0x109] sm:$0xff]
      %v1916 = vld [vmem:[%s1534 + $0x111] sm:$0xff]
      %v1917 = vld [vmem:[%s1534 + $0x121] sm:$0xff]
      %v1918 = vld [vmem:[%s1534 + $0x129] sm:$0xff]
      %v1919 = vld [vmem:[%s1534 + $0x139] sm:$0xff]
      %v1920 = vld [vmem:[%s1534 + $0x141] sm:$0xff]
      %v1921 = vld [vmem:[%s1534 + $0x151] sm:$0xff]
      %v1922 = vld [vmem:[%s1534 + $0x159] sm:$0xff]
      %v1923 = vld [vmem:[%s1534 + $0x169] sm:$0xff]
      %v1924 = vld [vmem:[%s1534 + $0x171] sm:$0xff]
      %v1925 = vld [vmem:[#allocation3] sm:$0xff]
      %v1926 = vld [vmem:[#allocation3 + $0x8] sm:$0xff]
      %v1927 = vld [vmem:[#allocation3 + $0x10] sm:$0xff]
      %v1928 = vld [vmem:[#allocation3 + $0x18] sm:$0xff]
      %v1929 = vld [vmem:[#allocation3 + $0x20] sm:$0xff]
      %v1930 = vld [vmem:[#allocation3 + $0x28] sm:$0xff]
      %v1931 = vld [vmem:[#allocation3 + $0x30] sm:$0xff]
      %v1932 = vld [vmem:[#allocation3 + $0x38] sm:$0xff]
      %v1933 = vld [vmem:[#allocation3 + $0x40] sm:$0xff]
      %v1934 = vld [vmem:[#allocation3 + $0x48] sm:$0xff]
      %v1935 = vld [vmem:[#allocation3 + $0x50] sm:$0xff]
      %v1936 = vld [vmem:[#allocation3 + $0x58] sm:$0xff]
      %v1937 = vld [vmem:[#allocation3 + $0x60] sm:$0xff]
      %v1938 = vld [vmem:[#allocation3 + $0x68] sm:$0xff]
      %v1939 = vld [vmem:[#allocation3 + $0x70] sm:$0xff]
      %v1940 = vld [vmem:[#allocation3 + $0x78] sm:$0xff]
      %v1941 = vld [vmem:[#allocation3 + $0x80] sm:$0xff]
      %v1942 = vld [vmem:[#allocation3 + $0x88] sm:$0xff]
      %v1943 = vld [vmem:[#allocation3 + $0x90] sm:$0xff]
      %v1944 = vld [vmem:[#allocation3 + $0x98] sm:$0xff]
      %v1945 = vld [vmem:[#allocation3 + $0xa0] sm:$0xff]
      %v1946 = vld [vmem:[#allocation3 + $0xa8] sm:$0xff]
      %v1947 = vld [vmem:[#allocation3 + $0xb0] sm:$0xff]
      %v1948 = vld [vmem:[#allocation3 + $0xb8] sm:$0xff]
      %v1949 = vld [vmem:[#allocation3 + $0xc0] sm:$0xff]
      %v1950 = vld [vmem:[#allocation3 + $0xc8] sm:$0xff]
      %v1951 = vld [vmem:[#allocation3 + $0xd0] sm:$0xff]
      %v1952 = vld [vmem:[#allocation3 + $0xd8] sm:$0xff]
      %v1953 = vld [vmem:[#allocation3 + $0xe0] sm:$0xff]
      %v1954 = vld [vmem:[#allocation3 + $0xe8] sm:$0xff]
      %v1955 = vld [vmem:[#allocation3 + $0xf0] sm:$0xff]
      %v1956 = vld [vmem:[#allocation3 + $0xf8] sm:$0xff]
      %v1957 = vpack.c.bf16 %v1894, %v1893
      %v1958 = vpack.c.bf16 %v1896, %v1895
      %v1959 = vpack.c.bf16 %v1898, %v1897
      %v1960 = vpack.c.bf16 %v1900, %v1899
      %v1961 = vpack.c.bf16 %v1902, %v1901
      %v1962 = vpack.c.bf16 %v1904, %v1903
      %v1963 = vpack.c.bf16 %v1906, %v1905
      %v1964 = vpack.c.bf16 %v1908, %v1907
      %v1965 = vpack.c.bf16 %v1910, %v1909
      %v1966 = vpack.c.bf16 %v1912, %v1911
      %v1967 = vpack.c.bf16 %v1914, %v1913
      %v1968 = vpack.c.bf16 %v1916, %v1915
      %v1969 = vpack.c.bf16 %v1918, %v1917
      %v1970 = vpack.c.bf16 %v1920, %v1919
      %v1971 = vpack.c.bf16 %v1922, %v1921
      %v1972 = vpack.c.bf16 %v1924, %v1923
      %s1973 = scalar_lea.vmem %s249, 8
      %v1974 = vld [vmem:[%s1973] sm:$0x3]
      %v1976 = vsel %vm540, %v1957, 0
      %v1979 = vsel %vm540, %v1958, 0
      %v1982 = vsel %vm540, %v1959, 0
      %v1985 = vsel %vm540, %v1960, 0
      %v1988 = vsel %vm540, %v1961, 0
      %v1991 = vsel %vm540, %v1962, 0
      %v1994 = vsel %vm540, %v1963, 0
      %v1997 = vsel %vm540, %v1964, 0
      %v2000 = vsel %vm540, %v1965, 0
      %v2003 = vsel %vm540, %v1966, 0
      %v2006 = vsel %vm540, %v1967, 0
      %v2009 = vsel %vm540, %v1968, 0
      %v2012 = vsel %vm540, %v1969, 0
      %v2015 = vsel %vm540, %v1970, 0
      %v2018 = vsel %vm540, %v1971, 0
      %v2021 = vsel %vm540, %v1972, 0
      %v2024 = vsel %vm589, %v1974, 0
      %2026 = vmatprep.subr.bf16.mxu0 0
      %2027 = vmatpush1.bf16.msra.mxu0 0
      %2028 = vmatprep.subr.bf16.mxu0 0
      %2029 = vmatpush1.bf16.msra.mxu0 0
      %2030 = vmatprep.subr.bf16.mxu0 0
      %2031 = vmatpush1.bf16.msra.mxu0 0
      %2032 = vmatprep.subr.bf16.mxu0 0
      %2033 = vmatpush1.bf16.msra.mxu0 0
      %2034 = vmatprep.subr.bf16.mxu0 0
      %2035 = vmatpush1.bf16.msra.mxu0 0
      %2036 = vmatprep.subr.bf16.mxu0 0
      %2037 = vmatpush1.bf16.msra.mxu0 0
      %2038 = vmatprep.subr.bf16.mxu0 0
      %2039 = vmatpush1.bf16.msra.mxu0 0
      %2040 = vmatprep.subr.bf16.mxu0 0
      %2041 = vmatpush1.bf16.msra.mxu0 %v2024
      %2042 = vmatprep.subr.bf16.mxu0 0
      %2043 = vmatpush2.bf16.msra.mxu0 0
      %2044 = vmatprep.subr.bf16.mxu0 0
      %2045 = vmatpush2.bf16.msra.mxu0 0
      %2046 = vmatprep.subr.bf16.mxu0 0
      %2047 = vmatpush2.bf16.msra.mxu0 0
      %2048 = vmatprep.subr.bf16.mxu0 0
      %2049 = vmatpush2.bf16.msra.mxu0 0
      %2050 = vmatprep.subr.bf16.mxu0 0
      %2051 = vmatpush2.bf16.msra.mxu0 0
      %2052 = vmatprep.subr.bf16.mxu0 0
      %2053 = vmatpush2.bf16.msra.mxu0 0
      %2054 = vmatprep.subr.bf16.mxu0 0
      %2055 = vmatpush2.bf16.msra.mxu0 0
      %2056 = vmatprep.subr.bf16.mxu0 0
      %2057 = vmatpush2.bf16.msra.mxu0 0
      %2058 = vmatprep.mubr.bf16.mxu0 0
      %2059 = vmatmul.mubr.bf16.gmra.mxu0 %v1976
      %v2060 = vpop.f32.mrf.mxu0
      %v2061 = vadd.f32 0.0, %v2060
      %v2062 = vpop.f32.mrf.mxu0
      %v2063 = vpop.f32.mrf.mxu0
      %v2064 = vadd.f32 0.0, %v2063
      %v2065 = vpop.f32.mrf.mxu0
      %2066 = vmatprep.mubr.bf16.mxu0 0
      %2067 = vmatmul.mubr.bf16.gmra.mxu0 %v1979
      %v2068 = vpop.f32.mrf.mxu0
      %v2069 = vadd.f32 0.0, %v2068
      %v2070 = vpop.f32.mrf.mxu0
      %v2071 = vpop.f32.mrf.mxu0
      %v2072 = vadd.f32 0.0, %v2071
      %v2073 = vpop.f32.mrf.mxu0
      %2074 = vmatprep.mubr.bf16.mxu0 0
      %2075 = vmatmul.mubr.bf16.gmra.mxu0 %v1982
      %v2076 = vpop.f32.mrf.mxu0
      %v2077 = vadd.f32 0.0, %v2076
      %v2078 = vpop.f32.mrf.mxu0
      %v2079 = vpop.f32.mrf.mxu0
      %v2080 = vadd.f32 0.0, %v2079
      %v2081 = vpop.f32.mrf.mxu0
      %2082 = vmatprep.mubr.bf16.mxu0 0
      %2083 = vmatmul.mubr.bf16.gmra.mxu0 %v1985
      %v2084 = vpop.f32.mrf.mxu0
      %v2085 = vadd.f32 0.0, %v2084
      %v2086 = vpop.f32.mrf.mxu0
      %v2087 = vpop.f32.mrf.mxu0
      %v2088 = vadd.f32 0.0, %v2087
      %v2089 = vpop.f32.mrf.mxu0
      %2090 = vmatprep.mubr.bf16.mxu0 0
      %2091 = vmatmul.mubr.bf16.gmra.mxu0 %v1988
      %v2092 = vpop.f32.mrf.mxu0
      %v2093 = vadd.f32 0.0, %v2092
      %v2094 = vpop.f32.mrf.mxu0
      %v2095 = vpop.f32.mrf.mxu0
      %v2096 = vadd.f32 0.0, %v2095
      %v2097 = vpop.f32.mrf.mxu0
      %2098 = vmatprep.mubr.bf16.mxu0 0
      %2099 = vmatmul.mubr.bf16.gmra.mxu0 %v1991
      %v2100 = vpop.f32.mrf.mxu0
      %v2101 = vadd.f32 0.0, %v2100
      %v2102 = vpop.f32.mrf.mxu0
      %v2103 = vpop.f32.mrf.mxu0
      %v2104 = vadd.f32 0.0, %v2103
      %v2105 = vpop.f32.mrf.mxu0
      %2106 = vmatprep.mubr.bf16.mxu0 0
      %2107 = vmatmul.mubr.bf16.gmra.mxu0 %v1994
      %v2108 = vpop.f32.mrf.mxu0
      %v2109 = vadd.f32 0.0, %v2108
      %v2110 = vpop.f32.mrf.mxu0
      %v2111 = vpop.f32.mrf.mxu0
      %v2112 = vadd.f32 0.0, %v2111
      %v2113 = vpop.f32.mrf.mxu0
      %2114 = vmatprep.mubr.bf16.mxu0 0
      %2115 = vmatmul.mubr.bf16.gmra.mxu0 %v1997
      %v2116 = vpop.f32.mrf.mxu0
      %v2117 = vadd.f32 0.0, %v2116
      %v2118 = vpop.f32.mrf.mxu0
      %v2119 = vpop.f32.mrf.mxu0
      %v2120 = vadd.f32 0.0, %v2119
      %v2121 = vpop.f32.mrf.mxu0
      %2122 = vmatprep.mubr.bf16.mxu0 0
      %2123 = vmatmul.mubr.bf16.gmra.mxu0 %v2000
      %v2124 = vpop.f32.mrf.mxu0
      %v2125 = vadd.f32 0.0, %v2124
      %v2126 = vpop.f32.mrf.mxu0
      %v2127 = vpop.f32.mrf.mxu0
      %v2128 = vadd.f32 0.0, %v2127
      %v2129 = vpop.f32.mrf.mxu0
      %2130 = vmatprep.mubr.bf16.mxu0 0
      %2131 = vmatmul.mubr.bf16.gmra.mxu0 %v2003
      %v2132 = vpop.f32.mrf.mxu0
      %v2133 = vadd.f32 0.0, %v2132
      %v2134 = vpop.f32.mrf.mxu0
      %v2135 = vpop.f32.mrf.mxu0
      %v2136 = vadd.f32 0.0, %v2135
      %v2137 = vpop.f32.mrf.mxu0
      %2138 = vmatprep.mubr.bf16.mxu0 0
      %2139 = vmatmul.mubr.bf16.gmra.mxu0 %v2006
      %v2140 = vpop.f32.mrf.mxu0
      %v2141 = vadd.f32 0.0, %v2140
      %v2142 = vpop.f32.mrf.mxu0
      %v2143 = vpop.f32.mrf.mxu0
      %v2144 = vadd.f32 0.0, %v2143
      %v2145 = vpop.f32.mrf.mxu0
      %2146 = vmatprep.mubr.bf16.mxu0 0
      %2147 = vmatmul.mubr.bf16.gmra.mxu0 %v2009
      %v2148 = vpop.f32.mrf.mxu0
      %v2149 = vadd.f32 0.0, %v2148
      %v2150 = vpop.f32.mrf.mxu0
      %v2151 = vpop.f32.mrf.mxu0
      %v2152 = vadd.f32 0.0, %v2151
      %v2153 = vpop.f32.mrf.mxu0
      %2154 = vmatprep.mubr.bf16.mxu0 0
      %2155 = vmatmul.mubr.bf16.gmra.mxu0 %v2012
      %v2156 = vpop.f32.mrf.mxu0
      %v2157 = vadd.f32 0.0, %v2156
      %v2158 = vpop.f32.mrf.mxu0
      %v2159 = vpop.f32.mrf.mxu0
      %v2160 = vadd.f32 0.0, %v2159
      %v2161 = vpop.f32.mrf.mxu0
      %2162 = vmatprep.mubr.bf16.mxu0 0
      %2163 = vmatmul.mubr.bf16.gmra.mxu0 %v2015
      %v2164 = vpop.f32.mrf.mxu0
      %v2165 = vadd.f32 0.0, %v2164
      %v2166 = vpop.f32.mrf.mxu0
      %v2167 = vpop.f32.mrf.mxu0
      %v2168 = vadd.f32 0.0, %v2167
      %v2169 = vpop.f32.mrf.mxu0
      %2170 = vmatprep.mubr.bf16.mxu0 0
      %2171 = vmatmul.mubr.bf16.gmra.mxu0 %v2018
      %v2172 = vpop.f32.mrf.mxu0
      %v2173 = vadd.f32 0.0, %v2172
      %v2174 = vpop.f32.mrf.mxu0
      %v2175 = vpop.f32.mrf.mxu0
      %v2176 = vadd.f32 0.0, %v2175
      %v2177 = vpop.f32.mrf.mxu0
      %2178 = vmatprep.mubr.bf16.mxu0 0
      %2179 = vmatmul.mubr.bf16.gmra.mxu0 %v2021
      %v2180 = vpop.f32.mrf.mxu0
      %v2181 = vadd.f32 0.0, %v2180
      %v2182 = vpop.f32.mrf.mxu0
      %v2183 = vpop.f32.mrf.mxu0
      %v2184 = vadd.f32 0.0, %v2183
      %v2185 = vpop.f32.mrf.mxu0
      %2186 = vdwg.mxu0
      %v2187 = vadd.f32 %v1925, %v2061
      %v2188 = vadd.f32 %v1926, %v2064
      %v2189 = vadd.f32 %v1927, %v2069
      %v2190 = vadd.f32 %v1928, %v2072
      %v2191 = vadd.f32 %v1929, %v2077
      %v2192 = vadd.f32 %v1930, %v2080
      %v2193 = vadd.f32 %v1931, %v2085
      %v2194 = vadd.f32 %v1932, %v2088
      %v2195 = vadd.f32 %v1933, %v2093
      %v2196 = vadd.f32 %v1934, %v2096
      %v2197 = vadd.f32 %v1935, %v2101
      %v2198 = vadd.f32 %v1936, %v2104
      %v2199 = vadd.f32 %v1937, %v2109
      %v2200 = vadd.f32 %v1938, %v2112
      %v2201 = vadd.f32 %v1939, %v2117
      %v2202 = vadd.f32 %v1940, %v2120
      %v2203 = vadd.f32 %v1941, %v2125
      %v2204 = vadd.f32 %v1942, %v2128
      %v2205 = vadd.f32 %v1943, %v2133
      %v2206 = vadd.f32 %v1944, %v2136
      %v2207 = vadd.f32 %v1945, %v2141
      %v2208 = vadd.f32 %v1946, %v2144
      %v2209 = vadd.f32 %v1947, %v2149
      %v2210 = vadd.f32 %v1948, %v2152
      %v2211 = vadd.f32 %v1949, %v2157
      %v2212 = vadd.f32 %v1950, %v2160
      %v2213 = vadd.f32 %v1951, %v2165
      %v2214 = vadd.f32 %v1952, %v2168
      %v2215 = vadd.f32 %v1953, %v2173
      %v2216 = vadd.f32 %v1954, %v2176
      %v2217 = vadd.f32 %v1955, %v2181
      %v2218 = vadd.f32 %v1956, %v2184
      %2219 = vst.msk [vmem:[#allocation3] sm:$0xff] %vm426, %v2187
      %2220 = vst.msk [vmem:[#allocation3 + $0x8] sm:$0xff] %vm426, %v2188
      %2221 = vst.msk [vmem:[#allocation3 + $0x10] sm:$0xff] %vm426, %v2189
      %2222 = vst.msk [vmem:[#allocation3 + $0x18] sm:$0xff] %vm426, %v2190
      %2223 = vst.msk [vmem:[#allocation3 + $0x20] sm:$0xff] %vm426, %v2191
      %2224 = vst.msk [vmem:[#allocation3 + $0x28] sm:$0xff] %vm426, %v2192
      %2225 = vst.msk [vmem:[#allocation3 + $0x30] sm:$0xff] %vm426, %v2193
      %2226 = vst.msk [vmem:[#allocation3 + $0x38] sm:$0xff] %vm426, %v2194
      %2227 = vst.msk [vmem:[#allocation3 + $0x40] sm:$0xff] %vm426, %v2195
      %2228 = vst.msk [vmem:[#allocation3 + $0x48] sm:$0xff] %vm426, %v2196
      %2229 = vst.msk [vmem:[#allocation3 + $0x50] sm:$0xff] %vm426, %v2197
      %2230 = vst.msk [vmem:[#allocation3 + $0x58] sm:$0xff] %vm426, %v2198
      %2231 = vst.msk [vmem:[#allocation3 + $0x60] sm:$0xff] %vm426, %v2199
      %2232 = vst.msk [vmem:[#allocation3 + $0x68] sm:$0xff] %vm426, %v2200
      %2233 = vst.msk [vmem:[#allocation3 + $0x70] sm:$0xff] %vm426, %v2201
      %2234 = vst.msk [vmem:[#allocation3 + $0x78] sm:$0xff] %vm426, %v2202
      %2235 = vst.msk [vmem:[#allocation3 + $0x80] sm:$0xff] %vm426, %v2203
      %2236 = vst.msk [vmem:[#allocation3 + $0x88] sm:$0xff] %vm426, %v2204
      %2237 = vst.msk [vmem:[#allocation3 + $0x90] sm:$0xff] %vm426, %v2205
      %2238 = vst.msk [vmem:[#allocation3 + $0x98] sm:$0xff] %vm426, %v2206
      %2239 = vst.msk [vmem:[#allocation3 + $0xa0] sm:$0xff] %vm426, %v2207
      %2240 = vst.msk [vmem:[#allocation3 + $0xa8] sm:$0xff] %vm426, %v2208
      %2241 = vst.msk [vmem:[#allocation3 + $0xb0] sm:$0xff] %vm426, %v2209
      %2242 = vst.msk [vmem:[#allocation3 + $0xb8] sm:$0xff] %vm426, %v2210
      %2243 = vst.msk [vmem:[#allocation3 + $0xc0] sm:$0xff] %vm426, %v2211
      %2244 = vst.msk [vmem:[#allocation3 + $0xc8] sm:$0xff] %vm426, %v2212
      %2245 = vst.msk [vmem:[#allocation3 + $0xd0] sm:$0xff] %vm426, %v2213
      %2246 = vst.msk [vmem:[#allocation3 + $0xd8] sm:$0xff] %vm426, %v2214
      %2247 = vst.msk [vmem:[#allocation3 + $0xe0] sm:$0xff] %vm426, %v2215
      %2248 = vst.msk [vmem:[#allocation3 + $0xe8] sm:$0xff] %vm426, %v2216
      %2249 = vst.msk [vmem:[#allocation3 + $0xf0] sm:$0xff] %vm426, %v2217
      %2250 = vst.msk [vmem:[#allocation3 + $0xf8] sm:$0xff] %vm426, %v2218
      %v2251 = vld [vmem:[%s1534 + $0x2] sm:$0xff]
      %v2252 = vld [vmem:[%s1534 + $0xa] sm:$0xff]
      %v2253 = vld [vmem:[%s1534 + $0x1a] sm:$0xff]
      %v2254 = vld [vmem:[%s1534 + $0x22] sm:$0xff]
      %v2255 = vld [vmem:[%s1534 + $0x32] sm:$0xff]
      %v2256 = vld [vmem:[%s1534 + $0x3a] sm:$0xff]
      %v2257 = vld [vmem:[%s1534 + $0x4a] sm:$0xff]
      %v2258 = vld [vmem:[%s1534 + $0x52] sm:$0xff]
      %v2259 = vld [vmem:[%s1534 + $0x62] sm:$0xff]
      %v2260 = vld [vmem:[%s1534 + $0x6a] sm:$0xff]
      %v2261 = vld [vmem:[%s1534 + $0x7a] sm:$0xff]
      %v2262 = vld [vmem:[%s1534 + $0x82] sm:$0xff]
      %v2263 = vld [vmem:[%s1534 + $0x92] sm:$0xff]
      %v2264 = vld [vmem:[%s1534 + $0x9a] sm:$0xff]
      %v2265 = vld [vmem:[%s1534 + $0xaa] sm:$0xff]
      %v2266 = vld [vmem:[%s1534 + $0xb2] sm:$0xff]
      %v2267 = vld [vmem:[%s1534 + $0xc2] sm:$0xff]
      %v2268 = vld [vmem:[%s1534 + $0xca] sm:$0xff]
      %v2269 = vld [vmem:[%s1534 + $0xda] sm:$0xff]
      %v2270 = vld [vmem:[%s1534 + $0xe2] sm:$0xff]
      %v2271 = vld [vmem:[%s1534 + $0xf2] sm:$0xff]
      %v2272 = vld [vmem:[%s1534 + $0xfa] sm:$0xff]
      %v2273 = vld [vmem:[%s1534 + $0x10a] sm:$0xff]
      %v2274 = vld [vmem:[%s1534 + $0x112] sm:$0xff]
      %v2275 = vld [vmem:[%s1534 + $0x122] sm:$0xff]
      %v2276 = vld [vmem:[%s1534 + $0x12a] sm:$0xff]
      %v2277 = vld [vmem:[%s1534 + $0x13a] sm:$0xff]
      %v2278 = vld [vmem:[%s1534 + $0x142] sm:$0xff]
      %v2279 = vld [vmem:[%s1534 + $0x152] sm:$0xff]
      %v2280 = vld [vmem:[%s1534 + $0x15a] sm:$0xff]
      %v2281 = vld [vmem:[%s1534 + $0x16a] sm:$0xff]
      %v2282 = vld [vmem:[%s1534 + $0x172] sm:$0xff]
      %v2283 = vld [vmem:[#allocation3] sm:$0xff]
      %v2284 = vld [vmem:[#allocation3 + $0x8] sm:$0xff]
      %v2285 = vld [vmem:[#allocation3 + $0x10] sm:$0xff]
      %v2286 = vld [vmem:[#allocation3 + $0x18] sm:$0xff]
      %v2287 = vld [vmem:[#allocation3 + $0x20] sm:$0xff]
      %v2288 = vld [vmem:[#allocation3 + $0x28] sm:$0xff]
      %v2289 = vld [vmem:[#allocation3 + $0x30] sm:$0xff]
      %v2290 = vld [vmem:[#allocation3 + $0x38] sm:$0xff]
      %v2291 = vld [vmem:[#allocation3 + $0x40] sm:$0xff]
      %v2292 = vld [vmem:[#allocation3 + $0x48] sm:$0xff]
      %v2293 = vld [vmem:[#allocation3 + $0x50] sm:$0xff]
      %v2294 = vld [vmem:[#allocation3 + $0x58] sm:$0xff]
      %v2295 = vld [vmem:[#allocation3 + $0x60] sm:$0xff]
      %v2296 = vld [vmem:[#allocation3 + $0x68] sm:$0xff]
      %v2297 = vld [vmem:[#allocation3 + $0x70] sm:$0xff]
      %v2298 = vld [vmem:[#allocation3 + $0x78] sm:$0xff]
      %v2299 = vld [vmem:[#allocation3 + $0x80] sm:$0xff]
      %v2300 = vld [vmem:[#allocation3 + $0x88] sm:$0xff]
      %v2301 = vld [vmem:[#allocation3 + $0x90] sm:$0xff]
      %v2302 = vld [vmem:[#allocation3 + $0x98] sm:$0xff]
      %v2303 = vld [vmem:[#allocation3 + $0xa0] sm:$0xff]
      %v2304 = vld [vmem:[#allocation3 + $0xa8] sm:$0xff]
      %v2305 = vld [vmem:[#allocation3 + $0xb0] sm:$0xff]
      %v2306 = vld [vmem:[#allocation3 + $0xb8] sm:$0xff]
      %v2307 = vld [vmem:[#allocation3 + $0xc0] sm:$0xff]
      %v2308 = vld [vmem:[#allocation3 + $0xc8] sm:$0xff]
      %v2309 = vld [vmem:[#allocation3 + $0xd0] sm:$0xff]
      %v2310 = vld [vmem:[#allocation3 + $0xd8] sm:$0xff]
      %v2311 = vld [vmem:[#allocation3 + $0xe0] sm:$0xff]
      %v2312 = vld [vmem:[#allocation3 + $0xe8] sm:$0xff]
      %v2313 = vld [vmem:[#allocation3 + $0xf0] sm:$0xff]
      %v2314 = vld [vmem:[#allocation3 + $0xf8] sm:$0xff]
      %v2315 = vpack.c.bf16 %v2252, %v2251
      %v2316 = vpack.c.bf16 %v2254, %v2253
      %v2317 = vpack.c.bf16 %v2256, %v2255
      %v2318 = vpack.c.bf16 %v2258, %v2257
      %v2319 = vpack.c.bf16 %v2260, %v2259
      %v2320 = vpack.c.bf16 %v2262, %v2261
      %v2321 = vpack.c.bf16 %v2264, %v2263
      %v2322 = vpack.c.bf16 %v2266, %v2265
      %v2323 = vpack.c.bf16 %v2268, %v2267
      %v2324 = vpack.c.bf16 %v2270, %v2269
      %v2325 = vpack.c.bf16 %v2272, %v2271
      %v2326 = vpack.c.bf16 %v2274, %v2273
      %v2327 = vpack.c.bf16 %v2276, %v2275
      %v2328 = vpack.c.bf16 %v2278, %v2277
      %v2329 = vpack.c.bf16 %v2280, %v2279
      %v2330 = vpack.c.bf16 %v2282, %v2281
      %s2331 = scalar_lea.vmem %s249, 10
      %v2332 = vld [vmem:[%s2331] sm:$0x3]
      %v2334 = vsel %vm540, %v2315, 0
      %v2337 = vsel %vm540, %v2316, 0
      %v2340 = vsel %vm540, %v2317, 0
      %v2343 = vsel %vm540, %v2318, 0
      %v2346 = vsel %vm540, %v2319, 0
      %v2349 = vsel %vm540, %v2320, 0
      %v2352 = vsel %vm540, %v2321, 0
      %v2355 = vsel %vm540, %v2322, 0
      %v2358 = vsel %vm540, %v2323, 0
      %v2361 = vsel %vm540, %v2324, 0
      %v2364 = vsel %vm540, %v2325, 0
      %v2367 = vsel %vm540, %v2326, 0
      %v2370 = vsel %vm540, %v2327, 0
      %v2373 = vsel %vm540, %v2328, 0
      %v2376 = vsel %vm540, %v2329, 0
      %v2379 = vsel %vm540, %v2330, 0
      %v2382 = vsel %vm589, %v2332, 0
      %2384 = vmatprep.subr.bf16.mxu0 0
      %2385 = vmatpush1.bf16.msra.mxu0 0
      %2386 = vmatprep.subr.bf16.mxu0 0
      %2387 = vmatpush1.bf16.msra.mxu0 0
      %2388 = vmatprep.subr.bf16.mxu0 0
      %2389 = vmatpush1.bf16.msra.mxu0 0
      %2390 = vmatprep.subr.bf16.mxu0 0
      %2391 = vmatpush1.bf16.msra.mxu0 0
      %2392 = vmatprep.subr.bf16.mxu0 0
      %2393 = vmatpush1.bf16.msra.mxu0 0
      %2394 = vmatprep.subr.bf16.mxu0 0
      %2395 = vmatpush1.bf16.msra.mxu0 0
      %2396 = vmatprep.subr.bf16.mxu0 0
      %2397 = vmatpush1.bf16.msra.mxu0 0
      %2398 = vmatprep.subr.bf16.mxu0 0
      %2399 = vmatpush1.bf16.msra.mxu0 %v2382
      %2400 = vmatprep.subr.bf16.mxu0 0
      %2401 = vmatpush2.bf16.msra.mxu0 0
      %2402 = vmatprep.subr.bf16.mxu0 0
      %2403 = vmatpush2.bf16.msra.mxu0 0
      %2404 = vmatprep.subr.bf16.mxu0 0
      %2405 = vmatpush2.bf16.msra.mxu0 0
      %2406 = vmatprep.subr.bf16.mxu0 0
      %2407 = vmatpush2.bf16.msra.mxu0 0
      %2408 = vmatprep.subr.bf16.mxu0 0
      %2409 = vmatpush2.bf16.msra.mxu0 0
      %2410 = vmatprep.subr.bf16.mxu0 0
      %2411 = vmatpush2.bf16.msra.mxu0 0
      %2412 = vmatprep.subr.bf16.mxu0 0
      %2413 = vmatpush2.bf16.msra.mxu0 0
      %2414 = vmatprep.subr.bf16.mxu0 0
      %2415 = vmatpush2.bf16.msra.mxu0 0
      %2416 = vmatprep.mubr.bf16.mxu0 0
      %2417 = vmatmul.mubr.bf16.gmra.mxu0 %v2334
      %v2418 = vpop.f32.mrf.mxu0
      %v2419 = vadd.f32 0.0, %v2418
      %v2420 = vpop.f32.mrf.mxu0
      %v2421 = vpop.f32.mrf.mxu0
      %v2422 = vadd.f32 0.0, %v2421
      %v2423 = vpop.f32.mrf.mxu0
      %2424 = vmatprep.mubr.bf16.mxu0 0
      %2425 = vmatmul.mubr.bf16.gmra.mxu0 %v2337
      %v2426 = vpop.f32.mrf.mxu0
      %v2427 = vadd.f32 0.0, %v2426
      %v2428 = vpop.f32.mrf.mxu0
      %v2429 = vpop.f32.mrf.mxu0
      %v2430 = vadd.f32 0.0, %v2429
      %v2431 = vpop.f32.mrf.mxu0
      %2432 = vmatprep.mubr.bf16.mxu0 0
      %2433 = vmatmul.mubr.bf16.gmra.mxu0 %v2340
      %v2434 = vpop.f32.mrf.mxu0
      %v2435 = vadd.f32 0.0, %v2434
      %v2436 = vpop.f32.mrf.mxu0
      %v2437 = vpop.f32.mrf.mxu0
      %v2438 = vadd.f32 0.0, %v2437
      %v2439 = vpop.f32.mrf.mxu0
      %2440 = vmatprep.mubr.bf16.mxu0 0
      %2441 = vmatmul.mubr.bf16.gmra.mxu0 %v2343
      %v2442 = vpop.f32.mrf.mxu0
      %v2443 = vadd.f32 0.0, %v2442
      %v2444 = vpop.f32.mrf.mxu0
      %v2445 = vpop.f32.mrf.mxu0
      %v2446 = vadd.f32 0.0, %v2445
      %v2447 = vpop.f32.mrf.mxu0
      %2448 = vmatprep.mubr.bf16.mxu0 0
      %2449 = vmatmul.mubr.bf16.gmra.mxu0 %v2346
      %v2450 = vpop.f32.mrf.mxu0
      %v2451 = vadd.f32 0.0, %v2450
      %v2452 = vpop.f32.mrf.mxu0
      %v2453 = vpop.f32.mrf.mxu0
      %v2454 = vadd.f32 0.0, %v2453
      %v2455 = vpop.f32.mrf.mxu0
      %2456 = vmatprep.mubr.bf16.mxu0 0
      %2457 = vmatmul.mubr.bf16.gmra.mxu0 %v2349
      %v2458 = vpop.f32.mrf.mxu0
      %v2459 = vadd.f32 0.0, %v2458
      %v2460 = vpop.f32.mrf.mxu0
      %v2461 = vpop.f32.mrf.mxu0
      %v2462 = vadd.f32 0.0, %v2461
      %v2463 = vpop.f32.mrf.mxu0
      %2464 = vmatprep.mubr.bf16.mxu0 0
      %2465 = vmatmul.mubr.bf16.gmra.mxu0 %v2352
      %v2466 = vpop.f32.mrf.mxu0
      %v2467 = vadd.f32 0.0, %v2466
      %v2468 = vpop.f32.mrf.mxu0
      %v2469 = vpop.f32.mrf.mxu0
      %v2470 = vadd.f32 0.0, %v2469
      %v2471 = vpop.f32.mrf.mxu0
      %2472 = vmatprep.mubr.bf16.mxu0 0
      %2473 = vmatmul.mubr.bf16.gmra.mxu0 %v2355
      %v2474 = vpop.f32.mrf.mxu0
      %v2475 = vadd.f32 0.0, %v2474
      %v2476 = vpop.f32.mrf.mxu0
      %v2477 = vpop.f32.mrf.mxu0
      %v2478 = vadd.f32 0.0, %v2477
      %v2479 = vpop.f32.mrf.mxu0
      %2480 = vmatprep.mubr.bf16.mxu0 0
      %2481 = vmatmul.mubr.bf16.gmra.mxu0 %v2358
      %v2482 = vpop.f32.mrf.mxu0
      %v2483 = vadd.f32 0.0, %v2482
      %v2484 = vpop.f32.mrf.mxu0
      %v2485 = vpop.f32.mrf.mxu0
      %v2486 = vadd.f32 0.0, %v2485
      %v2487 = vpop.f32.mrf.mxu0
      %2488 = vmatprep.mubr.bf16.mxu0 0
      %2489 = vmatmul.mubr.bf16.gmra.mxu0 %v2361
      %v2490 = vpop.f32.mrf.mxu0
      %v2491 = vadd.f32 0.0, %v2490
      %v2492 = vpop.f32.mrf.mxu0
      %v2493 = vpop.f32.mrf.mxu0
      %v2494 = vadd.f32 0.0, %v2493
      %v2495 = vpop.f32.mrf.mxu0
      %2496 = vmatprep.mubr.bf16.mxu0 0
      %2497 = vmatmul.mubr.bf16.gmra.mxu0 %v2364
      %v2498 = vpop.f32.mrf.mxu0
      %v2499 = vadd.f32 0.0, %v2498
      %v2500 = vpop.f32.mrf.mxu0
      %v2501 = vpop.f32.mrf.mxu0
      %v2502 = vadd.f32 0.0, %v2501
      %v2503 = vpop.f32.mrf.mxu0
      %2504 = vmatprep.mubr.bf16.mxu0 0
      %2505 = vmatmul.mubr.bf16.gmra.mxu0 %v2367
      %v2506 = vpop.f32.mrf.mxu0
      %v2507 = vadd.f32 0.0, %v2506
      %v2508 = vpop.f32.mrf.mxu0
      %v2509 = vpop.f32.mrf.mxu0
      %v2510 = vadd.f32 0.0, %v2509
      %v2511 = vpop.f32.mrf.mxu0
      %2512 = vmatprep.mubr.bf16.mxu0 0
      %2513 = vmatmul.mubr.bf16.gmra.mxu0 %v2370
      %v2514 = vpop.f32.mrf.mxu0
      %v2515 = vadd.f32 0.0, %v2514
      %v2516 = vpop.f32.mrf.mxu0
      %v2517 = vpop.f32.mrf.mxu0
      %v2518 = vadd.f32 0.0, %v2517
      %v2519 = vpop.f32.mrf.mxu0
      %2520 = vmatprep.mubr.bf16.mxu0 0
      %2521 = vmatmul.mubr.bf16.gmra.mxu0 %v2373
      %v2522 = vpop.f32.mrf.mxu0
      %v2523 = vadd.f32 0.0, %v2522
      %v2524 = vpop.f32.mrf.mxu0
      %v2525 = vpop.f32.mrf.mxu0
      %v2526 = vadd.f32 0.0, %v2525
      %v2527 = vpop.f32.mrf.mxu0
      %2528 = vmatprep.mubr.bf16.mxu0 0
      %2529 = vmatmul.mubr.bf16.gmra.mxu0 %v2376
      %v2530 = vpop.f32.mrf.mxu0
      %v2531 = vadd.f32 0.0, %v2530
      %v2532 = vpop.f32.mrf.mxu0
      %v2533 = vpop.f32.mrf.mxu0
      %v2534 = vadd.f32 0.0, %v2533
      %v2535 = vpop.f32.mrf.mxu0
      %2536 = vmatprep.mubr.bf16.mxu0 0
      %2537 = vmatmul.mubr.bf16.gmra.mxu0 %v2379
      %v2538 = vpop.f32.mrf.mxu0
      %v2539 = vadd.f32 0.0, %v2538
      %v2540 = vpop.f32.mrf.mxu0
      %v2541 = vpop.f32.mrf.mxu0
      %v2542 = vadd.f32 0.0, %v2541
      %v2543 = vpop.f32.mrf.mxu0
      %2544 = vdwg.mxu0
      %v2545 = vadd.f32 %v2283, %v2419
      %v2546 = vadd.f32 %v2284, %v2422
      %v2547 = vadd.f32 %v2285, %v2427
      %v2548 = vadd.f32 %v2286, %v2430
      %v2549 = vadd.f32 %v2287, %v2435
      %v2550 = vadd.f32 %v2288, %v2438
      %v2551 = vadd.f32 %v2289, %v2443
      %v2552 = vadd.f32 %v2290, %v2446
      %v2553 = vadd.f32 %v2291, %v2451
      %v2554 = vadd.f32 %v2292, %v2454
      %v2555 = vadd.f32 %v2293, %v2459
      %v2556 = vadd.f32 %v2294, %v2462
      %v2557 = vadd.f32 %v2295, %v2467
      %v2558 = vadd.f32 %v2296, %v2470
      %v2559 = vadd.f32 %v2297, %v2475
      %v2560 = vadd.f32 %v2298, %v2478
      %v2561 = vadd.f32 %v2299, %v2483
      %v2562 = vadd.f32 %v2300, %v2486
      %v2563 = vadd.f32 %v2301, %v2491
      %v2564 = vadd.f32 %v2302, %v2494
      %v2565 = vadd.f32 %v2303, %v2499
      %v2566 = vadd.f32 %v2304, %v2502
      %v2567 = vadd.f32 %v2305, %v2507
      %v2568 = vadd.f32 %v2306, %v2510
      %v2569 = vadd.f32 %v2307, %v2515
      %v2570 = vadd.f32 %v2308, %v2518
      %v2571 = vadd.f32 %v2309, %v2523
      %v2572 = vadd.f32 %v2310, %v2526
      %v2573 = vadd.f32 %v2311, %v2531
      %v2574 = vadd.f32 %v2312, %v2534
      %v2575 = vadd.f32 %v2313, %v2539
      %v2576 = vadd.f32 %v2314, %v2542
      %2577 = vst.msk [vmem:[#allocation3] sm:$0xff] %vm426, %v2545
      %2578 = vst.msk [vmem:[#allocation3 + $0x8] sm:$0xff] %vm426, %v2546
      %2579 = vst.msk [vmem:[#allocation3 + $0x10] sm:$0xff] %vm426, %v2547
      %2580 = vst.msk [vmem:[#allocation3 + $0x18] sm:$0xff] %vm426, %v2548
      %2581 = vst.msk [vmem:[#allocation3 + $0x20] sm:$0xff] %vm426, %v2549
      %2582 = vst.msk [vmem:[#allocation3 + $0x28] sm:$0xff] %vm426, %v2550
      %2583 = vst.msk [vmem:[#allocation3 + $0x30] sm:$0xff] %vm426, %v2551
      %2584 = vst.msk [vmem:[#allocation3 + $0x38] sm:$0xff] %vm426, %v2552
      %2585 = vst.msk [vmem:[#allocation3 + $0x40] sm:$0xff] %vm426, %v2553
      %2586 = vst.msk [vmem:[#allocation3 + $0x48] sm:$0xff] %vm426, %v2554
      %2587 = vst.msk [vmem:[#allocation3 + $0x50] sm:$0xff] %vm426, %v2555
      %2588 = vst.msk [vmem:[#allocation3 + $0x58] sm:$0xff] %vm426, %v2556
      %2589 = vst.msk [vmem:[#allocation3 + $0x60] sm:$0xff] %vm426, %v2557
      %2590 = vst.msk [vmem:[#allocation3 + $0x68] sm:$0xff] %vm426, %v2558
      %2591 = vst.msk [vmem:[#allocation3 + $0x70] sm:$0xff] %vm426, %v2559
      %2592 = vst.msk [vmem:[#allocation3 + $0x78] sm:$0xff] %vm426, %v2560
      %2593 = vst.msk [vmem:[#allocation3 + $0x80] sm:$0xff] %vm426, %v2561
      %2594 = vst.msk [vmem:[#allocation3 + $0x88] sm:$0xff] %vm426, %v2562
      %2595 = vst.msk [vmem:[#allocation3 + $0x90] sm:$0xff] %vm426, %v2563
      %2596 = vst.msk [vmem:[#allocation3 + $0x98] sm:$0xff] %vm426, %v2564
      %2597 = vst.msk [vmem:[#allocation3 + $0xa0] sm:$0xff] %vm426, %v2565
      %2598 = vst.msk [vmem:[#allocation3 + $0xa8] sm:$0xff] %vm426, %v2566
      %2599 = vst.msk [vmem:[#allocation3 + $0xb0] sm:$0xff] %vm426, %v2567
      %2600 = vst.msk [vmem:[#allocation3 + $0xb8] sm:$0xff] %vm426, %v2568
      %2601 = vst.msk [vmem:[#allocation3 + $0xc0] sm:$0xff] %vm426, %v2569
      %2602 = vst.msk [vmem:[#allocation3 + $0xc8] sm:$0xff] %vm426, %v2570
      %2603 = vst.msk [vmem:[#allocation3 + $0xd0] sm:$0xff] %vm426, %v2571
      %2604 = vst.msk [vmem:[#allocation3 + $0xd8] sm:$0xff] %vm426, %v2572
      %2605 = vst.msk [vmem:[#allocation3 + $0xe0] sm:$0xff] %vm426, %v2573
      %2606 = vst.msk [vmem:[#allocation3 + $0xe8] sm:$0xff] %vm426, %v2574
      %2607 = vst.msk [vmem:[#allocation3 + $0xf0] sm:$0xff] %vm426, %v2575
      %2608 = vst.msk [vmem:[#allocation3 + $0xf8] sm:$0xff] %vm426, %v2576
      %s2609 = scalar_lea.vmem [#allocation2], 48
      %v2610 = vld [vmem:[%s2609] sm:$0xff]
      %v2611 = vld [vmem:[%s2609 + $0x8] sm:$0xff]
      %v2612 = vld [vmem:[%s2609 + $0x18] sm:$0xff]
      %v2613 = vld [vmem:[%s2609 + $0x20] sm:$0xff]
      %v2614 = vld [vmem:[%s2609 + $0x30] sm:$0xff]
      %v2615 = vld [vmem:[%s2609 + $0x38] sm:$0xff]
      %v2616 = vld [vmem:[%s2609 + $0x48] sm:$0xff]
      %v2617 = vld [vmem:[%s2609 + $0x50] sm:$0xff]
      %v2618 = vld [vmem:[%s2609 + $0x60] sm:$0xff]
      %v2619 = vld [vmem:[%s2609 + $0x68] sm:$0xff]
      %v2620 = vld [vmem:[%s2609 + $0x78] sm:$0xff]
      %v2621 = vld [vmem:[%s2609 + $0x80] sm:$0xff]
      %v2622 = vld [vmem:[%s2609 + $0x90] sm:$0xff]
      %v2623 = vld [vmem:[%s2609 + $0x98] sm:$0xff]
      %v2624 = vld [vmem:[%s2609 + $0xa8] sm:$0xff]
      %v2625 = vld [vmem:[%s2609 + $0xb0] sm:$0xff]
      %v2626 = vld [vmem:[%s2609 + $0xc0] sm:$0xff]
      %v2627 = vld [vmem:[%s2609 + $0xc8] sm:$0xff]
      %v2628 = vld [vmem:[%s2609 + $0xd8] sm:$0xff]
      %v2629 = vld [vmem:[%s2609 + $0xe0] sm:$0xff]
      %v2630 = vld [vmem:[%s2609 + $0xf0] sm:$0xff]
      %v2631 = vld [vmem:[%s2609 + $0xf8] sm:$0xff]
      %v2632 = vld [vmem:[%s2609 + $0x108] sm:$0xff]
      %v2633 = vld [vmem:[%s2609 + $0x110] sm:$0xff]
      %v2634 = vld [vmem:[%s2609 + $0x120] sm:$0xff]
      %v2635 = vld [vmem:[%s2609 + $0x128] sm:$0xff]
      %v2636 = vld [vmem:[%s2609 + $0x138] sm:$0xff]
      %v2637 = vld [vmem:[%s2609 + $0x140] sm:$0xff]
      %v2638 = vld [vmem:[%s2609 + $0x150] sm:$0xff]
      %v2639 = vld [vmem:[%s2609 + $0x158] sm:$0xff]
      %v2640 = vld [vmem:[%s2609 + $0x168] sm:$0xff]
      %v2641 = vld [vmem:[%s2609 + $0x170] sm:$0xff]
      %v2642 = vld [vmem:[#allocation3] sm:$0xff]
      %v2643 = vld [vmem:[#allocation3 + $0x8] sm:$0xff]
      %v2644 = vld [vmem:[#allocation3 + $0x10] sm:$0xff]
      %v2645 = vld [vmem:[#allocation3 + $0x18] sm:$0xff]
      %v2646 = vld [vmem:[#allocation3 + $0x20] sm:$0xff]
      %v2647 = vld [vmem:[#allocation3 + $0x28] sm:$0xff]
      %v2648 = vld [vmem:[#allocation3 + $0x30] sm:$0xff]
      %v2649 = vld [vmem:[#allocation3 + $0x38] sm:$0xff]
      %v2650 = vld [vmem:[#allocation3 + $0x40] sm:$0xff]
      %v2651 = vld [vmem:[#allocation3 + $0x48] sm:$0xff]
      %v2652 = vld [vmem:[#allocation3 + $0x50] sm:$0xff]
      %v2653 = vld [vmem:[#allocation3 + $0x58] sm:$0xff]
      %v2654 = vld [vmem:[#allocation3 + $0x60] sm:$0xff]
      %v2655 = vld [vmem:[#allocation3 + $0x68] sm:$0xff]
      %v2656 = vld [vmem:[#allocation3 + $0x70] sm:$0xff]
      %v2657 = vld [vmem:[#allocation3 + $0x78] sm:$0xff]
      %v2658 = vld [vmem:[#allocation3 + $0x80] sm:$0xff]
      %v2659 = vld [vmem:[#allocation3 + $0x88] sm:$0xff]
      %v2660 = vld [vmem:[#allocation3 + $0x90] sm:$0xff]
      %v2661 = vld [vmem:[#allocation3 + $0x98] sm:$0xff]
      %v2662 = vld [vmem:[#allocation3 + $0xa0] sm:$0xff]
      %v2663 = vld [vmem:[#allocation3 + $0xa8] sm:$0xff]
      %v2664 = vld [vmem:[#allocation3 + $0xb0] sm:$0xff]
      %v2665 = vld [vmem:[#allocation3 + $0xb8] sm:$0xff]
      %v2666 = vld [vmem:[#allocation3 + $0xc0] sm:$0xff]
      %v2667 = vld [vmem:[#allocation3 + $0xc8] sm:$0xff]
      %v2668 = vld [vmem:[#allocation3 + $0xd0] sm:$0xff]
      %v2669 = vld [vmem:[#allocation3 + $0xd8] sm:$0xff]
      %v2670 = vld [vmem:[#allocation3 + $0xe0] sm:$0xff]
      %v2671 = vld [vmem:[#allocation3 + $0xe8] sm:$0xff]
      %v2672 = vld [vmem:[#allocation3 + $0xf0] sm:$0xff]
      %v2673 = vld [vmem:[#allocation3 + $0xf8] sm:$0xff]
      %v2674 = vpack.c.bf16 %v2611, %v2610
      %v2675 = vpack.c.bf16 %v2613, %v2612
      %v2676 = vpack.c.bf16 %v2615, %v2614
      %v2677 = vpack.c.bf16 %v2617, %v2616
      %v2678 = vpack.c.bf16 %v2619, %v2618
      %v2679 = vpack.c.bf16 %v2621, %v2620
      %v2680 = vpack.c.bf16 %v2623, %v2622
      %v2681 = vpack.c.bf16 %v2625, %v2624
      %v2682 = vpack.c.bf16 %v2627, %v2626
      %v2683 = vpack.c.bf16 %v2629, %v2628
      %v2684 = vpack.c.bf16 %v2631, %v2630
      %v2685 = vpack.c.bf16 %v2633, %v2632
      %v2686 = vpack.c.bf16 %v2635, %v2634
      %v2687 = vpack.c.bf16 %v2637, %v2636
      %v2688 = vpack.c.bf16 %v2639, %v2638
      %v2689 = vpack.c.bf16 %v2641, %v2640
      %s2690 = scalar_lea.vmem %s249, 12
      %v2691 = vld [vmem:[%s2690] sm:$0x3]
      %v2693 = vsel %vm540, %v2674, 0
      %v2696 = vsel %vm540, %v2675, 0
      %v2699 = vsel %vm540, %v2676, 0
      %v2702 = vsel %vm540, %v2677, 0
      %v2705 = vsel %vm540, %v2678, 0
      %v2708 = vsel %vm540, %v2679, 0
      %v2711 = vsel %vm540, %v2680, 0
      %v2714 = vsel %vm540, %v2681, 0
      %v2717 = vsel %vm540, %v2682, 0
      %v2720 = vsel %vm540, %v2683, 0
      %v2723 = vsel %vm540, %v2684, 0
      %v2726 = vsel %vm540, %v2685, 0
      %v2729 = vsel %vm540, %v2686, 0
      %v2732 = vsel %vm540, %v2687, 0
      %v2735 = vsel %vm540, %v2688, 0
      %v2738 = vsel %vm540, %v2689, 0
      %v2741 = vsel %vm589, %v2691, 0
      %2743 = vmatprep.subr.bf16.mxu0 0
      %2744 = vmatpush1.bf16.msra.mxu0 0
      %2745 = vmatprep.subr.bf16.mxu0 0
      %2746 = vmatpush1.bf16.msra.mxu0 0
      %2747 = vmatprep.subr.bf16.mxu0 0
      %2748 = vmatpush1.bf16.msra.mxu0 0
      %2749 = vmatprep.subr.bf16.mxu0 0
      %2750 = vmatpush1.bf16.msra.mxu0 0
      %2751 = vmatprep.subr.bf16.mxu0 0
      %2752 = vmatpush1.bf16.msra.mxu0 0
      %2753 = vmatprep.subr.bf16.mxu0 0
      %2754 = vmatpush1.bf16.msra.mxu0 0
      %2755 = vmatprep.subr.bf16.mxu0 0
      %2756 = vmatpush1.bf16.msra.mxu0 0
      %2757 = vmatprep.subr.bf16.mxu0 0
      %2758 = vmatpush1.bf16.msra.mxu0 %v2741
      %2759 = vmatprep.subr.bf16.mxu0 0
      %2760 = vmatpush2.bf16.msra.mxu0 0
      %2761 = vmatprep.subr.bf16.mxu0 0
      %2762 = vmatpush2.bf16.msra.mxu0 0
      %2763 = vmatprep.subr.bf16.mxu0 0
      %2764 = vmatpush2.bf16.msra.mxu0 0
      %2765 = vmatprep.subr.bf16.mxu0 0
      %2766 = vmatpush2.bf16.msra.mxu0 0
      %2767 = vmatprep.subr.bf16.mxu0 0
      %2768 = vmatpush2.bf16.msra.mxu0 0
      %2769 = vmatprep.subr.bf16.mxu0 0
      %2770 = vmatpush2.bf16.msra.mxu0 0
      %2771 = vmatprep.subr.bf16.mxu0 0
      %2772 = vmatpush2.bf16.msra.mxu0 0
      %2773 = vmatprep.subr.bf16.mxu0 0
      %2774 = vmatpush2.bf16.msra.mxu0 0
      %2775 = vmatprep.mubr.bf16.mxu0 0
      %2776 = vmatmul.mubr.bf16.gmra.mxu0 %v2693
      %v2777 = vpop.f32.mrf.mxu0
      %v2778 = vadd.f32 0.0, %v2777
      %v2779 = vpop.f32.mrf.mxu0
      %v2780 = vpop.f32.mrf.mxu0
      %v2781 = vadd.f32 0.0, %v2780
      %v2782 = vpop.f32.mrf.mxu0
      %2783 = vmatprep.mubr.bf16.mxu0 0
      %2784 = vmatmul.mubr.bf16.gmra.mxu0 %v2696
      %v2785 = vpop.f32.mrf.mxu0
      %v2786 = vadd.f32 0.0, %v2785
      %v2787 = vpop.f32.mrf.mxu0
      %v2788 = vpop.f32.mrf.mxu0
      %v2789 = vadd.f32 0.0, %v2788
      %v2790 = vpop.f32.mrf.mxu0
      %2791 = vmatprep.mubr.bf16.mxu0 0
      %2792 = vmatmul.mubr.bf16.gmra.mxu0 %v2699
      %v2793 = vpop.f32.mrf.mxu0
      %v2794 = vadd.f32 0.0, %v2793
      %v2795 = vpop.f32.mrf.mxu0
      %v2796 = vpop.f32.mrf.mxu0
      %v2797 = vadd.f32 0.0, %v2796
      %v2798 = vpop.f32.mrf.mxu0
      %2799 = vmatprep.mubr.bf16.mxu0 0
      %2800 = vmatmul.mubr.bf16.gmra.mxu0 %v2702
      %v2801 = vpop.f32.mrf.mxu0
      %v2802 = vadd.f32 0.0, %v2801
      %v2803 = vpop.f32.mrf.mxu0
      %v2804 = vpop.f32.mrf.mxu0
      %v2805 = vadd.f32 0.0, %v2804
      %v2806 = vpop.f32.mrf.mxu0
      %2807 = vmatprep.mubr.bf16.mxu0 0
      %2808 = vmatmul.mubr.bf16.gmra.mxu0 %v2705
      %v2809 = vpop.f32.mrf.mxu0
      %v2810 = vadd.f32 0.0, %v2809
      %v2811 = vpop.f32.mrf.mxu0
      %v2812 = vpop.f32.mrf.mxu0
      %v2813 = vadd.f32 0.0, %v2812
      %v2814 = vpop.f32.mrf.mxu0
      %2815 = vmatprep.mubr.bf16.mxu0 0
      %2816 = vmatmul.mubr.bf16.gmra.mxu0 %v2708
      %v2817 = vpop.f32.mrf.mxu0
      %v2818 = vadd.f32 0.0, %v2817
      %v2819 = vpop.f32.mrf.mxu0
      %v2820 = vpop.f32.mrf.mxu0
      %v2821 = vadd.f32 0.0, %v2820
      %v2822 = vpop.f32.mrf.mxu0
      %2823 = vmatprep.mubr.bf16.mxu0 0
      %2824 = vmatmul.mubr.bf16.gmra.mxu0 %v2711
      %v2825 = vpop.f32.mrf.mxu0
      %v2826 = vadd.f32 0.0, %v2825
      %v2827 = vpop.f32.mrf.mxu0
      %v2828 = vpop.f32.mrf.mxu0
      %v2829 = vadd.f32 0.0, %v2828
      %v2830 = vpop.f32.mrf.mxu0
      %2831 = vmatprep.mubr.bf16.mxu0 0
      %2832 = vmatmul.mubr.bf16.gmra.mxu0 %v2714
      %v2833 = vpop.f32.mrf.mxu0
      %v2834 = vadd.f32 0.0, %v2833
      %v2835 = vpop.f32.mrf.mxu0
      %v2836 = vpop.f32.mrf.mxu0
      %v2837 = vadd.f32 0.0, %v2836
      %v2838 = vpop.f32.mrf.mxu0
      %2839 = vmatprep.mubr.bf16.mxu0 0
      %2840 = vmatmul.mubr.bf16.gmra.mxu0 %v2717
      %v2841 = vpop.f32.mrf.mxu0
      %v2842 = vadd.f32 0.0, %v2841
      %v2843 = vpop.f32.mrf.mxu0
      %v2844 = vpop.f32.mrf.mxu0
      %v2845 = vadd.f32 0.0, %v2844
      %v2846 = vpop.f32.mrf.mxu0
      %2847 = vmatprep.mubr.bf16.mxu0 0
      %2848 = vmatmul.mubr.bf16.gmra.mxu0 %v2720
      %v2849 = vpop.f32.mrf.mxu0
      %v2850 = vadd.f32 0.0, %v2849
      %v2851 = vpop.f32.mrf.mxu0
      %v2852 = vpop.f32.mrf.mxu0
      %v2853 = vadd.f32 0.0, %v2852
      %v2854 = vpop.f32.mrf.mxu0
      %2855 = vmatprep.mubr.bf16.mxu0 0
      %2856 = vmatmul.mubr.bf16.gmra.mxu0 %v2723
      %v2857 = vpop.f32.mrf.mxu0
      %v2858 = vadd.f32 0.0, %v2857
      %v2859 = vpop.f32.mrf.mxu0
      %v2860 = vpop.f32.mrf.mxu0
      %v2861 = vadd.f32 0.0, %v2860
      %v2862 = vpop.f32.mrf.mxu0
      %2863 = vmatprep.mubr.bf16.mxu0 0
      %2864 = vmatmul.mubr.bf16.gmra.mxu0 %v2726
      %v2865 = vpop.f32.mrf.mxu0
      %v2866 = vadd.f32 0.0, %v2865
      %v2867 = vpop.f32.mrf.mxu0
      %v2868 = vpop.f32.mrf.mxu0
      %v2869 = vadd.f32 0.0, %v2868
      %v2870 = vpop.f32.mrf.mxu0
      %2871 = vmatprep.mubr.bf16.mxu0 0
      %2872 = vmatmul.mubr.bf16.gmra.mxu0 %v2729
      %v2873 = vpop.f32.mrf.mxu0
      %v2874 = vadd.f32 0.0, %v2873
      %v2875 = vpop.f32.mrf.mxu0
      %v2876 = vpop.f32.mrf.mxu0
      %v2877 = vadd.f32 0.0, %v2876
      %v2878 = vpop.f32.mrf.mxu0
      %2879 = vmatprep.mubr.bf16.mxu0 0
      %2880 = vmatmul.mubr.bf16.gmra.mxu0 %v2732
      %v2881 = vpop.f32.mrf.mxu0
      %v2882 = vadd.f32 0.0, %v2881
      %v2883 = vpop.f32.mrf.mxu0
      %v2884 = vpop.f32.mrf.mxu0
      %v2885 = vadd.f32 0.0, %v2884
      %v2886 = vpop.f32.mrf.mxu0
      %2887 = vmatprep.mubr.bf16.mxu0 0
      %2888 = vmatmul.mubr.bf16.gmra.mxu0 %v2735
      %v2889 = vpop.f32.mrf.mxu0
      %v2890 = vadd.f32 0.0, %v2889
      %v2891 = vpop.f32.mrf.mxu0
      %v2892 = vpop.f32.mrf.mxu0
      %v2893 = vadd.f32 0.0, %v2892
      %v2894 = vpop.f32.mrf.mxu0
      %2895 = vmatprep.mubr.bf16.mxu0 0
      %2896 = vmatmul.mubr.bf16.gmra.mxu0 %v2738
      %v2897 = vpop.f32.mrf.mxu0
      %v2898 = vadd.f32 0.0, %v2897
      %v2899 = vpop.f32.mrf.mxu0
      %v2900 = vpop.f32.mrf.mxu0
      %v2901 = vadd.f32 0.0, %v2900
      %v2902 = vpop.f32.mrf.mxu0
      %2903 = vdwg.mxu0
      %v2904 = vadd.f32 %v2642, %v2778
      %v2905 = vadd.f32 %v2643, %v2781
      %v2906 = vadd.f32 %v2644, %v2786
      %v2907 = vadd.f32 %v2645, %v2789
      %v2908 = vadd.f32 %v2646, %v2794
      %v2909 = vadd.f32 %v2647, %v2797
      %v2910 = vadd.f32 %v2648, %v2802
      %v2911 = vadd.f32 %v2649, %v2805
      %v2912 = vadd.f32 %v2650, %v2810
      %v2913 = vadd.f32 %v2651, %v2813
      %v2914 = vadd.f32 %v2652, %v2818
      %v2915 = vadd.f32 %v2653, %v2821
      %v2916 = vadd.f32 %v2654, %v2826
      %v2917 = vadd.f32 %v2655, %v2829
      %v2918 = vadd.f32 %v2656, %v2834
      %v2919 = vadd.f32 %v2657, %v2837
      %v2920 = vadd.f32 %v2658, %v2842
      %v2921 = vadd.f32 %v2659, %v2845
      %v2922 = vadd.f32 %v2660, %v2850
      %v2923 = vadd.f32 %v2661, %v2853
      %v2924 = vadd.f32 %v2662, %v2858
      %v2925 = vadd.f32 %v2663, %v2861
      %v2926 = vadd.f32 %v2664, %v2866
      %v2927 = vadd.f32 %v2665, %v2869
      %v2928 = vadd.f32 %v2666, %v2874
      %v2929 = vadd.f32 %v2667, %v2877
      %v2930 = vadd.f32 %v2668, %v2882
      %v2931 = vadd.f32 %v2669, %v2885
      %v2932 = vadd.f32 %v2670, %v2890
      %v2933 = vadd.f32 %v2671, %v2893
      %v2934 = vadd.f32 %v2672, %v2898
      %v2935 = vadd.f32 %v2673, %v2901
      %2936 = vst.msk [vmem:[#allocation3] sm:$0xff] %vm426, %v2904
      %2937 = vst.msk [vmem:[#allocation3 + $0x8] sm:$0xff] %vm426, %v2905
      %2938 = vst.msk [vmem:[#allocation3 + $0x10] sm:$0xff] %vm426, %v2906
      %2939 = vst.msk [vmem:[#allocation3 + $0x18] sm:$0xff] %vm426, %v2907
      %2940 = vst.msk [vmem:[#allocation3 + $0x20] sm:$0xff] %vm426, %v2908
      %2941 = vst.msk [vmem:[#allocation3 + $0x28] sm:$0xff] %vm426, %v2909
      %2942 = vst.msk [vmem:[#allocation3 + $0x30] sm:$0xff] %vm426, %v2910
      %2943 = vst.msk [vmem:[#allocation3 + $0x38] sm:$0xff] %vm426, %v2911
      %2944 = vst.msk [vmem:[#allocation3 + $0x40] sm:$0xff] %vm426, %v2912
      %2945 = vst.msk [vmem:[#allocation3 + $0x48] sm:$0xff] %vm426, %v2913
      %2946 = vst.msk [vmem:[#allocation3 + $0x50] sm:$0xff] %vm426, %v2914
      %2947 = vst.msk [vmem:[#allocation3 + $0x58] sm:$0xff] %vm426, %v2915
      %2948 = vst.msk [vmem:[#allocation3 + $0x60] sm:$0xff] %vm426, %v2916
      %2949 = vst.msk [vmem:[#allocation3 + $0x68] sm:$0xff] %vm426, %v2917
      %2950 = vst.msk [vmem:[#allocation3 + $0x70] sm:$0xff] %vm426, %v2918
      %2951 = vst.msk [vmem:[#allocation3 + $0x78] sm:$0xff] %vm426, %v2919
      %2952 = vst.msk [vmem:[#allocation3 + $0x80] sm:$0xff] %vm426, %v2920
      %2953 = vst.msk [vmem:[#allocation3 + $0x88] sm:$0xff] %vm426, %v2921
      %2954 = vst.msk [vmem:[#allocation3 + $0x90] sm:$0xff] %vm426, %v2922
      %2955 = vst.msk [vmem:[#allocation3 + $0x98] sm:$0xff] %vm426, %v2923
      %2956 = vst.msk [vmem:[#allocation3 + $0xa0] sm:$0xff] %vm426, %v2924
      %2957 = vst.msk [vmem:[#allocation3 + $0xa8] sm:$0xff] %vm426, %v2925
      %2958 = vst.msk [vmem:[#allocation3 + $0xb0] sm:$0xff] %vm426, %v2926
      %2959 = vst.msk [vmem:[#allocation3 + $0xb8] sm:$0xff] %vm426, %v2927
      %2960 = vst.msk [vmem:[#allocation3 + $0xc0] sm:$0xff] %vm426, %v2928
      %2961 = vst.msk [vmem:[#allocation3 + $0xc8] sm:$0xff] %vm426, %v2929
      %2962 = vst.msk [vmem:[#allocation3 + $0xd0] sm:$0xff] %vm426, %v2930
      %2963 = vst.msk [vmem:[#allocation3 + $0xd8] sm:$0xff] %vm426, %v2931
      %2964 = vst.msk [vmem:[#allocation3 + $0xe0] sm:$0xff] %vm426, %v2932
      %2965 = vst.msk [vmem:[#allocation3 + $0xe8] sm:$0xff] %vm426, %v2933
      %2966 = vst.msk [vmem:[#allocation3 + $0xf0] sm:$0xff] %vm426, %v2934
      %2967 = vst.msk [vmem:[#allocation3 + $0xf8] sm:$0xff] %vm426, %v2935
      %v2968 = vld [vmem:[%s2609 + $0x1] sm:$0xff]
      %v2969 = vld [vmem:[%s2609 + $0x9] sm:$0xff]
      %v2970 = vld [vmem:[%s2609 + $0x19] sm:$0xff]
      %v2971 = vld [vmem:[%s2609 + $0x21] sm:$0xff]
      %v2972 = vld [vmem:[%s2609 + $0x31] sm:$0xff]
      %v2973 = vld [vmem:[%s2609 + $0x39] sm:$0xff]
      %v2974 = vld [vmem:[%s2609 + $0x49] sm:$0xff]
      %v2975 = vld [vmem:[%s2609 + $0x51] sm:$0xff]
      %v2976 = vld [vmem:[%s2609 + $0x61] sm:$0xff]
      %v2977 = vld [vmem:[%s2609 + $0x69] sm:$0xff]
      %v2978 = vld [vmem:[%s2609 + $0x79] sm:$0xff]
      %v2979 = vld [vmem:[%s2609 + $0x81] sm:$0xff]
      %v2980 = vld [vmem:[%s2609 + $0x91] sm:$0xff]
      %v2981 = vld [vmem:[%s2609 + $0x99] sm:$0xff]
      %v2982 = vld [vmem:[%s2609 + $0xa9] sm:$0xff]
      %v2983 = vld [vmem:[%s2609 + $0xb1] sm:$0xff]
      %v2984 = vld [vmem:[%s2609 + $0xc1] sm:$0xff]
      %v2985 = vld [vmem:[%s2609 + $0xc9] sm:$0xff]
      %v2986 = vld [vmem:[%s2609 + $0xd9] sm:$0xff]
      %v2987 = vld [vmem:[%s2609 + $0xe1] sm:$0xff]
      %v2988 = vld [vmem:[%s2609 + $0xf1] sm:$0xff]
      %v2989 = vld [vmem:[%s2609 + $0xf9] sm:$0xff]
      %v2990 = vld [vmem:[%s2609 + $0x109] sm:$0xff]
      %v2991 = vld [vmem:[%s2609 + $0x111] sm:$0xff]
      %v2992 = vld [vmem:[%s2609 + $0x121] sm:$0xff]
      %v2993 = vld [vmem:[%s2609 + $0x129] sm:$0xff]
      %v2994 = vld [vmem:[%s2609 + $0x139] sm:$0xff]
      %v2995 = vld [vmem:[%s2609 + $0x141] sm:$0xff]
      %v2996 = vld [vmem:[%s2609 + $0x151] sm:$0xff]
      %v2997 = vld [vmem:[%s2609 + $0x159] sm:$0xff]
      %v2998 = vld [vmem:[%s2609 + $0x169] sm:$0xff]
      %v2999 = vld [vmem:[%s2609 + $0x171] sm:$0xff]
      %v3000 = vld [vmem:[#allocation3] sm:$0xff]
      %v3001 = vld [vmem:[#allocation3 + $0x8] sm:$0xff]
      %v3002 = vld [vmem:[#allocation3 + $0x10] sm:$0xff]
      %v3003 = vld [vmem:[#allocation3 + $0x18] sm:$0xff]
      %v3004 = vld [vmem:[#allocation3 + $0x20] sm:$0xff]
      %v3005 = vld [vmem:[#allocation3 + $0x28] sm:$0xff]
      %v3006 = vld [vmem:[#allocation3 + $0x30] sm:$0xff]
      %v3007 = vld [vmem:[#allocation3 + $0x38] sm:$0xff]
      %v3008 = vld [vmem:[#allocation3 + $0x40] sm:$0xff]
      %v3009 = vld [vmem:[#allocation3 + $0x48] sm:$0xff]
      %v3010 = vld [vmem:[#allocation3 + $0x50] sm:$0xff]
      %v3011 = vld [vmem:[#allocation3 + $0x58] sm:$0xff]
      %v3012 = vld [vmem:[#allocation3 + $0x60] sm:$0xff]
      %v3013 = vld [vmem:[#allocation3 + $0x68] sm:$0xff]
      %v3014 = vld [vmem:[#allocation3 + $0x70] sm:$0xff]
      %v3015 = vld [vmem:[#allocation3 + $0x78] sm:$0xff]
      %v3016 = vld [vmem:[#allocation3 + $0x80] sm:$0xff]
      %v3017 = vld [vmem:[#allocation3 + $0x88] sm:$0xff]
      %v3018 = vld [vmem:[#allocation3 + $0x90] sm:$0xff]
      %v3019 = vld [vmem:[#allocation3 + $0x98] sm:$0xff]
      %v3020 = vld [vmem:[#allocation3 + $0xa0] sm:$0xff]
      %v3021 = vld [vmem:[#allocation3 + $0xa8] sm:$0xff]
      %v3022 = vld [vmem:[#allocation3 + $0xb0] sm:$0xff]
      %v3023 = vld [vmem:[#allocation3 + $0xb8] sm:$0xff]
      %v3024 = vld [vmem:[#allocation3 + $0xc0] sm:$0xff]
      %v3025 = vld [vmem:[#allocation3 + $0xc8] sm:$0xff]
      %v3026 = vld [vmem:[#allocation3 + $0xd0] sm:$0xff]
      %v3027 = vld [vmem:[#allocation3 + $0xd8] sm:$0xff]
      %v3028 = vld [vmem:[#allocation3 + $0xe0] sm:$0xff]
      %v3029 = vld [vmem:[#allocation3 + $0xe8] sm:$0xff]
      %v3030 = vld [vmem:[#allocation3 + $0xf0] sm:$0xff]
      %v3031 = vld [vmem:[#allocation3 + $0xf8] sm:$0xff]
      %v3032 = vpack.c.bf16 %v2969, %v2968
      %v3033 = vpack.c.bf16 %v2971, %v2970
      %v3034 = vpack.c.bf16 %v2973, %v2972
      %v3035 = vpack.c.bf16 %v2975, %v2974
      %v3036 = vpack.c.bf16 %v2977, %v2976
      %v3037 = vpack.c.bf16 %v2979, %v2978
      %v3038 = vpack.c.bf16 %v2981, %v2980
      %v3039 = vpack.c.bf16 %v2983, %v2982
      %v3040 = vpack.c.bf16 %v2985, %v2984
      %v3041 = vpack.c.bf16 %v2987, %v2986
      %v3042 = vpack.c.bf16 %v2989, %v2988
      %v3043 = vpack.c.bf16 %v2991, %v2990
      %v3044 = vpack.c.bf16 %v2993, %v2992
      %v3045 = vpack.c.bf16 %v2995, %v2994
      %v3046 = vpack.c.bf16 %v2997, %v2996
      %v3047 = vpack.c.bf16 %v2999, %v2998
      %s3048 = scalar_lea.vmem %s249, 14
      %v3049 = vld [vmem:[%s3048] sm:$0x3]
      %v3051 = vsel %vm540, %v3032, 0
      %v3054 = vsel %vm540, %v3033, 0
      %v3057 = vsel %vm540, %v3034, 0
      %v3060 = vsel %vm540, %v3035, 0
      %v3063 = vsel %vm540, %v3036, 0
      %v3066 = vsel %vm540, %v3037, 0
      %v3069 = vsel %vm540, %v3038, 0
      %v3072 = vsel %vm540, %v3039, 0
      %v3075 = vsel %vm540, %v3040, 0
      %v3078 = vsel %vm540, %v3041, 0
      %v3081 = vsel %vm540, %v3042, 0
      %v3084 = vsel %vm540, %v3043, 0
      %v3087 = vsel %vm540, %v3044, 0
      %v3090 = vsel %vm540, %v3045, 0
      %v3093 = vsel %vm540, %v3046, 0
      %v3096 = vsel %vm540, %v3047, 0
      %v3099 = vsel %vm589, %v3049, 0
      %3101 = vmatprep.subr.bf16.mxu0 0
      %3102 = vmatpush1.bf16.msra.mxu0 0
      %3103 = vmatprep.subr.bf16.mxu0 0
      %3104 = vmatpush1.bf16.msra.mxu0 0
      %3105 = vmatprep.subr.bf16.mxu0 0
      %3106 = vmatpush1.bf16.msra.mxu0 0
      %3107 = vmatprep.subr.bf16.mxu0 0
      %3108 = vmatpush1.bf16.msra.mxu0 0
      %3109 = vmatprep.subr.bf16.mxu0 0
      %3110 = vmatpush1.bf16.msra.mxu0 0
      %3111 = vmatprep.subr.bf16.mxu0 0
      %3112 = vmatpush1.bf16.msra.mxu0 0
      %3113 = vmatprep.subr.bf16.mxu0 0
      %3114 = vmatpush1.bf16.msra.mxu0 0
      %3115 = vmatprep.subr.bf16.mxu0 0
      %3116 = vmatpush1.bf16.msra.mxu0 %v3099
      %3117 = vmatprep.subr.bf16.mxu0 0
      %3118 = vmatpush2.bf16.msra.mxu0 0
      %3119 = vmatprep.subr.bf16.mxu0 0
      %3120 = vmatpush2.bf16.msra.mxu0 0
      %3121 = vmatprep.subr.bf16.mxu0 0
      %3122 = vmatpush2.bf16.msra.mxu0 0
      %3123 = vmatprep.subr.bf16.mxu0 0
      %3124 = vmatpush2.bf16.msra.mxu0 0
      %3125 = vmatprep.subr.bf16.mxu0 0
      %3126 = vmatpush2.bf16.msra.mxu0 0
      %3127 = vmatprep.subr.bf16.mxu0 0
      %3128 = vmatpush2.bf16.msra.mxu0 0
      %3129 = vmatprep.subr.bf16.mxu0 0
      %3130 = vmatpush2.bf16.msra.mxu0 0
      %3131 = vmatprep.subr.bf16.mxu0 0
      %3132 = vmatpush2.bf16.msra.mxu0 0
      %3133 = vmatprep.mubr.bf16.mxu0 0
      %3134 = vmatmul.mubr.bf16.gmra.mxu0 %v3051
      %v3135 = vpop.f32.mrf.mxu0
      %v3136 = vadd.f32 0.0, %v3135
      %v3137 = vpop.f32.mrf.mxu0
      %v3138 = vpop.f32.mrf.mxu0
      %v3139 = vadd.f32 0.0, %v3138
      %v3140 = vpop.f32.mrf.mxu0
      %3141 = vmatprep.mubr.bf16.mxu0 0
      %3142 = vmatmul.mubr.bf16.gmra.mxu0 %v3054
      %v3143 = vpop.f32.mrf.mxu0
      %v3144 = vadd.f32 0.0, %v3143
      %v3145 = vpop.f32.mrf.mxu0
      %v3146 = vpop.f32.mrf.mxu0
      %v3147 = vadd.f32 0.0, %v3146
      %v3148 = vpop.f32.mrf.mxu0
      %3149 = vmatprep.mubr.bf16.mxu0 0
      %3150 = vmatmul.mubr.bf16.gmra.mxu0 %v3057
      %v3151 = vpop.f32.mrf.mxu0
      %v3152 = vadd.f32 0.0, %v3151
      %v3153 = vpop.f32.mrf.mxu0
      %v3154 = vpop.f32.mrf.mxu0
      %v3155 = vadd.f32 0.0, %v3154
      %v3156 = vpop.f32.mrf.mxu0
      %3157 = vmatprep.mubr.bf16.mxu0 0
      %3158 = vmatmul.mubr.bf16.gmra.mxu0 %v3060
      %v3159 = vpop.f32.mrf.mxu0
      %v3160 = vadd.f32 0.0, %v3159
      %v3161 = vpop.f32.mrf.mxu0
      %v3162 = vpop.f32.mrf.mxu0
      %v3163 = vadd.f32 0.0, %v3162
      %v3164 = vpop.f32.mrf.mxu0
      %3165 = vmatprep.mubr.bf16.mxu0 0
      %3166 = vmatmul.mubr.bf16.gmra.mxu0 %v3063
      %v3167 = vpop.f32.mrf.mxu0
      %v3168 = vadd.f32 0.0, %v3167
      %v3169 = vpop.f32.mrf.mxu0
      %v3170 = vpop.f32.mrf.mxu0
      %v3171 = vadd.f32 0.0, %v3170
      %v3172 = vpop.f32.mrf.mxu0
      %3173 = vmatprep.mubr.bf16.mxu0 0
      %3174 = vmatmul.mubr.bf16.gmra.mxu0 %v3066
      %v3175 = vpop.f32.mrf.mxu0
      %v3176 = vadd.f32 0.0, %v3175
      %v3177 = vpop.f32.mrf.mxu0
      %v3178 = vpop.f32.mrf.mxu0
      %v3179 = vadd.f32 0.0, %v3178
      %v3180 = vpop.f32.mrf.mxu0
      %3181 = vmatprep.mubr.bf16.mxu0 0
      %3182 = vmatmul.mubr.bf16.gmra.mxu0 %v3069
      %v3183 = vpop.f32.mrf.mxu0
      %v3184 = vadd.f32 0.0, %v3183
      %v3185 = vpop.f32.mrf.mxu0
      %v3186 = vpop.f32.mrf.mxu0
      %v3187 = vadd.f32 0.0, %v3186
      %v3188 = vpop.f32.mrf.mxu0
      %3189 = vmatprep.mubr.bf16.mxu0 0
      %3190 = vmatmul.mubr.bf16.gmra.mxu0 %v3072
      %v3191 = vpop.f32.mrf.mxu0
      %v3192 = vadd.f32 0.0, %v3191
      %v3193 = vpop.f32.mrf.mxu0
      %v3194 = vpop.f32.mrf.mxu0
      %v3195 = vadd.f32 0.0, %v3194
      %v3196 = vpop.f32.mrf.mxu0
      %3197 = vmatprep.mubr.bf16.mxu0 0
      %3198 = vmatmul.mubr.bf16.gmra.mxu0 %v3075
      %v3199 = vpop.f32.mrf.mxu0
      %v3200 = vadd.f32 0.0, %v3199
      %v3201 = vpop.f32.mrf.mxu0
      %v3202 = vpop.f32.mrf.mxu0
      %v3203 = vadd.f32 0.0, %v3202
      %v3204 = vpop.f32.mrf.mxu0
      %3205 = vmatprep.mubr.bf16.mxu0 0
      %3206 = vmatmul.mubr.bf16.gmra.mxu0 %v3078
      %v3207 = vpop.f32.mrf.mxu0
      %v3208 = vadd.f32 0.0, %v3207
      %v3209 = vpop.f32.mrf.mxu0
      %v3210 = vpop.f32.mrf.mxu0
      %v3211 = vadd.f32 0.0, %v3210
      %v3212 = vpop.f32.mrf.mxu0
      %3213 = vmatprep.mubr.bf16.mxu0 0
      %3214 = vmatmul.mubr.bf16.gmra.mxu0 %v3081
      %v3215 = vpop.f32.mrf.mxu0
      %v3216 = vadd.f32 0.0, %v3215
      %v3217 = vpop.f32.mrf.mxu0
      %v3218 = vpop.f32.mrf.mxu0
      %v3219 = vadd.f32 0.0, %v3218
      %v3220 = vpop.f32.mrf.mxu0
      %3221 = vmatprep.mubr.bf16.mxu0 0
      %3222 = vmatmul.mubr.bf16.gmra.mxu0 %v3084
      %v3223 = vpop.f32.mrf.mxu0
      %v3224 = vadd.f32 0.0, %v3223
      %v3225 = vpop.f32.mrf.mxu0
      %v3226 = vpop.f32.mrf.mxu0
      %v3227 = vadd.f32 0.0, %v3226
      %v3228 = vpop.f32.mrf.mxu0
      %3229 = vmatprep.mubr.bf16.mxu0 0
      %3230 = vmatmul.mubr.bf16.gmra.mxu0 %v3087
      %v3231 = vpop.f32.mrf.mxu0
      %v3232 = vadd.f32 0.0, %v3231
      %v3233 = vpop.f32.mrf.mxu0
      %v3234 = vpop.f32.mrf.mxu0
      %v3235 = vadd.f32 0.0, %v3234
      %v3236 = vpop.f32.mrf.mxu0
      %3237 = vmatprep.mubr.bf16.mxu0 0
      %3238 = vmatmul.mubr.bf16.gmra.mxu0 %v3090
      %v3239 = vpop.f32.mrf.mxu0
      %v3240 = vadd.f32 0.0, %v3239
      %v3241 = vpop.f32.mrf.mxu0
      %v3242 = vpop.f32.mrf.mxu0
      %v3243 = vadd.f32 0.0, %v3242
      %v3244 = vpop.f32.mrf.mxu0
      %3245 = vmatprep.mubr.bf16.mxu0 0
      %3246 = vmatmul.mubr.bf16.gmra.mxu0 %v3093
      %v3247 = vpop.f32.mrf.mxu0
      %v3248 = vadd.f32 0.0, %v3247
      %v3249 = vpop.f32.mrf.mxu0
      %v3250 = vpop.f32.mrf.mxu0
      %v3251 = vadd.f32 0.0, %v3250
      %v3252 = vpop.f32.mrf.mxu0
      %3253 = vmatprep.mubr.bf16.mxu0 0
      %3254 = vmatmul.mubr.bf16.gmra.mxu0 %v3096
      %v3255 = vpop.f32.mrf.mxu0
      %v3256 = vadd.f32 0.0, %v3255
      %v3257 = vpop.f32.mrf.mxu0
      %v3258 = vpop.f32.mrf.mxu0
      %v3259 = vadd.f32 0.0, %v3258
      %v3260 = vpop.f32.mrf.mxu0
      %3261 = vdwg.mxu0
      %v3262 = vadd.f32 %v3000, %v3136
      %v3263 = vadd.f32 %v3001, %v3139
      %v3264 = vadd.f32 %v3002, %v3144
      %v3265 = vadd.f32 %v3003, %v3147
      %v3266 = vadd.f32 %v3004, %v3152
      %v3267 = vadd.f32 %v3005, %v3155
      %v3268 = vadd.f32 %v3006, %v3160
      %v3269 = vadd.f32 %v3007, %v3163
      %v3270 = vadd.f32 %v3008, %v3168
      %v3271 = vadd.f32 %v3009, %v3171
      %v3272 = vadd.f32 %v3010, %v3176
      %v3273 = vadd.f32 %v3011, %v3179
      %v3274 = vadd.f32 %v3012, %v3184
      %v3275 = vadd.f32 %v3013, %v3187
      %v3276 = vadd.f32 %v3014, %v3192
      %v3277 = vadd.f32 %v3015, %v3195
      %v3278 = vadd.f32 %v3016, %v3200
      %v3279 = vadd.f32 %v3017, %v3203
      %v3280 = vadd.f32 %v3018, %v3208
      %v3281 = vadd.f32 %v3019, %v3211
      %v3282 = vadd.f32 %v3020, %v3216
      %v3283 = vadd.f32 %v3021, %v3219
      %v3284 = vadd.f32 %v3022, %v3224
      %v3285 = vadd.f32 %v3023, %v3227
      %v3286 = vadd.f32 %v3024, %v3232
      %v3287 = vadd.f32 %v3025, %v3235
      %v3288 = vadd.f32 %v3026, %v3240
      %v3289 = vadd.f32 %v3027, %v3243
      %v3290 = vadd.f32 %v3028, %v3248
      %v3291 = vadd.f32 %v3029, %v3251
      %v3292 = vadd.f32 %v3030, %v3256
      %v3293 = vadd.f32 %v3031, %v3259
      %3294 = vst.msk [vmem:[#allocation3] sm:$0xff] %vm426, %v3262
      %3295 = vst.msk [vmem:[#allocation3 + $0x8] sm:$0xff] %vm426, %v3263
      %3296 = vst.msk [vmem:[#allocation3 + $0x10] sm:$0xff] %vm426, %v3264
      %3297 = vst.msk [vmem:[#allocation3 + $0x18] sm:$0xff] %vm426, %v3265
      %3298 = vst.msk [vmem:[#allocation3 + $0x20] sm:$0xff] %vm426, %v3266
      %3299 = vst.msk [vmem:[#allocation3 + $0x28] sm:$0xff] %vm426, %v3267
      %3300 = vst.msk [vmem:[#allocation3 + $0x30] sm:$0xff] %vm426, %v3268
      %3301 = vst.msk [vmem:[#allocation3 + $0x38] sm:$0xff] %vm426, %v3269
      %3302 = vst.msk [vmem:[#allocation3 + $0x40] sm:$0xff] %vm426, %v3270
      %3303 = vst.msk [vmem:[#allocation3 + $0x48] sm:$0xff] %vm426, %v3271
      %3304 = vst.msk [vmem:[#allocation3 + $0x50] sm:$0xff] %vm426, %v3272
      %3305 = vst.msk [vmem:[#allocation3 + $0x58] sm:$0xff] %vm426, %v3273
      %3306 = vst.msk [vmem:[#allocation3 + $0x60] sm:$0xff] %vm426, %v3274
      %3307 = vst.msk [vmem:[#allocation3 + $0x68] sm:$0xff] %vm426, %v3275
      %3308 = vst.msk [vmem:[#allocation3 + $0x70] sm:$0xff] %vm426, %v3276
      %3309 = vst.msk [vmem:[#allocation3 + $0x78] sm:$0xff] %vm426, %v3277
      %3310 = vst.msk [vmem:[#allocation3 + $0x80] sm:$0xff] %vm426, %v3278
      %3311 = vst.msk [vmem:[#allocation3 + $0x88] sm:$0xff] %vm426, %v3279
      %3312 = vst.msk [vmem:[#allocation3 + $0x90] sm:$0xff] %vm426, %v3280
      %3313 = vst.msk [vmem:[#allocation3 + $0x98] sm:$0xff] %vm426, %v3281
      %3314 = vst.msk [vmem:[#allocation3 + $0xa0] sm:$0xff] %vm426, %v3282
      %3315 = vst.msk [vmem:[#allocation3 + $0xa8] sm:$0xff] %vm426, %v3283
      %3316 = vst.msk [vmem:[#allocation3 + $0xb0] sm:$0xff] %vm426, %v3284
      %3317 = vst.msk [vmem:[#allocation3 + $0xb8] sm:$0xff] %vm426, %v3285
      %3318 = vst.msk [vmem:[#allocation3 + $0xc0] sm:$0xff] %vm426, %v3286
      %3319 = vst.msk [vmem:[#allocation3 + $0xc8] sm:$0xff] %vm426, %v3287
      %3320 = vst.msk [vmem:[#allocation3 + $0xd0] sm:$0xff] %vm426, %v3288
      %3321 = vst.msk [vmem:[#allocation3 + $0xd8] sm:$0xff] %vm426, %v3289
      %3322 = vst.msk [vmem:[#allocation3 + $0xe0] sm:$0xff] %vm426, %v3290
      %3323 = vst.msk [vmem:[#allocation3 + $0xe8] sm:$0xff] %vm426, %v3291
      %3324 = vst.msk [vmem:[#allocation3 + $0xf0] sm:$0xff] %vm426, %v3292
      %3325 = vst.msk [vmem:[#allocation3 + $0xf8] sm:$0xff] %vm426, %v3293
      %v3326 = vld [vmem:[%s2609 + $0x2] sm:$0xff]
      %v3327 = vld [vmem:[%s2609 + $0xa] sm:$0xff]
      %v3328 = vld [vmem:[%s2609 + $0x1a] sm:$0xff]
      %v3329 = vld [vmem:[%s2609 + $0x22] sm:$0xff]
      %v3330 = vld [vmem:[%s2609 + $0x32] sm:$0xff]
      %v3331 = vld [vmem:[%s2609 + $0x3a] sm:$0xff]
      %v3332 = vld [vmem:[%s2609 + $0x4a] sm:$0xff]
      %v3333 = vld [vmem:[%s2609 + $0x52] sm:$0xff]
      %v3334 = vld [vmem:[%s2609 + $0x62] sm:$0xff]
      %v3335 = vld [vmem:[%s2609 + $0x6a] sm:$0xff]
      %v3336 = vld [vmem:[%s2609 + $0x7a] sm:$0xff]
      %v3337 = vld [vmem:[%s2609 + $0x82] sm:$0xff]
      %v3338 = vld [vmem:[%s2609 + $0x92] sm:$0xff]
      %v3339 = vld [vmem:[%s2609 + $0x9a] sm:$0xff]
      %v3340 = vld [vmem:[%s2609 + $0xaa] sm:$0xff]
      %v3341 = vld [vmem:[%s2609 + $0xb2] sm:$0xff]
      %v3342 = vld [vmem:[%s2609 + $0xc2] sm:$0xff]
      %v3343 = vld [vmem:[%s2609 + $0xca] sm:$0xff]
      %v3344 = vld [vmem:[%s2609 + $0xda] sm:$0xff]
      %v3345 = vld [vmem:[%s2609 + $0xe2] sm:$0xff]
      %v3346 = vld [vmem:[%s2609 + $0xf2] sm:$0xff]
      %v3347 = vld [vmem:[%s2609 + $0xfa] sm:$0xff]
      %v3348 = vld [vmem:[%s2609 + $0x10a] sm:$0xff]
      %v3349 = vld [vmem:[%s2609 + $0x112] sm:$0xff]
      %v3350 = vld [vmem:[%s2609 + $0x122] sm:$0xff]
      %v3351 = vld [vmem:[%s2609 + $0x12a] sm:$0xff]
      %v3352 = vld [vmem:[%s2609 + $0x13a] sm:$0xff]
      %v3353 = vld [vmem:[%s2609 + $0x142] sm:$0xff]
      %v3354 = vld [vmem:[%s2609 + $0x152] sm:$0xff]
      %v3355 = vld [vmem:[%s2609 + $0x15a] sm:$0xff]
      %v3356 = vld [vmem:[%s2609 + $0x16a] sm:$0xff]
      %v3357 = vld [vmem:[%s2609 + $0x172] sm:$0xff]
      %v3358 = vld [vmem:[#allocation3] sm:$0xff]
      %v3359 = vld [vmem:[#allocation3 + $0x8] sm:$0xff]
      %v3360 = vld [vmem:[#allocation3 + $0x10] sm:$0xff]
      %v3361 = vld [vmem:[#allocation3 + $0x18] sm:$0xff]
      %v3362 = vld [vmem:[#allocation3 + $0x20] sm:$0xff]
      %v3363 = vld [vmem:[#allocation3 + $0x28] sm:$0xff]
      %v3364 = vld [vmem:[#allocation3 + $0x30] sm:$0xff]
      %v3365 = vld [vmem:[#allocation3 + $0x38] sm:$0xff]
      %v3366 = vld [vmem:[#allocation3 + $0x40] sm:$0xff]
      %v3367 = vld [vmem:[#allocation3 + $0x48] sm:$0xff]
      %v3368 = vld [vmem:[#allocation3 + $0x50] sm:$0xff]
      %v3369 = vld [vmem:[#allocation3 + $0x58] sm:$0xff]
      %v3370 = vld [vmem:[#allocation3 + $0x60] sm:$0xff]
      %v3371 = vld [vmem:[#allocation3 + $0x68] sm:$0xff]
      %v3372 = vld [vmem:[#allocation3 + $0x70] sm:$0xff]
      %v3373 = vld [vmem:[#allocation3 + $0x78] sm:$0xff]
      %v3374 = vld [vmem:[#allocation3 + $0x80] sm:$0xff]
      %v3375 = vld [vmem:[#allocation3 + $0x88] sm:$0xff]
      %v3376 = vld [vmem:[#allocation3 + $0x90] sm:$0xff]
      %v3377 = vld [vmem:[#allocation3 + $0x98] sm:$0xff]
      %v3378 = vld [vmem:[#allocation3 + $0xa0] sm:$0xff]
      %v3379 = vld [vmem:[#allocation3 + $0xa8] sm:$0xff]
      %v3380 = vld [vmem:[#allocation3 + $0xb0] sm:$0xff]
      %v3381 = vld [vmem:[#allocation3 + $0xb8] sm:$0xff]
      %v3382 = vld [vmem:[#allocation3 + $0xc0] sm:$0xff]
      %v3383 = vld [vmem:[#allocation3 + $0xc8] sm:$0xff]
      %v3384 = vld [vmem:[#allocation3 + $0xd0] sm:$0xff]
      %v3385 = vld [vmem:[#allocation3 + $0xd8] sm:$0xff]
      %v3386 = vld [vmem:[#allocation3 + $0xe0] sm:$0xff]
      %v3387 = vld [vmem:[#allocation3 + $0xe8] sm:$0xff]
      %v3388 = vld [vmem:[#allocation3 + $0xf0] sm:$0xff]
      %v3389 = vld [vmem:[#allocation3 + $0xf8] sm:$0xff]
      %v3390 = vpack.c.bf16 %v3327, %v3326
      %v3391 = vpack.c.bf16 %v3329, %v3328
      %v3392 = vpack.c.bf16 %v3331, %v3330
      %v3393 = vpack.c.bf16 %v3333, %v3332
      %v3394 = vpack.c.bf16 %v3335, %v3334
      %v3395 = vpack.c.bf16 %v3337, %v3336
      %v3396 = vpack.c.bf16 %v3339, %v3338
      %v3397 = vpack.c.bf16 %v3341, %v3340
      %v3398 = vpack.c.bf16 %v3343, %v3342
      %v3399 = vpack.c.bf16 %v3345, %v3344
      %v3400 = vpack.c.bf16 %v3347, %v3346
      %v3401 = vpack.c.bf16 %v3349, %v3348
      %v3402 = vpack.c.bf16 %v3351, %v3350
      %v3403 = vpack.c.bf16 %v3353, %v3352
      %v3404 = vpack.c.bf16 %v3355, %v3354
      %v3405 = vpack.c.bf16 %v3357, %v3356
      %s3406 = scalar_lea.vmem %s249, 16
      %v3407 = vld [vmem:[%s3406] sm:$0x3]
      %v3409 = vsel %vm540, %v3390, 0
      %v3412 = vsel %vm540, %v3391, 0
      %v3415 = vsel %vm540, %v3392, 0
      %v3418 = vsel %vm540, %v3393, 0
      %v3421 = vsel %vm540, %v3394, 0
      %v3424 = vsel %vm540, %v3395, 0
      %v3427 = vsel %vm540, %v3396, 0
      %v3430 = vsel %vm540, %v3397, 0
      %v3433 = vsel %vm540, %v3398, 0
      %v3436 = vsel %vm540, %v3399, 0
      %v3439 = vsel %vm540, %v3400, 0
      %v3442 = vsel %vm540, %v3401, 0
      %v3445 = vsel %vm540, %v3402, 0
      %v3448 = vsel %vm540, %v3403, 0
      %v3451 = vsel %vm540, %v3404, 0
      %v3454 = vsel %vm540, %v3405, 0
      %v3457 = vsel %vm589, %v3407, 0
      %3459 = vmatprep.subr.bf16.mxu0 0
      %3460 = vmatpush1.bf16.msra.mxu0 0
      %3461 = vmatprep.subr.bf16.mxu0 0
      %3462 = vmatpush1.bf16.msra.mxu0 0
      %3463 = vmatprep.subr.bf16.mxu0 0
      %3464 = vmatpush1.bf16.msra.mxu0 0
      %3465 = vmatprep.subr.bf16.mxu0 0
      %3466 = vmatpush1.bf16.msra.mxu0 0
      %3467 = vmatprep.subr.bf16.mxu0 0
      %3468 = vmatpush1.bf16.msra.mxu0 0
      %3469 = vmatprep.subr.bf16.mxu0 0
      %3470 = vmatpush1.bf16.msra.mxu0 0
      %3471 = vmatprep.subr.bf16.mxu0 0
      %3472 = vmatpush1.bf16.msra.mxu0 0
      %3473 = vmatprep.subr.bf16.mxu0 0
      %3474 = vmatpush1.bf16.msra.mxu0 %v3457
      %3475 = vmatprep.subr.bf16.mxu0 0
      %3476 = vmatpush2.bf16.msra.mxu0 0
      %3477 = vmatprep.subr.bf16.mxu0 0
      %3478 = vmatpush2.bf16.msra.mxu0 0
      %3479 = vmatprep.subr.bf16.mxu0 0
      %3480 = vmatpush2.bf16.msra.mxu0 0
      %3481 = vmatprep.subr.bf16.mxu0 0
      %3482 = vmatpush2.bf16.msra.mxu0 0
      %3483 = vmatprep.subr.bf16.mxu0 0
      %3484 = vmatpush2.bf16.msra.mxu0 0
      %3485 = vmatprep.subr.bf16.mxu0 0
      %3486 = vmatpush2.bf16.msra.mxu0 0
      %3487 = vmatprep.subr.bf16.mxu0 0
      %3488 = vmatpush2.bf16.msra.mxu0 0
      %3489 = vmatprep.subr.bf16.mxu0 0
      %3490 = vmatpush2.bf16.msra.mxu0 0
      %3491 = vmatprep.mubr.bf16.mxu0 0
      %3492 = vmatmul.mubr.bf16.gmra.mxu0 %v3409
      %v3493 = vpop.f32.mrf.mxu0
      %v3494 = vadd.f32 0.0, %v3493
      %v3495 = vpop.f32.mrf.mxu0
      %v3496 = vpop.f32.mrf.mxu0
      %v3497 = vadd.f32 0.0, %v3496
      %v3498 = vpop.f32.mrf.mxu0
      %3499 = vmatprep.mubr.bf16.mxu0 0
      %3500 = vmatmul.mubr.bf16.gmra.mxu0 %v3412
      %v3501 = vpop.f32.mrf.mxu0
      %v3502 = vadd.f32 0.0, %v3501
      %v3503 = vpop.f32.mrf.mxu0
      %v3504 = vpop.f32.mrf.mxu0
      %v3505 = vadd.f32 0.0, %v3504
      %v3506 = vpop.f32.mrf.mxu0
      %3507 = vmatprep.mubr.bf16.mxu0 0
      %3508 = vmatmul.mubr.bf16.gmra.mxu0 %v3415
      %v3509 = vpop.f32.mrf.mxu0
      %v3510 = vadd.f32 0.0, %v3509
      %v3511 = vpop.f32.mrf.mxu0
      %v3512 = vpop.f32.mrf.mxu0
      %v3513 = vadd.f32 0.0, %v3512
      %v3514 = vpop.f32.mrf.mxu0
      %3515 = vmatprep.mubr.bf16.mxu0 0
      %3516 = vmatmul.mubr.bf16.gmra.mxu0 %v3418
      %v3517 = vpop.f32.mrf.mxu0
      %v3518 = vadd.f32 0.0, %v3517
      %v3519 = vpop.f32.mrf.mxu0
      %v3520 = vpop.f32.mrf.mxu0
      %v3521 = vadd.f32 0.0, %v3520
      %v3522 = vpop.f32.mrf.mxu0
      %3523 = vmatprep.mubr.bf16.mxu0 0
      %3524 = vmatmul.mubr.bf16.gmra.mxu0 %v3421
      %v3525 = vpop.f32.mrf.mxu0
      %v3526 = vadd.f32 0.0, %v3525
      %v3527 = vpop.f32.mrf.mxu0
      %v3528 = vpop.f32.mrf.mxu0
      %v3529 = vadd.f32 0.0, %v3528
      %v3530 = vpop.f32.mrf.mxu0
      %3531 = vmatprep.mubr.bf16.mxu0 0
      %3532 = vmatmul.mubr.bf16.gmra.mxu0 %v3424
      %v3533 = vpop.f32.mrf.mxu0
      %v3534 = vadd.f32 0.0, %v3533
      %v3535 = vpop.f32.mrf.mxu0
      %v3536 = vpop.f32.mrf.mxu0
      %v3537 = vadd.f32 0.0, %v3536
      %v3538 = vpop.f32.mrf.mxu0
      %3539 = vmatprep.mubr.bf16.mxu0 0
      %3540 = vmatmul.mubr.bf16.gmra.mxu0 %v3427
      %v3541 = vpop.f32.mrf.mxu0
      %v3542 = vadd.f32 0.0, %v3541
      %v3543 = vpop.f32.mrf.mxu0
      %v3544 = vpop.f32.mrf.mxu0
      %v3545 = vadd.f32 0.0, %v3544
      %v3546 = vpop.f32.mrf.mxu0
      %3547 = vmatprep.mubr.bf16.mxu0 0
      %3548 = vmatmul.mubr.bf16.gmra.mxu0 %v3430
      %v3549 = vpop.f32.mrf.mxu0
      %v3550 = vadd.f32 0.0, %v3549
      %v3551 = vpop.f32.mrf.mxu0
      %v3552 = vpop.f32.mrf.mxu0
      %v3553 = vadd.f32 0.0, %v3552
      %v3554 = vpop.f32.mrf.mxu0
      %3555 = vmatprep.mubr.bf16.mxu0 0
      %3556 = vmatmul.mubr.bf16.gmra.mxu0 %v3433
      %v3557 = vpop.f32.mrf.mxu0
      %v3558 = vadd.f32 0.0, %v3557
      %v3559 = vpop.f32.mrf.mxu0
      %v3560 = vpop.f32.mrf.mxu0
      %v3561 = vadd.f32 0.0, %v3560
      %v3562 = vpop.f32.mrf.mxu0
      %3563 = vmatprep.mubr.bf16.mxu0 0
      %3564 = vmatmul.mubr.bf16.gmra.mxu0 %v3436
      %v3565 = vpop.f32.mrf.mxu0
      %v3566 = vadd.f32 0.0, %v3565
      %v3567 = vpop.f32.mrf.mxu0
      %v3568 = vpop.f32.mrf.mxu0
      %v3569 = vadd.f32 0.0, %v3568
      %v3570 = vpop.f32.mrf.mxu0
      %3571 = vmatprep.mubr.bf16.mxu0 0
      %3572 = vmatmul.mubr.bf16.gmra.mxu0 %v3439
      %v3573 = vpop.f32.mrf.mxu0
      %v3574 = vadd.f32 0.0, %v3573
      %v3575 = vpop.f32.mrf.mxu0
      %v3576 = vpop.f32.mrf.mxu0
      %v3577 = vadd.f32 0.0, %v3576
      %v3578 = vpop.f32.mrf.mxu0
      %3579 = vmatprep.mubr.bf16.mxu0 0
      %3580 = vmatmul.mubr.bf16.gmra.mxu0 %v3442
      %v3581 = vpop.f32.mrf.mxu0
      %v3582 = vadd.f32 0.0, %v3581
      %v3583 = vpop.f32.mrf.mxu0
      %v3584 = vpop.f32.mrf.mxu0
      %v3585 = vadd.f32 0.0, %v3584
      %v3586 = vpop.f32.mrf.mxu0
      %3587 = vmatprep.mubr.bf16.mxu0 0
      %3588 = vmatmul.mubr.bf16.gmra.mxu0 %v3445
      %v3589 = vpop.f32.mrf.mxu0
      %v3590 = vadd.f32 0.0, %v3589
      %v3591 = vpop.f32.mrf.mxu0
      %v3592 = vpop.f32.mrf.mxu0
      %v3593 = vadd.f32 0.0, %v3592
      %v3594 = vpop.f32.mrf.mxu0
      %3595 = vmatprep.mubr.bf16.mxu0 0
      %3596 = vmatmul.mubr.bf16.gmra.mxu0 %v3448
      %v3597 = vpop.f32.mrf.mxu0
      %v3598 = vadd.f32 0.0, %v3597
      %v3599 = vpop.f32.mrf.mxu0
      %v3600 = vpop.f32.mrf.mxu0
      %v3601 = vadd.f32 0.0, %v3600
      %v3602 = vpop.f32.mrf.mxu0
      %3603 = vmatprep.mubr.bf16.mxu0 0
      %3604 = vmatmul.mubr.bf16.gmra.mxu0 %v3451
      %v3605 = vpop.f32.mrf.mxu0
      %v3606 = vadd.f32 0.0, %v3605
      %v3607 = vpop.f32.mrf.mxu0
      %v3608 = vpop.f32.mrf.mxu0
      %v3609 = vadd.f32 0.0, %v3608
      %v3610 = vpop.f32.mrf.mxu0
      %3611 = vmatprep.mubr.bf16.mxu0 0
      %3612 = vmatmul.mubr.bf16.gmra.mxu0 %v3454
      %v3613 = vpop.f32.mrf.mxu0
      %v3614 = vadd.f32 0.0, %v3613
      %v3615 = vpop.f32.mrf.mxu0
      %v3616 = vpop.f32.mrf.mxu0
      %v3617 = vadd.f32 0.0, %v3616
      %v3618 = vpop.f32.mrf.mxu0
      %3619 = vdwg.mxu0
      %v3620 = vadd.f32 %v3358, %v3494
      %v3621 = vadd.f32 %v3359, %v3497
      %v3622 = vadd.f32 %v3360, %v3502
      %v3623 = vadd.f32 %v3361, %v3505
      %v3624 = vadd.f32 %v3362, %v3510
      %v3625 = vadd.f32 %v3363, %v3513
      %v3626 = vadd.f32 %v3364, %v3518
      %v3627 = vadd.f32 %v3365, %v3521
      %v3628 = vadd.f32 %v3366, %v3526
      %v3629 = vadd.f32 %v3367, %v3529
      %v3630 = vadd.f32 %v3368, %v3534
      %v3631 = vadd.f32 %v3369, %v3537
      %v3632 = vadd.f32 %v3370, %v3542
      %v3633 = vadd.f32 %v3371, %v3545
      %v3634 = vadd.f32 %v3372, %v3550
      %v3635 = vadd.f32 %v3373, %v3553
      %v3636 = vadd.f32 %v3374, %v3558
      %v3637 = vadd.f32 %v3375, %v3561
      %v3638 = vadd.f32 %v3376, %v3566
      %v3639 = vadd.f32 %v3377, %v3569
      %v3640 = vadd.f32 %v3378, %v3574
      %v3641 = vadd.f32 %v3379, %v3577
      %v3642 = vadd.f32 %v3380, %v3582
      %v3643 = vadd.f32 %v3381, %v3585
      %v3644 = vadd.f32 %v3382, %v3590
      %v3645 = vadd.f32 %v3383, %v3593
      %v3646 = vadd.f32 %v3384, %v3598
      %v3647 = vadd.f32 %v3385, %v3601
      %v3648 = vadd.f32 %v3386, %v3606
      %v3649 = vadd.f32 %v3387, %v3609
      %v3650 = vadd.f32 %v3388, %v3614
      %v3651 = vadd.f32 %v3389, %v3617
      %3652 = vst.msk [vmem:[#allocation3] sm:$0xff] %vm426, %v3620
      %3653 = vst.msk [vmem:[#allocation3 + $0x8] sm:$0xff] %vm426, %v3621
      %3654 = vst.msk [vmem:[#allocation3 + $0x10] sm:$0xff] %vm426, %v3622
      %3655 = vst.msk [vmem:[#allocation3 + $0x18] sm:$0xff] %vm426, %v3623
      %3656 = vst.msk [vmem:[#allocation3 + $0x20] sm:$0xff] %vm426, %v3624
      %3657 = vst.msk [vmem:[#allocation3 + $0x28] sm:$0xff] %vm426, %v3625
      %3658 = vst.msk [vmem:[#allocation3 + $0x30] sm:$0xff] %vm426, %v3626
      %3659 = vst.msk [vmem:[#allocation3 + $0x38] sm:$0xff] %vm426, %v3627
      %3660 = vst.msk [vmem:[#allocation3 + $0x40] sm:$0xff] %vm426, %v3628
      %3661 = vst.msk [vmem:[#allocation3 + $0x48] sm:$0xff] %vm426, %v3629
      %3662 = vst.msk [vmem:[#allocation3 + $0x50] sm:$0xff] %vm426, %v3630
      %3663 = vst.msk [vmem:[#allocation3 + $0x58] sm:$0xff] %vm426, %v3631
      %3664 = vst.msk [vmem:[#allocation3 + $0x60] sm:$0xff] %vm426, %v3632
      %3665 = vst.msk [vmem:[#allocation3 + $0x68] sm:$0xff] %vm426, %v3633
      %3666 = vst.msk [vmem:[#allocation3 + $0x70] sm:$0xff] %vm426, %v3634
      %3667 = vst.msk [vmem:[#allocation3 + $0x78] sm:$0xff] %vm426, %v3635
      %3668 = vst.msk [vmem:[#allocation3 + $0x80] sm:$0xff] %vm426, %v3636
      %3669 = vst.msk [vmem:[#allocation3 + $0x88] sm:$0xff] %vm426, %v3637
      %3670 = vst.msk [vmem:[#allocation3 + $0x90] sm:$0xff] %vm426, %v3638
      %3671 = vst.msk [vmem:[#allocation3 + $0x98] sm:$0xff] %vm426, %v3639
      %3672 = vst.msk [vmem:[#allocation3 + $0xa0] sm:$0xff] %vm426, %v3640
      %3673 = vst.msk [vmem:[#allocation3 + $0xa8] sm:$0xff] %vm426, %v3641
      %3674 = vst.msk [vmem:[#allocation3 + $0xb0] sm:$0xff] %vm426, %v3642
      %3675 = vst.msk [vmem:[#allocation3 + $0xb8] sm:$0xff] %vm426, %v3643
      %3676 = vst.msk [vmem:[#allocation3 + $0xc0] sm:$0xff] %vm426, %v3644
      %3677 = vst.msk [vmem:[#allocation3 + $0xc8] sm:$0xff] %vm426, %v3645
      %3678 = vst.msk [vmem:[#allocation3 + $0xd0] sm:$0xff] %vm426, %v3646
      %3679 = vst.msk [vmem:[#allocation3 + $0xd8] sm:$0xff] %vm426, %v3647
      %3680 = vst.msk [vmem:[#allocation3 + $0xe0] sm:$0xff] %vm426, %v3648
      %3681 = vst.msk [vmem:[#allocation3 + $0xe8] sm:$0xff] %vm426, %v3649
      %3682 = vst.msk [vmem:[#allocation3 + $0xf0] sm:$0xff] %vm426, %v3650
      %3683 = vst.msk [vmem:[#allocation3 + $0xf8] sm:$0xff] %vm426, %v3651
      %v3684 = vld [vmem:[#allocation3] sm:$0xff]
      %v3685 = vld [vmem:[#allocation3 + $0x8] sm:$0xff]
      %v3686 = vld [vmem:[#allocation3 + $0x10] sm:$0xff]
      %v3687 = vld [vmem:[#allocation3 + $0x18] sm:$0xff]
      %v3688 = vld [vmem:[#allocation3 + $0x20] sm:$0xff]
      %v3689 = vld [vmem:[#allocation3 + $0x28] sm:$0xff]
      %v3690 = vld [vmem:[#allocation3 + $0x30] sm:$0xff]
      %v3691 = vld [vmem:[#allocation3 + $0x38] sm:$0xff]
      %v3692 = vld [vmem:[#allocation3 + $0x40] sm:$0xff]
      %v3693 = vld [vmem:[#allocation3 + $0x48] sm:$0xff]
      %v3694 = vld [vmem:[#allocation3 + $0x50] sm:$0xff]
      %v3695 = vld [vmem:[#allocation3 + $0x58] sm:$0xff]
      %v3696 = vld [vmem:[#allocation3 + $0x60] sm:$0xff]
      %v3697 = vld [vmem:[#allocation3 + $0x68] sm:$0xff]
      %v3698 = vld [vmem:[#allocation3 + $0x70] sm:$0xff]
      %v3699 = vld [vmem:[#allocation3 + $0x78] sm:$0xff]
      %v3700 = vld [vmem:[#allocation3 + $0x80] sm:$0xff]
      %v3701 = vld [vmem:[#allocation3 + $0x88] sm:$0xff]
      %v3702 = vld [vmem:[#allocation3 + $0x90] sm:$0xff]
      %v3703 = vld [vmem:[#allocation3 + $0x98] sm:$0xff]
      %v3704 = vld [vmem:[#allocation3 + $0xa0] sm:$0xff]
      %v3705 = vld [vmem:[#allocation3 + $0xa8] sm:$0xff]
      %v3706 = vld [vmem:[#allocation3 + $0xb0] sm:$0xff]
      %v3707 = vld [vmem:[#allocation3 + $0xb8] sm:$0xff]
      %v3708 = vld [vmem:[#allocation3 + $0xc0] sm:$0xff]
      %v3709 = vld [vmem:[#allocation3 + $0xc8] sm:$0xff]
      %v3710 = vld [vmem:[#allocation3 + $0xd0] sm:$0xff]
      %v3711 = vld [vmem:[#allocation3 + $0xd8] sm:$0xff]
      %v3712 = vld [vmem:[#allocation3 + $0xe0] sm:$0xff]
      %v3713 = vld [vmem:[#allocation3 + $0xe8] sm:$0xff]
      %v3714 = vld [vmem:[#allocation3 + $0xf0] sm:$0xff]
      %v3715 = vld [vmem:[#allocation3 + $0xf8] sm:$0xff]
      %v3716 = vld [vmem:[%s252] sm:$0x1]
      %v3718 = vlaneseq
      %v3719 = vshrl.u32 %v3718, 7
      %v3720 = vsub.s32 0, %v3719
      %v3721 = vrot.slane %v3716, %v3720
      %v3723 = vadd.f32 %v3684, %v3721
      %v3724 = vadd.f32 %v3685, %v3721
      %v3725 = vadd.f32 %v3686, %v3721
      %v3726 = vadd.f32 %v3687, %v3721
      %v3727 = vadd.f32 %v3688, %v3721
      %v3728 = vadd.f32 %v3689, %v3721
      %v3729 = vadd.f32 %v3690, %v3721
      %v3730 = vadd.f32 %v3691, %v3721
      %v3731 = vadd.f32 %v3692, %v3721
      %v3732 = vadd.f32 %v3693, %v3721
      %v3733 = vadd.f32 %v3694, %v3721
      %v3734 = vadd.f32 %v3695, %v3721
      %v3735 = vadd.f32 %v3696, %v3721
      %v3736 = vadd.f32 %v3697, %v3721
      %v3737 = vadd.f32 %v3698, %v3721
      %v3738 = vadd.f32 %v3699, %v3721
      %v3739 = vadd.f32 %v3700, %v3721
      %v3740 = vadd.f32 %v3701, %v3721
      %v3741 = vadd.f32 %v3702, %v3721
      %v3742 = vadd.f32 %v3703, %v3721
      %v3743 = vadd.f32 %v3704, %v3721
      %v3744 = vadd.f32 %v3705, %v3721
      %v3745 = vadd.f32 %v3706, %v3721
      %v3746 = vadd.f32 %v3707, %v3721
      %v3747 = vadd.f32 %v3708, %v3721
      %v3748 = vadd.f32 %v3709, %v3721
      %v3749 = vadd.f32 %v3710, %v3721
      %v3750 = vadd.f32 %v3711, %v3721
      %v3751 = vadd.f32 %v3712, %v3721
      %v3752 = vadd.f32 %v3713, %v3721
      %v3753 = vadd.f32 %v3714, %v3721
      %v3754 = vadd.f32 %v3715, %v3721
      %3755 = vst.msk [vmem:[%s260] sm:$0xff] %vm426, %v3723
      %3756 = vst.msk [vmem:[%s260 + $0x8] sm:$0xff] %vm426, %v3724
      %3757 = vst.msk [vmem:[%s260 + $0x10] sm:$0xff] %vm426, %v3725
      %3758 = vst.msk [vmem:[%s260 + $0x18] sm:$0xff] %vm426, %v3726
      %3759 = vst.msk [vmem:[%s260 + $0x20] sm:$0xff] %vm426, %v3727
      %3760 = vst.msk [vmem:[%s260 + $0x28] sm:$0xff] %vm426, %v3728
      %3761 = vst.msk [vmem:[%s260 + $0x30] sm:$0xff] %vm426, %v3729
      %3762 = vst.msk [vmem:[%s260 + $0x38] sm:$0xff] %vm426, %v3730
      %3763 = vst.msk [vmem:[%s260 + $0x40] sm:$0xff] %vm426, %v3731
      %3764 = vst.msk [vmem:[%s260 + $0x48] sm:$0xff] %vm426, %v3732
      %3765 = vst.msk [vmem:[%s260 + $0x50] sm:$0xff] %vm426, %v3733
      %3766 = vst.msk [vmem:[%s260 + $0x58] sm:$0xff] %vm426, %v3734
      %3767 = vst.msk [vmem:[%s260 + $0x60] sm:$0xff] %vm426, %v3735
      %3768 = vst.msk [vmem:[%s260 + $0x68] sm:$0xff] %vm426, %v3736
      %3769 = vst.msk [vmem:[%s260 + $0x70] sm:$0xff] %vm426, %v3737
      %3770 = vst.msk [vmem:[%s260 + $0x78] sm:$0xff] %vm426, %v3738
      %3771 = vst.msk [vmem:[%s260 + $0x80] sm:$0xff] %vm426, %v3739
      %3772 = vst.msk [vmem:[%s260 + $0x88] sm:$0xff] %vm426, %v3740
      %3773 = vst.msk [vmem:[%s260 + $0x90] sm:$0xff] %vm426, %v3741
      %3774 = vst.msk [vmem:[%s260 + $0x98] sm:$0xff] %vm426, %v3742
      %3775 = vst.msk [vmem:[%s260 + $0xa0] sm:$0xff] %vm426, %v3743
      %3776 = vst.msk [vmem:[%s260 + $0xa8] sm:$0xff] %vm426, %v3744
      %3777 = vst.msk [vmem:[%s260 + $0xb0] sm:$0xff] %vm426, %v3745
      %3778 = vst.msk [vmem:[%s260 + $0xb8] sm:$0xff] %vm426, %v3746
      %3779 = vst.msk [vmem:[%s260 + $0xc0] sm:$0xff] %vm426, %v3747
      %3780 = vst.msk [vmem:[%s260 + $0xc8] sm:$0xff] %vm426, %v3748
      %3781 = vst.msk [vmem:[%s260 + $0xd0] sm:$0xff] %vm426, %v3749
      %3782 = vst.msk [vmem:[%s260 + $0xd8] sm:$0xff] %vm426, %v3750
      %3783 = vst.msk [vmem:[%s260 + $0xe0] sm:$0xff] %vm426, %v3751
      %3784 = vst.msk [vmem:[%s260 + $0xe8] sm:$0xff] %vm426, %v3752
      %3785 = vst.msk [vmem:[%s260 + $0xf0] sm:$0xff] %vm426, %v3753
      %3786 = vst.msk [vmem:[%s260 + $0xf8] sm:$0xff] %vm426, %v3754
      %v3787 = vsel %vm426, %v3723, 0.0
      %v3788 = vsel %vm426, %v3724, 0.0
      %v3789 = vadd.f32 %v3787, %v3788
      %v3790 = vsel %vm426, %v3725, 0.0
      %v3791 = vadd.f32 %v3789, %v3790
      %v3792 = vsel %vm426, %v3726, 0.0
      %v3793 = vadd.f32 %v3791, %v3792
      %v3794 = vsel %vm426, %v3727, 0.0
      %v3795 = vadd.f32 %v3793, %v3794
      %v3796 = vsel %vm426, %v3728, 0.0
      %v3797 = vadd.f32 %v3795, %v3796
      %v3798 = vsel %vm426, %v3729, 0.0
      %v3799 = vadd.f32 %v3797, %v3798
      %v3800 = vsel %vm426, %v3730, 0.0
      %v3801 = vadd.f32 %v3799, %v3800
      %v3802 = vsel %vm426, %v3731, 0.0
      %v3803 = vadd.f32 %v3801, %v3802
      %v3804 = vsel %vm426, %v3732, 0.0
      %v3805 = vadd.f32 %v3803, %v3804
      %v3806 = vsel %vm426, %v3733, 0.0
      %v3807 = vadd.f32 %v3805, %v3806
      %v3808 = vsel %vm426, %v3734, 0.0
      %v3809 = vadd.f32 %v3807, %v3808
      %v3810 = vsel %vm426, %v3735, 0.0
      %v3811 = vadd.f32 %v3809, %v3810
      %v3812 = vsel %vm426, %v3736, 0.0
      %v3813 = vadd.f32 %v3811, %v3812
      %v3814 = vsel %vm426, %v3737, 0.0
      %v3815 = vadd.f32 %v3813, %v3814
      %v3816 = vsel %vm426, %v3738, 0.0
      %v3817 = vadd.f32 %v3815, %v3816
      %v3818 = vsel %vm426, %v3739, 0.0
      %v3819 = vadd.f32 %v3817, %v3818
      %v3820 = vsel %vm426, %v3740, 0.0
      %v3821 = vadd.f32 %v3819, %v3820
      %v3822 = vsel %vm426, %v3741, 0.0
      %v3823 = vadd.f32 %v3821, %v3822
      %v3824 = vsel %vm426, %v3742, 0.0
      %v3825 = vadd.f32 %v3823, %v3824
      %v3826 = vsel %vm426, %v3743, 0.0
      %v3827 = vadd.f32 %v3825, %v3826
      %v3828 = vsel %vm426, %v3744, 0.0
      %v3829 = vadd.f32 %v3827, %v3828
      %v3830 = vsel %vm426, %v3745, 0.0
      %v3831 = vadd.f32 %v3829, %v3830
      %v3832 = vsel %vm426, %v3746, 0.0
      %v3833 = vadd.f32 %v3831, %v3832
      %v3834 = vsel %vm426, %v3747, 0.0
      %v3835 = vadd.f32 %v3833, %v3834
      %v3836 = vsel %vm426, %v3748, 0.0
      %v3837 = vadd.f32 %v3835, %v3836
      %v3838 = vsel %vm426, %v3749, 0.0
      %v3839 = vadd.f32 %v3837, %v3838
      %v3840 = vsel %vm426, %v3750, 0.0
      %v3841 = vadd.f32 %v3839, %v3840
      %v3842 = vsel %vm426, %v3751, 0.0
      %v3843 = vadd.f32 %v3841, %v3842
      %v3844 = vsel %vm426, %v3752, 0.0
      %v3845 = vadd.f32 %v3843, %v3844
      %v3846 = vsel %vm426, %v3753, 0.0
      %v3847 = vadd.f32 %v3845, %v3846
      %v3848 = vsel %vm426, %v3754, 0.0
      %v3849 = vadd.f32 %v3847, %v3848
      %v3850 = vrot.slane %v3849, 4
      %v3851 = vadd.f32 %v3849, %v3850
      %v3852 = vrot.slane %v3851, 2
      %v3853 = vadd.f32 %v3851, %v3852
      %v3854 = vrot.slane %v3853, 1
      %v3855 = vadd.f32 %v3853, %v3854
      %v3856 = vmul.f32 %v3723, %v3723
      %v3857 = vmul.f32 %v3724, %v3724
      %v3858 = vmul.f32 %v3725, %v3725
      %v3859 = vmul.f32 %v3726, %v3726
      %v3860 = vmul.f32 %v3727, %v3727
      %v3861 = vmul.f32 %v3728, %v3728
      %v3862 = vmul.f32 %v3729, %v3729
      %v3863 = vmul.f32 %v3730, %v3730
      %v3864 = vmul.f32 %v3731, %v3731
      %v3865 = vmul.f32 %v3732, %v3732
      %v3866 = vmul.f32 %v3733, %v3733
      %v3867 = vmul.f32 %v3734, %v3734
      %v3868 = vmul.f32 %v3735, %v3735
      %v3869 = vmul.f32 %v3736, %v3736
      %v3870 = vmul.f32 %v3737, %v3737
      %v3871 = vmul.f32 %v3738, %v3738
      %v3872 = vmul.f32 %v3739, %v3739
      %v3873 = vmul.f32 %v3740, %v3740
      %v3874 = vmul.f32 %v3741, %v3741
      %v3875 = vmul.f32 %v3742, %v3742
      %v3876 = vmul.f32 %v3743, %v3743
      %v3877 = vmul.f32 %v3744, %v3744
      %v3878 = vmul.f32 %v3745, %v3745
      %v3879 = vmul.f32 %v3746, %v3746
      %v3880 = vmul.f32 %v3747, %v3747
      %v3881 = vmul.f32 %v3748, %v3748
      %v3882 = vmul.f32 %v3749, %v3749
      %v3883 = vmul.f32 %v3750, %v3750
      %v3884 = vmul.f32 %v3751, %v3751
      %v3885 = vmul.f32 %v3752, %v3752
      %v3886 = vmul.f32 %v3753, %v3753
      %v3887 = vmul.f32 %v3754, %v3754
      %v3888 = vsel %vm426, %v3856, 0.0
      %v3889 = vsel %vm426, %v3857, 0.0
      %v3890 = vadd.f32 %v3888, %v3889
      %v3891 = vsel %vm426, %v3858, 0.0
      %v3892 = vadd.f32 %v3890, %v3891
      %v3893 = vsel %vm426, %v3859, 0.0
      %v3894 = vadd.f32 %v3892, %v3893
      %v3895 = vsel %vm426, %v3860, 0.0
      %v3896 = vadd.f32 %v3894, %v3895
      %v3897 = vsel %vm426, %v3861, 0.0
      %v3898 = vadd.f32 %v3896, %v3897
      %v3899 = vsel %vm426, %v3862, 0.0
      %v3900 = vadd.f32 %v3898, %v3899
      %v3901 = vsel %vm426, %v3863, 0.0
      %v3902 = vadd.f32 %v3900, %v3901
      %v3903 = vsel %vm426, %v3864, 0.0
      %v3904 = vadd.f32 %v3902, %v3903
      %v3905 = vsel %vm426, %v3865, 0.0
      %v3906 = vadd.f32 %v3904, %v3905
      %v3907 = vsel %vm426, %v3866, 0.0
      %v3908 = vadd.f32 %v3906, %v3907
      %v3909 = vsel %vm426, %v3867, 0.0
      %v3910 = vadd.f32 %v3908, %v3909
      %v3911 = vsel %vm426, %v3868, 0.0
      %v3912 = vadd.f32 %v3910, %v3911
      %v3913 = vsel %vm426, %v3869, 0.0
      %v3914 = vadd.f32 %v3912, %v3913
      %v3915 = vsel %vm426, %v3870, 0.0
      %v3916 = vadd.f32 %v3914, %v3915
      %v3917 = vsel %vm426, %v3871, 0.0
      %v3918 = vadd.f32 %v3916, %v3917
      %v3919 = vsel %vm426, %v3872, 0.0
      %v3920 = vadd.f32 %v3918, %v3919
      %v3921 = vsel %vm426, %v3873, 0.0
      %v3922 = vadd.f32 %v3920, %v3921
      %v3923 = vsel %vm426, %v3874, 0.0
      %v3924 = vadd.f32 %v3922, %v3923
      %v3925 = vsel %vm426, %v3875, 0.0
      %v3926 = vadd.f32 %v3924, %v3925
      %v3927 = vsel %vm426, %v3876, 0.0
      %v3928 = vadd.f32 %v3926, %v3927
      %v3929 = vsel %vm426, %v3877, 0.0
      %v3930 = vadd.f32 %v3928, %v3929
      %v3931 = vsel %vm426, %v3878, 0.0
      %v3932 = vadd.f32 %v3930, %v3931
      %v3933 = vsel %vm426, %v3879, 0.0
      %v3934 = vadd.f32 %v3932, %v3933
      %v3935 = vsel %vm426, %v3880, 0.0
      %v3936 = vadd.f32 %v3934, %v3935
      %v3937 = vsel %vm426, %v3881, 0.0
      %v3938 = vadd.f32 %v3936, %v3937
      %v3939 = vsel %vm426, %v3882, 0.0
      %v3940 = vadd.f32 %v3938, %v3939
      %v3941 = vsel %vm426, %v3883, 0.0
      %v3942 = vadd.f32 %v3940, %v3941
      %v3943 = vsel %vm426, %v3884, 0.0
      %v3944 = vadd.f32 %v3942, %v3943
      %v3945 = vsel %vm426, %v3885, 0.0
      %v3946 = vadd.f32 %v3944, %v3945
      %v3947 = vsel %vm426, %v3886, 0.0
      %v3948 = vadd.f32 %v3946, %v3947
      %v3949 = vsel %vm426, %v3887, 0.0
      %v3950 = vadd.f32 %v3948, %v3949
      %v3951 = vrot.slane %v3950, 4
      %v3952 = vadd.f32 %v3950, %v3951
      %v3953 = vrot.slane %v3952, 2
      %v3954 = vadd.f32 %v3952, %v3953
      %v3955 = vrot.slane %v3954, 1
      %v3956 = vadd.f32 %v3954, %v3955
      %vm3957 = vcmask 1040384
      %v3958 = vsel %vm3957, %v3855, %v3956
      %vm3959 = vcmask 58368
      %3960 = vst.msk [vmem:[%s267] sm:$0x3] %vm3959, %v3958
      %p3961 = scmp.lt.s32.totalorder %s20, 1
      %s3962 = scalar_select %p3961, %s20, 1
      %p3963 = scmp.lt.s32.totalorder %s21, 0
      %s3964 = scalar_select %p3963, %s21, 0
      %s3965 = smul.addr %s3962, 32
      %s3966 = sadd.s32 %s3964, %s3965
      %s3967 = smul.addr %s3966, 8
      %s3968 = scalar_lea.vmem %s3, %s3967
      %p3969 = scmp.lt.s32.totalorder %s20, 1
      %s3970 = scalar_select %p3969, %s20, 1
      %p3971 = scmp.lt.s32.totalorder %s21, 0
      %s3972 = scalar_select %p3971, %s21, 0
      %s3973 = sadd.s32 %s3972, %s3970
      %s3974 = smul.addr %s3973, 2
      %s3975 = scalar_lea.vmem %s4, %s3974
      // Predicated region
      $region37: #{bridgeconv_forward.3} parent=31 // pred_check
        %p3976 = pneg %p126
      $region38: #{bridgeconv_forward.3} parent=31 // pred_check_branch
        %3978 = sbr.rel (%p3976) target = $region40
      $region39: #{bridgeconv_forward.3} parent=31 // pred_region
        _
      $region40: #{bridgeconv_forward.3} parent=31 // pred_fallthru
        _
      // Predicated region
      $region41: #{bridgeconv_forward.3} parent=31 // pred_check
        %p3979 = pneg %p154
      $region42: #{bridgeconv_forward.3} parent=31 // pred_check_branch
        %3981 = sbr.rel (%p3979) target = $region44
      $region43: #{bridgeconv_forward.3} parent=31 // pred_region
        _
      $region44: #{bridgeconv_forward.3} parent=31 // pred_fallthru
        _
    $region32: #{bridgeconv_forward.3} parent=5 // pred_fallthru
      _
    %p3982 = scmp.le.s32.totalorder 2, %s11
    // Predicated region
    $region45: #{bridgeconv_forward.3} parent=5 // pred_check
      %p3983 = pneg %p3982
    $region46: #{bridgeconv_forward.3} parent=5 // pred_check_branch
      %3985 = sbr.rel (%p3983) target = $region48
    $region47: #{bridgeconv_forward.3} parent=5 // pred_region
      %s3986 = ssub.s32 %s11, 2
      // Predicated region
      $region49: #{bridgeconv_forward.3} parent=47 // pred_check
        %p3987 = pneg %p132
      $region50: #{bridgeconv_forward.3} parent=47 // pred_check_branch
        %3989 = sbr.rel (%p3987) target = $region52
      $region51: #{bridgeconv_forward.3} parent=47 // pred_region
        %p3990 = scmp.lt.s32.totalorder %s22, 1
        %s3991 = scalar_select %p3990, %s22, 1
        %p3992 = scmp.lt.s32.totalorder %s23, 0
        %s3993 = scalar_select %p3992, %s23, 0
        %s3994 = smul.addr %s3991, 32
        %s3995 = sadd.s32 %s3993, %s3994
        %s3996 = smul.addr %s3995, 8
        %s3997 = scalar_lea.vmem %s3, %s3996
      $region52: #{bridgeconv_forward.3} parent=47 // pred_fallthru
        _
      // Predicated region
      $region53: #{bridgeconv_forward.3} parent=47 // pred_check
        %p3998 = pneg %p160
      $region54: #{bridgeconv_forward.3} parent=47 // pred_check_branch
        %4000 = sbr.rel (%p3998) target = $region56
      $region55: #{bridgeconv_forward.3} parent=47 // pred_region
        %p4001 = scmp.lt.s32.totalorder %s22, 1
        %s4002 = scalar_select %p4001, %s22, 1
        %p4003 = scmp.lt.s32.totalorder %s23, 0
        %s4004 = scalar_select %p4003, %s23, 0
        %s4005 = sadd.s32 %s4004, %s4002
        %s4006 = smul.addr %s4005, 2
        %s4007 = scalar_lea.vmem %s4, %s4006
      $region56: #{bridgeconv_forward.3} parent=47 // pred_fallthru
        _
    $region48: #{bridgeconv_forward.3} parent=5 // pred_fallthru
      _
  $region6: #{bridgeconv_forward.3} parent=0 // loop_footer
    %s15 = sadd.s32 1, %s11
  $region7: #{bridgeconv_forward.3} parent=0 // loop_footer_branch
    %10 = sbr.rel target = $region3
  $region8: #{bridgeconv_forward.3} parent=0 // loop_exit
    _

// kernel: bridgeconv_forward.4
$region0: #{bridgeconv_forward.4}
  #allocation0 [shape = 'u32[]', space=smem, size = 0x4, offset = 0x4, fixed_abs, tag = 'smem constant byte address 0x4 - core index']
  #allocation1 [shape = 'u32[144,128]{1,0:T(1,128)}', space=vmem, size = 0x12000, scoped, tag = 'internal scratch']
  #allocation2 [shape = 'f32[18,18,8]{2,1,0:T(8,128)}', space=vmem, size = 0x36000, scoped, tag = 'scratch operand']
  #allocation3 [shape = 'f32[256,8]{1,0:T(8,128)}', space=vmem, size = 0x20000, scoped, tag = 'scratch operand']
  %s0 = inlined_call_operand.vmem [shape: f32[2,16,16,8], index: 0, kind: input, shape index: {}]
  %s1 = inlined_call_operand.vmem [shape: f32[1,8], index: 1, kind: input, shape index: {}]
  %s2 = inlined_call_operand.vmem [shape: f32[1,8], index: 2, kind: input, shape index: {}]
  %s3 = inlined_call_operand.vmem [shape: bf16[9,8,8], index: 3, kind: input, shape index: {}]
  %s4 = inlined_call_operand.vmem [shape: f32[1,8], index: 4, kind: input, shape index: {}]
  %s5 = inlined_call_operand.vmem [shape: f32[2,16,16,8], index: 5, kind: output, shape index: {0}]
  %s6 = inlined_call_operand.vmem [shape: f32[2,2,8], index: 6, kind: output, shape index: {1}]
  %7 = xla_tuple %s5, %s6
  %s8 = sld [smem:[#allocation0]]
  $region65: #{bridgeconv_forward.4} parent=0
    _
  %s10 = ssub.s32 1, %s8
  %s11 = scalar_select 0, %s10, %s8
  loop: start=0, step=1, limit=4
  $region2: #{bridgeconv_forward.4} parent=0 // loop_pre_header
    _
  $region3: #{bridgeconv_forward.4} parent=0 // loop_header
    %s13 = sphi 0, %s17
    %p14 = scmp.ge.s32.totalorder %s13, 4
    %s20 = sphi 0, %s32
    %s21 = sphi 0, %s28
    %s22 = sphi 0, %s20
    %s23 = sphi 0, %s21
    %s24 = sphi 0, %s22
    %s25 = sphi 0, %s23
    %s35 = sphi 0, %s37
    %s38 = sphi 0, %s35
    %s39 = sphi 0, %s38
    %s55 = sphi 0, %s39
    %s59 = sphi 0, %s59
    %s61 = sphi 0, %s59
    %s62 = sphi 0, %s61
    %s76 = sphi 0, %s62
    %s80 = sphi 0, %s80
    %s82 = sphi 0, %s80
    %s83 = sphi 0, %s82
    %s97 = sphi 0, %s83
    %s103 = sphi 0, %s105
    %s106 = sphi 0, %s103
    %s107 = sphi 0, %s106
    %s123 = sphi 0, %s107
    %s129 = sphi 0, %s131
    %s132 = sphi 0, %s129
    %s133 = sphi 0, %s132
    %s149 = sphi 0, %s133
    %s157 = sphi 0, %s159
    %s160 = sphi 0, %s157
    %s161 = sphi 0, %s160
    %s177 = sphi 0, %s161
    %s185 = sphi 0, %s187
    %s188 = sphi 0, %s185
    %s189 = sphi 0, %s188
    %s205 = sphi 0, %s189
  $region4: #{bridgeconv_forward.4} parent=0 // loop_header_branch
    %16 = sbr.rel (%p14) target = $region8
  $region5: #{bridgeconv_forward.4} parent=0 // loop_body
    %s18 = ssub.s32 %s13, 1
    %s19 = ssub.s32 %s13, 2
    %s26 = sadd.s32 1, %s21
    %p27 = scmp.ge.s32.totalorder %s26, 1
    %s28 = scalar_select %p27, 0, %s26
    %s29 = sadd.s32 1, %s20
    %s30 = scalar_select %p27, %s29, %s20
    %p31 = scmp.ge.s32.totalorder %s30, 2
    %s32 = scalar_select %p31, 0, %s30
    %s33 = ssub.s32 %s20, %s32
    %p34 = scmp.eq.s32.totalorder %s33, 0
    %s36 = sadd.s32 %s35, 1
    %s37 = scalar_select %p34, %s35, %s36
    %p40 = pneg %p34
    %p41 = scmp.eq.s32.totalorder %s13, 1
    %p42 = por %p40, %p41
    %p43 = scmp.ne.s32.totalorder %s35, %s38
    %p44 = scmp.eq.s32.totalorder %s13, 0
    %p45 = por %p43, %p44
    %p46 = scmp.ne.s32.totalorder %s35, %s38
    %p47 = scmp.eq.s32.totalorder %s18, 1
    %p48 = por %p46, %p47
    %p49 = scmp.ne.s32.totalorder %s38, %s39
    %p50 = scmp.eq.s32.totalorder %s18, 0
    %p51 = por %p49, %p50
    %p52 = scmp.ne.s32.totalorder %s38, %s39
    %p53 = scmp.eq.s32.totalorder %s19, 1
    %p54 = por %p52, %p53
    %p56 = scmp.ne.s32.totalorder %s39, %s55
    %p57 = scmp.eq.s32.totalorder %s19, 0
    %p58 = por %p56, %p57
    %s60 = sadd.s32 %s59, 1
    %p63 = scmp.eq.s32.totalorder %s13, 1
    %p64 = scmp.ne.s32.totalorder %s59, %s61
    %p65 = scmp.eq.s32.totalorder %s13, 0
    %p66 = por %p64, %p65
    %p67 = scmp.ne.s32.totalorder %s59, %s61
    %p68 = scmp.eq.s32.totalorder %s18, 1
    %p69 = por %p67, %p68
    %p70 = scmp.ne.s32.totalorder %s61, %s62
    %p71 = scmp.eq.s32.totalorder %s18, 0
    %p72 = por %p70, %p71
    %p73 = scmp.ne.s32.totalorder %s61, %s62
    %p74 = scmp.eq.s32.totalorder %s19, 1
    %p75 = por %p73, %p74
    %p77 = scmp.ne.s32.totalorder %s62, %s76
    %p78 = scmp.eq.s32.totalorder %s19, 0
    %p79 = por %p77, %p78
    %s81 = sadd.s32 %s80, 1
    %p84 = scmp.eq.s32.totalorder %s13, 1
    %p85 = scmp.ne.s32.totalorder %s80, %s82
    %p86 = scmp.eq.s32.totalorder %s13, 0
    %p87 = por %p85, %p86
    %p88 = scmp.ne.s32.totalorder %s80, %s82
    %p89 = scmp.eq.s32.totalorder %s18, 1
    %p90 = por %p88, %p89
    %p91 = scmp.ne.s32.totalorder %s82, %s83
    %p92 = scmp.eq.s32.totalorder %s18, 0
    %p93 = por %p91, %p92
    %p94 = scmp.ne.s32.totalorder %s82, %s83
    %p95 = scmp.eq.s32.totalorder %s19, 1
    %p96 = por %p94, %p95
    %p98 = scmp.ne.s32.totalorder %s83, %s97
    %p99 = scmp.eq.s32.totalorder %s19, 0
    %p100 = por %p98, %p99
    %s101 = ssub.s32 %s21, %s28
    %p102 = scmp.eq.s32.totalorder %s101, 0
    %s104 = sadd.s32 %s103, 1
    %s105 = scalar_select %p102, %s103, %s104
    %p108 = pneg %p102
    %p109 = scmp.eq.s32.totalorder %s13, 1
    %p110 = por %p108, %p109
    %p111 = scmp.ne.s32.totalorder %s103, %s106
    %p112 = scmp.eq.s32.totalorder %s13, 0
    %p113 = por %p111, %p112
    %p114 = scmp.ne.s32.totalorder %s103, %s106
    %p115 = scmp.eq.s32.totalorder %s18, 1
    %p116 = por %p114, %p115
    %p117 = scmp.ne.s32.totalorder %s106, %s107
    %p118 = scmp.eq.s32.totalorder %s18, 0
    %p119 = por %p117, %p118
    %p120 = scmp.ne.s32.totalorder %s106, %s107
    %p121 = scmp.eq.s32.totalorder %s19, 1
    %p122 = por %p120, %p121
    %p124 = scmp.ne.s32.totalorder %s107, %s123
    %p125 = scmp.eq.s32.totalorder %s19, 0
    %p126 = por %p124, %p125
    %s127 = ssub.s32 %s21, %s28
    %p128 = scmp.eq.s32.totalorder %s127, 0
    %s130 = sadd.s32 %s129, 1
    %s131 = scalar_select %p128, %s129, %s130
    %p134 = pneg %p128
    %p135 = scmp.eq.s32.totalorder %s13, 1
    %p136 = por %p134, %p135
    %p137 = scmp.ne.s32.totalorder %s129, %s132
    %p138 = scmp.eq.s32.totalorder %s13, 0
    %p139 = por %p137, %p138
    %p140 = scmp.ne.s32.totalorder %s129, %s132
    %p141 = scmp.eq.s32.totalorder %s18, 1
    %p142 = por %p140, %p141
    %p143 = scmp.ne.s32.totalorder %s132, %s133
    %p144 = scmp.eq.s32.totalorder %s18, 0
    %p145 = por %p143, %p144
    %p146 = scmp.ne.s32.totalorder %s132, %s133
    %p147 = scmp.eq.s32.totalorder %s19, 1
    %p148 = por %p146, %p147
    %p150 = scmp.ne.s32.totalorder %s133, %s149
    %p151 = scmp.eq.s32.totalorder %s19, 0
    %p152 = por %p150, %p151
    %s153 = ssub.s32 %s20, %s32
    %s154 = ssub.s32 %s21, %s28
    %s155 = sor.u32 %s153, %s154
    %p156 = scmp.eq.s32.totalorder %s155, 0
    %s158 = sadd.s32 %s157, 1
    %s159 = scalar_select %p156, %s157, %s158
    %p162 = pneg %p156
    %p163 = scmp.eq.s32.totalorder %s13, 1
    %p164 = por %p162, %p163
    %p165 = scmp.ne.s32.totalorder %s157, %s160
    %p166 = scmp.eq.s32.totalorder %s13, 0
    %p167 = por %p165, %p166
    %p168 = scmp.ne.s32.totalorder %s157, %s160
    %p169 = scmp.eq.s32.totalorder %s18, 1
    %p170 = por %p168, %p169
    %p171 = scmp.ne.s32.totalorder %s160, %s161
    %p172 = scmp.eq.s32.totalorder %s18, 0
    %p173 = por %p171, %p172
    %p174 = scmp.ne.s32.totalorder %s160, %s161
    %p175 = scmp.eq.s32.totalorder %s19, 1
    %p176 = por %p174, %p175
    %p178 = scmp.ne.s32.totalorder %s161, %s177
    %p179 = scmp.eq.s32.totalorder %s19, 0
    %p180 = por %p178, %p179
    %s181 = ssub.s32 %s20, %s32
    %s182 = ssub.s32 %s21, %s28
    %s183 = sor.u32 %s181, %s182
    %p184 = scmp.eq.s32.totalorder %s183, 0
    %s186 = sadd.s32 %s185, 1
    %s187 = scalar_select %p184, %s185, %s186
    %p190 = pneg %p184
    %p191 = scmp.eq.s32.totalorder %s13, 1
    %p192 = por %p190, %p191
    %p193 = scmp.ne.s32.totalorder %s185, %s188
    %p194 = scmp.eq.s32.totalorder %s13, 0
    %p195 = por %p193, %p194
    %p196 = scmp.ne.s32.totalorder %s185, %s188
    %p197 = scmp.eq.s32.totalorder %s18, 1
    %p198 = por %p196, %p197
    %p199 = scmp.ne.s32.totalorder %s188, %s189
    %p200 = scmp.eq.s32.totalorder %s18, 0
    %p201 = por %p199, %p200
    %p202 = scmp.ne.s32.totalorder %s188, %s189
    %p203 = scmp.eq.s32.totalorder %s19, 1
    %p204 = por %p202, %p203
    %p206 = scmp.ne.s32.totalorder %s189, %s205
    %p207 = scmp.eq.s32.totalorder %s19, 0
    %p208 = por %p206, %p207
    %p209 = scmp.le.s32.totalorder 1, %s13
    %p210 = scmp.lt.s32.totalorder %s13, 3
    %p211 = pnand %p209, %p210
    %p212 = pneg %p211
    // Predicated region
    $region9: #{bridgeconv_forward.4} parent=5 // pred_check
      _
    $region10: #{bridgeconv_forward.4} parent=5 // pred_check_branch
      %214 = sbr.rel (%p211) target = $region12
    $region11: #{bridgeconv_forward.4} parent=5 // pred_region
      %s215 = ssub.s32 %s13, 1
      // Predicated region
      $region13: #{bridgeconv_forward.4} parent=11 // pred_check
        %p216 = pneg %p72
      $region14: #{bridgeconv_forward.4} parent=11 // pred_check_branch
        %218 = sbr.rel (%p216) target = $region16
      $region15: #{bridgeconv_forward.4} parent=11 // pred_region
        _
      $region16: #{bridgeconv_forward.4} parent=11 // pred_fallthru
        _
      // Predicated region
      $region17: #{bridgeconv_forward.4} parent=11 // pred_check
        %p219 = pneg %p93
      $region18: #{bridgeconv_forward.4} parent=11 // pred_check_branch
        %221 = sbr.rel (%p219) target = $region20
      $region19: #{bridgeconv_forward.4} parent=11 // pred_region
        _
      $region20: #{bridgeconv_forward.4} parent=11 // pred_fallthru
        _
      // Predicated region
      $region21: #{bridgeconv_forward.4} parent=11 // pred_check
        %p222 = pneg %p119
      $region22: #{bridgeconv_forward.4} parent=11 // pred_check_branch
        %224 = sbr.rel (%p222) target = $region24
      $region23: #{bridgeconv_forward.4} parent=11 // pred_region
        %p225 = scmp.lt.s32.totalorder %s23, 0
        %s226 = scalar_select %p225, %s23, 0
        %s227 = smul.addr %s226, 4
        %s228 = scalar_lea.vmem %s3, %s227
      $region24: #{bridgeconv_forward.4} parent=11 // pred_fallthru
        _
      // Predicated region
      $region25: #{bridgeconv_forward.4} parent=11 // pred_check
        %p229 = pneg %p145
      $region26: #{bridgeconv_forward.4} parent=11 // pred_check_branch
        %231 = sbr.rel (%p229) target = $region28
      $region27: #{bridgeconv_forward.4} parent=11 // pred_region
        %p232 = scmp.lt.s32.totalorder %s23, 0
        %s233 = scalar_select %p232, %s23, 0
        %s234 = scalar_lea.vmem %s4, %s233
      $region28: #{bridgeconv_forward.4} parent=11 // pred_fallthru
        _
    $region12: #{bridgeconv_forward.4} parent=5 // pred_fallthru
      _
    %p235 = scmp.lt.s32.totalorder %s13, 2
    // Predicated region
    $region29: #{bridgeconv_forward.4} parent=5 // pred_check
      %p236 = pneg %p235
    $region30: #{bridgeconv_forward.4} parent=5 // pred_check_branch
      %238 = sbr.rel (%p236) target = $region32
    $region31: #{bridgeconv_forward.4} parent=5 // pred_region
      // Predicated region
      $region33: #{bridgeconv_forward.4} parent=31 // pred_check
        %p239 = pneg %p45
      $region34: #{bridgeconv_forward.4} parent=31 // pred_check_branch
        %241 = sbr.rel (%p239) target = $region36
      $region35: #{bridgeconv_forward.4} parent=31 // pred_region
        %p242 = scmp.lt.s32.totalorder %s20, 1
        %s243 = scalar_select %p242, %s20, 1
        %s244 = smul.addr %s243, 32
        %s245 = smul.addr %s244, 8
        %s246 = scalar_lea.vmem %s0, %s245
      $region36: #{bridgeconv_forward.4} parent=31 // pred_fallthru
        _
    $region32: #{bridgeconv_forward.4} parent=5 // pred_fallthru
      _
    %p247 = scmp.le.s32.totalorder 1, %s13
    %p248 = scmp.lt.s32.totalorder %s13, 3
    %p249 = pnand %p247, %p248
    %p250 = pneg %p249
    // Predicated region
    $region37: #{bridgeconv_forward.4} parent=5 // pred_check
      _
    $region38: #{bridgeconv_forward.4} parent=5 // pred_check_branch
      %252 = sbr.rel (%p249) target = $region40
    $region39: #{bridgeconv_forward.4} parent=5 // pred_region
      %s253 = ssub.s32 %s13, 1
      %p254 = scmp.lt.s32.totalorder %s22, 1
      %s255 = scalar_select %p254, %s22, 1
      %s256 = smul.addr %s255, 32
      %s257 = smul.addr %s256, 8
      %s258 = scalar_lea.vmem %s0, %s257
      %p259 = pneg %p51
      %p260 = pneg %p48
      %p261 = pneg %p72
      %p262 = pneg %p69
      %p263 = pneg %p93
      %p264 = pneg %p90
      %p265 = scmp.lt.s32.totalorder %s23, 0
      %s266 = scalar_select %p265, %s23, 0
      %s267 = smul.addr %s266, 4
      %s268 = scalar_lea.vmem %s3, %s267
      %p269 = pneg %p119
      %p270 = pneg %p116
      %p271 = scmp.lt.s32.totalorder %s23, 0
      %s272 = scalar_select %p271, %s23, 0
      %s273 = scalar_lea.vmem %s4, %s272
      %p274 = pneg %p145
      %p275 = pneg %p142
      %p276 = pneg %p173
      %p277 = pneg %p170
      %p278 = scmp.lt.s32.totalorder %s22, 1
      %s279 = scalar_select %p278, %s22, 1
      %p280 = scmp.lt.s32.totalorder %s23, 0
      %s281 = scalar_select %p280, %s23, 0
      %s282 = smul.addr %s279, 32
      %s283 = sadd.s32 %s281, %s282
      %s284 = smul.addr %s283, 8
      %s285 = scalar_lea.vmem %s5, %s284
      %p286 = pneg %p201
      %p287 = pneg %p198
      %p288 = scmp.lt.s32.totalorder %s22, 1
      %s289 = scalar_select %p288, %s22, 1
      %p290 = scmp.lt.s32.totalorder %s23, 0
      %s291 = scalar_select %p290, %s23, 0
      %s292 = sadd.s32 %s291, %s289
      %s293 = smul.addr %s292, 2
      %s294 = scalar_lea.vmem %s6, %s293
      %p295 = scmp.lt.s32.totalorder %s22, 1
      %s296 = scalar_select %p295, %s22, 1
      %s297 = smul.addr %s296, 32
      %s298 = smul.addr %s297, 8
      %s299 = scalar_lea.vmem %s0, %s298
      %p300 = scmp.lt.s32.totalorder %s23, 0
      %s301 = scalar_select %p300, %s23, 0
      %s302 = smul.addr %s301, 4
      %s303 = scalar_lea.vmem %s3, %s302
      %p304 = scmp.lt.s32.totalorder %s23, 0
      %s305 = scalar_select %p304, %s23, 0
      %s306 = scalar_lea.vmem %s4, %s305
      %p307 = scmp.lt.s32.totalorder %s22, 1
      %s308 = scalar_select %p307, %s22, 1
      %p309 = scmp.lt.s32.totalorder %s23, 0
      %s310 = scalar_select %p309, %s23, 0
      %s311 = smul.addr %s308, 32
      %s312 = sadd.s32 %s310, %s311
      %s313 = smul.addr %s312, 8
      %s314 = scalar_lea.vmem %s5, %s313
      %p315 = scmp.lt.s32.totalorder %s22, 1
      %s316 = scalar_select %p315, %s22, 1
      %p317 = scmp.lt.s32.totalorder %s23, 0
      %s318 = scalar_select %p317, %s23, 0
      %s319 = sadd.s32 %s318, %s316
      %s320 = smul.addr %s319, 2
      %s321 = scalar_lea.vmem %s6, %s320
      %p323 = scmp.eq.s32.totalorder %s23, 0
      // Predicated region
      $region41: #{bridgeconv_forward.4} parent=39 // pred_check
        %p324 = pneg %p323
      $region42: #{bridgeconv_forward.4} parent=39 // pred_check_branch
        %326 = sbr.rel (%p324) target = $region44
      $region43: #{bridgeconv_forward.4} parent=39 // pred_region
        %vm327 = vcmask 64512
        %328 = vst.msk [vmem:[#allocation2] sm:$0xff] %vm327, 0.0
        %329 = vst.msk [vmem:[#allocation2 + $0x8] sm:$0xff] %vm327, 0.0
        %vm330 = vcmask 58368
        %331 = vst.msk [vmem:[#allocation2 + $0x10] sm:$0x3] %vm330, 0.0
        %332 = vst.msk [vmem:[#allocation2 + $0x18] sm:$0xff] %vm327, 0.0
        %333 = vst.msk [vmem:[#allocation2 + $0x20] sm:$0xff] %vm327, 0.0
        %334 = vst.msk [vmem:[#allocation2 + $0x28] sm:$0x3] %vm330, 0.0
        %335 = vst.msk [vmem:[#allocation2 + $0x30] sm:$0xff] %vm327, 0.0
        %336 = vst.msk [vmem:[#allocation2 + $0x38] sm:$0xff] %vm327, 0.0
        %337 = vst.msk [vmem:[#allocation2 + $0x40] sm:$0x3] %vm330, 0.0
        %338 = vst.msk [vmem:[#allocation2 + $0x48] sm:$0xff] %vm327, 0.0
        %339 = vst.msk [vmem:[#allocation2 + $0x50] sm:$0xff] %vm327, 0.0
        %340 = vst.msk [vmem:[#allocation2 + $0x58] sm:$0x3] %vm330, 0.0
        %341 = vst.msk [vmem:[#allocation2 + $0x60] sm:$0xff] %vm327, 0.0
        %342 = vst.msk [vmem:[#allocation2 + $0x68] sm:$0xff] %vm327, 0.0
        %343 = vst.msk [vmem:[#allocation2 + $0x70] sm:$0x3] %vm330, 0.0
        %344 = vst.msk [vmem:[#allocation2 + $0x78] sm:$0xff] %vm327, 0.0
        %345 = vst.msk [vmem:[#allocation2 + $0x80] sm:$0xff] %vm327, 0.0
        %346 = vst.msk [vmem:[#allocation2 + $0x88] sm:$0x3] %vm330, 0.0
        %347 = vst.msk [vmem:[#allocation2 + $0x90] sm:$0xff] %vm327, 0.0
        %348 = vst.msk [vmem:[#allocation2 + $0x98] sm:$0xff] %vm327, 0.0
        %349 = vst.msk [vmem:[#allocation2 + $0xa0] sm:$0x3] %vm330, 0.0
        %350 = vst.msk [vmem:[#allocation2 + $0xa8] sm:$0xff] %vm327, 0.0
        %351 = vst.msk [vmem:[#allocation2 + $0xb0] sm:$0xff] %vm327, 0.0
        %352 = vst.msk [vmem:[#allocation2 + $0xb8] sm:$0x3] %vm330, 0.0
        %353 = vst.msk [vmem:[#allocation2 + $0xc0] sm:$0xff] %vm327, 0.0
        %354 = vst.msk [vmem:[#allocation2 + $0xc8] sm:$0xff] %vm327, 0.0
        %355 = vst.msk [vmem:[#allocation2 + $0xd0] sm:$0x3] %vm330, 0.0
        %356 = vst.msk [vmem:[#allocation2 + $0xd8] sm:$0xff] %vm327, 0.0
        %357 = vst.msk [vmem:[#allocation2 + $0xe0] sm:$0xff] %vm327, 0.0
        %358 = vst.msk [vmem:[#allocation2 + $0xe8] sm:$0x3] %vm330, 0.0
        %359 = vst.msk [vmem:[#allocation2 + $0xf0] sm:$0xff] %vm327, 0.0
        %360 = vst.msk [vmem:[#allocation2 + $0xf8] sm:$0xff] %vm327, 0.0
        %361 = vst.msk [vmem:[#allocation2 + $0x100] sm:$0x3] %vm330, 0.0
        %362 = vst.msk [vmem:[#allocation2 + $0x108] sm:$0xff] %vm327, 0.0
        %363 = vst.msk [vmem:[#allocation2 + $0x110] sm:$0xff] %vm327, 0.0
        %364 = vst.msk [vmem:[#allocation2 + $0x118] sm:$0x3] %vm330, 0.0
        %365 = vst.msk [vmem:[#allocation2 + $0x120] sm:$0xff] %vm327, 0.0
        %366 = vst.msk [vmem:[#allocation2 + $0x128] sm:$0xff] %vm327, 0.0
        %367 = vst.msk [vmem:[#allocation2 + $0x130] sm:$0x3] %vm330, 0.0
        %368 = vst.msk [vmem:[#allocation2 + $0x138] sm:$0xff] %vm327, 0.0
        %369 = vst.msk [vmem:[#allocation2 + $0x140] sm:$0xff] %vm327, 0.0
        %370 = vst.msk [vmem:[#allocation2 + $0x148] sm:$0x3] %vm330, 0.0
        %371 = vst.msk [vmem:[#allocation2 + $0x150] sm:$0xff] %vm327, 0.0
        %372 = vst.msk [vmem:[#allocation2 + $0x158] sm:$0xff] %vm327, 0.0
        %373 = vst.msk [vmem:[#allocation2 + $0x160] sm:$0x3] %vm330, 0.0
        %374 = vst.msk [vmem:[#allocation2 + $0x168] sm:$0xff] %vm327, 0.0
        %375 = vst.msk [vmem:[#allocation2 + $0x170] sm:$0xff] %vm327, 0.0
        %376 = vst.msk [vmem:[#allocation2 + $0x178] sm:$0x3] %vm330, 0.0
        %377 = vst.msk [vmem:[#allocation2 + $0x180] sm:$0xff] %vm327, 0.0
        %378 = vst.msk [vmem:[#allocation2 + $0x188] sm:$0xff] %vm327, 0.0
        %379 = vst.msk [vmem:[#allocation2 + $0x190] sm:$0x3] %vm330, 0.0
        %380 = vst.msk [vmem:[#allocation2 + $0x198] sm:$0xff] %vm327, 0.0
        %381 = vst.msk [vmem:[#allocation2 + $0x1a0] sm:$0xff] %vm327, 0.0
        %382 = vst.msk [vmem:[#allocation2 + $0x1a8] sm:$0x3] %vm330, 0.0
        %v383 = vld [vmem:[%s299] sm:$0xff]
        %v384 = vld [vmem:[%s299 + $0x8] sm:$0xff]
        %v385 = vld [vmem:[%s299 + $0x10] sm:$0xff]
        %v386 = vld [vmem:[%s299 + $0x18] sm:$0xff]
        %v387 = vld [vmem:[%s299 + $0x20] sm:$0xff]
        %v388 = vld [vmem:[%s299 + $0x28] sm:$0xff]
        %v389 = vld [vmem:[%s299 + $0x30] sm:$0xff]
        %v390 = vld [vmem:[%s299 + $0x38] sm:$0xff]
        %v391 = vld [vmem:[%s299 + $0x40] sm:$0xff]
        %v392 = vld [vmem:[%s299 + $0x48] sm:$0xff]
        %v393 = vld [vmem:[%s299 + $0x50] sm:$0xff]
        %v394 = vld [vmem:[%s299 + $0x58] sm:$0xff]
        %v395 = vld [vmem:[%s299 + $0x60] sm:$0xff]
        %v396 = vld [vmem:[%s299 + $0x68] sm:$0xff]
        %v397 = vld [vmem:[%s299 + $0x70] sm:$0xff]
        %v398 = vld [vmem:[%s299 + $0x78] sm:$0xff]
        %v399 = vld [vmem:[%s299 + $0x80] sm:$0xff]
        %v400 = vld [vmem:[%s299 + $0x88] sm:$0xff]
        %v401 = vld [vmem:[%s299 + $0x90] sm:$0xff]
        %v402 = vld [vmem:[%s299 + $0x98] sm:$0xff]
        %v403 = vld [vmem:[%s299 + $0xa0] sm:$0xff]
        %v404 = vld [vmem:[%s299 + $0xa8] sm:$0xff]
        %v405 = vld [vmem:[%s299 + $0xb0] sm:$0xff]
        %v406 = vld [vmem:[%s299 + $0xb8] sm:$0xff]
        %v407 = vld [vmem:[%s299 + $0xc0] sm:$0xff]
        %v408 = vld [vmem:[%s299 + $0xc8] sm:$0xff]
        %v409 = vld [vmem:[%s299 + $0xd0] sm:$0xff]
        %v410 = vld [vmem:[%s299 + $0xd8] sm:$0xff]
        %v411 = vld [vmem:[%s299 + $0xe0] sm:$0xff]
        %v412 = vld [vmem:[%s299 + $0xe8] sm:$0xff]
        %v413 = vld [vmem:[%s299 + $0xf0] sm:$0xff]
        %v414 = vld [vmem:[%s299 + $0xf8] sm:$0xff]
        %v415 = vld [vmem:[%s1] sm:$0x1]
        %v417 = vlaneseq
        %v418 = vshrl.u32 %v417, 7
        %v419 = vsub.s32 0, %v418
        %v420 = vrot.slane %v415, %v419
        %v422 = vmul.f32 %v383, %v420
        %v423 = vmul.f32 %v384, %v420
        %v424 = vmul.f32 %v385, %v420
        %v425 = vmul.f32 %v386, %v420
        %v426 = vmul.f32 %v387, %v420
        %v427 = vmul.f32 %v388, %v420
        %v428 = vmul.f32 %v389, %v420
        %v429 = vmul.f32 %v390, %v420
        %v430 = vmul.f32 %v391, %v420
        %v431 = vmul.f32 %v392, %v420
        %v432 = vmul.f32 %v393, %v420
        %v433 = vmul.f32 %v394, %v420
        %v434 = vmul.f32 %v395, %v420
        %v435 = vmul.f32 %v396, %v420
        %v436 = vmul.f32 %v397, %v420
        %v437 = vmul.f32 %v398, %v420
        %v438 = vmul.f32 %v399, %v420
        %v439 = vmul.f32 %v400, %v420
        %v440 = vmul.f32 %v401, %v420
        %v441 = vmul.f32 %v402, %v420
        %v442 = vmul.f32 %v403, %v420
        %v443 = vmul.f32 %v404, %v420
        %v444 = vmul.f32 %v405, %v420
        %v445 = vmul.f32 %v406, %v420
        %v446 = vmul.f32 %v407, %v420
        %v447 = vmul.f32 %v408, %v420
        %v448 = vmul.f32 %v409, %v420
        %v449 = vmul.f32 %v410, %v420
        %v450 = vmul.f32 %v411, %v420
        %v451 = vmul.f32 %v412, %v420
        %v452 = vmul.f32 %v413, %v420
        %v453 = vmul.f32 %v414, %v420
        %v454 = vld [vmem:[%s2] sm:$0x1]
        %v456 = vlaneseq
        %v457 = vshrl.u32 %v456, 7
        %v458 = vsub.s32 0, %v457
        %v459 = vrot.slane %v454, %v458
        %v461 = vadd.f32 %v422, %v459
        %v462 = vadd.f32 %v423, %v459
        %v463 = vadd.f32 %v424, %v459
        %v464 = vadd.f32 %v425, %v459
        %v465 = vadd.f32 %v426, %v459
        %v466 = vadd.f32 %v427, %v459
        %v467 = vadd.f32 %v428, %v459
        %v468 = vadd.f32 %v429, %v459
        %v469 = vadd.f32 %v430, %v459
        %v470 = vadd.f32 %v431, %v459
        %v471 = vadd.f32 %v432, %v459
        %v472 = vadd.f32 %v433, %v459
        %v473 = vadd.f32 %v434, %v459
        %v474 = vadd.f32 %v435, %v459
        %v475 = vadd.f32 %v436, %v459
        %v476 = vadd.f32 %v437, %v459
        %v477 = vadd.f32 %v438, %v459
        %v478 = vadd.f32 %v439, %v459
        %v479 = vadd.f32 %v440, %v459
        %v480 = vadd.f32 %v441, %v459
        %v481 = vadd.f32 %v442, %v459
        %v482 = vadd.f32 %v443, %v459
        %v483 = vadd.f32 %v444, %v459
        %v484 = vadd.f32 %v445, %v459
        %v485 = vadd.f32 %v446, %v459
        %v486 = vadd.f32 %v447, %v459
        %v487 = vadd.f32 %v448, %v459
        %v488 = vadd.f32 %v449, %v459
        %v489 = vadd.f32 %v450, %v459
        %v490 = vadd.f32 %v451, %v459
        %v491 = vadd.f32 %v452, %v459
        %v492 = vadd.f32 %v453, %v459
        %v493 = vmax.f32 %v461, 0.0
        %v494 = vmax.f32 %v462, 0.0
        %v495 = vmax.f32 %v463, 0.0
        %v496 = vmax.f32 %v464, 0.0
        %v497 = vmax.f32 %v465, 0.0
        %v498 = vmax.f32 %v466, 0.0
        %v499 = vmax.f32 %v467, 0.0
        %v500 = vmax.f32 %v468, 0.0
        %v501 = vmax.f32 %v469, 0.0
        %v502 = vmax.f32 %v470, 0.0
        %v503 = vmax.f32 %v471, 0.0
        %v504 = vmax.f32 %v472, 0.0
        %v505 = vmax.f32 %v473, 0.0
        %v506 = vmax.f32 %v474, 0.0
        %v507 = vmax.f32 %v475, 0.0
        %v508 = vmax.f32 %v476, 0.0
        %v509 = vmax.f32 %v477, 0.0
        %v510 = vmax.f32 %v478, 0.0
        %v511 = vmax.f32 %v479, 0.0
        %v512 = vmax.f32 %v480, 0.0
        %v513 = vmax.f32 %v481, 0.0
        %v514 = vmax.f32 %v482, 0.0
        %v515 = vmax.f32 %v483, 0.0
        %v516 = vmax.f32 %v484, 0.0
        %v517 = vmax.f32 %v485, 0.0
        %v518 = vmax.f32 %v486, 0.0
        %v519 = vmax.f32 %v487, 0.0
        %v520 = vmax.f32 %v488, 0.0
        %v521 = vmax.f32 %v489, 0.0
        %v522 = vmax.f32 %v490, 0.0
        %v523 = vmax.f32 %v491, 0.0
        %v524 = vmax.f32 %v492, 0.0
        %s525 = scalar_lea.vmem [#allocation2], 24
        %526 = vst.msk [vmem:[%s525 + $0x1] sm:$0xff] %vm327, %v493
        %527 = vst.msk [vmem:[%s525 + $0x9] sm:$0xff] %vm327, %v494
        %528 = vst.msk [vmem:[%s525 + $0x19] sm:$0xff] %vm327, %v495
        %529 = vst.msk [vmem:[%s525 + $0x21] sm:$0xff] %vm327, %v496
        %530 = vst.msk [vmem:[%s525 + $0x31] sm:$0xff] %vm327, %v497
        %531 = vst.msk [vmem:[%s525 + $0x39] sm:$0xff] %vm327, %v498
        %532 = vst.msk [vmem:[%s525 + $0x49] sm:$0xff] %vm327, %v499
        %533 = vst.msk [vmem:[%s525 + $0x51] sm:$0xff] %vm327, %v500
        %534 = vst.msk [vmem:[%s525 + $0x61] sm:$0xff] %vm327, %v501
        %535 = vst.msk [vmem:[%s525 + $0x69] sm:$0xff] %vm327, %v502
        %536 = vst.msk [vmem:[%s525 + $0x79] sm:$0xff] %vm327, %v503
        %537 = vst.msk [vmem:[%s525 + $0x81] sm:$0xff] %vm327, %v504
        %538 = vst.msk [vmem:[%s525 + $0x91] sm:$0xff] %vm327, %v505
        %539 = vst.msk [vmem:[%s525 + $0x99] sm:$0xff] %vm327, %v506
        %540 = vst.msk [vmem:[%s525 + $0xa9] sm:$0xff] %vm327, %v507
        %541 = vst.msk [vmem:[%s525 + $0xb1] sm:$0xff] %vm327, %v508
        %542 = vst.msk [vmem:[%s525 + $0xc1] sm:$0xff] %vm327, %v509
        %543 = vst.msk [vmem:[%s525 + $0xc9] sm:$0xff] %vm327, %v510
        %544 = vst.msk [vmem:[%s525 + $0xd9] sm:$0xff] %vm327, %v511
        %545 = vst.msk [vmem:[%s525 + $0xe1] sm:$0xff] %vm327, %v512
        %546 = vst.msk [vmem:[%s525 + $0xf1] sm:$0xff] %vm327, %v513
        %547 = vst.msk [vmem:[%s525 + $0xf9] sm:$0xff] %vm327, %v514
        %548 = vst.msk [vmem:[%s525 + $0x109] sm:$0xff] %vm327, %v515
        %549 = vst.msk [vmem:[%s525 + $0x111] sm:$0xff] %vm327, %v516
        %550 = vst.msk [vmem:[%s525 + $0x121] sm:$0xff] %vm327, %v517
        %551 = vst.msk [vmem:[%s525 + $0x129] sm:$0xff] %vm327, %v518
        %552 = vst.msk [vmem:[%s525 + $0x139] sm:$0xff] %vm327, %v519
        %553 = vst.msk [vmem:[%s525 + $0x141] sm:$0xff] %vm327, %v520
        %554 = vst.msk [vmem:[%s525 + $0x151] sm:$0xff] %vm327, %v521
        %555 = vst.msk [vmem:[%s525 + $0x159] sm:$0xff] %vm327, %v522
        %556 = vst.msk [vmem:[%s525 + $0x169] sm:$0xff] %vm327, %v523
        %557 = vst.msk [vmem:[%s525 + $0x171] sm:$0xff] %vm327, %v524
      $region44: #{bridgeconv_forward.4} parent=39 // pred_fallthru
        _
      %vm558 = vcmask 64512
      %559 = vst.msk [vmem:[#allocation3] sm:$0xff] %vm558, 0.0
      %560 = vst.msk [vmem:[#allocation3 + $0x8] sm:$0xff] %vm558, 0.0
      %561 = vst.msk [vmem:[#allocation3 + $0x10] sm:$0xff] %vm558, 0.0
      %562 = vst.msk [vmem:[#allocation3 + $0x18] sm:$0xff] %vm558, 0.0
      %563 = vst.msk [vmem:[#allocation3 + $0x20] sm:$0xff] %vm558, 0.0
      %564 = vst.msk [vmem:[#allocation3 + $0x28] sm:$0xff] %vm558, 0.0
      %565 = vst.msk [vmem:[#allocation3 + $0x30] sm:$0xff] %vm558, 0.0
      %566 = vst.msk [vmem:[#allocation3 + $0x38] sm:$0xff] %vm558, 0.0
      %567 = vst.msk [vmem:[#allocation3 + $0x40] sm:$0xff] %vm558, 0.0
      %568 = vst.msk [vmem:[#allocation3 + $0x48] sm:$0xff] %vm558, 0.0
      %569 = vst.msk [vmem:[#allocation3 + $0x50] sm:$0xff] %vm558, 0.0
      %570 = vst.msk [vmem:[#allocation3 + $0x58] sm:$0xff] %vm558, 0.0
      %571 = vst.msk [vmem:[#allocation3 + $0x60] sm:$0xff] %vm558, 0.0
      %572 = vst.msk [vmem:[#allocation3 + $0x68] sm:$0xff] %vm558, 0.0
      %573 = vst.msk [vmem:[#allocation3 + $0x70] sm:$0xff] %vm558, 0.0
      %574 = vst.msk [vmem:[#allocation3 + $0x78] sm:$0xff] %vm558, 0.0
      %575 = vst.msk [vmem:[#allocation3 + $0x80] sm:$0xff] %vm558, 0.0
      %576 = vst.msk [vmem:[#allocation3 + $0x88] sm:$0xff] %vm558, 0.0
      %577 = vst.msk [vmem:[#allocation3 + $0x90] sm:$0xff] %vm558, 0.0
      %578 = vst.msk [vmem:[#allocation3 + $0x98] sm:$0xff] %vm558, 0.0
      %579 = vst.msk [vmem:[#allocation3 + $0xa0] sm:$0xff] %vm558, 0.0
      %580 = vst.msk [vmem:[#allocation3 + $0xa8] sm:$0xff] %vm558, 0.0
      %581 = vst.msk [vmem:[#allocation3 + $0xb0] sm:$0xff] %vm558, 0.0
      %582 = vst.msk [vmem:[#allocation3 + $0xb8] sm:$0xff] %vm558, 0.0
      %583 = vst.msk [vmem:[#allocation3 + $0xc0] sm:$0xff] %vm558, 0.0
      %584 = vst.msk [vmem:[#allocation3 + $0xc8] sm:$0xff] %vm558, 0.0
      %585 = vst.msk [vmem:[#allocation3 + $0xd0] sm:$0xff] %vm558, 0.0
      %586 = vst.msk [vmem:[#allocation3 + $0xd8] sm:$0xff] %vm558, 0.0
      %587 = vst.msk [vmem:[#allocation3 + $0xe0] sm:$0xff] %vm558, 0.0
      %588 = vst.msk [vmem:[#allocation3 + $0xe8] sm:$0xff] %vm558, 0.0
      %589 = vst.msk [vmem:[#allocation3 + $0xf0] sm:$0xff] %vm558, 0.0
      %590 = vst.msk [vmem:[#allocation3 + $0xf8] sm:$0xff] %vm558, 0.0
      %v591 = vld [vmem:[#allocation2] sm:$0xff]
      %v592 = vld [vmem:[#allocation2 + $0x8] sm:$0xff]
      %v593 = vld [vmem:[#allocation2 + $0x18] sm:$0xff]
      %v594 = vld [vmem:[#allocation2 + $0x20] sm:$0xff]
      %v595 = vld [vmem:[#allocation2 + $0x30] sm:$0xff]
      %v596 = vld [vmem:[#allocation2 + $0x38] sm:$0xff]
      %v597 = vld [vmem:[#allocation2 + $0x48] sm:$0xff]
      %v598 = vld [vmem:[#allocation2 + $0x50] sm:$0xff]
      %v599 = vld [vmem:[#allocation2 + $0x60] sm:$0xff]
      %v600 = vld [vmem:[#allocation2 + $0x68] sm:$0xff]
      %v601 = vld [vmem:[#allocation2 + $0x78] sm:$0xff]
      %v602 = vld [vmem:[#allocation2 + $0x80] sm:$0xff]
      %v603 = vld [vmem:[#allocation2 + $0x90] sm:$0xff]
      %v604 = vld [vmem:[#allocation2 + $0x98] sm:$0xff]
      %v605 = vld [vmem:[#allocation2 + $0xa8] sm:$0xff]
      %v606 = vld [vmem:[#allocation2 + $0xb0] sm:$0xff]
      %v607 = vld [vmem:[#allocation2 + $0xc0] sm:$0xff]
      %v608 = vld [vmem:[#allocation2 + $0xc8] sm:$0xff]
      %v609 = vld [vmem:[#allocation2 + $0xd8] sm:$0xff]
      %v610 = vld [vmem:[#allocation2 + $0xe0] sm:$0xff]
      %v611 = vld [vmem:[#allocation2 + $0xf0] sm:$0xff]
      %v612 = vld [vmem:[#allocation2 + $0xf8] sm:$0xff]
      %v613 = vld [vmem:[#allocation2 + $0x108] sm:$0xff]
      %v614 = vld [vmem:[#allocation2 + $0x110] sm:$0xff]
      %v615 = vld [vmem:[#allocation2 + $0x120] sm:$0xff]
      %v616 = vld [vmem:[#allocation2 + $0x128] sm:$0xff]
      %v617 = vld [vmem:[#allocation2 + $0x138] sm:$0xff]
      %v618 = vld [vmem:[#allocation2 + $0x140] sm:$0xff]
      %v619 = vld [vmem:[#allocation2 + $0x150] sm:$0xff]
      %v620 = vld [vmem:[#allocation2 + $0x158] sm:$0xff]
      %v621 = vld [vmem:[#allocation2 + $0x168] sm:$0xff]
      %v622 = vld [vmem:[#allocation2 + $0x170] sm:$0xff]
      %v623 = vld [vmem:[#allocation3] sm:$0xff]
      %v624 = vld [vmem:[#allocation3 + $0x8] sm:$0xff]
      %v625 = vld [vmem:[#allocation3 + $0x10] sm:$0xff]
      %v626 = vld [vmem:[#allocation3 + $0x18] sm:$0xff]
      %v627 = vld [vmem:[#allocation3 + $0x20] sm:$0xff]
      %v628 = vld [vmem:[#allocation3 + $0x28] sm:$0xff]
      %v629 = vld [vmem:[#allocation3 + $0x30] sm:$0xff]
      %v630 = vld [vmem:[#allocation3 + $0x38] sm:$0xff]
      %v631 = vld [vmem:[#allocation3 + $0x40] sm:$0xff]
      %v632 = vld [vmem:[#allocation3 + $0x48] sm:$0xff]
      %v633 = vld [vmem:[#allocation3 + $0x50] sm:$0xff]
      %v634 = vld [vmem:[#allocation3 + $0x58] sm:$0xff]
      %v635 = vld [vmem:[#allocation3 + $0x60] sm:$0xff]
      %v636 = vld [vmem:[#allocation3 + $0x68] sm:$0xff]
      %v637 = vld [vmem:[#allocation3 + $0x70] sm:$0xff]
      %v638 = vld [vmem:[#allocation3 + $0x78] sm:$0xff]
      %v639 = vld [vmem:[#allocation3 + $0x80] sm:$0xff]
      %v640 = vld [vmem:[#allocation3 + $0x88] sm:$0xff]
      %v641 = vld [vmem:[#allocation3 + $0x90] sm:$0xff]
      %v642 = vld [vmem:[#allocation3 + $0x98] sm:$0xff]
      %v643 = vld [vmem:[#allocation3 + $0xa0] sm:$0xff]
      %v644 = vld [vmem:[#allocation3 + $0xa8] sm:$0xff]
      %v645 = vld [vmem:[#allocation3 + $0xb0] sm:$0xff]
      %v646 = vld [vmem:[#allocation3 + $0xb8] sm:$0xff]
      %v647 = vld [vmem:[#allocation3 + $0xc0] sm:$0xff]
      %v648 = vld [vmem:[#allocation3 + $0xc8] sm:$0xff]
      %v649 = vld [vmem:[#allocation3 + $0xd0] sm:$0xff]
      %v650 = vld [vmem:[#allocation3 + $0xd8] sm:$0xff]
      %v651 = vld [vmem:[#allocation3 + $0xe0] sm:$0xff]
      %v652 = vld [vmem:[#allocation3 + $0xe8] sm:$0xff]
      %v653 = vld [vmem:[#allocation3 + $0xf0] sm:$0xff]
      %v654 = vld [vmem:[#allocation3 + $0xf8] sm:$0xff]
      %v655 = vpack.c.bf16 %v592, %v591
      %v656 = vpack.c.bf16 %v594, %v593
      %v657 = vpack.c.bf16 %v596, %v595
      %v658 = vpack.c.bf16 %v598, %v597
      %v659 = vpack.c.bf16 %v600, %v599
      %v660 = vpack.c.bf16 %v602, %v601
      %v661 = vpack.c.bf16 %v604, %v603
      %v662 = vpack.c.bf16 %v606, %v605
      %v663 = vpack.c.bf16 %v608, %v607
      %v664 = vpack.c.bf16 %v610, %v609
      %v665 = vpack.c.bf16 %v612, %v611
      %v666 = vpack.c.bf16 %v614, %v613
      %v667 = vpack.c.bf16 %v616, %v615
      %v668 = vpack.c.bf16 %v618, %v617
      %v669 = vpack.c.bf16 %v620, %v619
      %v670 = vpack.c.bf16 %v622, %v621
      %v671 = vld [vmem:[%s303] sm:$0xf]
      %v673 = vsel %vm558, %v655, 0
      %v676 = vsel %vm558, %v656, 0
      %v679 = vsel %vm558, %v657, 0
      %v682 = vsel %vm558, %v658, 0
      %v685 = vsel %vm558, %v659, 0
      %v688 = vsel %vm558, %v660, 0
      %v691 = vsel %vm558, %v661, 0
      %v694 = vsel %vm558, %v662, 0
      %v697 = vsel %vm558, %v663, 0
      %v700 = vsel %vm558, %v664, 0
      %v703 = vsel %vm558, %v665, 0
      %v706 = vsel %vm558, %v666, 0
      %v709 = vsel %vm558, %v667, 0
      %v712 = vsel %vm558, %v668, 0
      %v715 = vsel %vm558, %v669, 0
      %v718 = vsel %vm558, %v670, 0
      %vm720 = vcmask 1043456
      %v722 = vsel %vm720, %v671, 0
      %724 = vmatprep.subr.bf16.mxu0 0
      %725 = vmatpush1.bf16.msra.mxu0 0
      %726 = vmatprep.subr.bf16.mxu0 0
      %727 = vmatpush1.bf16.msra.mxu0 0
      %728 = vmatprep.subr.bf16.mxu0 0
      %729 = vmatpush1.bf16.msra.mxu0 0
      %730 = vmatprep.subr.bf16.mxu0 0
      %731 = vmatpush1.bf16.msra.mxu0 0
      %732 = vmatprep.subr.bf16.mxu0 0
      %733 = vmatpush1.bf16.msra.mxu0 0
      %734 = vmatprep.subr.bf16.mxu0 0
      %735 = vmatpush1.bf16.msra.mxu0 0
      %736 = vmatprep.subr.bf16.mxu0 0
      %737 = vmatpush1.bf16.msra.mxu0 0
      %738 = vmatprep.subr.bf16.mxu0 0
      %739 = vmatpush1.bf16.msra.mxu0 %v722
      %740 = vmatprep.subr.bf16.mxu0 0
      %741 = vmatpush2.bf16.msra.mxu0 0
      %742 = vmatprep.subr.bf16.mxu0 0
      %743 = vmatpush2.bf16.msra.mxu0 0
      %744 = vmatprep.subr.bf16.mxu0 0
      %745 = vmatpush2.bf16.msra.mxu0 0
      %746 = vmatprep.subr.bf16.mxu0 0
      %747 = vmatpush2.bf16.msra.mxu0 0
      %748 = vmatprep.subr.bf16.mxu0 0
      %749 = vmatpush2.bf16.msra.mxu0 0
      %750 = vmatprep.subr.bf16.mxu0 0
      %751 = vmatpush2.bf16.msra.mxu0 0
      %752 = vmatprep.subr.bf16.mxu0 0
      %753 = vmatpush2.bf16.msra.mxu0 0
      %754 = vmatprep.subr.bf16.mxu0 0
      %755 = vmatpush2.bf16.msra.mxu0 0
      %756 = vmatprep.mubr.bf16.mxu0 0
      %757 = vmatmul.mubr.bf16.gmra.mxu0 %v673
      %v758 = vpop.f32.mrf.mxu0
      %v759 = vadd.f32 0.0, %v758
      %v760 = vpop.f32.mrf.mxu0
      %v761 = vpop.f32.mrf.mxu0
      %v762 = vadd.f32 0.0, %v761
      %v763 = vpop.f32.mrf.mxu0
      %764 = vmatprep.mubr.bf16.mxu0 0
      %765 = vmatmul.mubr.bf16.gmra.mxu0 %v676
      %v766 = vpop.f32.mrf.mxu0
      %v767 = vadd.f32 0.0, %v766
      %v768 = vpop.f32.mrf.mxu0
      %v769 = vpop.f32.mrf.mxu0
      %v770 = vadd.f32 0.0, %v769
      %v771 = vpop.f32.mrf.mxu0
      %772 = vmatprep.mubr.bf16.mxu0 0
      %773 = vmatmul.mubr.bf16.gmra.mxu0 %v679
      %v774 = vpop.f32.mrf.mxu0
      %v775 = vadd.f32 0.0, %v774
      %v776 = vpop.f32.mrf.mxu0
      %v777 = vpop.f32.mrf.mxu0
      %v778 = vadd.f32 0.0, %v777
      %v779 = vpop.f32.mrf.mxu0
      %780 = vmatprep.mubr.bf16.mxu0 0
      %781 = vmatmul.mubr.bf16.gmra.mxu0 %v682
      %v782 = vpop.f32.mrf.mxu0
      %v783 = vadd.f32 0.0, %v782
      %v784 = vpop.f32.mrf.mxu0
      %v785 = vpop.f32.mrf.mxu0
      %v786 = vadd.f32 0.0, %v785
      %v787 = vpop.f32.mrf.mxu0
      %788 = vmatprep.mubr.bf16.mxu0 0
      %789 = vmatmul.mubr.bf16.gmra.mxu0 %v685
      %v790 = vpop.f32.mrf.mxu0
      %v791 = vadd.f32 0.0, %v790
      %v792 = vpop.f32.mrf.mxu0
      %v793 = vpop.f32.mrf.mxu0
      %v794 = vadd.f32 0.0, %v793
      %v795 = vpop.f32.mrf.mxu0
      %796 = vmatprep.mubr.bf16.mxu0 0
      %797 = vmatmul.mubr.bf16.gmra.mxu0 %v688
      %v798 = vpop.f32.mrf.mxu0
      %v799 = vadd.f32 0.0, %v798
      %v800 = vpop.f32.mrf.mxu0
      %v801 = vpop.f32.mrf.mxu0
      %v802 = vadd.f32 0.0, %v801
      %v803 = vpop.f32.mrf.mxu0
      %804 = vmatprep.mubr.bf16.mxu0 0
      %805 = vmatmul.mubr.bf16.gmra.mxu0 %v691
      %v806 = vpop.f32.mrf.mxu0
      %v807 = vadd.f32 0.0, %v806
      %v808 = vpop.f32.mrf.mxu0
      %v809 = vpop.f32.mrf.mxu0
      %v810 = vadd.f32 0.0, %v809
      %v811 = vpop.f32.mrf.mxu0
      %812 = vmatprep.mubr.bf16.mxu0 0
      %813 = vmatmul.mubr.bf16.gmra.mxu0 %v694
      %v814 = vpop.f32.mrf.mxu0
      %v815 = vadd.f32 0.0, %v814
      %v816 = vpop.f32.mrf.mxu0
      %v817 = vpop.f32.mrf.mxu0
      %v818 = vadd.f32 0.0, %v817
      %v819 = vpop.f32.mrf.mxu0
      %820 = vmatprep.mubr.bf16.mxu0 0
      %821 = vmatmul.mubr.bf16.gmra.mxu0 %v697
      %v822 = vpop.f32.mrf.mxu0
      %v823 = vadd.f32 0.0, %v822
      %v824 = vpop.f32.mrf.mxu0
      %v825 = vpop.f32.mrf.mxu0
      %v826 = vadd.f32 0.0, %v825
      %v827 = vpop.f32.mrf.mxu0
      %828 = vmatprep.mubr.bf16.mxu0 0
      %829 = vmatmul.mubr.bf16.gmra.mxu0 %v700
      %v830 = vpop.f32.mrf.mxu0
      %v831 = vadd.f32 0.0, %v830
      %v832 = vpop.f32.mrf.mxu0
      %v833 = vpop.f32.mrf.mxu0
      %v834 = vadd.f32 0.0, %v833
      %v835 = vpop.f32.mrf.mxu0
      %836 = vmatprep.mubr.bf16.mxu0 0
      %837 = vmatmul.mubr.bf16.gmra.mxu0 %v703
      %v838 = vpop.f32.mrf.mxu0
      %v839 = vadd.f32 0.0, %v838
      %v840 = vpop.f32.mrf.mxu0
      %v841 = vpop.f32.mrf.mxu0
      %v842 = vadd.f32 0.0, %v841
      %v843 = vpop.f32.mrf.mxu0
      %844 = vmatprep.mubr.bf16.mxu0 0
      %845 = vmatmul.mubr.bf16.gmra.mxu0 %v706
      %v846 = vpop.f32.mrf.mxu0
      %v847 = vadd.f32 0.0, %v846
      %v848 = vpop.f32.mrf.mxu0
      %v849 = vpop.f32.mrf.mxu0
      %v850 = vadd.f32 0.0, %v849
      %v851 = vpop.f32.mrf.mxu0
      %852 = vmatprep.mubr.bf16.mxu0 0
      %853 = vmatmul.mubr.bf16.gmra.mxu0 %v709
      %v854 = vpop.f32.mrf.mxu0
      %v855 = vadd.f32 0.0, %v854
      %v856 = vpop.f32.mrf.mxu0
      %v857 = vpop.f32.mrf.mxu0
      %v858 = vadd.f32 0.0, %v857
      %v859 = vpop.f32.mrf.mxu0
      %860 = vmatprep.mubr.bf16.mxu0 0
      %861 = vmatmul.mubr.bf16.gmra.mxu0 %v712
      %v862 = vpop.f32.mrf.mxu0
      %v863 = vadd.f32 0.0, %v862
      %v864 = vpop.f32.mrf.mxu0
      %v865 = vpop.f32.mrf.mxu0
      %v866 = vadd.f32 0.0, %v865
      %v867 = vpop.f32.mrf.mxu0
      %868 = vmatprep.mubr.bf16.mxu0 0
      %869 = vmatmul.mubr.bf16.gmra.mxu0 %v715
      %v870 = vpop.f32.mrf.mxu0
      %v871 = vadd.f32 0.0, %v870
      %v872 = vpop.f32.mrf.mxu0
      %v873 = vpop.f32.mrf.mxu0
      %v874 = vadd.f32 0.0, %v873
      %v875 = vpop.f32.mrf.mxu0
      %876 = vmatprep.mubr.bf16.mxu0 0
      %877 = vmatmul.mubr.bf16.gmra.mxu0 %v718
      %v878 = vpop.f32.mrf.mxu0
      %v879 = vadd.f32 0.0, %v878
      %v880 = vpop.f32.mrf.mxu0
      %v881 = vpop.f32.mrf.mxu0
      %v882 = vadd.f32 0.0, %v881
      %v883 = vpop.f32.mrf.mxu0
      %884 = vdwg.mxu0
      %v885 = vadd.f32 %v623, %v759
      %v886 = vadd.f32 %v624, %v762
      %v887 = vadd.f32 %v625, %v767
      %v888 = vadd.f32 %v626, %v770
      %v889 = vadd.f32 %v627, %v775
      %v890 = vadd.f32 %v628, %v778
      %v891 = vadd.f32 %v629, %v783
      %v892 = vadd.f32 %v630, %v786
      %v893 = vadd.f32 %v631, %v791
      %v894 = vadd.f32 %v632, %v794
      %v895 = vadd.f32 %v633, %v799
      %v896 = vadd.f32 %v634, %v802
      %v897 = vadd.f32 %v635, %v807
      %v898 = vadd.f32 %v636, %v810
      %v899 = vadd.f32 %v637, %v815
      %v900 = vadd.f32 %v638, %v818
      %v901 = vadd.f32 %v639, %v823
      %v902 = vadd.f32 %v640, %v826
      %v903 = vadd.f32 %v641, %v831
      %v904 = vadd.f32 %v642, %v834
      %v905 = vadd.f32 %v643, %v839
      %v906 = vadd.f32 %v644, %v842
      %v907 = vadd.f32 %v645, %v847
      %v908 = vadd.f32 %v646, %v850
      %v909 = vadd.f32 %v647, %v855
      %v910 = vadd.f32 %v648, %v858
      %v911 = vadd.f32 %v649, %v863
      %v912 = vadd.f32 %v650, %v866
      %v913 = vadd.f32 %v651, %v871
      %v914 = vadd.f32 %v652, %v874
      %v915 = vadd.f32 %v653, %v879
      %v916 = vadd.f32 %v654, %v882
      %917 = vst.msk [vmem:[#allocation3] sm:$0xff] %vm558, %v885
      %918 = vst.msk [vmem:[#allocation3 + $0x8] sm:$0xff] %vm558, %v886
      %919 = vst.msk [vmem:[#allocation3 + $0x10] sm:$0xff] %vm558, %v887
      %920 = vst.msk [vmem:[#allocation3 + $0x18] sm:$0xff] %vm558, %v888
      %921 = vst.msk [vmem:[#allocation3 + $0x20] sm:$0xff] %vm558, %v889
      %922 = vst.msk [vmem:[#allocation3 + $0x28] sm:$0xff] %vm558, %v890
      %923 = vst.msk [vmem:[#allocation3 + $0x30] sm:$0xff] %vm558, %v891
      %924 = vst.msk [vmem:[#allocation3 + $0x38] sm:$0xff] %vm558, %v892
      %925 = vst.msk [vmem:[#allocation3 + $0x40] sm:$0xff] %vm558, %v893
      %926 = vst.msk [vmem:[#allocation3 + $0x48] sm:$0xff] %vm558, %v894
      %927 = vst.msk [vmem:[#allocation3 + $0x50] sm:$0xff] %vm558, %v895
      %928 = vst.msk [vmem:[#allocation3 + $0x58] sm:$0xff] %vm558, %v896
      %929 = vst.msk [vmem:[#allocation3 + $0x60] sm:$0xff] %vm558, %v897
      %930 = vst.msk [vmem:[#allocation3 + $0x68] sm:$0xff] %vm558, %v898
      %931 = vst.msk [vmem:[#allocation3 + $0x70] sm:$0xff] %vm558, %v899
      %932 = vst.msk [vmem:[#allocation3 + $0x78] sm:$0xff] %vm558, %v900
      %933 = vst.msk [vmem:[#allocation3 + $0x80] sm:$0xff] %vm558, %v901
      %934 = vst.msk [vmem:[#allocation3 + $0x88] sm:$0xff] %vm558, %v902
      %935 = vst.msk [vmem:[#allocation3 + $0x90] sm:$0xff] %vm558, %v903
      %936 = vst.msk [vmem:[#allocation3 + $0x98] sm:$0xff] %vm558, %v904
      %937 = vst.msk [vmem:[#allocation3 + $0xa0] sm:$0xff] %vm558, %v905
      %938 = vst.msk [vmem:[#allocation3 + $0xa8] sm:$0xff] %vm558, %v906
      %939 = vst.msk [vmem:[#allocation3 + $0xb0] sm:$0xff] %vm558, %v907
      %940 = vst.msk [vmem:[#allocation3 + $0xb8] sm:$0xff] %vm558, %v908
      %941 = vst.msk [vmem:[#allocation3 + $0xc0] sm:$0xff] %vm558, %v909
      %942 = vst.msk [vmem:[#allocation3 + $0xc8] sm:$0xff] %vm558, %v910
      %943 = vst.msk [vmem:[#allocation3 + $0xd0] sm:$0xff] %vm558, %v911
      %944 = vst.msk [vmem:[#allocation3 + $0xd8] sm:$0xff] %vm558, %v912
      %945 = vst.msk [vmem:[#allocation3 + $0xe0] sm:$0xff] %vm558, %v913
      %946 = vst.msk [vmem:[#allocation3 + $0xe8] sm:$0xff] %vm558, %v914
      %947 = vst.msk [vmem:[#allocation3 + $0xf0] sm:$0xff] %vm558, %v915
      %948 = vst.msk [vmem:[#allocation3 + $0xf8] sm:$0xff] %vm558, %v916
      %v949 = vld [vmem:[#allocation2 + $0x1] sm:$0xff]
      %v950 = vld [vmem:[#allocation2 + $0x9] sm:$0xff]
      %v951 = vld [vmem:[#allocation2 + $0x19] sm:$0xff]
      %v952 = vld [vmem:[#allocation2 + $0x21] sm:$0xff]
      %v953 = vld [vmem:[#allocation2 + $0x31] sm:$0xff]
      %v954 = vld [vmem:[#allocation2 + $0x39] sm:$0xff]
      %v955 = vld [vmem:[#allocation2 + $0x49] sm:$0xff]
      %v956 = vld [vmem:[#allocation2 + $0x51] sm:$0xff]
      %v957 = vld [vmem:[#allocation2 + $0x61] sm:$0xff]
      %v958 = vld [vmem:[#allocation2 + $0x69] sm:$0xff]
      %v959 = vld [vmem:[#allocation2 + $0x79] sm:$0xff]
      %v960 = vld [vmem:[#allocation2 + $0x81] sm:$0xff]
      %v961 = vld [vmem:[#allocation2 + $0x91] sm:$0xff]
      %v962 = vld [vmem:[#allocation2 + $0x99] sm:$0xff]
      %v963 = vld [vmem:[#allocation2 + $0xa9] sm:$0xff]
      %v964 = vld [vmem:[#allocation2 + $0xb1] sm:$0xff]
      %v965 = vld [vmem:[#allocation2 + $0xc1] sm:$0xff]
      %v966 = vld [vmem:[#allocation2 + $0xc9] sm:$0xff]
      %v967 = vld [vmem:[#allocation2 + $0xd9] sm:$0xff]
      %v968 = vld [vmem:[#allocation2 + $0xe1] sm:$0xff]
      %v969 = vld [vmem:[#allocation2 + $0xf1] sm:$0xff]
      %v970 = vld [vmem:[#allocation2 + $0xf9] sm:$0xff]
      %v971 = vld [vmem:[#allocation2 + $0x109] sm:$0xff]
      %v972 = vld [vmem:[#allocation2 + $0x111] sm:$0xff]
      %v973 = vld [vmem:[#allocation2 + $0x121] sm:$0xff]
      %v974 = vld [vmem:[#allocation2 + $0x129] sm:$0xff]
      %v975 = vld [vmem:[#allocation2 + $0x139] sm:$0xff]
      %v976 = vld [vmem:[#allocation2 + $0x141] sm:$0xff]
      %v977 = vld [vmem:[#allocation2 + $0x151] sm:$0xff]
      %v978 = vld [vmem:[#allocation2 + $0x159] sm:$0xff]
      %v979 = vld [vmem:[#allocation2 + $0x169] sm:$0xff]
      %v980 = vld [vmem:[#allocation2 + $0x171] sm:$0xff]
      %v981 = vld [vmem:[#allocation3] sm:$0xff]
      %v982 = vld [vmem:[#allocation3 + $0x8] sm:$0xff]
      %v983 = vld [vmem:[#allocation3 + $0x10] sm:$0xff]
      %v984 = vld [vmem:[#allocation3 + $0x18] sm:$0xff]
      %v985 = vld [vmem:[#allocation3 + $0x20] sm:$0xff]
      %v986 = vld [vmem:[#allocation3 + $0x28] sm:$0xff]
      %v987 = vld [vmem:[#allocation3 + $0x30] sm:$0xff]
      %v988 = vld [vmem:[#allocation3 + $0x38] sm:$0xff]
      %v989 = vld [vmem:[#allocation3 + $0x40] sm:$0xff]
      %v990 = vld [vmem:[#allocation3 + $0x48] sm:$0xff]
      %v991 = vld [vmem:[#allocation3 + $0x50] sm:$0xff]
      %v992 = vld [vmem:[#allocation3 + $0x58] sm:$0xff]
      %v993 = vld [vmem:[#allocation3 + $0x60] sm:$0xff]
      %v994 = vld [vmem:[#allocation3 + $0x68] sm:$0xff]
      %v995 = vld [vmem:[#allocation3 + $0x70] sm:$0xff]
      %v996 = vld [vmem:[#allocation3 + $0x78] sm:$0xff]
      %v997 = vld [vmem:[#allocation3 + $0x80] sm:$0xff]
      %v998 = vld [vmem:[#allocation3 + $0x88] sm:$0xff]
      %v999 = vld [vmem:[#allocation3 + $0x90] sm:$0xff]
      %v1000 = vld [vmem:[#allocation3 + $0x98] sm:$0xff]
      %v1001 = vld [vmem:[#allocation3 + $0xa0] sm:$0xff]
      %v1002 = vld [vmem:[#allocation3 + $0xa8] sm:$0xff]
      %v1003 = vld [vmem:[#allocation3 + $0xb0] sm:$0xff]
      %v1004 = vld [vmem:[#allocation3 + $0xb8] sm:$0xff]
      %v1005 = vld [vmem:[#allocation3 + $0xc0] sm:$0xff]
      %v1006 = vld [vmem:[#allocation3 + $0xc8] sm:$0xff]
      %v1007 = vld [vmem:[#allocation3 + $0xd0] sm:$0xff]
      %v1008 = vld [vmem:[#allocation3 + $0xd8] sm:$0xff]
      %v1009 = vld [vmem:[#allocation3 + $0xe0] sm:$0xff]
      %v1010 = vld [vmem:[#allocation3 + $0xe8] sm:$0xff]
      %v1011 = vld [vmem:[#allocation3 + $0xf0] sm:$0xff]
      %v1012 = vld [vmem:[#allocation3 + $0xf8] sm:$0xff]
      %v1013 = vpack.c.bf16 %v950, %v949
      %v1014 = vpack.c.bf16 %v952, %v951
      %v1015 = vpack.c.bf16 %v954, %v953
      %v1016 = vpack.c.bf16 %v956, %v955
      %v1017 = vpack.c.bf16 %v958, %v957
      %v1018 = vpack.c.bf16 %v960, %v959
      %v1019 = vpack.c.bf16 %v962, %v961
      %v1020 = vpack.c.bf16 %v964, %v963
      %v1021 = vpack.c.bf16 %v966, %v965
      %v1022 = vpack.c.bf16 %v968, %v967
      %v1023 = vpack.c.bf16 %v970, %v969
      %v1024 = vpack.c.bf16 %v972, %v971
      %v1025 = vpack.c.bf16 %v974, %v973
      %v1026 = vpack.c.bf16 %v976, %v975
      %v1027 = vpack.c.bf16 %v978, %v977
      %v1028 = vpack.c.bf16 %v980, %v979
      %s1029 = scalar_lea.vmem %s303, 4
      %v1030 = vld [vmem:[%s1029] sm:$0xf]
      %v1032 = vsel %vm558, %v1013, 0
      %v1035 = vsel %vm558, %v1014, 0
      %v1038 = vsel %vm558, %v1015, 0
      %v1041 = vsel %vm558, %v1016, 0
      %v1044 = vsel %vm558, %v1017, 0
      %v1047 = vsel %vm558, %v1018, 0
      %v1050 = vsel %vm558, %v1019, 0
      %v1053 = vsel %vm558, %v1020, 0
      %v1056 = vsel %vm558, %v1021, 0
      %v1059 = vsel %vm558, %v1022, 0
      %v1062 = vsel %vm558, %v1023, 0
      %v1065 = vsel %vm558, %v1024, 0
      %v1068 = vsel %vm558, %v1025, 0
      %v1071 = vsel %vm558, %v1026, 0
      %v1074 = vsel %vm558, %v1027, 0
      %v1077 = vsel %vm558, %v1028, 0
      %v1080 = vsel %vm720, %v1030, 0
      %1082 = vmatprep.subr.bf16.mxu0 0
      %1083 = vmatpush1.bf16.msra.mxu0 0
      %1084 = vmatprep.subr.bf16.mxu0 0
      %1085 = vmatpush1.bf16.msra.mxu0 0
      %1086 = vmatprep.subr.bf16.mxu0 0
      %1087 = vmatpush1.bf16.msra.mxu0 0
      %1088 = vmatprep.subr.bf16.mxu0 0
      %1089 = vmatpush1.bf16.msra.mxu0 0
      %1090 = vmatprep.subr.bf16.mxu0 0
      %1091 = vmatpush1.bf16.msra.mxu0 0
      %1092 = vmatprep.subr.bf16.mxu0 0
      %1093 = vmatpush1.bf16.msra.mxu0 0
      %1094 = vmatprep.subr.bf16.mxu0 0
      %1095 = vmatpush1.bf16.msra.mxu0 0
      %1096 = vmatprep.subr.bf16.mxu0 0
      %1097 = vmatpush1.bf16.msra.mxu0 %v1080
      %1098 = vmatprep.subr.bf16.mxu0 0
      %1099 = vmatpush2.bf16.msra.mxu0 0
      %1100 = vmatprep.subr.bf16.mxu0 0
      %1101 = vmatpush2.bf16.msra.mxu0 0
      %1102 = vmatprep.subr.bf16.mxu0 0
      %1103 = vmatpush2.bf16.msra.mxu0 0
      %1104 = vmatprep.subr.bf16.mxu0 0
      %1105 = vmatpush2.bf16.msra.mxu0 0
      %1106 = vmatprep.subr.bf16.mxu0 0
      %1107 = vmatpush2.bf16.msra.mxu0 0
      %1108 = vmatprep.subr.bf16.mxu0 0
      %1109 = vmatpush2.bf16.msra.mxu0 0
      %1110 = vmatprep.subr.bf16.mxu0 0
      %1111 = vmatpush2.bf16.msra.mxu0 0
      %1112 = vmatprep.subr.bf16.mxu0 0
      %1113 = vmatpush2.bf16.msra.mxu0 0
      %1114 = vmatprep.mubr.bf16.mxu0 0
      %1115 = vmatmul.mubr.bf16.gmra.mxu0 %v1032
      %v1116 = vpop.f32.mrf.mxu0
      %v1117 = vadd.f32 0.0, %v1116
      %v1118 = vpop.f32.mrf.mxu0
      %v1119 = vpop.f32.mrf.mxu0
      %v1120 = vadd.f32 0.0, %v1119
      %v1121 = vpop.f32.mrf.mxu0
      %1122 = vmatprep.mubr.bf16.mxu0 0
      %1123 = vmatmul.mubr.bf16.gmra.mxu0 %v1035
      %v1124 = vpop.f32.mrf.mxu0
      %v1125 = vadd.f32 0.0, %v1124
      %v1126 = vpop.f32.mrf.mxu0
      %v1127 = vpop.f32.mrf.mxu0
      %v1128 = vadd.f32 0.0, %v1127
      %v1129 = vpop.f32.mrf.mxu0
      %1130 = vmatprep.mubr.bf16.mxu0 0
      %1131 = vmatmul.mubr.bf16.gmra.mxu0 %v1038
      %v1132 = vpop.f32.mrf.mxu0
      %v1133 = vadd.f32 0.0, %v1132
      %v1134 = vpop.f32.mrf.mxu0
      %v1135 = vpop.f32.mrf.mxu0
      %v1136 = vadd.f32 0.0, %v1135
      %v1137 = vpop.f32.mrf.mxu0
      %1138 = vmatprep.mubr.bf16.mxu0 0
      %1139 = vmatmul.mubr.bf16.gmra.mxu0 %v1041
      %v1140 = vpop.f32.mrf.mxu0
      %v1141 = vadd.f32 0.0, %v1140
      %v1142 = vpop.f32.mrf.mxu0
      %v1143 = vpop.f32.mrf.mxu0
      %v1144 = vadd.f32 0.0, %v1143
      %v1145 = vpop.f32.mrf.mxu0
      %1146 = vmatprep.mubr.bf16.mxu0 0
      %1147 = vmatmul.mubr.bf16.gmra.mxu0 %v1044
      %v1148 = vpop.f32.mrf.mxu0
      %v1149 = vadd.f32 0.0, %v1148
      %v1150 = vpop.f32.mrf.mxu0
      %v1151 = vpop.f32.mrf.mxu0
      %v1152 = vadd.f32 0.0, %v1151
      %v1153 = vpop.f32.mrf.mxu0
      %1154 = vmatprep.mubr.bf16.mxu0 0
      %1155 = vmatmul.mubr.bf16.gmra.mxu0 %v1047
      %v1156 = vpop.f32.mrf.mxu0
      %v1157 = vadd.f32 0.0, %v1156
      %v1158 = vpop.f32.mrf.mxu0
      %v1159 = vpop.f32.mrf.mxu0
      %v1160 = vadd.f32 0.0, %v1159
      %v1161 = vpop.f32.mrf.mxu0
      %1162 = vmatprep.mubr.bf16.mxu0 0
      %1163 = vmatmul.mubr.bf16.gmra.mxu0 %v1050
      %v1164 = vpop.f32.mrf.mxu0
      %v1165 = vadd.f32 0.0, %v1164
      %v1166 = vpop.f32.mrf.mxu0
      %v1167 = vpop.f32.mrf.mxu0
      %v1168 = vadd.f32 0.0, %v1167
      %v1169 = vpop.f32.mrf.mxu0
      %1170 = vmatprep.mubr.bf16.mxu0 0
      %1171 = vmatmul.mubr.bf16.gmra.mxu0 %v1053
      %v1172 = vpop.f32.mrf.mxu0
      %v1173 = vadd.f32 0.0, %v1172
      %v1174 = vpop.f32.mrf.mxu0
      %v1175 = vpop.f32.mrf.mxu0
      %v1176 = vadd.f32 0.0, %v1175
      %v1177 = vpop.f32.mrf.mxu0
      %1178 = vmatprep.mubr.bf16.mxu0 0
      %1179 = vmatmul.mubr.bf16.gmra.mxu0 %v1056
      %v1180 = vpop.f32.mrf.mxu0
      %v1181 = vadd.f32 0.0, %v1180
      %v1182 = vpop.f32.mrf.mxu0
      %v1183 = vpop.f32.mrf.mxu0
      %v1184 = vadd.f32 0.0, %v1183
      %v1185 = vpop.f32.mrf.mxu0
      %1186 = vmatprep.mubr.bf16.mxu0 0
      %1187 = vmatmul.mubr.bf16.gmra.mxu0 %v1059
      %v1188 = vpop.f32.mrf.mxu0
      %v1189 = vadd.f32 0.0, %v1188
      %v1190 = vpop.f32.mrf.mxu0
      %v1191 = vpop.f32.mrf.mxu0
      %v1192 = vadd.f32 0.0, %v1191
      %v1193 = vpop.f32.mrf.mxu0
      %1194 = vmatprep.mubr.bf16.mxu0 0
      %1195 = vmatmul.mubr.bf16.gmra.mxu0 %v1062
      %v1196 = vpop.f32.mrf.mxu0
      %v1197 = vadd.f32 0.0, %v1196
      %v1198 = vpop.f32.mrf.mxu0
      %v1199 = vpop.f32.mrf.mxu0
      %v1200 = vadd.f32 0.0, %v1199
      %v1201 = vpop.f32.mrf.mxu0
      %1202 = vmatprep.mubr.bf16.mxu0 0
      %1203 = vmatmul.mubr.bf16.gmra.mxu0 %v1065
      %v1204 = vpop.f32.mrf.mxu0
      %v1205 = vadd.f32 0.0, %v1204
      %v1206 = vpop.f32.mrf.mxu0
      %v1207 = vpop.f32.mrf.mxu0
      %v1208 = vadd.f32 0.0, %v1207
      %v1209 = vpop.f32.mrf.mxu0
      %1210 = vmatprep.mubr.bf16.mxu0 0
      %1211 = vmatmul.mubr.bf16.gmra.mxu0 %v1068
      %v1212 = vpop.f32.mrf.mxu0
      %v1213 = vadd.f32 0.0, %v1212
      %v1214 = vpop.f32.mrf.mxu0
      %v1215 = vpop.f32.mrf.mxu0
      %v1216 = vadd.f32 0.0, %v1215
      %v1217 = vpop.f32.mrf.mxu0
      %1218 = vmatprep.mubr.bf16.mxu0 0
      %1219 = vmatmul.mubr.bf16.gmra.mxu0 %v1071
      %v1220 = vpop.f32.mrf.mxu0
      %v1221 = vadd.f32 0.0, %v1220
      %v1222 = vpop.f32.mrf.mxu0
      %v1223 = vpop.f32.mrf.mxu0
      %v1224 = vadd.f32 0.0, %v1223
      %v1225 = vpop.f32.mrf.mxu0
      %1226 = vmatprep.mubr.bf16.mxu0 0
      %1227 = vmatmul.mubr.bf16.gmra.mxu0 %v1074
      %v1228 = vpop.f32.mrf.mxu0
      %v1229 = vadd.f32 0.0, %v1228
      %v1230 = vpop.f32.mrf.mxu0
      %v1231 = vpop.f32.mrf.mxu0
      %v1232 = vadd.f32 0.0, %v1231
      %v1233 = vpop.f32.mrf.mxu0
      %1234 = vmatprep.mubr.bf16.mxu0 0
      %1235 = vmatmul.mubr.bf16.gmra.mxu0 %v1077
      %v1236 = vpop.f32.mrf.mxu0
      %v1237 = vadd.f32 0.0, %v1236
      %v1238 = vpop.f32.mrf.mxu0
      %v1239 = vpop.f32.mrf.mxu0
      %v1240 = vadd.f32 0.0, %v1239
      %v1241 = vpop.f32.mrf.mxu0
      %1242 = vdwg.mxu0
      %v1243 = vadd.f32 %v981, %v1117
      %v1244 = vadd.f32 %v982, %v1120
      %v1245 = vadd.f32 %v983, %v1125
      %v1246 = vadd.f32 %v984, %v1128
      %v1247 = vadd.f32 %v985, %v1133
      %v1248 = vadd.f32 %v986, %v1136
      %v1249 = vadd.f32 %v987, %v1141
      %v1250 = vadd.f32 %v988, %v1144
      %v1251 = vadd.f32 %v989, %v1149
      %v1252 = vadd.f32 %v990, %v1152
      %v1253 = vadd.f32 %v991, %v1157
      %v1254 = vadd.f32 %v992, %v1160
      %v1255 = vadd.f32 %v993, %v1165
      %v1256 = vadd.f32 %v994, %v1168
      %v1257 = vadd.f32 %v995, %v1173
      %v1258 = vadd.f32 %v996, %v1176
      %v1259 = vadd.f32 %v997, %v1181
      %v1260 = vadd.f32 %v998, %v1184
      %v1261 = vadd.f32 %v999, %v1189
      %v1262 = vadd.f32 %v1000, %v1192
      %v1263 = vadd.f32 %v1001, %v1197
      %v1264 = vadd.f32 %v1002, %v1200
      %v1265 = vadd.f32 %v1003, %v1205
      %v1266 = vadd.f32 %v1004, %v1208
      %v1267 = vadd.f32 %v1005, %v1213
      %v1268 = vadd.f32 %v1006, %v1216
      %v1269 = vadd.f32 %v1007, %v1221
      %v1270 = vadd.f32 %v1008, %v1224
      %v1271 = vadd.f32 %v1009, %v1229
      %v1272 = vadd.f32 %v1010, %v1232
      %v1273 = vadd.f32 %v1011, %v1237
      %v1274 = vadd.f32 %v1012, %v1240
      %1275 = vst.msk [vmem:[#allocation3] sm:$0xff] %vm558, %v1243
      %1276 = vst.msk [vmem:[#allocation3 + $0x8] sm:$0xff] %vm558, %v1244
      %1277 = vst.msk [vmem:[#allocation3 + $0x10] sm:$0xff] %vm558, %v1245
      %1278 = vst.msk [vmem:[#allocation3 + $0x18] sm:$0xff] %vm558, %v1246
      %1279 = vst.msk [vmem:[#allocation3 + $0x20] sm:$0xff] %vm558, %v1247
      %1280 = vst.msk [vmem:[#allocation3 + $0x28] sm:$0xff] %vm558, %v1248
      %1281 = vst.msk [vmem:[#allocation3 + $0x30] sm:$0xff] %vm558, %v1249
      %1282 = vst.msk [vmem:[#allocation3 + $0x38] sm:$0xff] %vm558, %v1250
      %1283 = vst.msk [vmem:[#allocation3 + $0x40] sm:$0xff] %vm558, %v1251
      %1284 = vst.msk [vmem:[#allocation3 + $0x48] sm:$0xff] %vm558, %v1252
      %1285 = vst.msk [vmem:[#allocation3 + $0x50] sm:$0xff] %vm558, %v1253
      %1286 = vst.msk [vmem:[#allocation3 + $0x58] sm:$0xff] %vm558, %v1254
      %1287 = vst.msk [vmem:[#allocation3 + $0x60] sm:$0xff] %vm558, %v1255
      %1288 = vst.msk [vmem:[#allocation3 + $0x68] sm:$0xff] %vm558, %v1256
      %1289 = vst.msk [vmem:[#allocation3 + $0x70] sm:$0xff] %vm558, %v1257
      %1290 = vst.msk [vmem:[#allocation3 + $0x78] sm:$0xff] %vm558, %v1258
      %1291 = vst.msk [vmem:[#allocation3 + $0x80] sm:$0xff] %vm558, %v1259
      %1292 = vst.msk [vmem:[#allocation3 + $0x88] sm:$0xff] %vm558, %v1260
      %1293 = vst.msk [vmem:[#allocation3 + $0x90] sm:$0xff] %vm558, %v1261
      %1294 = vst.msk [vmem:[#allocation3 + $0x98] sm:$0xff] %vm558, %v1262
      %1295 = vst.msk [vmem:[#allocation3 + $0xa0] sm:$0xff] %vm558, %v1263
      %1296 = vst.msk [vmem:[#allocation3 + $0xa8] sm:$0xff] %vm558, %v1264
      %1297 = vst.msk [vmem:[#allocation3 + $0xb0] sm:$0xff] %vm558, %v1265
      %1298 = vst.msk [vmem:[#allocation3 + $0xb8] sm:$0xff] %vm558, %v1266
      %1299 = vst.msk [vmem:[#allocation3 + $0xc0] sm:$0xff] %vm558, %v1267
      %1300 = vst.msk [vmem:[#allocation3 + $0xc8] sm:$0xff] %vm558, %v1268
      %1301 = vst.msk [vmem:[#allocation3 + $0xd0] sm:$0xff] %vm558, %v1269
      %1302 = vst.msk [vmem:[#allocation3 + $0xd8] sm:$0xff] %vm558, %v1270
      %1303 = vst.msk [vmem:[#allocation3 + $0xe0] sm:$0xff] %vm558, %v1271
      %1304 = vst.msk [vmem:[#allocation3 + $0xe8] sm:$0xff] %vm558, %v1272
      %1305 = vst.msk [vmem:[#allocation3 + $0xf0] sm:$0xff] %vm558, %v1273
      %1306 = vst.msk [vmem:[#allocation3 + $0xf8] sm:$0xff] %vm558, %v1274
      %v1307 = vld [vmem:[#allocation2 + $0x2] sm:$0xff]
      %v1308 = vld [vmem:[#allocation2 + $0xa] sm:$0xff]
      %v1309 = vld [vmem:[#allocation2 + $0x1a] sm:$0xff]
      %v1310 = vld [vmem:[#allocation2 + $0x22] sm:$0xff]
      %v1311 = vld [vmem:[#allocation2 + $0x32] sm:$0xff]
      %v1312 = vld [vmem:[#allocation2 + $0x3a] sm:$0xff]
      %v1313 = vld [vmem:[#allocation2 + $0x4a] sm:$0xff]
      %v1314 = vld [vmem:[#allocation2 + $0x52] sm:$0xff]
      %v1315 = vld [vmem:[#allocation2 + $0x62] sm:$0xff]
      %v1316 = vld [vmem:[#allocation2 + $0x6a] sm:$0xff]
      %v1317 = vld [vmem:[#allocation2 + $0x7a] sm:$0xff]
      %v1318 = vld [vmem:[#allocation2 + $0x82] sm:$0xff]
      %v1319 = vld [vmem:[#allocation2 + $0x92] sm:$0xff]
      %v1320 = vld [vmem:[#allocation2 + $0x9a] sm:$0xff]
      %v1321 = vld [vmem:[#allocation2 + $0xaa] sm:$0xff]
      %v1322 = vld [vmem:[#allocation2 + $0xb2] sm:$0xff]
      %v1323 = vld [vmem:[#allocation2 + $0xc2] sm:$0xff]
      %v1324 = vld [vmem:[#allocation2 + $0xca] sm:$0xff]
      %v1325 = vld [vmem:[#allocation2 + $0xda] sm:$0xff]
      %v1326 = vld [vmem:[#allocation2 + $0xe2] sm:$0xff]
      %v1327 = vld [vmem:[#allocation2 + $0xf2] sm:$0xff]
      %v1328 = vld [vmem:[#allocation2 + $0xfa] sm:$0xff]
      %v1329 = vld [vmem:[#allocation2 + $0x10a] sm:$0xff]
      %v1330 = vld [vmem:[#allocation2 + $0x112] sm:$0xff]
      %v1331 = vld [vmem:[#allocation2 + $0x122] sm:$0xff]
      %v1332 = vld [vmem:[#allocation2 + $0x12a] sm:$0xff]
      %v1333 = vld [vmem:[#allocation2 + $0x13a] sm:$0xff]
      %v1334 = vld [vmem:[#allocation2 + $0x142] sm:$0xff]
      %v1335 = vld [vmem:[#allocation2 + $0x152] sm:$0xff]
      %v1336 = vld [vmem:[#allocation2 + $0x15a] sm:$0xff]
      %v1337 = vld [vmem:[#allocation2 + $0x16a] sm:$0xff]
      %v1338 = vld [vmem:[#allocation2 + $0x172] sm:$0xff]
      %v1339 = vld [vmem:[#allocation3] sm:$0xff]
      %v1340 = vld [vmem:[#allocation3 + $0x8] sm:$0xff]
      %v1341 = vld [vmem:[#allocation3 + $0x10] sm:$0xff]
      %v1342 = vld [vmem:[#allocation3 + $0x18] sm:$0xff]
      %v1343 = vld [vmem:[#allocation3 + $0x20] sm:$0xff]
      %v1344 = vld [vmem:[#allocation3 + $0x28] sm:$0xff]
      %v1345 = vld [vmem:[#allocation3 + $0x30] sm:$0xff]
      %v1346 = vld [vmem:[#allocation3 + $0x38] sm:$0xff]
      %v1347 = vld [vmem:[#allocation3 + $0x40] sm:$0xff]
      %v1348 = vld [vmem:[#allocation3 + $0x48] sm:$0xff]
      %v1349 = vld [vmem:[#allocation3 + $0x50] sm:$0xff]
      %v1350 = vld [vmem:[#allocation3 + $0x58] sm:$0xff]
      %v1351 = vld [vmem:[#allocation3 + $0x60] sm:$0xff]
      %v1352 = vld [vmem:[#allocation3 + $0x68] sm:$0xff]
      %v1353 = vld [vmem:[#allocation3 + $0x70] sm:$0xff]
      %v1354 = vld [vmem:[#allocation3 + $0x78] sm:$0xff]
      %v1355 = vld [vmem:[#allocation3 + $0x80] sm:$0xff]
      %v1356 = vld [vmem:[#allocation3 + $0x88] sm:$0xff]
      %v1357 = vld [vmem:[#allocation3 + $0x90] sm:$0xff]
      %v1358 = vld [vmem:[#allocation3 + $0x98] sm:$0xff]
      %v1359 = vld [vmem:[#allocation3 + $0xa0] sm:$0xff]
      %v1360 = vld [vmem:[#allocation3 + $0xa8] sm:$0xff]
      %v1361 = vld [vmem:[#allocation3 + $0xb0] sm:$0xff]
      %v1362 = vld [vmem:[#allocation3 + $0xb8] sm:$0xff]
      %v1363 = vld [vmem:[#allocation3 + $0xc0] sm:$0xff]
      %v1364 = vld [vmem:[#allocation3 + $0xc8] sm:$0xff]
      %v1365 = vld [vmem:[#allocation3 + $0xd0] sm:$0xff]
      %v1366 = vld [vmem:[#allocation3 + $0xd8] sm:$0xff]
      %v1367 = vld [vmem:[#allocation3 + $0xe0] sm:$0xff]
      %v1368 = vld [vmem:[#allocation3 + $0xe8] sm:$0xff]
      %v1369 = vld [vmem:[#allocation3 + $0xf0] sm:$0xff]
      %v1370 = vld [vmem:[#allocation3 + $0xf8] sm:$0xff]
      %v1371 = vpack.c.bf16 %v1308, %v1307
      %v1372 = vpack.c.bf16 %v1310, %v1309
      %v1373 = vpack.c.bf16 %v1312, %v1311
      %v1374 = vpack.c.bf16 %v1314, %v1313
      %v1375 = vpack.c.bf16 %v1316, %v1315
      %v1376 = vpack.c.bf16 %v1318, %v1317
      %v1377 = vpack.c.bf16 %v1320, %v1319
      %v1378 = vpack.c.bf16 %v1322, %v1321
      %v1379 = vpack.c.bf16 %v1324, %v1323
      %v1380 = vpack.c.bf16 %v1326, %v1325
      %v1381 = vpack.c.bf16 %v1328, %v1327
      %v1382 = vpack.c.bf16 %v1330, %v1329
      %v1383 = vpack.c.bf16 %v1332, %v1331
      %v1384 = vpack.c.bf16 %v1334, %v1333
      %v1385 = vpack.c.bf16 %v1336, %v1335
      %v1386 = vpack.c.bf16 %v1338, %v1337
      %s1387 = scalar_lea.vmem %s303, 8
      %v1388 = vld [vmem:[%s1387] sm:$0xf]
      %v1390 = vsel %vm558, %v1371, 0
      %v1393 = vsel %vm558, %v1372, 0
      %v1396 = vsel %vm558, %v1373, 0
      %v1399 = vsel %vm558, %v1374, 0
      %v1402 = vsel %vm558, %v1375, 0
      %v1405 = vsel %vm558, %v1376, 0
      %v1408 = vsel %vm558, %v1377, 0
      %v1411 = vsel %vm558, %v1378, 0
      %v1414 = vsel %vm558, %v1379, 0
      %v1417 = vsel %vm558, %v1380, 0
      %v1420 = vsel %vm558, %v1381, 0
      %v1423 = vsel %vm558, %v1382, 0
      %v1426 = vsel %vm558, %v1383, 0
      %v1429 = vsel %vm558, %v1384, 0
      %v1432 = vsel %vm558, %v1385, 0
      %v1435 = vsel %vm558, %v1386, 0
      %v1438 = vsel %vm720, %v1388, 0
      %1440 = vmatprep.subr.bf16.mxu0 0
      %1441 = vmatpush1.bf16.msra.mxu0 0
      %1442 = vmatprep.subr.bf16.mxu0 0
      %1443 = vmatpush1.bf16.msra.mxu0 0
      %1444 = vmatprep.subr.bf16.mxu0 0
      %1445 = vmatpush1.bf16.msra.mxu0 0
      %1446 = vmatprep.subr.bf16.mxu0 0
      %1447 = vmatpush1.bf16.msra.mxu0 0
      %1448 = vmatprep.subr.bf16.mxu0 0
      %1449 = vmatpush1.bf16.msra.mxu0 0
      %1450 = vmatprep.subr.bf16.mxu0 0
      %1451 = vmatpush1.bf16.msra.mxu0 0
      %1452 = vmatprep.subr.bf16.mxu0 0
      %1453 = vmatpush1.bf16.msra.mxu0 0
      %1454 = vmatprep.subr.bf16.mxu0 0
      %1455 = vmatpush1.bf16.msra.mxu0 %v1438
      %1456 = vmatprep.subr.bf16.mxu0 0
      %1457 = vmatpush2.bf16.msra.mxu0 0
      %1458 = vmatprep.subr.bf16.mxu0 0
      %1459 = vmatpush2.bf16.msra.mxu0 0
      %1460 = vmatprep.subr.bf16.mxu0 0
      %1461 = vmatpush2.bf16.msra.mxu0 0
      %1462 = vmatprep.subr.bf16.mxu0 0
      %1463 = vmatpush2.bf16.msra.mxu0 0
      %1464 = vmatprep.subr.bf16.mxu0 0
      %1465 = vmatpush2.bf16.msra.mxu0 0
      %1466 = vmatprep.subr.bf16.mxu0 0
      %1467 = vmatpush2.bf16.msra.mxu0 0
      %1468 = vmatprep.subr.bf16.mxu0 0
      %1469 = vmatpush2.bf16.msra.mxu0 0
      %1470 = vmatprep.subr.bf16.mxu0 0
      %1471 = vmatpush2.bf16.msra.mxu0 0
      %1472 = vmatprep.mubr.bf16.mxu0 0
      %1473 = vmatmul.mubr.bf16.gmra.mxu0 %v1390
      %v1474 = vpop.f32.mrf.mxu0
      %v1475 = vadd.f32 0.0, %v1474
      %v1476 = vpop.f32.mrf.mxu0
      %v1477 = vpop.f32.mrf.mxu0
      %v1478 = vadd.f32 0.0, %v1477
      %v1479 = vpop.f32.mrf.mxu0
      %1480 = vmatprep.mubr.bf16.mxu0 0
      %1481 = vmatmul.mubr.bf16.gmra.mxu0 %v1393
      %v1482 = vpop.f32.mrf.mxu0
      %v1483 = vadd.f32 0.0, %v1482
      %v1484 = vpop.f32.mrf.mxu0
      %v1485 = vpop.f32.mrf.mxu0
      %v1486 = vadd.f32 0.0, %v1485
      %v1487 = vpop.f32.mrf.mxu0
      %1488 = vmatprep.mubr.bf16.mxu0 0
      %1489 = vmatmul.mubr.bf16.gmra.mxu0 %v1396
      %v1490 = vpop.f32.mrf.mxu0
      %v1491 = vadd.f32 0.0, %v1490
      %v1492 = vpop.f32.mrf.mxu0
      %v1493 = vpop.f32.mrf.mxu0
      %v1494 = vadd.f32 0.0, %v1493
      %v1495 = vpop.f32.mrf.mxu0
      %1496 = vmatprep.mubr.bf16.mxu0 0
      %1497 = vmatmul.mubr.bf16.gmra.mxu0 %v1399
      %v1498 = vpop.f32.mrf.mxu0
      %v1499 = vadd.f32 0.0, %v1498
      %v1500 = vpop.f32.mrf.mxu0
      %v1501 = vpop.f32.mrf.mxu0
      %v1502 = vadd.f32 0.0, %v1501
      %v1503 = vpop.f32.mrf.mxu0
      %1504 = vmatprep.mubr.bf16.mxu0 0
      %1505 = vmatmul.mubr.bf16.gmra.mxu0 %v1402
      %v1506 = vpop.f32.mrf.mxu0
      %v1507 = vadd.f32 0.0, %v1506
      %v1508 = vpop.f32.mrf.mxu0
      %v1509 = vpop.f32.mrf.mxu0
      %v1510 = vadd.f32 0.0, %v1509
      %v1511 = vpop.f32.mrf.mxu0
      %1512 = vmatprep.mubr.bf16.mxu0 0
      %1513 = vmatmul.mubr.bf16.gmra.mxu0 %v1405
      %v1514 = vpop.f32.mrf.mxu0
      %v1515 = vadd.f32 0.0, %v1514
      %v1516 = vpop.f32.mrf.mxu0
      %v1517 = vpop.f32.mrf.mxu0
      %v1518 = vadd.f32 0.0, %v1517
      %v1519 = vpop.f32.mrf.mxu0
      %1520 = vmatprep.mubr.bf16.mxu0 0
      %1521 = vmatmul.mubr.bf16.gmra.mxu0 %v1408
      %v1522 = vpop.f32.mrf.mxu0
      %v1523 = vadd.f32 0.0, %v1522
      %v1524 = vpop.f32.mrf.mxu0
      %v1525 = vpop.f32.mrf.mxu0
      %v1526 = vadd.f32 0.0, %v1525
      %v1527 = vpop.f32.mrf.mxu0
      %1528 = vmatprep.mubr.bf16.mxu0 0
      %1529 = vmatmul.mubr.bf16.gmra.mxu0 %v1411
      %v1530 = vpop.f32.mrf.mxu0
      %v1531 = vadd.f32 0.0, %v1530
      %v1532 = vpop.f32.mrf.mxu0
      %v1533 = vpop.f32.mrf.mxu0
      %v1534 = vadd.f32 0.0, %v1533
      %v1535 = vpop.f32.mrf.mxu0
      %1536 = vmatprep.mubr.bf16.mxu0 0
      %1537 = vmatmul.mubr.bf16.gmra.mxu0 %v1414
      %v1538 = vpop.f32.mrf.mxu0
      %v1539 = vadd.f32 0.0, %v1538
      %v1540 = vpop.f32.mrf.mxu0
      %v1541 = vpop.f32.mrf.mxu0
      %v1542 = vadd.f32 0.0, %v1541
      %v1543 = vpop.f32.mrf.mxu0
      %1544 = vmatprep.mubr.bf16.mxu0 0
      %1545 = vmatmul.mubr.bf16.gmra.mxu0 %v1417
      %v1546 = vpop.f32.mrf.mxu0
      %v1547 = vadd.f32 0.0, %v1546
      %v1548 = vpop.f32.mrf.mxu0
      %v1549 = vpop.f32.mrf.mxu0
      %v1550 = vadd.f32 0.0, %v1549
      %v1551 = vpop.f32.mrf.mxu0
      %1552 = vmatprep.mubr.bf16.mxu0 0
      %1553 = vmatmul.mubr.bf16.gmra.mxu0 %v1420
      %v1554 = vpop.f32.mrf.mxu0
      %v1555 = vadd.f32 0.0, %v1554
      %v1556 = vpop.f32.mrf.mxu0
      %v1557 = vpop.f32.mrf.mxu0
      %v1558 = vadd.f32 0.0, %v1557
      %v1559 = vpop.f32.mrf.mxu0
      %1560 = vmatprep.mubr.bf16.mxu0 0
      %1561 = vmatmul.mubr.bf16.gmra.mxu0 %v1423
      %v1562 = vpop.f32.mrf.mxu0
      %v1563 = vadd.f32 0.0, %v1562
      %v1564 = vpop.f32.mrf.mxu0
      %v1565 = vpop.f32.mrf.mxu0
      %v1566 = vadd.f32 0.0, %v1565
      %v1567 = vpop.f32.mrf.mxu0
      %1568 = vmatprep.mubr.bf16.mxu0 0
      %1569 = vmatmul.mubr.bf16.gmra.mxu0 %v1426
      %v1570 = vpop.f32.mrf.mxu0
      %v1571 = vadd.f32 0.0, %v1570
      %v1572 = vpop.f32.mrf.mxu0
      %v1573 = vpop.f32.mrf.mxu0
      %v1574 = vadd.f32 0.0, %v1573
      %v1575 = vpop.f32.mrf.mxu0
      %1576 = vmatprep.mubr.bf16.mxu0 0
      %1577 = vmatmul.mubr.bf16.gmra.mxu0 %v1429
      %v1578 = vpop.f32.mrf.mxu0
      %v1579 = vadd.f32 0.0, %v1578
      %v1580 = vpop.f32.mrf.mxu0
      %v1581 = vpop.f32.mrf.mxu0
      %v1582 = vadd.f32 0.0, %v1581
      %v1583 = vpop.f32.mrf.mxu0
      %1584 = vmatprep.mubr.bf16.mxu0 0
      %1585 = vmatmul.mubr.bf16.gmra.mxu0 %v1432
      %v1586 = vpop.f32.mrf.mxu0
      %v1587 = vadd.f32 0.0, %v1586
      %v1588 = vpop.f32.mrf.mxu0
      %v1589 = vpop.f32.mrf.mxu0
      %v1590 = vadd.f32 0.0, %v1589
      %v1591 = vpop.f32.mrf.mxu0
      %1592 = vmatprep.mubr.bf16.mxu0 0
      %1593 = vmatmul.mubr.bf16.gmra.mxu0 %v1435
      %v1594 = vpop.f32.mrf.mxu0
      %v1595 = vadd.f32 0.0, %v1594
      %v1596 = vpop.f32.mrf.mxu0
      %v1597 = vpop.f32.mrf.mxu0
      %v1598 = vadd.f32 0.0, %v1597
      %v1599 = vpop.f32.mrf.mxu0
      %1600 = vdwg.mxu0
      %v1601 = vadd.f32 %v1339, %v1475
      %v1602 = vadd.f32 %v1340, %v1478
      %v1603 = vadd.f32 %v1341, %v1483
      %v1604 = vadd.f32 %v1342, %v1486
      %v1605 = vadd.f32 %v1343, %v1491
      %v1606 = vadd.f32 %v1344, %v1494
      %v1607 = vadd.f32 %v1345, %v1499
      %v1608 = vadd.f32 %v1346, %v1502
      %v1609 = vadd.f32 %v1347, %v1507
      %v1610 = vadd.f32 %v1348, %v1510
      %v1611 = vadd.f32 %v1349, %v1515
      %v1612 = vadd.f32 %v1350, %v1518
      %v1613 = vadd.f32 %v1351, %v1523
      %v1614 = vadd.f32 %v1352, %v1526
      %v1615 = vadd.f32 %v1353, %v1531
      %v1616 = vadd.f32 %v1354, %v1534
      %v1617 = vadd.f32 %v1355, %v1539
      %v1618 = vadd.f32 %v1356, %v1542
      %v1619 = vadd.f32 %v1357, %v1547
      %v1620 = vadd.f32 %v1358, %v1550
      %v1621 = vadd.f32 %v1359, %v1555
      %v1622 = vadd.f32 %v1360, %v1558
      %v1623 = vadd.f32 %v1361, %v1563
      %v1624 = vadd.f32 %v1362, %v1566
      %v1625 = vadd.f32 %v1363, %v1571
      %v1626 = vadd.f32 %v1364, %v1574
      %v1627 = vadd.f32 %v1365, %v1579
      %v1628 = vadd.f32 %v1366, %v1582
      %v1629 = vadd.f32 %v1367, %v1587
      %v1630 = vadd.f32 %v1368, %v1590
      %v1631 = vadd.f32 %v1369, %v1595
      %v1632 = vadd.f32 %v1370, %v1598
      %1633 = vst.msk [vmem:[#allocation3] sm:$0xff] %vm558, %v1601
      %1634 = vst.msk [vmem:[#allocation3 + $0x8] sm:$0xff] %vm558, %v1602
      %1635 = vst.msk [vmem:[#allocation3 + $0x10] sm:$0xff] %vm558, %v1603
      %1636 = vst.msk [vmem:[#allocation3 + $0x18] sm:$0xff] %vm558, %v1604
      %1637 = vst.msk [vmem:[#allocation3 + $0x20] sm:$0xff] %vm558, %v1605
      %1638 = vst.msk [vmem:[#allocation3 + $0x28] sm:$0xff] %vm558, %v1606
      %1639 = vst.msk [vmem:[#allocation3 + $0x30] sm:$0xff] %vm558, %v1607
      %1640 = vst.msk [vmem:[#allocation3 + $0x38] sm:$0xff] %vm558, %v1608
      %1641 = vst.msk [vmem:[#allocation3 + $0x40] sm:$0xff] %vm558, %v1609
      %1642 = vst.msk [vmem:[#allocation3 + $0x48] sm:$0xff] %vm558, %v1610
      %1643 = vst.msk [vmem:[#allocation3 + $0x50] sm:$0xff] %vm558, %v1611
      %1644 = vst.msk [vmem:[#allocation3 + $0x58] sm:$0xff] %vm558, %v1612
      %1645 = vst.msk [vmem:[#allocation3 + $0x60] sm:$0xff] %vm558, %v1613
      %1646 = vst.msk [vmem:[#allocation3 + $0x68] sm:$0xff] %vm558, %v1614
      %1647 = vst.msk [vmem:[#allocation3 + $0x70] sm:$0xff] %vm558, %v1615
      %1648 = vst.msk [vmem:[#allocation3 + $0x78] sm:$0xff] %vm558, %v1616
      %1649 = vst.msk [vmem:[#allocation3 + $0x80] sm:$0xff] %vm558, %v1617
      %1650 = vst.msk [vmem:[#allocation3 + $0x88] sm:$0xff] %vm558, %v1618
      %1651 = vst.msk [vmem:[#allocation3 + $0x90] sm:$0xff] %vm558, %v1619
      %1652 = vst.msk [vmem:[#allocation3 + $0x98] sm:$0xff] %vm558, %v1620
      %1653 = vst.msk [vmem:[#allocation3 + $0xa0] sm:$0xff] %vm558, %v1621
      %1654 = vst.msk [vmem:[#allocation3 + $0xa8] sm:$0xff] %vm558, %v1622
      %1655 = vst.msk [vmem:[#allocation3 + $0xb0] sm:$0xff] %vm558, %v1623
      %1656 = vst.msk [vmem:[#allocation3 + $0xb8] sm:$0xff] %vm558, %v1624
      %1657 = vst.msk [vmem:[#allocation3 + $0xc0] sm:$0xff] %vm558, %v1625
      %1658 = vst.msk [vmem:[#allocation3 + $0xc8] sm:$0xff] %vm558, %v1626
      %1659 = vst.msk [vmem:[#allocation3 + $0xd0] sm:$0xff] %vm558, %v1627
      %1660 = vst.msk [vmem:[#allocation3 + $0xd8] sm:$0xff] %vm558, %v1628
      %1661 = vst.msk [vmem:[#allocation3 + $0xe0] sm:$0xff] %vm558, %v1629
      %1662 = vst.msk [vmem:[#allocation3 + $0xe8] sm:$0xff] %vm558, %v1630
      %1663 = vst.msk [vmem:[#allocation3 + $0xf0] sm:$0xff] %vm558, %v1631
      %1664 = vst.msk [vmem:[#allocation3 + $0xf8] sm:$0xff] %vm558, %v1632
      %s1665 = scalar_lea.vmem [#allocation2], 24
      %v1666 = vld [vmem:[%s1665] sm:$0xff]
      %v1667 = vld [vmem:[%s1665 + $0x8] sm:$0xff]
      %v1668 = vld [vmem:[%s1665 + $0x18] sm:$0xff]
      %v1669 = vld [vmem:[%s1665 + $0x20] sm:$0xff]
      %v1670 = vld [vmem:[%s1665 + $0x30] sm:$0xff]
      %v1671 = vld [vmem:[%s1665 + $0x38] sm:$0xff]
      %v1672 = vld [vmem:[%s1665 + $0x48] sm:$0xff]
      %v1673 = vld [vmem:[%s1665 + $0x50] sm:$0xff]
      %v1674 = vld [vmem:[%s1665 + $0x60] sm:$0xff]
      %v1675 = vld [vmem:[%s1665 + $0x68] sm:$0xff]
      %v1676 = vld [vmem:[%s1665 + $0x78] sm:$0xff]
      %v1677 = vld [vmem:[%s1665 + $0x80] sm:$0xff]
      %v1678 = vld [vmem:[%s1665 + $0x90] sm:$0xff]
      %v1679 = vld [vmem:[%s1665 + $0x98] sm:$0xff]
      %v1680 = vld [vmem:[%s1665 + $0xa8] sm:$0xff]
      %v1681 = vld [vmem:[%s1665 + $0xb0] sm:$0xff]
      %v1682 = vld [vmem:[%s1665 + $0xc0] sm:$0xff]
      %v1683 = vld [vmem:[%s1665 + $0xc8] sm:$0xff]
      %v1684 = vld [vmem:[%s1665 + $0xd8] sm:$0xff]
      %v1685 = vld [vmem:[%s1665 + $0xe0] sm:$0xff]
      %v1686 = vld [vmem:[%s1665 + $0xf0] sm:$0xff]
      %v1687 = vld [vmem:[%s1665 + $0xf8] sm:$0xff]
      %v1688 = vld [vmem:[%s1665 + $0x108] sm:$0xff]
      %v1689 = vld [vmem:[%s1665 + $0x110] sm:$0xff]
      %v1690 = vld [vmem:[%s1665 + $0x120] sm:$0xff]
      %v1691 = vld [vmem:[%s1665 + $0x128] sm:$0xff]
      %v1692 = vld [vmem:[%s1665 + $0x138] sm:$0xff]
      %v1693 = vld [vmem:[%s1665 + $0x140] sm:$0xff]
      %v1694 = vld [vmem:[%s1665 + $0x150] sm:$0xff]
      %v1695 = vld [vmem:[%s1665 + $0x158] sm:$0xff]
      %v1696 = vld [vmem:[%s1665 + $0x168] sm:$0xff]
      %v1697 = vld [vmem:[%s1665 + $0x170] sm:$0xff]
      %v1698 = vld [vmem:[#allocation3] sm:$0xff]
      %v1699 = vld [vmem:[#allocation3 + $0x8] sm:$0xff]
      %v1700 = vld [vmem:[#allocation3 + $0x10] sm:$0xff]
      %v1701 = vld [vmem:[#allocation3 + $0x18] sm:$0xff]
      %v1702 = vld [vmem:[#allocation3 + $0x20] sm:$0xff]
      %v1703 = vld [vmem:[#allocation3 + $0x28] sm:$0xff]
      %v1704 = vld [vmem:[#allocation3 + $0x30] sm:$0xff]
      %v1705 = vld [vmem:[#allocation3 + $0x38] sm:$0xff]
      %v1706 = vld [vmem:[#allocation3 + $0x40] sm:$0xff]
      %v1707 = vld [vmem:[#allocation3 + $0x48] sm:$0xff]
      %v1708 = vld [vmem:[#allocation3 + $0x50] sm:$0xff]
      %v1709 = vld [vmem:[#allocation3 + $0x58] sm:$0xff]
      %v1710 = vld [vmem:[#allocation3 + $0x60] sm:$0xff]
      %v1711 = vld [vmem:[#allocation3 + $0x68] sm:$0xff]
      %v1712 = vld [vmem:[#allocation3 + $0x70] sm:$0xff]
      %v1713 = vld [vmem:[#allocation3 + $0x78] sm:$0xff]
      %v1714 = vld [vmem:[#allocation3 + $0x80] sm:$0xff]
      %v1715 = vld [vmem:[#allocation3 + $0x88] sm:$0xff]
      %v1716 = vld [vmem:[#allocation3 + $0x90] sm:$0xff]
      %v1717 = vld [vmem:[#allocation3 + $0x98] sm:$0xff]
      %v1718 = vld [vmem:[#allocation3 + $0xa0] sm:$0xff]
      %v1719 = vld [vmem:[#allocation3 + $0xa8] sm:$0xff]
      %v1720 = vld [vmem:[#allocation3 + $0xb0] sm:$0xff]
      %v1721 = vld [vmem:[#allocation3 + $0xb8] sm:$0xff]
      %v1722 = vld [vmem:[#allocation3 + $0xc0] sm:$0xff]
      %v1723 = vld [vmem:[#allocation3 + $0xc8] sm:$0xff]
      %v1724 = vld [vmem:[#allocation3 + $0xd0] sm:$0xff]
      %v1725 = vld [vmem:[#allocation3 + $0xd8] sm:$0xff]
      %v1726 = vld [vmem:[#allocation3 + $0xe0] sm:$0xff]
      %v1727 = vld [vmem:[#allocation3 + $0xe8] sm:$0xff]
      %v1728 = vld [vmem:[#allocation3 + $0xf0] sm:$0xff]
      %v1729 = vld [vmem:[#allocation3 + $0xf8] sm:$0xff]
      %v1730 = vpack.c.bf16 %v1667, %v1666
      %v1731 = vpack.c.bf16 %v1669, %v1668
      %v1732 = vpack.c.bf16 %v1671, %v1670
      %v1733 = vpack.c.bf16 %v1673, %v1672
      %v1734 = vpack.c.bf16 %v1675, %v1674
      %v1735 = vpack.c.bf16 %v1677, %v1676
      %v1736 = vpack.c.bf16 %v1679, %v1678
      %v1737 = vpack.c.bf16 %v1681, %v1680
      %v1738 = vpack.c.bf16 %v1683, %v1682
      %v1739 = vpack.c.bf16 %v1685, %v1684
      %v1740 = vpack.c.bf16 %v1687, %v1686
      %v1741 = vpack.c.bf16 %v1689, %v1688
      %v1742 = vpack.c.bf16 %v1691, %v1690
      %v1743 = vpack.c.bf16 %v1693, %v1692
      %v1744 = vpack.c.bf16 %v1695, %v1694
      %v1745 = vpack.c.bf16 %v1697, %v1696
      %s1746 = scalar_lea.vmem %s303, 12
      %v1747 = vld [vmem:[%s1746] sm:$0xf]
      %v1749 = vsel %vm558, %v1730, 0
      %v1752 = vsel %vm558, %v1731, 0
      %v1755 = vsel %vm558, %v1732, 0
      %v1758 = vsel %vm558, %v1733, 0
      %v1761 = vsel %vm558, %v1734, 0
      %v1764 = vsel %vm558, %v1735, 0
      %v1767 = vsel %vm558, %v1736, 0
      %v1770 = vsel %vm558, %v1737, 0
      %v1773 = vsel %vm558, %v1738, 0
      %v1776 = vsel %vm558, %v1739, 0
      %v1779 = vsel %vm558, %v1740, 0
      %v1782 = vsel %vm558, %v1741, 0
      %v1785 = vsel %vm558, %v1742, 0
      %v1788 = vsel %vm558, %v1743, 0
      %v1791 = vsel %vm558, %v1744, 0
      %v1794 = vsel %vm558, %v1745, 0
      %v1797 = vsel %vm720, %v1747, 0
      %1799 = vmatprep.subr.bf16.mxu0 0
      %1800 = vmatpush1.bf16.msra.mxu0 0
      %1801 = vmatprep.subr.bf16.mxu0 0
      %1802 = vmatpush1.bf16.msra.mxu0 0
      %1803 = vmatprep.subr.bf16.mxu0 0
      %1804 = vmatpush1.bf16.msra.mxu0 0
      %1805 = vmatprep.subr.bf16.mxu0 0
      %1806 = vmatpush1.bf16.msra.mxu0 0
      %1807 = vmatprep.subr.bf16.mxu0 0
      %1808 = vmatpush1.bf16.msra.mxu0 0
      %1809 = vmatprep.subr.bf16.mxu0 0
      %1810 = vmatpush1.bf16.msra.mxu0 0
      %1811 = vmatprep.subr.bf16.mxu0 0
      %1812 = vmatpush1.bf16.msra.mxu0 0
      %1813 = vmatprep.subr.bf16.mxu0 0
      %1814 = vmatpush1.bf16.msra.mxu0 %v1797
      %1815 = vmatprep.subr.bf16.mxu0 0
      %1816 = vmatpush2.bf16.msra.mxu0 0
      %1817 = vmatprep.subr.bf16.mxu0 0
      %1818 = vmatpush2.bf16.msra.mxu0 0
      %1819 = vmatprep.subr.bf16.mxu0 0
      %1820 = vmatpush2.bf16.msra.mxu0 0
      %1821 = vmatprep.subr.bf16.mxu0 0
      %1822 = vmatpush2.bf16.msra.mxu0 0
      %1823 = vmatprep.subr.bf16.mxu0 0
      %1824 = vmatpush2.bf16.msra.mxu0 0
      %1825 = vmatprep.subr.bf16.mxu0 0
      %1826 = vmatpush2.bf16.msra.mxu0 0
      %1827 = vmatprep.subr.bf16.mxu0 0
      %1828 = vmatpush2.bf16.msra.mxu0 0
      %1829 = vmatprep.subr.bf16.mxu0 0
      %1830 = vmatpush2.bf16.msra.mxu0 0
      %1831 = vmatprep.mubr.bf16.mxu0 0
      %1832 = vmatmul.mubr.bf16.gmra.mxu0 %v1749
      %v1833 = vpop.f32.mrf.mxu0
      %v1834 = vadd.f32 0.0, %v1833
      %v1835 = vpop.f32.mrf.mxu0
      %v1836 = vpop.f32.mrf.mxu0
      %v1837 = vadd.f32 0.0, %v1836
      %v1838 = vpop.f32.mrf.mxu0
      %1839 = vmatprep.mubr.bf16.mxu0 0
      %1840 = vmatmul.mubr.bf16.gmra.mxu0 %v1752
      %v1841 = vpop.f32.mrf.mxu0
      %v1842 = vadd.f32 0.0, %v1841
      %v1843 = vpop.f32.mrf.mxu0
      %v1844 = vpop.f32.mrf.mxu0
      %v1845 = vadd.f32 0.0, %v1844
      %v1846 = vpop.f32.mrf.mxu0
      %1847 = vmatprep.mubr.bf16.mxu0 0
      %1848 = vmatmul.mubr.bf16.gmra.mxu0 %v1755
      %v1849 = vpop.f32.mrf.mxu0
      %v1850 = vadd.f32 0.0, %v1849
      %v1851 = vpop.f32.mrf.mxu0
      %v1852 = vpop.f32.mrf.mxu0
      %v1853 = vadd.f32 0.0, %v1852
      %v1854 = vpop.f32.mrf.mxu0
      %1855 = vmatprep.mubr.bf16.mxu0 0
      %1856 = vmatmul.mubr.bf16.gmra.mxu0 %v1758
      %v1857 = vpop.f32.mrf.mxu0
      %v1858 = vadd.f32 0.0, %v1857
      %v1859 = vpop.f32.mrf.mxu0
      %v1860 = vpop.f32.mrf.mxu0
      %v1861 = vadd.f32 0.0, %v1860
      %v1862 = vpop.f32.mrf.mxu0
      %1863 = vmatprep.mubr.bf16.mxu0 0
      %1864 = vmatmul.mubr.bf16.gmra.mxu0 %v1761
      %v1865 = vpop.f32.mrf.mxu0
      %v1866 = vadd.f32 0.0, %v1865
      %v1867 = vpop.f32.mrf.mxu0
      %v1868 = vpop.f32.mrf.mxu0
      %v1869 = vadd.f32 0.0, %v1868
      %v1870 = vpop.f32.mrf.mxu0
      %1871 = vmatprep.mubr.bf16.mxu0 0
      %1872 = vmatmul.mubr.bf16.gmra.mxu0 %v1764
      %v1873 = vpop.f32.mrf.mxu0
      %v1874 = vadd.f32 0.0, %v1873
      %v1875 = vpop.f32.mrf.mxu0
      %v1876 = vpop.f32.mrf.mxu0
      %v1877 = vadd.f32 0.0, %v1876
      %v1878 = vpop.f32.mrf.mxu0
      %1879 = vmatprep.mubr.bf16.mxu0 0
      %1880 = vmatmul.mubr.bf16.gmra.mxu0 %v1767
      %v1881 = vpop.f32.mrf.mxu0
      %v1882 = vadd.f32 0.0, %v1881
      %v1883 = vpop.f32.mrf.mxu0
      %v1884 = vpop.f32.mrf.mxu0
      %v1885 = vadd.f32 0.0, %v1884
      %v1886 = vpop.f32.mrf.mxu0
      %1887 = vmatprep.mubr.bf16.mxu0 0
      %1888 = vmatmul.mubr.bf16.gmra.mxu0 %v1770
      %v1889 = vpop.f32.mrf.mxu0
      %v1890 = vadd.f32 0.0, %v1889
      %v1891 = vpop.f32.mrf.mxu0
      %v1892 = vpop.f32.mrf.mxu0
      %v1893 = vadd.f32 0.0, %v1892
      %v1894 = vpop.f32.mrf.mxu0
      %1895 = vmatprep.mubr.bf16.mxu0 0
      %1896 = vmatmul.mubr.bf16.gmra.mxu0 %v1773
      %v1897 = vpop.f32.mrf.mxu0
      %v1898 = vadd.f32 0.0, %v1897
      %v1899 = vpop.f32.mrf.mxu0
      %v1900 = vpop.f32.mrf.mxu0
      %v1901 = vadd.f32 0.0, %v1900
      %v1902 = vpop.f32.mrf.mxu0
      %1903 = vmatprep.mubr.bf16.mxu0 0
      %1904 = vmatmul.mubr.bf16.gmra.mxu0 %v1776
      %v1905 = vpop.f32.mrf.mxu0
      %v1906 = vadd.f32 0.0, %v1905
      %v1907 = vpop.f32.mrf.mxu0
      %v1908 = vpop.f32.mrf.mxu0
      %v1909 = vadd.f32 0.0, %v1908
      %v1910 = vpop.f32.mrf.mxu0
      %1911 = vmatprep.mubr.bf16.mxu0 0
      %1912 = vmatmul.mubr.bf16.gmra.mxu0 %v1779
      %v1913 = vpop.f32.mrf.mxu0
      %v1914 = vadd.f32 0.0, %v1913
      %v1915 = vpop.f32.mrf.mxu0
      %v1916 = vpop.f32.mrf.mxu0
      %v1917 = vadd.f32 0.0, %v1916
      %v1918 = vpop.f32.mrf.mxu0
      %1919 = vmatprep.mubr.bf16.mxu0 0
      %1920 = vmatmul.mubr.bf16.gmra.mxu0 %v1782
      %v1921 = vpop.f32.mrf.mxu0
      %v1922 = vadd.f32 0.0, %v1921
      %v1923 = vpop.f32.mrf.mxu0
      %v1924 = vpop.f32.mrf.mxu0
      %v1925 = vadd.f32 0.0, %v1924
      %v1926 = vpop.f32.mrf.mxu0
      %1927 = vmatprep.mubr.bf16.mxu0 0
      %1928 = vmatmul.mubr.bf16.gmra.mxu0 %v1785
      %v1929 = vpop.f32.mrf.mxu0
      %v1930 = vadd.f32 0.0, %v1929
      %v1931 = vpop.f32.mrf.mxu0
      %v1932 = vpop.f32.mrf.mxu0
      %v1933 = vadd.f32 0.0, %v1932
      %v1934 = vpop.f32.mrf.mxu0
      %1935 = vmatprep.mubr.bf16.mxu0 0
      %1936 = vmatmul.mubr.bf16.gmra.mxu0 %v1788
      %v1937 = vpop.f32.mrf.mxu0
      %v1938 = vadd.f32 0.0, %v1937
      %v1939 = vpop.f32.mrf.mxu0
      %v1940 = vpop.f32.mrf.mxu0
      %v1941 = vadd.f32 0.0, %v1940
      %v1942 = vpop.f32.mrf.mxu0
      %1943 = vmatprep.mubr.bf16.mxu0 0
      %1944 = vmatmul.mubr.bf16.gmra.mxu0 %v1791
      %v1945 = vpop.f32.mrf.mxu0
      %v1946 = vadd.f32 0.0, %v1945
      %v1947 = vpop.f32.mrf.mxu0
      %v1948 = vpop.f32.mrf.mxu0
      %v1949 = vadd.f32 0.0, %v1948
      %v1950 = vpop.f32.mrf.mxu0
      %1951 = vmatprep.mubr.bf16.mxu0 0
      %1952 = vmatmul.mubr.bf16.gmra.mxu0 %v1794
      %v1953 = vpop.f32.mrf.mxu0
      %v1954 = vadd.f32 0.0, %v1953
      %v1955 = vpop.f32.mrf.mxu0
      %v1956 = vpop.f32.mrf.mxu0
      %v1957 = vadd.f32 0.0, %v1956
      %v1958 = vpop.f32.mrf.mxu0
      %1959 = vdwg.mxu0
      %v1960 = vadd.f32 %v1698, %v1834
      %v1961 = vadd.f32 %v1699, %v1837
      %v1962 = vadd.f32 %v1700, %v1842
      %v1963 = vadd.f32 %v1701, %v1845
      %v1964 = vadd.f32 %v1702, %v1850
      %v1965 = vadd.f32 %v1703, %v1853
      %v1966 = vadd.f32 %v1704, %v1858
      %v1967 = vadd.f32 %v1705, %v1861
      %v1968 = vadd.f32 %v1706, %v1866
      %v1969 = vadd.f32 %v1707, %v1869
      %v1970 = vadd.f32 %v1708, %v1874
      %v1971 = vadd.f32 %v1709, %v1877
      %v1972 = vadd.f32 %v1710, %v1882
      %v1973 = vadd.f32 %v1711, %v1885
      %v1974 = vadd.f32 %v1712, %v1890
      %v1975 = vadd.f32 %v1713, %v1893
      %v1976 = vadd.f32 %v1714, %v1898
      %v1977 = vadd.f32 %v1715, %v1901
      %v1978 = vadd.f32 %v1716, %v1906
      %v1979 = vadd.f32 %v1717, %v1909
      %v1980 = vadd.f32 %v1718, %v1914
      %v1981 = vadd.f32 %v1719, %v1917
      %v1982 = vadd.f32 %v1720, %v1922
      %v1983 = vadd.f32 %v1721, %v1925
      %v1984 = vadd.f32 %v1722, %v1930
      %v1985 = vadd.f32 %v1723, %v1933
      %v1986 = vadd.f32 %v1724, %v1938
      %v1987 = vadd.f32 %v1725, %v1941
      %v1988 = vadd.f32 %v1726, %v1946
      %v1989 = vadd.f32 %v1727, %v1949
      %v1990 = vadd.f32 %v1728, %v1954
      %v1991 = vadd.f32 %v1729, %v1957
      %1992 = vst.msk [vmem:[#allocation3] sm:$0xff] %vm558, %v1960
      %1993 = vst.msk [vmem:[#allocation3 + $0x8] sm:$0xff] %vm558, %v1961
      %1994 = vst.msk [vmem:[#allocation3 + $0x10] sm:$0xff] %vm558, %v1962
      %1995 = vst.msk [vmem:[#allocation3 + $0x18] sm:$0xff] %vm558, %v1963
      %1996 = vst.msk [vmem:[#allocation3 + $0x20] sm:$0xff] %vm558, %v1964
      %1997 = vst.msk [vmem:[#allocation3 + $0x28] sm:$0xff] %vm558, %v1965
      %1998 = vst.msk [vmem:[#allocation3 + $0x30] sm:$0xff] %vm558, %v1966
      %1999 = vst.msk [vmem:[#allocation3 + $0x38] sm:$0xff] %vm558, %v1967
      %2000 = vst.msk [vmem:[#allocation3 + $0x40] sm:$0xff] %vm558, %v1968
      %2001 = vst.msk [vmem:[#allocation3 + $0x48] sm:$0xff] %vm558, %v1969
      %2002 = vst.msk [vmem:[#allocation3 + $0x50] sm:$0xff] %vm558, %v1970
      %2003 = vst.msk [vmem:[#allocation3 + $0x58] sm:$0xff] %vm558, %v1971
      %2004 = vst.msk [vmem:[#allocation3 + $0x60] sm:$0xff] %vm558, %v1972
      %2005 = vst.msk [vmem:[#allocation3 + $0x68] sm:$0xff] %vm558, %v1973
      %2006 = vst.msk [vmem:[#allocation3 + $0x70] sm:$0xff] %vm558, %v1974
      %2007 = vst.msk [vmem:[#allocation3 + $0x78] sm:$0xff] %vm558, %v1975
      %2008 = vst.msk [vmem:[#allocation3 + $0x80] sm:$0xff] %vm558, %v1976
      %2009 = vst.msk [vmem:[#allocation3 + $0x88] sm:$0xff] %vm558, %v1977
      %2010 = vst.msk [vmem:[#allocation3 + $0x90] sm:$0xff] %vm558, %v1978
      %2011 = vst.msk [vmem:[#allocation3 + $0x98] sm:$0xff] %vm558, %v1979
      %2012 = vst.msk [vmem:[#allocation3 + $0xa0] sm:$0xff] %vm558, %v1980
      %2013 = vst.msk [vmem:[#allocation3 + $0xa8] sm:$0xff] %vm558, %v1981
      %2014 = vst.msk [vmem:[#allocation3 + $0xb0] sm:$0xff] %vm558, %v1982
      %2015 = vst.msk [vmem:[#allocation3 + $0xb8] sm:$0xff] %vm558, %v1983
      %2016 = vst.msk [vmem:[#allocation3 + $0xc0] sm:$0xff] %vm558, %v1984
      %2017 = vst.msk [vmem:[#allocation3 + $0xc8] sm:$0xff] %vm558, %v1985
      %2018 = vst.msk [vmem:[#allocation3 + $0xd0] sm:$0xff] %vm558, %v1986
      %2019 = vst.msk [vmem:[#allocation3 + $0xd8] sm:$0xff] %vm558, %v1987
      %2020 = vst.msk [vmem:[#allocation3 + $0xe0] sm:$0xff] %vm558, %v1988
      %2021 = vst.msk [vmem:[#allocation3 + $0xe8] sm:$0xff] %vm558, %v1989
      %2022 = vst.msk [vmem:[#allocation3 + $0xf0] sm:$0xff] %vm558, %v1990
      %2023 = vst.msk [vmem:[#allocation3 + $0xf8] sm:$0xff] %vm558, %v1991
      %v2024 = vld [vmem:[%s1665 + $0x1] sm:$0xff]
      %v2025 = vld [vmem:[%s1665 + $0x9] sm:$0xff]
      %v2026 = vld [vmem:[%s1665 + $0x19] sm:$0xff]
      %v2027 = vld [vmem:[%s1665 + $0x21] sm:$0xff]
      %v2028 = vld [vmem:[%s1665 + $0x31] sm:$0xff]
      %v2029 = vld [vmem:[%s1665 + $0x39] sm:$0xff]
      %v2030 = vld [vmem:[%s1665 + $0x49] sm:$0xff]
      %v2031 = vld [vmem:[%s1665 + $0x51] sm:$0xff]
      %v2032 = vld [vmem:[%s1665 + $0x61] sm:$0xff]
      %v2033 = vld [vmem:[%s1665 + $0x69] sm:$0xff]
      %v2034 = vld [vmem:[%s1665 + $0x79] sm:$0xff]
      %v2035 = vld [vmem:[%s1665 + $0x81] sm:$0xff]
      %v2036 = vld [vmem:[%s1665 + $0x91] sm:$0xff]
      %v2037 = vld [vmem:[%s1665 + $0x99] sm:$0xff]
      %v2038 = vld [vmem:[%s1665 + $0xa9] sm:$0xff]
      %v2039 = vld [vmem:[%s1665 + $0xb1] sm:$0xff]
      %v2040 = vld [vmem:[%s1665 + $0xc1] sm:$0xff]
      %v2041 = vld [vmem:[%s1665 + $0xc9] sm:$0xff]
      %v2042 = vld [vmem:[%s1665 + $0xd9] sm:$0xff]
      %v2043 = vld [vmem:[%s1665 + $0xe1] sm:$0xff]
      %v2044 = vld [vmem:[%s1665 + $0xf1] sm:$0xff]
      %v2045 = vld [vmem:[%s1665 + $0xf9] sm:$0xff]
      %v2046 = vld [vmem:[%s1665 + $0x109] sm:$0xff]
      %v2047 = vld [vmem:[%s1665 + $0x111] sm:$0xff]
      %v2048 = vld [vmem:[%s1665 + $0x121] sm:$0xff]
      %v2049 = vld [vmem:[%s1665 + $0x129] sm:$0xff]
      %v2050 = vld [vmem:[%s1665 + $0x139] sm:$0xff]
      %v2051 = vld [vmem:[%s1665 + $0x141] sm:$0xff]
      %v2052 = vld [vmem:[%s1665 + $0x151] sm:$0xff]
      %v2053 = vld [vmem:[%s1665 + $0x159] sm:$0xff]
      %v2054 = vld [vmem:[%s1665 + $0x169] sm:$0xff]
      %v2055 = vld [vmem:[%s1665 + $0x171] sm:$0xff]
      %v2056 = vld [vmem:[#allocation3] sm:$0xff]
      %v2057 = vld [vmem:[#allocation3 + $0x8] sm:$0xff]
      %v2058 = vld [vmem:[#allocation3 + $0x10] sm:$0xff]
      %v2059 = vld [vmem:[#allocation3 + $0x18] sm:$0xff]
      %v2060 = vld [vmem:[#allocation3 + $0x20] sm:$0xff]
      %v2061 = vld [vmem:[#allocation3 + $0x28] sm:$0xff]
      %v2062 = vld [vmem:[#allocation3 + $0x30] sm:$0xff]
      %v2063 = vld [vmem:[#allocation3 + $0x38] sm:$0xff]
      %v2064 = vld [vmem:[#allocation3 + $0x40] sm:$0xff]
      %v2065 = vld [vmem:[#allocation3 + $0x48] sm:$0xff]
      %v2066 = vld [vmem:[#allocation3 + $0x50] sm:$0xff]
      %v2067 = vld [vmem:[#allocation3 + $0x58] sm:$0xff]
      %v2068 = vld [vmem:[#allocation3 + $0x60] sm:$0xff]
      %v2069 = vld [vmem:[#allocation3 + $0x68] sm:$0xff]
      %v2070 = vld [vmem:[#allocation3 + $0x70] sm:$0xff]
      %v2071 = vld [vmem:[#allocation3 + $0x78] sm:$0xff]
      %v2072 = vld [vmem:[#allocation3 + $0x80] sm:$0xff]
      %v2073 = vld [vmem:[#allocation3 + $0x88] sm:$0xff]
      %v2074 = vld [vmem:[#allocation3 + $0x90] sm:$0xff]
      %v2075 = vld [vmem:[#allocation3 + $0x98] sm:$0xff]
      %v2076 = vld [vmem:[#allocation3 + $0xa0] sm:$0xff]
      %v2077 = vld [vmem:[#allocation3 + $0xa8] sm:$0xff]
      %v2078 = vld [vmem:[#allocation3 + $0xb0] sm:$0xff]
      %v2079 = vld [vmem:[#allocation3 + $0xb8] sm:$0xff]
      %v2080 = vld [vmem:[#allocation3 + $0xc0] sm:$0xff]
      %v2081 = vld [vmem:[#allocation3 + $0xc8] sm:$0xff]
      %v2082 = vld [vmem:[#allocation3 + $0xd0] sm:$0xff]
      %v2083 = vld [vmem:[#allocation3 + $0xd8] sm:$0xff]
      %v2084 = vld [vmem:[#allocation3 + $0xe0] sm:$0xff]
      %v2085 = vld [vmem:[#allocation3 + $0xe8] sm:$0xff]
      %v2086 = vld [vmem:[#allocation3 + $0xf0] sm:$0xff]
      %v2087 = vld [vmem:[#allocation3 + $0xf8] sm:$0xff]
      %v2088 = vpack.c.bf16 %v2025, %v2024
      %v2089 = vpack.c.bf16 %v2027, %v2026
      %v2090 = vpack.c.bf16 %v2029, %v2028
      %v2091 = vpack.c.bf16 %v2031, %v2030
      %v2092 = vpack.c.bf16 %v2033, %v2032
      %v2093 = vpack.c.bf16 %v2035, %v2034
      %v2094 = vpack.c.bf16 %v2037, %v2036
      %v2095 = vpack.c.bf16 %v2039, %v2038
      %v2096 = vpack.c.bf16 %v2041, %v2040
      %v2097 = vpack.c.bf16 %v2043, %v2042
      %v2098 = vpack.c.bf16 %v2045, %v2044
      %v2099 = vpack.c.bf16 %v2047, %v2046
      %v2100 = vpack.c.bf16 %v2049, %v2048
      %v2101 = vpack.c.bf16 %v2051, %v2050
      %v2102 = vpack.c.bf16 %v2053, %v2052
      %v2103 = vpack.c.bf16 %v2055, %v2054
      %s2104 = scalar_lea.vmem %s303, 16
      %v2105 = vld [vmem:[%s2104] sm:$0xf]
      %v2107 = vsel %vm558, %v2088, 0
      %v2110 = vsel %vm558, %v2089, 0
      %v2113 = vsel %vm558, %v2090, 0
      %v2116 = vsel %vm558, %v2091, 0
      %v2119 = vsel %vm558, %v2092, 0
      %v2122 = vsel %vm558, %v2093, 0
      %v2125 = vsel %vm558, %v2094, 0
      %v2128 = vsel %vm558, %v2095, 0
      %v2131 = vsel %vm558, %v2096, 0
      %v2134 = vsel %vm558, %v2097, 0
      %v2137 = vsel %vm558, %v2098, 0
      %v2140 = vsel %vm558, %v2099, 0
      %v2143 = vsel %vm558, %v2100, 0
      %v2146 = vsel %vm558, %v2101, 0
      %v2149 = vsel %vm558, %v2102, 0
      %v2152 = vsel %vm558, %v2103, 0
      %v2155 = vsel %vm720, %v2105, 0
      %2157 = vmatprep.subr.bf16.mxu0 0
      %2158 = vmatpush1.bf16.msra.mxu0 0
      %2159 = vmatprep.subr.bf16.mxu0 0
      %2160 = vmatpush1.bf16.msra.mxu0 0
      %2161 = vmatprep.subr.bf16.mxu0 0
      %2162 = vmatpush1.bf16.msra.mxu0 0
      %2163 = vmatprep.subr.bf16.mxu0 0
      %2164 = vmatpush1.bf16.msra.mxu0 0
      %2165 = vmatprep.subr.bf16.mxu0 0
      %2166 = vmatpush1.bf16.msra.mxu0 0
      %2167 = vmatprep.subr.bf16.mxu0 0
      %2168 = vmatpush1.bf16.msra.mxu0 0
      %2169 = vmatprep.subr.bf16.mxu0 0
      %2170 = vmatpush1.bf16.msra.mxu0 0
      %2171 = vmatprep.subr.bf16.mxu0 0
      %2172 = vmatpush1.bf16.msra.mxu0 %v2155
      %2173 = vmatprep.subr.bf16.mxu0 0
      %2174 = vmatpush2.bf16.msra.mxu0 0
      %2175 = vmatprep.subr.bf16.mxu0 0
      %2176 = vmatpush2.bf16.msra.mxu0 0
      %2177 = vmatprep.subr.bf16.mxu0 0
      %2178 = vmatpush2.bf16.msra.mxu0 0
      %2179 = vmatprep.subr.bf16.mxu0 0
      %2180 = vmatpush2.bf16.msra.mxu0 0
      %2181 = vmatprep.subr.bf16.mxu0 0
      %2182 = vmatpush2.bf16.msra.mxu0 0
      %2183 = vmatprep.subr.bf16.mxu0 0
      %2184 = vmatpush2.bf16.msra.mxu0 0
      %2185 = vmatprep.subr.bf16.mxu0 0
      %2186 = vmatpush2.bf16.msra.mxu0 0
      %2187 = vmatprep.subr.bf16.mxu0 0
      %2188 = vmatpush2.bf16.msra.mxu0 0
      %2189 = vmatprep.mubr.bf16.mxu0 0
      %2190 = vmatmul.mubr.bf16.gmra.mxu0 %v2107
      %v2191 = vpop.f32.mrf.mxu0
      %v2192 = vadd.f32 0.0, %v2191
      %v2193 = vpop.f32.mrf.mxu0
      %v2194 = vpop.f32.mrf.mxu0
      %v2195 = vadd.f32 0.0, %v2194
      %v2196 = vpop.f32.mrf.mxu0
      %2197 = vmatprep.mubr.bf16.mxu0 0
      %2198 = vmatmul.mubr.bf16.gmra.mxu0 %v2110
      %v2199 = vpop.f32.mrf.mxu0
      %v2200 = vadd.f32 0.0, %v2199
      %v2201 = vpop.f32.mrf.mxu0
      %v2202 = vpop.f32.mrf.mxu0
      %v2203 = vadd.f32 0.0, %v2202
      %v2204 = vpop.f32.mrf.mxu0
      %2205 = vmatprep.mubr.bf16.mxu0 0
      %2206 = vmatmul.mubr.bf16.gmra.mxu0 %v2113
      %v2207 = vpop.f32.mrf.mxu0
      %v2208 = vadd.f32 0.0, %v2207
      %v2209 = vpop.f32.mrf.mxu0
      %v2210 = vpop.f32.mrf.mxu0
      %v2211 = vadd.f32 0.0, %v2210
      %v2212 = vpop.f32.mrf.mxu0
      %2213 = vmatprep.mubr.bf16.mxu0 0
      %2214 = vmatmul.mubr.bf16.gmra.mxu0 %v2116
      %v2215 = vpop.f32.mrf.mxu0
      %v2216 = vadd.f32 0.0, %v2215
      %v2217 = vpop.f32.mrf.mxu0
      %v2218 = vpop.f32.mrf.mxu0
      %v2219 = vadd.f32 0.0, %v2218
      %v2220 = vpop.f32.mrf.mxu0
      %2221 = vmatprep.mubr.bf16.mxu0 0
      %2222 = vmatmul.mubr.bf16.gmra.mxu0 %v2119
      %v2223 = vpop.f32.mrf.mxu0
      %v2224 = vadd.f32 0.0, %v2223
      %v2225 = vpop.f32.mrf.mxu0
      %v2226 = vpop.f32.mrf.mxu0
      %v2227 = vadd.f32 0.0, %v2226
      %v2228 = vpop.f32.mrf.mxu0
      %2229 = vmatprep.mubr.bf16.mxu0 0
      %2230 = vmatmul.mubr.bf16.gmra.mxu0 %v2122
      %v2231 = vpop.f32.mrf.mxu0
      %v2232 = vadd.f32 0.0, %v2231
      %v2233 = vpop.f32.mrf.mxu0
      %v2234 = vpop.f32.mrf.mxu0
      %v2235 = vadd.f32 0.0, %v2234
      %v2236 = vpop.f32.mrf.mxu0
      %2237 = vmatprep.mubr.bf16.mxu0 0
      %2238 = vmatmul.mubr.bf16.gmra.mxu0 %v2125
      %v2239 = vpop.f32.mrf.mxu0
      %v2240 = vadd.f32 0.0, %v2239
      %v2241 = vpop.f32.mrf.mxu0
      %v2242 = vpop.f32.mrf.mxu0
      %v2243 = vadd.f32 0.0, %v2242
      %v2244 = vpop.f32.mrf.mxu0
      %2245 = vmatprep.mubr.bf16.mxu0 0
      %2246 = vmatmul.mubr.bf16.gmra.mxu0 %v2128
      %v2247 = vpop.f32.mrf.mxu0
      %v2248 = vadd.f32 0.0, %v2247
      %v2249 = vpop.f32.mrf.mxu0
      %v2250 = vpop.f32.mrf.mxu0
      %v2251 = vadd.f32 0.0, %v2250
      %v2252 = vpop.f32.mrf.mxu0
      %2253 = vmatprep.mubr.bf16.mxu0 0
      %2254 = vmatmul.mubr.bf16.gmra.mxu0 %v2131
      %v2255 = vpop.f32.mrf.mxu0
      %v2256 = vadd.f32 0.0, %v2255
      %v2257 = vpop.f32.mrf.mxu0
      %v2258 = vpop.f32.mrf.mxu0
      %v2259 = vadd.f32 0.0, %v2258
      %v2260 = vpop.f32.mrf.mxu0
      %2261 = vmatprep.mubr.bf16.mxu0 0
      %2262 = vmatmul.mubr.bf16.gmra.mxu0 %v2134
      %v2263 = vpop.f32.mrf.mxu0
      %v2264 = vadd.f32 0.0, %v2263
      %v2265 = vpop.f32.mrf.mxu0
      %v2266 = vpop.f32.mrf.mxu0
      %v2267 = vadd.f32 0.0, %v2266
      %v2268 = vpop.f32.mrf.mxu0
      %2269 = vmatprep.mubr.bf16.mxu0 0
      %2270 = vmatmul.mubr.bf16.gmra.mxu0 %v2137
      %v2271 = vpop.f32.mrf.mxu0
      %v2272 = vadd.f32 0.0, %v2271
      %v2273 = vpop.f32.mrf.mxu0
      %v2274 = vpop.f32.mrf.mxu0
      %v2275 = vadd.f32 0.0, %v2274
      %v2276 = vpop.f32.mrf.mxu0
      %2277 = vmatprep.mubr.bf16.mxu0 0
      %2278 = vmatmul.mubr.bf16.gmra.mxu0 %v2140
      %v2279 = vpop.f32.mrf.mxu0
      %v2280 = vadd.f32 0.0, %v2279
      %v2281 = vpop.f32.mrf.mxu0
      %v2282 = vpop.f32.mrf.mxu0
      %v2283 = vadd.f32 0.0, %v2282
      %v2284 = vpop.f32.mrf.mxu0
      %2285 = vmatprep.mubr.bf16.mxu0 0
      %2286 = vmatmul.mubr.bf16.gmra.mxu0 %v2143
      %v2287 = vpop.f32.mrf.mxu0
      %v2288 = vadd.f32 0.0, %v2287
      %v2289 = vpop.f32.mrf.mxu0
      %v2290 = vpop.f32.mrf.mxu0
      %v2291 = vadd.f32 0.0, %v2290
      %v2292 = vpop.f32.mrf.mxu0
      %2293 = vmatprep.mubr.bf16.mxu0 0
      %2294 = vmatmul.mubr.bf16.gmra.mxu0 %v2146
      %v2295 = vpop.f32.mrf.mxu0
      %v2296 = vadd.f32 0.0, %v2295
      %v2297 = vpop.f32.mrf.mxu0
      %v2298 = vpop.f32.mrf.mxu0
      %v2299 = vadd.f32 0.0, %v2298
      %v2300 = vpop.f32.mrf.mxu0
      %2301 = vmatprep.mubr.bf16.mxu0 0
      %2302 = vmatmul.mubr.bf16.gmra.mxu0 %v2149
      %v2303 = vpop.f32.mrf.mxu0
      %v2304 = vadd.f32 0.0, %v2303
      %v2305 = vpop.f32.mrf.mxu0
      %v2306 = vpop.f32.mrf.mxu0
      %v2307 = vadd.f32 0.0, %v2306
      %v2308 = vpop.f32.mrf.mxu0
      %2309 = vmatprep.mubr.bf16.mxu0 0
      %2310 = vmatmul.mubr.bf16.gmra.mxu0 %v2152
      %v2311 = vpop.f32.mrf.mxu0
      %v2312 = vadd.f32 0.0, %v2311
      %v2313 = vpop.f32.mrf.mxu0
      %v2314 = vpop.f32.mrf.mxu0
      %v2315 = vadd.f32 0.0, %v2314
      %v2316 = vpop.f32.mrf.mxu0
      %2317 = vdwg.mxu0
      %v2318 = vadd.f32 %v2056, %v2192
      %v2319 = vadd.f32 %v2057, %v2195
      %v2320 = vadd.f32 %v2058, %v2200
      %v2321 = vadd.f32 %v2059, %v2203
      %v2322 = vadd.f32 %v2060, %v2208
      %v2323 = vadd.f32 %v2061, %v2211
      %v2324 = vadd.f32 %v2062, %v2216
      %v2325 = vadd.f32 %v2063, %v2219
      %v2326 = vadd.f32 %v2064, %v2224
      %v2327 = vadd.f32 %v2065, %v2227
      %v2328 = vadd.f32 %v2066, %v2232
      %v2329 = vadd.f32 %v2067, %v2235
      %v2330 = vadd.f32 %v2068, %v2240
      %v2331 = vadd.f32 %v2069, %v2243
      %v2332 = vadd.f32 %v2070, %v2248
      %v2333 = vadd.f32 %v2071, %v2251
      %v2334 = vadd.f32 %v2072, %v2256
      %v2335 = vadd.f32 %v2073, %v2259
      %v2336 = vadd.f32 %v2074, %v2264
      %v2337 = vadd.f32 %v2075, %v2267
      %v2338 = vadd.f32 %v2076, %v2272
      %v2339 = vadd.f32 %v2077, %v2275
      %v2340 = vadd.f32 %v2078, %v2280
      %v2341 = vadd.f32 %v2079, %v2283
      %v2342 = vadd.f32 %v2080, %v2288
      %v2343 = vadd.f32 %v2081, %v2291
      %v2344 = vadd.f32 %v2082, %v2296
      %v2345 = vadd.f32 %v2083, %v2299
      %v2346 = vadd.f32 %v2084, %v2304
      %v2347 = vadd.f32 %v2085, %v2307
      %v2348 = vadd.f32 %v2086, %v2312
      %v2349 = vadd.f32 %v2087, %v2315
      %2350 = vst.msk [vmem:[#allocation3] sm:$0xff] %vm558, %v2318
      %2351 = vst.msk [vmem:[#allocation3 + $0x8] sm:$0xff] %vm558, %v2319
      %2352 = vst.msk [vmem:[#allocation3 + $0x10] sm:$0xff] %vm558, %v2320
      %2353 = vst.msk [vmem:[#allocation3 + $0x18] sm:$0xff] %vm558, %v2321
      %2354 = vst.msk [vmem:[#allocation3 + $0x20] sm:$0xff] %vm558, %v2322
      %2355 = vst.msk [vmem:[#allocation3 + $0x28] sm:$0xff] %vm558, %v2323
      %2356 = vst.msk [vmem:[#allocation3 + $0x30] sm:$0xff] %vm558, %v2324
      %2357 = vst.msk [vmem:[#allocation3 + $0x38] sm:$0xff] %vm558, %v2325
      %2358 = vst.msk [vmem:[#allocation3 + $0x40] sm:$0xff] %vm558, %v2326
      %2359 = vst.msk [vmem:[#allocation3 + $0x48] sm:$0xff] %vm558, %v2327
      %2360 = vst.msk [vmem:[#allocation3 + $0x50] sm:$0xff] %vm558, %v2328
      %2361 = vst.msk [vmem:[#allocation3 + $0x58] sm:$0xff] %vm558, %v2329
      %2362 = vst.msk [vmem:[#allocation3 + $0x60] sm:$0xff] %vm558, %v2330
      %2363 = vst.msk [vmem:[#allocation3 + $0x68] sm:$0xff] %vm558, %v2331
      %2364 = vst.msk [vmem:[#allocation3 + $0x70] sm:$0xff] %vm558, %v2332
      %2365 = vst.msk [vmem:[#allocation3 + $0x78] sm:$0xff] %vm558, %v2333
      %2366 = vst.msk [vmem:[#allocation3 + $0x80] sm:$0xff] %vm558, %v2334
      %2367 = vst.msk [vmem:[#allocation3 + $0x88] sm:$0xff] %vm558, %v2335
      %2368 = vst.msk [vmem:[#allocation3 + $0x90] sm:$0xff] %vm558, %v2336
      %2369 = vst.msk [vmem:[#allocation3 + $0x98] sm:$0xff] %vm558, %v2337
      %2370 = vst.msk [vmem:[#allocation3 + $0xa0] sm:$0xff] %vm558, %v2338
      %2371 = vst.msk [vmem:[#allocation3 + $0xa8] sm:$0xff] %vm558, %v2339
      %2372 = vst.msk [vmem:[#allocation3 + $0xb0] sm:$0xff] %vm558, %v2340
      %2373 = vst.msk [vmem:[#allocation3 + $0xb8] sm:$0xff] %vm558, %v2341
      %2374 = vst.msk [vmem:[#allocation3 + $0xc0] sm:$0xff] %vm558, %v2342
      %2375 = vst.msk [vmem:[#allocation3 + $0xc8] sm:$0xff] %vm558, %v2343
      %2376 = vst.msk [vmem:[#allocation3 + $0xd0] sm:$0xff] %vm558, %v2344
      %2377 = vst.msk [vmem:[#allocation3 + $0xd8] sm:$0xff] %vm558, %v2345
      %2378 = vst.msk [vmem:[#allocation3 + $0xe0] sm:$0xff] %vm558, %v2346
      %2379 = vst.msk [vmem:[#allocation3 + $0xe8] sm:$0xff] %vm558, %v2347
      %2380 = vst.msk [vmem:[#allocation3 + $0xf0] sm:$0xff] %vm558, %v2348
      %2381 = vst.msk [vmem:[#allocation3 + $0xf8] sm:$0xff] %vm558, %v2349
      %v2382 = vld [vmem:[%s1665 + $0x2] sm:$0xff]
      %v2383 = vld [vmem:[%s1665 + $0xa] sm:$0xff]
      %v2384 = vld [vmem:[%s1665 + $0x1a] sm:$0xff]
      %v2385 = vld [vmem:[%s1665 + $0x22] sm:$0xff]
      %v2386 = vld [vmem:[%s1665 + $0x32] sm:$0xff]
      %v2387 = vld [vmem:[%s1665 + $0x3a] sm:$0xff]
      %v2388 = vld [vmem:[%s1665 + $0x4a] sm:$0xff]
      %v2389 = vld [vmem:[%s1665 + $0x52] sm:$0xff]
      %v2390 = vld [vmem:[%s1665 + $0x62] sm:$0xff]
      %v2391 = vld [vmem:[%s1665 + $0x6a] sm:$0xff]
      %v2392 = vld [vmem:[%s1665 + $0x7a] sm:$0xff]
      %v2393 = vld [vmem:[%s1665 + $0x82] sm:$0xff]
      %v2394 = vld [vmem:[%s1665 + $0x92] sm:$0xff]
      %v2395 = vld [vmem:[%s1665 + $0x9a] sm:$0xff]
      %v2396 = vld [vmem:[%s1665 + $0xaa] sm:$0xff]
      %v2397 = vld [vmem:[%s1665 + $0xb2] sm:$0xff]
      %v2398 = vld [vmem:[%s1665 + $0xc2] sm:$0xff]
      %v2399 = vld [vmem:[%s1665 + $0xca] sm:$0xff]
      %v2400 = vld [vmem:[%s1665 + $0xda] sm:$0xff]
      %v2401 = vld [vmem:[%s1665 + $0xe2] sm:$0xff]
      %v2402 = vld [vmem:[%s1665 + $0xf2] sm:$0xff]
      %v2403 = vld [vmem:[%s1665 + $0xfa] sm:$0xff]
      %v2404 = vld [vmem:[%s1665 + $0x10a] sm:$0xff]
      %v2405 = vld [vmem:[%s1665 + $0x112] sm:$0xff]
      %v2406 = vld [vmem:[%s1665 + $0x122] sm:$0xff]
      %v2407 = vld [vmem:[%s1665 + $0x12a] sm:$0xff]
      %v2408 = vld [vmem:[%s1665 + $0x13a] sm:$0xff]
      %v2409 = vld [vmem:[%s1665 + $0x142] sm:$0xff]
      %v2410 = vld [vmem:[%s1665 + $0x152] sm:$0xff]
      %v2411 = vld [vmem:[%s1665 + $0x15a] sm:$0xff]
      %v2412 = vld [vmem:[%s1665 + $0x16a] sm:$0xff]
      %v2413 = vld [vmem:[%s1665 + $0x172] sm:$0xff]
      %v2414 = vld [vmem:[#allocation3] sm:$0xff]
      %v2415 = vld [vmem:[#allocation3 + $0x8] sm:$0xff]
      %v2416 = vld [vmem:[#allocation3 + $0x10] sm:$0xff]
      %v2417 = vld [vmem:[#allocation3 + $0x18] sm:$0xff]
      %v2418 = vld [vmem:[#allocation3 + $0x20] sm:$0xff]
      %v2419 = vld [vmem:[#allocation3 + $0x28] sm:$0xff]
      %v2420 = vld [vmem:[#allocation3 + $0x30] sm:$0xff]
      %v2421 = vld [vmem:[#allocation3 + $0x38] sm:$0xff]
      %v2422 = vld [vmem:[#allocation3 + $0x40] sm:$0xff]
      %v2423 = vld [vmem:[#allocation3 + $0x48] sm:$0xff]
      %v2424 = vld [vmem:[#allocation3 + $0x50] sm:$0xff]
      %v2425 = vld [vmem:[#allocation3 + $0x58] sm:$0xff]
      %v2426 = vld [vmem:[#allocation3 + $0x60] sm:$0xff]
      %v2427 = vld [vmem:[#allocation3 + $0x68] sm:$0xff]
      %v2428 = vld [vmem:[#allocation3 + $0x70] sm:$0xff]
      %v2429 = vld [vmem:[#allocation3 + $0x78] sm:$0xff]
      %v2430 = vld [vmem:[#allocation3 + $0x80] sm:$0xff]
      %v2431 = vld [vmem:[#allocation3 + $0x88] sm:$0xff]
      %v2432 = vld [vmem:[#allocation3 + $0x90] sm:$0xff]
      %v2433 = vld [vmem:[#allocation3 + $0x98] sm:$0xff]
      %v2434 = vld [vmem:[#allocation3 + $0xa0] sm:$0xff]
      %v2435 = vld [vmem:[#allocation3 + $0xa8] sm:$0xff]
      %v2436 = vld [vmem:[#allocation3 + $0xb0] sm:$0xff]
      %v2437 = vld [vmem:[#allocation3 + $0xb8] sm:$0xff]
      %v2438 = vld [vmem:[#allocation3 + $0xc0] sm:$0xff]
      %v2439 = vld [vmem:[#allocation3 + $0xc8] sm:$0xff]
      %v2440 = vld [vmem:[#allocation3 + $0xd0] sm:$0xff]
      %v2441 = vld [vmem:[#allocation3 + $0xd8] sm:$0xff]
      %v2442 = vld [vmem:[#allocation3 + $0xe0] sm:$0xff]
      %v2443 = vld [vmem:[#allocation3 + $0xe8] sm:$0xff]
      %v2444 = vld [vmem:[#allocation3 + $0xf0] sm:$0xff]
      %v2445 = vld [vmem:[#allocation3 + $0xf8] sm:$0xff]
      %v2446 = vpack.c.bf16 %v2383, %v2382
      %v2447 = vpack.c.bf16 %v2385, %v2384
      %v2448 = vpack.c.bf16 %v2387, %v2386
      %v2449 = vpack.c.bf16 %v2389, %v2388
      %v2450 = vpack.c.bf16 %v2391, %v2390
      %v2451 = vpack.c.bf16 %v2393, %v2392
      %v2452 = vpack.c.bf16 %v2395, %v2394
      %v2453 = vpack.c.bf16 %v2397, %v2396
      %v2454 = vpack.c.bf16 %v2399, %v2398
      %v2455 = vpack.c.bf16 %v2401, %v2400
      %v2456 = vpack.c.bf16 %v2403, %v2402
      %v2457 = vpack.c.bf16 %v2405, %v2404
      %v2458 = vpack.c.bf16 %v2407, %v2406
      %v2459 = vpack.c.bf16 %v2409, %v2408
      %v2460 = vpack.c.bf16 %v2411, %v2410
      %v2461 = vpack.c.bf16 %v2413, %v2412
      %s2462 = scalar_lea.vmem %s303, 20
      %v2463 = vld [vmem:[%s2462] sm:$0xf]
      %v2465 = vsel %vm558, %v2446, 0
      %v2468 = vsel %vm558, %v2447, 0
      %v2471 = vsel %vm558, %v2448, 0
      %v2474 = vsel %vm558, %v2449, 0
      %v2477 = vsel %vm558, %v2450, 0
      %v2480 = vsel %vm558, %v2451, 0
      %v2483 = vsel %vm558, %v2452, 0
      %v2486 = vsel %vm558, %v2453, 0
      %v2489 = vsel %vm558, %v2454, 0
      %v2492 = vsel %vm558, %v2455, 0
      %v2495 = vsel %vm558, %v2456, 0
      %v2498 = vsel %vm558, %v2457, 0
      %v2501 = vsel %vm558, %v2458, 0
      %v2504 = vsel %vm558, %v2459, 0
      %v2507 = vsel %vm558, %v2460, 0
      %v2510 = vsel %vm558, %v2461, 0
      %v2513 = vsel %vm720, %v2463, 0
      %2515 = vmatprep.subr.bf16.mxu0 0
      %2516 = vmatpush1.bf16.msra.mxu0 0
      %2517 = vmatprep.subr.bf16.mxu0 0
      %2518 = vmatpush1.bf16.msra.mxu0 0
      %2519 = vmatprep.subr.bf16.mxu0 0
      %2520 = vmatpush1.bf16.msra.mxu0 0
      %2521 = vmatprep.subr.bf16.mxu0 0
      %2522 = vmatpush1.bf16.msra.mxu0 0
      %2523 = vmatprep.subr.bf16.mxu0 0
      %2524 = vmatpush1.bf16.msra.mxu0 0
      %2525 = vmatprep.subr.bf16.mxu0 0
      %2526 = vmatpush1.bf16.msra.mxu0 0
      %2527 = vmatprep.subr.bf16.mxu0 0
      %2528 = vmatpush1.bf16.msra.mxu0 0
      %2529 = vmatprep.subr.bf16.mxu0 0
      %2530 = vmatpush1.bf16.msra.mxu0 %v2513
      %2531 = vmatprep.subr.bf16.mxu0 0
      %2532 = vmatpush2.bf16.msra.mxu0 0
      %2533 = vmatprep.subr.bf16.mxu0 0
      %2534 = vmatpush2.bf16.msra.mxu0 0
      %2535 = vmatprep.subr.bf16.mxu0 0
      %2536 = vmatpush2.bf16.msra.mxu0 0
      %2537 = vmatprep.subr.bf16.mxu0 0
      %2538 = vmatpush2.bf16.msra.mxu0 0
      %2539 = vmatprep.subr.bf16.mxu0 0
      %2540 = vmatpush2.bf16.msra.mxu0 0
      %2541 = vmatprep.subr.bf16.mxu0 0
      %2542 = vmatpush2.bf16.msra.mxu0 0
      %2543 = vmatprep.subr.bf16.mxu0 0
      %2544 = vmatpush2.bf16.msra.mxu0 0
      %2545 = vmatprep.subr.bf16.mxu0 0
      %2546 = vmatpush2.bf16.msra.mxu0 0
      %2547 = vmatprep.mubr.bf16.mxu0 0
      %2548 = vmatmul.mubr.bf16.gmra.mxu0 %v2465
      %v2549 = vpop.f32.mrf.mxu0
      %v2550 = vadd.f32 0.0, %v2549
      %v2551 = vpop.f32.mrf.mxu0
      %v2552 = vpop.f32.mrf.mxu0
      %v2553 = vadd.f32 0.0, %v2552
      %v2554 = vpop.f32.mrf.mxu0
      %2555 = vmatprep.mubr.bf16.mxu0 0
      %2556 = vmatmul.mubr.bf16.gmra.mxu0 %v2468
      %v2557 = vpop.f32.mrf.mxu0
      %v2558 = vadd.f32 0.0, %v2557
      %v2559 = vpop.f32.mrf.mxu0
      %v2560 = vpop.f32.mrf.mxu0
      %v2561 = vadd.f32 0.0, %v2560
      %v2562 = vpop.f32.mrf.mxu0
      %2563 = vmatprep.mubr.bf16.mxu0 0
      %2564 = vmatmul.mubr.bf16.gmra.mxu0 %v2471
      %v2565 = vpop.f32.mrf.mxu0
      %v2566 = vadd.f32 0.0, %v2565
      %v2567 = vpop.f32.mrf.mxu0
      %v2568 = vpop.f32.mrf.mxu0
      %v2569 = vadd.f32 0.0, %v2568
      %v2570 = vpop.f32.mrf.mxu0
      %2571 = vmatprep.mubr.bf16.mxu0 0
      %2572 = vmatmul.mubr.bf16.gmra.mxu0 %v2474
      %v2573 = vpop.f32.mrf.mxu0
      %v2574 = vadd.f32 0.0, %v2573
      %v2575 = vpop.f32.mrf.mxu0
      %v2576 = vpop.f32.mrf.mxu0
      %v2577 = vadd.f32 0.0, %v2576
      %v2578 = vpop.f32.mrf.mxu0
      %2579 = vmatprep.mubr.bf16.mxu0 0
      %2580 = vmatmul.mubr.bf16.gmra.mxu0 %v2477
      %v2581 = vpop.f32.mrf.mxu0
      %v2582 = vadd.f32 0.0, %v2581
      %v2583 = vpop.f32.mrf.mxu0
      %v2584 = vpop.f32.mrf.mxu0
      %v2585 = vadd.f32 0.0, %v2584
      %v2586 = vpop.f32.mrf.mxu0
      %2587 = vmatprep.mubr.bf16.mxu0 0
      %2588 = vmatmul.mubr.bf16.gmra.mxu0 %v2480
      %v2589 = vpop.f32.mrf.mxu0
      %v2590 = vadd.f32 0.0, %v2589
      %v2591 = vpop.f32.mrf.mxu0
      %v2592 = vpop.f32.mrf.mxu0
      %v2593 = vadd.f32 0.0, %v2592
      %v2594 = vpop.f32.mrf.mxu0
      %2595 = vmatprep.mubr.bf16.mxu0 0
      %2596 = vmatmul.mubr.bf16.gmra.mxu0 %v2483
      %v2597 = vpop.f32.mrf.mxu0
      %v2598 = vadd.f32 0.0, %v2597
      %v2599 = vpop.f32.mrf.mxu0
      %v2600 = vpop.f32.mrf.mxu0
      %v2601 = vadd.f32 0.0, %v2600
      %v2602 = vpop.f32.mrf.mxu0
      %2603 = vmatprep.mubr.bf16.mxu0 0
      %2604 = vmatmul.mubr.bf16.gmra.mxu0 %v2486
      %v2605 = vpop.f32.mrf.mxu0
      %v2606 = vadd.f32 0.0, %v2605
      %v2607 = vpop.f32.mrf.mxu0
      %v2608 = vpop.f32.mrf.mxu0
      %v2609 = vadd.f32 0.0, %v2608
      %v2610 = vpop.f32.mrf.mxu0
      %2611 = vmatprep.mubr.bf16.mxu0 0
      %2612 = vmatmul.mubr.bf16.gmra.mxu0 %v2489
      %v2613 = vpop.f32.mrf.mxu0
      %v2614 = vadd.f32 0.0, %v2613
      %v2615 = vpop.f32.mrf.mxu0
      %v2616 = vpop.f32.mrf.mxu0
      %v2617 = vadd.f32 0.0, %v2616
      %v2618 = vpop.f32.mrf.mxu0
      %2619 = vmatprep.mubr.bf16.mxu0 0
      %2620 = vmatmul.mubr.bf16.gmra.mxu0 %v2492
      %v2621 = vpop.f32.mrf.mxu0
      %v2622 = vadd.f32 0.0, %v2621
      %v2623 = vpop.f32.mrf.mxu0
      %v2624 = vpop.f32.mrf.mxu0
      %v2625 = vadd.f32 0.0, %v2624
      %v2626 = vpop.f32.mrf.mxu0
      %2627 = vmatprep.mubr.bf16.mxu0 0
      %2628 = vmatmul.mubr.bf16.gmra.mxu0 %v2495
      %v2629 = vpop.f32.mrf.mxu0
      %v2630 = vadd.f32 0.0, %v2629
      %v2631 = vpop.f32.mrf.mxu0
      %v2632 = vpop.f32.mrf.mxu0
      %v2633 = vadd.f32 0.0, %v2632
      %v2634 = vpop.f32.mrf.mxu0
      %2635 = vmatprep.mubr.bf16.mxu0 0
      %2636 = vmatmul.mubr.bf16.gmra.mxu0 %v2498
      %v2637 = vpop.f32.mrf.mxu0
      %v2638 = vadd.f32 0.0, %v2637
      %v2639 = vpop.f32.mrf.mxu0
      %v2640 = vpop.f32.mrf.mxu0
      %v2641 = vadd.f32 0.0, %v2640
      %v2642 = vpop.f32.mrf.mxu0
      %2643 = vmatprep.mubr.bf16.mxu0 0
      %2644 = vmatmul.mubr.bf16.gmra.mxu0 %v2501
      %v2645 = vpop.f32.mrf.mxu0
      %v2646 = vadd.f32 0.0, %v2645
      %v2647 = vpop.f32.mrf.mxu0
      %v2648 = vpop.f32.mrf.mxu0
      %v2649 = vadd.f32 0.0, %v2648
      %v2650 = vpop.f32.mrf.mxu0
      %2651 = vmatprep.mubr.bf16.mxu0 0
      %2652 = vmatmul.mubr.bf16.gmra.mxu0 %v2504
      %v2653 = vpop.f32.mrf.mxu0
      %v2654 = vadd.f32 0.0, %v2653
      %v2655 = vpop.f32.mrf.mxu0
      %v2656 = vpop.f32.mrf.mxu0
      %v2657 = vadd.f32 0.0, %v2656
      %v2658 = vpop.f32.mrf.mxu0
      %2659 = vmatprep.mubr.bf16.mxu0 0
      %2660 = vmatmul.mubr.bf16.gmra.mxu0 %v2507
      %v2661 = vpop.f32.mrf.mxu0
      %v2662 = vadd.f32 0.0, %v2661
      %v2663 = vpop.f32.mrf.mxu0
      %v2664 = vpop.f32.mrf.mxu0
      %v2665 = vadd.f32 0.0, %v2664
      %v2666 = vpop.f32.mrf.mxu0
      %2667 = vmatprep.mubr.bf16.mxu0 0
      %2668 = vmatmul.mubr.bf16.gmra.mxu0 %v2510
      %v2669 = vpop.f32.mrf.mxu0
      %v2670 = vadd.f32 0.0, %v2669
      %v2671 = vpop.f32.mrf.mxu0
      %v2672 = vpop.f32.mrf.mxu0
      %v2673 = vadd.f32 0.0, %v2672
      %v2674 = vpop.f32.mrf.mxu0
      %2675 = vdwg.mxu0
      %v2676 = vadd.f32 %v2414, %v2550
      %v2677 = vadd.f32 %v2415, %v2553
      %v2678 = vadd.f32 %v2416, %v2558
      %v2679 = vadd.f32 %v2417, %v2561
      %v2680 = vadd.f32 %v2418, %v2566
      %v2681 = vadd.f32 %v2419, %v2569
      %v2682 = vadd.f32 %v2420, %v2574
      %v2683 = vadd.f32 %v2421, %v2577
      %v2684 = vadd.f32 %v2422, %v2582
      %v2685 = vadd.f32 %v2423, %v2585
      %v2686 = vadd.f32 %v2424, %v2590
      %v2687 = vadd.f32 %v2425, %v2593
      %v2688 = vadd.f32 %v2426, %v2598
      %v2689 = vadd.f32 %v2427, %v2601
      %v2690 = vadd.f32 %v2428, %v2606
      %v2691 = vadd.f32 %v2429, %v2609
      %v2692 = vadd.f32 %v2430, %v2614
      %v2693 = vadd.f32 %v2431, %v2617
      %v2694 = vadd.f32 %v2432, %v2622
      %v2695 = vadd.f32 %v2433, %v2625
      %v2696 = vadd.f32 %v2434, %v2630
      %v2697 = vadd.f32 %v2435, %v2633
      %v2698 = vadd.f32 %v2436, %v2638
      %v2699 = vadd.f32 %v2437, %v2641
      %v2700 = vadd.f32 %v2438, %v2646
      %v2701 = vadd.f32 %v2439, %v2649
      %v2702 = vadd.f32 %v2440, %v2654
      %v2703 = vadd.f32 %v2441, %v2657
      %v2704 = vadd.f32 %v2442, %v2662
      %v2705 = vadd.f32 %v2443, %v2665
      %v2706 = vadd.f32 %v2444, %v2670
      %v2707 = vadd.f32 %v2445, %v2673
      %2708 = vst.msk [vmem:[#allocation3] sm:$0xff] %vm558, %v2676
      %2709 = vst.msk [vmem:[#allocation3 + $0x8] sm:$0xff] %vm558, %v2677
      %2710 = vst.msk [vmem:[#allocation3 + $0x10] sm:$0xff] %vm558, %v2678
      %2711 = vst.msk [vmem:[#allocation3 + $0x18] sm:$0xff] %vm558, %v2679
      %2712 = vst.msk [vmem:[#allocation3 + $0x20] sm:$0xff] %vm558, %v2680
      %2713 = vst.msk [vmem:[#allocation3 + $0x28] sm:$0xff] %vm558, %v2681
      %2714 = vst.msk [vmem:[#allocation3 + $0x30] sm:$0xff] %vm558, %v2682
      %2715 = vst.msk [vmem:[#allocation3 + $0x38] sm:$0xff] %vm558, %v2683
      %2716 = vst.msk [vmem:[#allocation3 + $0x40] sm:$0xff] %vm558, %v2684
      %2717 = vst.msk [vmem:[#allocation3 + $0x48] sm:$0xff] %vm558, %v2685
      %2718 = vst.msk [vmem:[#allocation3 + $0x50] sm:$0xff] %vm558, %v2686
      %2719 = vst.msk [vmem:[#allocation3 + $0x58] sm:$0xff] %vm558, %v2687
      %2720 = vst.msk [vmem:[#allocation3 + $0x60] sm:$0xff] %vm558, %v2688
      %2721 = vst.msk [vmem:[#allocation3 + $0x68] sm:$0xff] %vm558, %v2689
      %2722 = vst.msk [vmem:[#allocation3 + $0x70] sm:$0xff] %vm558, %v2690
      %2723 = vst.msk [vmem:[#allocation3 + $0x78] sm:$0xff] %vm558, %v2691
      %2724 = vst.msk [vmem:[#allocation3 + $0x80] sm:$0xff] %vm558, %v2692
      %2725 = vst.msk [vmem:[#allocation3 + $0x88] sm:$0xff] %vm558, %v2693
      %2726 = vst.msk [vmem:[#allocation3 + $0x90] sm:$0xff] %vm558, %v2694
      %2727 = vst.msk [vmem:[#allocation3 + $0x98] sm:$0xff] %vm558, %v2695
      %2728 = vst.msk [vmem:[#allocation3 + $0xa0] sm:$0xff] %vm558, %v2696
      %2729 = vst.msk [vmem:[#allocation3 + $0xa8] sm:$0xff] %vm558, %v2697
      %2730 = vst.msk [vmem:[#allocation3 + $0xb0] sm:$0xff] %vm558, %v2698
      %2731 = vst.msk [vmem:[#allocation3 + $0xb8] sm:$0xff] %vm558, %v2699
      %2732 = vst.msk [vmem:[#allocation3 + $0xc0] sm:$0xff] %vm558, %v2700
      %2733 = vst.msk [vmem:[#allocation3 + $0xc8] sm:$0xff] %vm558, %v2701
      %2734 = vst.msk [vmem:[#allocation3 + $0xd0] sm:$0xff] %vm558, %v2702
      %2735 = vst.msk [vmem:[#allocation3 + $0xd8] sm:$0xff] %vm558, %v2703
      %2736 = vst.msk [vmem:[#allocation3 + $0xe0] sm:$0xff] %vm558, %v2704
      %2737 = vst.msk [vmem:[#allocation3 + $0xe8] sm:$0xff] %vm558, %v2705
      %2738 = vst.msk [vmem:[#allocation3 + $0xf0] sm:$0xff] %vm558, %v2706
      %2739 = vst.msk [vmem:[#allocation3 + $0xf8] sm:$0xff] %vm558, %v2707
      %s2740 = scalar_lea.vmem [#allocation2], 48
      %v2741 = vld [vmem:[%s2740] sm:$0xff]
      %v2742 = vld [vmem:[%s2740 + $0x8] sm:$0xff]
      %v2743 = vld [vmem:[%s2740 + $0x18] sm:$0xff]
      %v2744 = vld [vmem:[%s2740 + $0x20] sm:$0xff]
      %v2745 = vld [vmem:[%s2740 + $0x30] sm:$0xff]
      %v2746 = vld [vmem:[%s2740 + $0x38] sm:$0xff]
      %v2747 = vld [vmem:[%s2740 + $0x48] sm:$0xff]
      %v2748 = vld [vmem:[%s2740 + $0x50] sm:$0xff]
      %v2749 = vld [vmem:[%s2740 + $0x60] sm:$0xff]
      %v2750 = vld [vmem:[%s2740 + $0x68] sm:$0xff]
      %v2751 = vld [vmem:[%s2740 + $0x78] sm:$0xff]
      %v2752 = vld [vmem:[%s2740 + $0x80] sm:$0xff]
      %v2753 = vld [vmem:[%s2740 + $0x90] sm:$0xff]
      %v2754 = vld [vmem:[%s2740 + $0x98] sm:$0xff]
      %v2755 = vld [vmem:[%s2740 + $0xa8] sm:$0xff]
      %v2756 = vld [vmem:[%s2740 + $0xb0] sm:$0xff]
      %v2757 = vld [vmem:[%s2740 + $0xc0] sm:$0xff]
      %v2758 = vld [vmem:[%s2740 + $0xc8] sm:$0xff]
      %v2759 = vld [vmem:[%s2740 + $0xd8] sm:$0xff]
      %v2760 = vld [vmem:[%s2740 + $0xe0] sm:$0xff]
      %v2761 = vld [vmem:[%s2740 + $0xf0] sm:$0xff]
      %v2762 = vld [vmem:[%s2740 + $0xf8] sm:$0xff]
      %v2763 = vld [vmem:[%s2740 + $0x108] sm:$0xff]
      %v2764 = vld [vmem:[%s2740 + $0x110] sm:$0xff]
      %v2765 = vld [vmem:[%s2740 + $0x120] sm:$0xff]
      %v2766 = vld [vmem:[%s2740 + $0x128] sm:$0xff]
      %v2767 = vld [vmem:[%s2740 + $0x138] sm:$0xff]
      %v2768 = vld [vmem:[%s2740 + $0x140] sm:$0xff]
      %v2769 = vld [vmem:[%s2740 + $0x150] sm:$0xff]
      %v2770 = vld [vmem:[%s2740 + $0x158] sm:$0xff]
      %v2771 = vld [vmem:[%s2740 + $0x168] sm:$0xff]
      %v2772 = vld [vmem:[%s2740 + $0x170] sm:$0xff]
      %v2773 = vld [vmem:[#allocation3] sm:$0xff]
      %v2774 = vld [vmem:[#allocation3 + $0x8] sm:$0xff]
      %v2775 = vld [vmem:[#allocation3 + $0x10] sm:$0xff]
      %v2776 = vld [vmem:[#allocation3 + $0x18] sm:$0xff]
      %v2777 = vld [vmem:[#allocation3 + $0x20] sm:$0xff]
      %v2778 = vld [vmem:[#allocation3 + $0x28] sm:$0xff]
      %v2779 = vld [vmem:[#allocation3 + $0x30] sm:$0xff]
      %v2780 = vld [vmem:[#allocation3 + $0x38] sm:$0xff]
      %v2781 = vld [vmem:[#allocation3 + $0x40] sm:$0xff]
      %v2782 = vld [vmem:[#allocation3 + $0x48] sm:$0xff]
      %v2783 = vld [vmem:[#allocation3 + $0x50] sm:$0xff]
      %v2784 = vld [vmem:[#allocation3 + $0x58] sm:$0xff]
      %v2785 = vld [vmem:[#allocation3 + $0x60] sm:$0xff]
      %v2786 = vld [vmem:[#allocation3 + $0x68] sm:$0xff]
      %v2787 = vld [vmem:[#allocation3 + $0x70] sm:$0xff]
      %v2788 = vld [vmem:[#allocation3 + $0x78] sm:$0xff]
      %v2789 = vld [vmem:[#allocation3 + $0x80] sm:$0xff]
      %v2790 = vld [vmem:[#allocation3 + $0x88] sm:$0xff]
      %v2791 = vld [vmem:[#allocation3 + $0x90] sm:$0xff]
      %v2792 = vld [vmem:[#allocation3 + $0x98] sm:$0xff]
      %v2793 = vld [vmem:[#allocation3 + $0xa0] sm:$0xff]
      %v2794 = vld [vmem:[#allocation3 + $0xa8] sm:$0xff]
      %v2795 = vld [vmem:[#allocation3 + $0xb0] sm:$0xff]
      %v2796 = vld [vmem:[#allocation3 + $0xb8] sm:$0xff]
      %v2797 = vld [vmem:[#allocation3 + $0xc0] sm:$0xff]
      %v2798 = vld [vmem:[#allocation3 + $0xc8] sm:$0xff]
      %v2799 = vld [vmem:[#allocation3 + $0xd0] sm:$0xff]
      %v2800 = vld [vmem:[#allocation3 + $0xd8] sm:$0xff]
      %v2801 = vld [vmem:[#allocation3 + $0xe0] sm:$0xff]
      %v2802 = vld [vmem:[#allocation3 + $0xe8] sm:$0xff]
      %v2803 = vld [vmem:[#allocation3 + $0xf0] sm:$0xff]
      %v2804 = vld [vmem:[#allocation3 + $0xf8] sm:$0xff]
      %v2805 = vpack.c.bf16 %v2742, %v2741
      %v2806 = vpack.c.bf16 %v2744, %v2743
      %v2807 = vpack.c.bf16 %v2746, %v2745
      %v2808 = vpack.c.bf16 %v2748, %v2747
      %v2809 = vpack.c.bf16 %v2750, %v2749
      %v2810 = vpack.c.bf16 %v2752, %v2751
      %v2811 = vpack.c.bf16 %v2754, %v2753
      %v2812 = vpack.c.bf16 %v2756, %v2755
      %v2813 = vpack.c.bf16 %v2758, %v2757
      %v2814 = vpack.c.bf16 %v2760, %v2759
      %v2815 = vpack.c.bf16 %v2762, %v2761
      %v2816 = vpack.c.bf16 %v2764, %v2763
      %v2817 = vpack.c.bf16 %v2766, %v2765
      %v2818 = vpack.c.bf16 %v2768, %v2767
      %v2819 = vpack.c.bf16 %v2770, %v2769
      %v2820 = vpack.c.bf16 %v2772, %v2771
      %s2821 = scalar_lea.vmem %s303, 24
      %v2822 = vld [vmem:[%s2821] sm:$0xf]
      %v2824 = vsel %vm558, %v2805, 0
      %v2827 = vsel %vm558, %v2806, 0
      %v2830 = vsel %vm558, %v2807, 0
      %v2833 = vsel %vm558, %v2808, 0
      %v2836 = vsel %vm558, %v2809, 0
      %v2839 = vsel %vm558, %v2810, 0
      %v2842 = vsel %vm558, %v2811, 0
      %v2845 = vsel %vm558, %v2812, 0
      %v2848 = vsel %vm558, %v2813, 0
      %v2851 = vsel %vm558, %v2814, 0
      %v2854 = vsel %vm558, %v2815, 0
      %v2857 = vsel %vm558, %v2816, 0
      %v2860 = vsel %vm558, %v2817, 0
      %v2863 = vsel %vm558, %v2818, 0
      %v2866 = vsel %vm558, %v2819, 0
      %v2869 = vsel %vm558, %v2820, 0
      %v2872 = vsel %vm720, %v2822, 0
      %2874 = vmatprep.subr.bf16.mxu0 0
      %2875 = vmatpush1.bf16.msra.mxu0 0
      %2876 = vmatprep.subr.bf16.mxu0 0
      %2877 = vmatpush1.bf16.msra.mxu0 0
      %2878 = vmatprep.subr.bf16.mxu0 0
      %2879 = vmatpush1.bf16.msra.mxu0 0
      %2880 = vmatprep.subr.bf16.mxu0 0
      %2881 = vmatpush1.bf16.msra.mxu0 0
      %2882 = vmatprep.subr.bf16.mxu0 0
      %2883 = vmatpush1.bf16.msra.mxu0 0
      %2884 = vmatprep.subr.bf16.mxu0 0
      %2885 = vmatpush1.bf16.msra.mxu0 0
      %2886 = vmatprep.subr.bf16.mxu0 0
      %2887 = vmatpush1.bf16.msra.mxu0 0
      %2888 = vmatprep.subr.bf16.mxu0 0
      %2889 = vmatpush1.bf16.msra.mxu0 %v2872
      %2890 = vmatprep.subr.bf16.mxu0 0
      %2891 = vmatpush2.bf16.msra.mxu0 0
      %2892 = vmatprep.subr.bf16.mxu0 0
      %2893 = vmatpush2.bf16.msra.mxu0 0
      %2894 = vmatprep.subr.bf16.mxu0 0
      %2895 = vmatpush2.bf16.msra.mxu0 0
      %2896 = vmatprep.subr.bf16.mxu0 0
      %2897 = vmatpush2.bf16.msra.mxu0 0
      %2898 = vmatprep.subr.bf16.mxu0 0
      %2899 = vmatpush2.bf16.msra.mxu0 0
      %2900 = vmatprep.subr.bf16.mxu0 0
      %2901 = vmatpush2.bf16.msra.mxu0 0
      %2902 = vmatprep.subr.bf16.mxu0 0
      %2903 = vmatpush2.bf16.msra.mxu0 0
      %2904 = vmatprep.subr.bf16.mxu0 0
      %2905 = vmatpush2.bf16.msra.mxu0 0
      %2906 = vmatprep.mubr.bf16.mxu0 0
      %2907 = vmatmul.mubr.bf16.gmra.mxu0 %v2824
      %v2908 = vpop.f32.mrf.mxu0
      %v2909 = vadd.f32 0.0, %v2908
      %v2910 = vpop.f32.mrf.mxu0
      %v2911 = vpop.f32.mrf.mxu0
      %v2912 = vadd.f32 0.0, %v2911
      %v2913 = vpop.f32.mrf.mxu0
      %2914 = vmatprep.mubr.bf16.mxu0 0
      %2915 = vmatmul.mubr.bf16.gmra.mxu0 %v2827
      %v2916 = vpop.f32.mrf.mxu0
      %v2917 = vadd.f32 0.0, %v2916
      %v2918 = vpop.f32.mrf.mxu0
      %v2919 = vpop.f32.mrf.mxu0
      %v2920 = vadd.f32 0.0, %v2919
      %v2921 = vpop.f32.mrf.mxu0
      %2922 = vmatprep.mubr.bf16.mxu0 0
      %2923 = vmatmul.mubr.bf16.gmra.mxu0 %v2830
      %v2924 = vpop.f32.mrf.mxu0
      %v2925 = vadd.f32 0.0, %v2924
      %v2926 = vpop.f32.mrf.mxu0
      %v2927 = vpop.f32.mrf.mxu0
      %v2928 = vadd.f32 0.0, %v2927
      %v2929 = vpop.f32.mrf.mxu0
      %2930 = vmatprep.mubr.bf16.mxu0 0
      %2931 = vmatmul.mubr.bf16.gmra.mxu0 %v2833
      %v2932 = vpop.f32.mrf.mxu0
      %v2933 = vadd.f32 0.0, %v2932
      %v2934 = vpop.f32.mrf.mxu0
      %v2935 = vpop.f32.mrf.mxu0
      %v2936 = vadd.f32 0.0, %v2935
      %v2937 = vpop.f32.mrf.mxu0
      %2938 = vmatprep.mubr.bf16.mxu0 0
      %2939 = vmatmul.mubr.bf16.gmra.mxu0 %v2836
      %v2940 = vpop.f32.mrf.mxu0
      %v2941 = vadd.f32 0.0, %v2940
      %v2942 = vpop.f32.mrf.mxu0
      %v2943 = vpop.f32.mrf.mxu0
      %v2944 = vadd.f32 0.0, %v2943
      %v2945 = vpop.f32.mrf.mxu0
      %2946 = vmatprep.mubr.bf16.mxu0 0
      %2947 = vmatmul.mubr.bf16.gmra.mxu0 %v2839
      %v2948 = vpop.f32.mrf.mxu0
      %v2949 = vadd.f32 0.0, %v2948
      %v2950 = vpop.f32.mrf.mxu0
      %v2951 = vpop.f32.mrf.mxu0
      %v2952 = vadd.f32 0.0, %v2951
      %v2953 = vpop.f32.mrf.mxu0
      %2954 = vmatprep.mubr.bf16.mxu0 0
      %2955 = vmatmul.mubr.bf16.gmra.mxu0 %v2842
      %v2956 = vpop.f32.mrf.mxu0
      %v2957 = vadd.f32 0.0, %v2956
      %v2958 = vpop.f32.mrf.mxu0
      %v2959 = vpop.f32.mrf.mxu0
      %v2960 = vadd.f32 0.0, %v2959
      %v2961 = vpop.f32.mrf.mxu0
      %2962 = vmatprep.mubr.bf16.mxu0 0
      %2963 = vmatmul.mubr.bf16.gmra.mxu0 %v2845
      %v2964 = vpop.f32.mrf.mxu0
      %v2965 = vadd.f32 0.0, %v2964
      %v2966 = vpop.f32.mrf.mxu0
      %v2967 = vpop.f32.mrf.mxu0
      %v2968 = vadd.f32 0.0, %v2967
      %v2969 = vpop.f32.mrf.mxu0
      %2970 = vmatprep.mubr.bf16.mxu0 0
      %2971 = vmatmul.mubr.bf16.gmra.mxu0 %v2848
      %v2972 = vpop.f32.mrf.mxu0
      %v2973 = vadd.f32 0.0, %v2972
      %v2974 = vpop.f32.mrf.mxu0
      %v2975 = vpop.f32.mrf.mxu0
      %v2976 = vadd.f32 0.0, %v2975
      %v2977 = vpop.f32.mrf.mxu0
      %2978 = vmatprep.mubr.bf16.mxu0 0
      %2979 = vmatmul.mubr.bf16.gmra.mxu0 %v2851
      %v2980 = vpop.f32.mrf.mxu0
      %v2981 = vadd.f32 0.0, %v2980
      %v2982 = vpop.f32.mrf.mxu0
      %v2983 = vpop.f32.mrf.mxu0
      %v2984 = vadd.f32 0.0, %v2983
      %v2985 = vpop.f32.mrf.mxu0
      %2986 = vmatprep.mubr.bf16.mxu0 0
      %2987 = vmatmul.mubr.bf16.gmra.mxu0 %v2854
      %v2988 = vpop.f32.mrf.mxu0
      %v2989 = vadd.f32 0.0, %v2988
      %v2990 = vpop.f32.mrf.mxu0
      %v2991 = vpop.f32.mrf.mxu0
      %v2992 = vadd.f32 0.0, %v2991
      %v2993 = vpop.f32.mrf.mxu0
      %2994 = vmatprep.mubr.bf16.mxu0 0
      %2995 = vmatmul.mubr.bf16.gmra.mxu0 %v2857
      %v2996 = vpop.f32.mrf.mxu0
      %v2997 = vadd.f32 0.0, %v2996
      %v2998 = vpop.f32.mrf.mxu0
      %v2999 = vpop.f32.mrf.mxu0
      %v3000 = vadd.f32 0.0, %v2999
      %v3001 = vpop.f32.mrf.mxu0
      %3002 = vmatprep.mubr.bf16.mxu0 0
      %3003 = vmatmul.mubr.bf16.gmra.mxu0 %v2860
      %v3004 = vpop.f32.mrf.mxu0
      %v3005 = vadd.f32 0.0, %v3004
      %v3006 = vpop.f32.mrf.mxu0
      %v3007 = vpop.f32.mrf.mxu0
      %v3008 = vadd.f32 0.0, %v3007
      %v3009 = vpop.f32.mrf.mxu0
      %3010 = vmatprep.mubr.bf16.mxu0 0
      %3011 = vmatmul.mubr.bf16.gmra.mxu0 %v2863
      %v3012 = vpop.f32.mrf.mxu0
      %v3013 = vadd.f32 0.0, %v3012
      %v3014 = vpop.f32.mrf.mxu0
      %v3015 = vpop.f32.mrf.mxu0
      %v3016 = vadd.f32 0.0, %v3015
      %v3017 = vpop.f32.mrf.mxu0
      %3018 = vmatprep.mubr.bf16.mxu0 0
      %3019 = vmatmul.mubr.bf16.gmra.mxu0 %v2866
      %v3020 = vpop.f32.mrf.mxu0
      %v3021 = vadd.f32 0.0, %v3020
      %v3022 = vpop.f32.mrf.mxu0
      %v3023 = vpop.f32.mrf.mxu0
      %v3024 = vadd.f32 0.0, %v3023
      %v3025 = vpop.f32.mrf.mxu0
      %3026 = vmatprep.mubr.bf16.mxu0 0
      %3027 = vmatmul.mubr.bf16.gmra.mxu0 %v2869
      %v3028 = vpop.f32.mrf.mxu0
      %v3029 = vadd.f32 0.0, %v3028
      %v3030 = vpop.f32.mrf.mxu0
      %v3031 = vpop.f32.mrf.mxu0
      %v3032 = vadd.f32 0.0, %v3031
      %v3033 = vpop.f32.mrf.mxu0
      %3034 = vdwg.mxu0
      %v3035 = vadd.f32 %v2773, %v2909
      %v3036 = vadd.f32 %v2774, %v2912
      %v3037 = vadd.f32 %v2775, %v2917
      %v3038 = vadd.f32 %v2776, %v2920
      %v3039 = vadd.f32 %v2777, %v2925
      %v3040 = vadd.f32 %v2778, %v2928
      %v3041 = vadd.f32 %v2779, %v2933
      %v3042 = vadd.f32 %v2780, %v2936
      %v3043 = vadd.f32 %v2781, %v2941
      %v3044 = vadd.f32 %v2782, %v2944
      %v3045 = vadd.f32 %v2783, %v2949
      %v3046 = vadd.f32 %v2784, %v2952
      %v3047 = vadd.f32 %v2785, %v2957
      %v3048 = vadd.f32 %v2786, %v2960
      %v3049 = vadd.f32 %v2787, %v2965
      %v3050 = vadd.f32 %v2788, %v2968
      %v3051 = vadd.f32 %v2789, %v2973
      %v3052 = vadd.f32 %v2790, %v2976
      %v3053 = vadd.f32 %v2791, %v2981
      %v3054 = vadd.f32 %v2792, %v2984
      %v3055 = vadd.f32 %v2793, %v2989
      %v3056 = vadd.f32 %v2794, %v2992
      %v3057 = vadd.f32 %v2795, %v2997
      %v3058 = vadd.f32 %v2796, %v3000
      %v3059 = vadd.f32 %v2797, %v3005
      %v3060 = vadd.f32 %v2798, %v3008
      %v3061 = vadd.f32 %v2799, %v3013
      %v3062 = vadd.f32 %v2800, %v3016
      %v3063 = vadd.f32 %v2801, %v3021
      %v3064 = vadd.f32 %v2802, %v3024
      %v3065 = vadd.f32 %v2803, %v3029
      %v3066 = vadd.f32 %v2804, %v3032
      %3067 = vst.msk [vmem:[#allocation3] sm:$0xff] %vm558, %v3035
      %3068 = vst.msk [vmem:[#allocation3 + $0x8] sm:$0xff] %vm558, %v3036
      %3069 = vst.msk [vmem:[#allocation3 + $0x10] sm:$0xff] %vm558, %v3037
      %3070 = vst.msk [vmem:[#allocation3 + $0x18] sm:$0xff] %vm558, %v3038
      %3071 = vst.msk [vmem:[#allocation3 + $0x20] sm:$0xff] %vm558, %v3039
      %3072 = vst.msk [vmem:[#allocation3 + $0x28] sm:$0xff] %vm558, %v3040
      %3073 = vst.msk [vmem:[#allocation3 + $0x30] sm:$0xff] %vm558, %v3041
      %3074 = vst.msk [vmem:[#allocation3 + $0x38] sm:$0xff] %vm558, %v3042
      %3075 = vst.msk [vmem:[#allocation3 + $0x40] sm:$0xff] %vm558, %v3043
      %3076 = vst.msk [vmem:[#allocation3 + $0x48] sm:$0xff] %vm558, %v3044
      %3077 = vst.msk [vmem:[#allocation3 + $0x50] sm:$0xff] %vm558, %v3045
      %3078 = vst.msk [vmem:[#allocation3 + $0x58] sm:$0xff] %vm558, %v3046
      %3079 = vst.msk [vmem:[#allocation3 + $0x60] sm:$0xff] %vm558, %v3047
      %3080 = vst.msk [vmem:[#allocation3 + $0x68] sm:$0xff] %vm558, %v3048
      %3081 = vst.msk [vmem:[#allocation3 + $0x70] sm:$0xff] %vm558, %v3049
      %3082 = vst.msk [vmem:[#allocation3 + $0x78] sm:$0xff] %vm558, %v3050
      %3083 = vst.msk [vmem:[#allocation3 + $0x80] sm:$0xff] %vm558, %v3051
      %3084 = vst.msk [vmem:[#allocation3 + $0x88] sm:$0xff] %vm558, %v3052
      %3085 = vst.msk [vmem:[#allocation3 + $0x90] sm:$0xff] %vm558, %v3053
      %3086 = vst.msk [vmem:[#allocation3 + $0x98] sm:$0xff] %vm558, %v3054
      %3087 = vst.msk [vmem:[#allocation3 + $0xa0] sm:$0xff] %vm558, %v3055
      %3088 = vst.msk [vmem:[#allocation3 + $0xa8] sm:$0xff] %vm558, %v3056
      %3089 = vst.msk [vmem:[#allocation3 + $0xb0] sm:$0xff] %vm558, %v3057
      %3090 = vst.msk [vmem:[#allocation3 + $0xb8] sm:$0xff] %vm558, %v3058
      %3091 = vst.msk [vmem:[#allocation3 + $0xc0] sm:$0xff] %vm558, %v3059
      %3092 = vst.msk [vmem:[#allocation3 + $0xc8] sm:$0xff] %vm558, %v3060
      %3093 = vst.msk [vmem:[#allocation3 + $0xd0] sm:$0xff] %vm558, %v3061
      %3094 = vst.msk [vmem:[#allocation3 + $0xd8] sm:$0xff] %vm558, %v3062
      %3095 = vst.msk [vmem:[#allocation3 + $0xe0] sm:$0xff] %vm558, %v3063
      %3096 = vst.msk [vmem:[#allocation3 + $0xe8] sm:$0xff] %vm558, %v3064
      %3097 = vst.msk [vmem:[#allocation3 + $0xf0] sm:$0xff] %vm558, %v3065
      %3098 = vst.msk [vmem:[#allocation3 + $0xf8] sm:$0xff] %vm558, %v3066
      %v3099 = vld [vmem:[%s2740 + $0x1] sm:$0xff]
      %v3100 = vld [vmem:[%s2740 + $0x9] sm:$0xff]
      %v3101 = vld [vmem:[%s2740 + $0x19] sm:$0xff]
      %v3102 = vld [vmem:[%s2740 + $0x21] sm:$0xff]
      %v3103 = vld [vmem:[%s2740 + $0x31] sm:$0xff]
      %v3104 = vld [vmem:[%s2740 + $0x39] sm:$0xff]
      %v3105 = vld [vmem:[%s2740 + $0x49] sm:$0xff]
      %v3106 = vld [vmem:[%s2740 + $0x51] sm:$0xff]
      %v3107 = vld [vmem:[%s2740 + $0x61] sm:$0xff]
      %v3108 = vld [vmem:[%s2740 + $0x69] sm:$0xff]
      %v3109 = vld [vmem:[%s2740 + $0x79] sm:$0xff]
      %v3110 = vld [vmem:[%s2740 + $0x81] sm:$0xff]
      %v3111 = vld [vmem:[%s2740 + $0x91] sm:$0xff]
      %v3112 = vld [vmem:[%s2740 + $0x99] sm:$0xff]
      %v3113 = vld [vmem:[%s2740 + $0xa9] sm:$0xff]
      %v3114 = vld [vmem:[%s2740 + $0xb1] sm:$0xff]
      %v3115 = vld [vmem:[%s2740 + $0xc1] sm:$0xff]
      %v3116 = vld [vmem:[%s2740 + $0xc9] sm:$0xff]
      %v3117 = vld [vmem:[%s2740 + $0xd9] sm:$0xff]
      %v3118 = vld [vmem:[%s2740 + $0xe1] sm:$0xff]
      %v3119 = vld [vmem:[%s2740 + $0xf1] sm:$0xff]
      %v3120 = vld [vmem:[%s2740 + $0xf9] sm:$0xff]
      %v3121 = vld [vmem:[%s2740 + $0x109] sm:$0xff]
      %v3122 = vld [vmem:[%s2740 + $0x111] sm:$0xff]
      %v3123 = vld [vmem:[%s2740 + $0x121] sm:$0xff]
      %v3124 = vld [vmem:[%s2740 + $0x129] sm:$0xff]
      %v3125 = vld [vmem:[%s2740 + $0x139] sm:$0xff]
      %v3126 = vld [vmem:[%s2740 + $0x141] sm:$0xff]
      %v3127 = vld [vmem:[%s2740 + $0x151] sm:$0xff]
      %v3128 = vld [vmem:[%s2740 + $0x159] sm:$0xff]
      %v3129 = vld [vmem:[%s2740 + $0x169] sm:$0xff]
      %v3130 = vld [vmem:[%s2740 + $0x171] sm:$0xff]
      %v3131 = vld [vmem:[#allocation3] sm:$0xff]
      %v3132 = vld [vmem:[#allocation3 + $0x8] sm:$0xff]
      %v3133 = vld [vmem:[#allocation3 + $0x10] sm:$0xff]
      %v3134 = vld [vmem:[#allocation3 + $0x18] sm:$0xff]
      %v3135 = vld [vmem:[#allocation3 + $0x20] sm:$0xff]
      %v3136 = vld [vmem:[#allocation3 + $0x28] sm:$0xff]
      %v3137 = vld [vmem:[#allocation3 + $0x30] sm:$0xff]
      %v3138 = vld [vmem:[#allocation3 + $0x38] sm:$0xff]
      %v3139 = vld [vmem:[#allocation3 + $0x40] sm:$0xff]
      %v3140 = vld [vmem:[#allocation3 + $0x48] sm:$0xff]
      %v3141 = vld [vmem:[#allocation3 + $0x50] sm:$0xff]
      %v3142 = vld [vmem:[#allocation3 + $0x58] sm:$0xff]
      %v3143 = vld [vmem:[#allocation3 + $0x60] sm:$0xff]
      %v3144 = vld [vmem:[#allocation3 + $0x68] sm:$0xff]
      %v3145 = vld [vmem:[#allocation3 + $0x70] sm:$0xff]
      %v3146 = vld [vmem:[#allocation3 + $0x78] sm:$0xff]
      %v3147 = vld [vmem:[#allocation3 + $0x80] sm:$0xff]
      %v3148 = vld [vmem:[#allocation3 + $0x88] sm:$0xff]
      %v3149 = vld [vmem:[#allocation3 + $0x90] sm:$0xff]
      %v3150 = vld [vmem:[#allocation3 + $0x98] sm:$0xff]
      %v3151 = vld [vmem:[#allocation3 + $0xa0] sm:$0xff]
      %v3152 = vld [vmem:[#allocation3 + $0xa8] sm:$0xff]
      %v3153 = vld [vmem:[#allocation3 + $0xb0] sm:$0xff]
      %v3154 = vld [vmem:[#allocation3 + $0xb8] sm:$0xff]
      %v3155 = vld [vmem:[#allocation3 + $0xc0] sm:$0xff]
      %v3156 = vld [vmem:[#allocation3 + $0xc8] sm:$0xff]
      %v3157 = vld [vmem:[#allocation3 + $0xd0] sm:$0xff]
      %v3158 = vld [vmem:[#allocation3 + $0xd8] sm:$0xff]
      %v3159 = vld [vmem:[#allocation3 + $0xe0] sm:$0xff]
      %v3160 = vld [vmem:[#allocation3 + $0xe8] sm:$0xff]
      %v3161 = vld [vmem:[#allocation3 + $0xf0] sm:$0xff]
      %v3162 = vld [vmem:[#allocation3 + $0xf8] sm:$0xff]
      %v3163 = vpack.c.bf16 %v3100, %v3099
      %v3164 = vpack.c.bf16 %v3102, %v3101
      %v3165 = vpack.c.bf16 %v3104, %v3103
      %v3166 = vpack.c.bf16 %v3106, %v3105
      %v3167 = vpack.c.bf16 %v3108, %v3107
      %v3168 = vpack.c.bf16 %v3110, %v3109
      %v3169 = vpack.c.bf16 %v3112, %v3111
      %v3170 = vpack.c.bf16 %v3114, %v3113
      %v3171 = vpack.c.bf16 %v3116, %v3115
      %v3172 = vpack.c.bf16 %v3118, %v3117
      %v3173 = vpack.c.bf16 %v3120, %v3119
      %v3174 = vpack.c.bf16 %v3122, %v3121
      %v3175 = vpack.c.bf16 %v3124, %v3123
      %v3176 = vpack.c.bf16 %v3126, %v3125
      %v3177 = vpack.c.bf16 %v3128, %v3127
      %v3178 = vpack.c.bf16 %v3130, %v3129
      %s3179 = scalar_lea.vmem %s303, 28
      %v3180 = vld [vmem:[%s3179] sm:$0xf]
      %v3182 = vsel %vm558, %v3163, 0
      %v3185 = vsel %vm558, %v3164, 0
      %v3188 = vsel %vm558, %v3165, 0
      %v3191 = vsel %vm558, %v3166, 0
      %v3194 = vsel %vm558, %v3167, 0
      %v3197 = vsel %vm558, %v3168, 0
      %v3200 = vsel %vm558, %v3169, 0
      %v3203 = vsel %vm558, %v3170, 0
      %v3206 = vsel %vm558, %v3171, 0
      %v3209 = vsel %vm558, %v3172, 0
      %v3212 = vsel %vm558, %v3173, 0
      %v3215 = vsel %vm558, %v3174, 0
      %v3218 = vsel %vm558, %v3175, 0
      %v3221 = vsel %vm558, %v3176, 0
      %v3224 = vsel %vm558, %v3177, 0
      %v3227 = vsel %vm558, %v3178, 0
      %v3230 = vsel %vm720, %v3180, 0
      %3232 = vmatprep.subr.bf16.mxu0 0
      %3233 = vmatpush1.bf16.msra.mxu0 0
      %3234 = vmatprep.subr.bf16.mxu0 0
      %3235 = vmatpush1.bf16.msra.mxu0 0
      %3236 = vmatprep.subr.bf16.mxu0 0
      %3237 = vmatpush1.bf16.msra.mxu0 0
      %3238 = vmatprep.subr.bf16.mxu0 0
      %3239 = vmatpush1.bf16.msra.mxu0 0
      %3240 = vmatprep.subr.bf16.mxu0 0
      %3241 = vmatpush1.bf16.msra.mxu0 0
      %3242 = vmatprep.subr.bf16.mxu0 0
      %3243 = vmatpush1.bf16.msra.mxu0 0
      %3244 = vmatprep.subr.bf16.mxu0 0
      %3245 = vmatpush1.bf16.msra.mxu0 0
      %3246 = vmatprep.subr.bf16.mxu0 0
      %3247 = vmatpush1.bf16.msra.mxu0 %v3230
      %3248 = vmatprep.subr.bf16.mxu0 0
      %3249 = vmatpush2.bf16.msra.mxu0 0
      %3250 = vmatprep.subr.bf16.mxu0 0
      %3251 = vmatpush2.bf16.msra.mxu0 0
      %3252 = vmatprep.subr.bf16.mxu0 0
      %3253 = vmatpush2.bf16.msra.mxu0 0
      %3254 = vmatprep.subr.bf16.mxu0 0
      %3255 = vmatpush2.bf16.msra.mxu0 0
      %3256 = vmatprep.subr.bf16.mxu0 0
      %3257 = vmatpush2.bf16.msra.mxu0 0
      %3258 = vmatprep.subr.bf16.mxu0 0
      %3259 = vmatpush2.bf16.msra.mxu0 0
      %3260 = vmatprep.subr.bf16.mxu0 0
      %3261 = vmatpush2.bf16.msra.mxu0 0
      %3262 = vmatprep.subr.bf16.mxu0 0
      %3263 = vmatpush2.bf16.msra.mxu0 0
      %3264 = vmatprep.mubr.bf16.mxu0 0
      %3265 = vmatmul.mubr.bf16.gmra.mxu0 %v3182
      %v3266 = vpop.f32.mrf.mxu0
      %v3267 = vadd.f32 0.0, %v3266
      %v3268 = vpop.f32.mrf.mxu0
      %v3269 = vpop.f32.mrf.mxu0
      %v3270 = vadd.f32 0.0, %v3269
      %v3271 = vpop.f32.mrf.mxu0
      %3272 = vmatprep.mubr.bf16.mxu0 0
      %3273 = vmatmul.mubr.bf16.gmra.mxu0 %v3185
      %v3274 = vpop.f32.mrf.mxu0
      %v3275 = vadd.f32 0.0, %v3274
      %v3276 = vpop.f32.mrf.mxu0
      %v3277 = vpop.f32.mrf.mxu0
      %v3278 = vadd.f32 0.0, %v3277
      %v3279 = vpop.f32.mrf.mxu0
      %3280 = vmatprep.mubr.bf16.mxu0 0
      %3281 = vmatmul.mubr.bf16.gmra.mxu0 %v3188
      %v3282 = vpop.f32.mrf.mxu0
      %v3283 = vadd.f32 0.0, %v3282
      %v3284 = vpop.f32.mrf.mxu0
      %v3285 = vpop.f32.mrf.mxu0
      %v3286 = vadd.f32 0.0, %v3285
      %v3287 = vpop.f32.mrf.mxu0
      %3288 = vmatprep.mubr.bf16.mxu0 0
      %3289 = vmatmul.mubr.bf16.gmra.mxu0 %v3191
      %v3290 = vpop.f32.mrf.mxu0
      %v3291 = vadd.f32 0.0, %v3290
      %v3292 = vpop.f32.mrf.mxu0
      %v3293 = vpop.f32.mrf.mxu0
      %v3294 = vadd.f32 0.0, %v3293
      %v3295 = vpop.f32.mrf.mxu0
      %3296 = vmatprep.mubr.bf16.mxu0 0
      %3297 = vmatmul.mubr.bf16.gmra.mxu0 %v3194
      %v3298 = vpop.f32.mrf.mxu0
      %v3299 = vadd.f32 0.0, %v3298
      %v3300 = vpop.f32.mrf.mxu0
      %v3301 = vpop.f32.mrf.mxu0
      %v3302 = vadd.f32 0.0, %v3301
      %v3303 = vpop.f32.mrf.mxu0
      %3304 = vmatprep.mubr.bf16.mxu0 0
      %3305 = vmatmul.mubr.bf16.gmra.mxu0 %v3197
      %v3306 = vpop.f32.mrf.mxu0
      %v3307 = vadd.f32 0.0, %v3306
      %v3308 = vpop.f32.mrf.mxu0
      %v3309 = vpop.f32.mrf.mxu0
      %v3310 = vadd.f32 0.0, %v3309
      %v3311 = vpop.f32.mrf.mxu0
      %3312 = vmatprep.mubr.bf16.mxu0 0
      %3313 = vmatmul.mubr.bf16.gmra.mxu0 %v3200
      %v3314 = vpop.f32.mrf.mxu0
      %v3315 = vadd.f32 0.0, %v3314
      %v3316 = vpop.f32.mrf.mxu0
      %v3317 = vpop.f32.mrf.mxu0
      %v3318 = vadd.f32 0.0, %v3317
      %v3319 = vpop.f32.mrf.mxu0
      %3320 = vmatprep.mubr.bf16.mxu0 0
      %3321 = vmatmul.mubr.bf16.gmra.mxu0 %v3203
      %v3322 = vpop.f32.mrf.mxu0
      %v3323 = vadd.f32 0.0, %v3322
      %v3324 = vpop.f32.mrf.mxu0
      %v3325 = vpop.f32.mrf.mxu0
      %v3326 = vadd.f32 0.0, %v3325
      %v3327 = vpop.f32.mrf.mxu0
      %3328 = vmatprep.mubr.bf16.mxu0 0
      %3329 = vmatmul.mubr.bf16.gmra.mxu0 %v3206
      %v3330 = vpop.f32.mrf.mxu0
      %v3331 = vadd.f32 0.0, %v3330
      %v3332 = vpop.f32.mrf.mxu0
      %v3333 = vpop.f32.mrf.mxu0
      %v3334 = vadd.f32 0.0, %v3333
      %v3335 = vpop.f32.mrf.mxu0
      %3336 = vmatprep.mubr.bf16.mxu0 0
      %3337 = vmatmul.mubr.bf16.gmra.mxu0 %v3209
      %v3338 = vpop.f32.mrf.mxu0
      %v3339 = vadd.f32 0.0, %v3338
      %v3340 = vpop.f32.mrf.mxu0
      %v3341 = vpop.f32.mrf.mxu0
      %v3342 = vadd.f32 0.0, %v3341
      %v3343 = vpop.f32.mrf.mxu0
      %3344 = vmatprep.mubr.bf16.mxu0 0
      %3345 = vmatmul.mubr.bf16.gmra.mxu0 %v3212
      %v3346 = vpop.f32.mrf.mxu0
      %v3347 = vadd.f32 0.0, %v3346
      %v3348 = vpop.f32.mrf.mxu0
      %v3349 = vpop.f32.mrf.mxu0
      %v3350 = vadd.f32 0.0, %v3349
      %v3351 = vpop.f32.mrf.mxu0
      %3352 = vmatprep.mubr.bf16.mxu0 0
      %3353 = vmatmul.mubr.bf16.gmra.mxu0 %v3215
      %v3354 = vpop.f32.mrf.mxu0
      %v3355 = vadd.f32 0.0, %v3354
      %v3356 = vpop.f32.mrf.mxu0
      %v3357 = vpop.f32.mrf.mxu0
      %v3358 = vadd.f32 0.0, %v3357
      %v3359 = vpop.f32.mrf.mxu0
      %3360 = vmatprep.mubr.bf16.mxu0 0
      %3361 = vmatmul.mubr.bf16.gmra.mxu0 %v3218
      %v3362 = vpop.f32.mrf.mxu0
      %v3363 = vadd.f32 0.0, %v3362
      %v3364 = vpop.f32.mrf.mxu0
      %v3365 = vpop.f32.mrf.mxu0
      %v3366 = vadd.f32 0.0, %v3365
      %v3367 = vpop.f32.mrf.mxu0
      %3368 = vmatprep.mubr.bf16.mxu0 0
      %3369 = vmatmul.mubr.bf16.gmra.mxu0 %v3221
      %v3370 = vpop.f32.mrf.mxu0
      %v3371 = vadd.f32 0.0, %v3370
      %v3372 = vpop.f32.mrf.mxu0
      %v3373 = vpop.f32.mrf.mxu0
      %v3374 = vadd.f32 0.0, %v3373
      %v3375 = vpop.f32.mrf.mxu0
      %3376 = vmatprep.mubr.bf16.mxu0 0
      %3377 = vmatmul.mubr.bf16.gmra.mxu0 %v3224
      %v3378 = vpop.f32.mrf.mxu0
      %v3379 = vadd.f32 0.0, %v3378
      %v3380 = vpop.f32.mrf.mxu0
      %v3381 = vpop.f32.mrf.mxu0
      %v3382 = vadd.f32 0.0, %v3381
      %v3383 = vpop.f32.mrf.mxu0
      %3384 = vmatprep.mubr.bf16.mxu0 0
      %3385 = vmatmul.mubr.bf16.gmra.mxu0 %v3227
      %v3386 = vpop.f32.mrf.mxu0
      %v3387 = vadd.f32 0.0, %v3386
      %v3388 = vpop.f32.mrf.mxu0
      %v3389 = vpop.f32.mrf.mxu0
      %v3390 = vadd.f32 0.0, %v3389
      %v3391 = vpop.f32.mrf.mxu0
      %3392 = vdwg.mxu0
      %v3393 = vadd.f32 %v3131, %v3267
      %v3394 = vadd.f32 %v3132, %v3270
      %v3395 = vadd.f32 %v3133, %v3275
      %v3396 = vadd.f32 %v3134, %v3278
      %v3397 = vadd.f32 %v3135, %v3283
      %v3398 = vadd.f32 %v3136, %v3286
      %v3399 = vadd.f32 %v3137, %v3291
      %v3400 = vadd.f32 %v3138, %v3294
      %v3401 = vadd.f32 %v3139, %v3299
      %v3402 = vadd.f32 %v3140, %v3302
      %v3403 = vadd.f32 %v3141, %v3307
      %v3404 = vadd.f32 %v3142, %v3310
      %v3405 = vadd.f32 %v3143, %v3315
      %v3406 = vadd.f32 %v3144, %v3318
      %v3407 = vadd.f32 %v3145, %v3323
      %v3408 = vadd.f32 %v3146, %v3326
      %v3409 = vadd.f32 %v3147, %v3331
      %v3410 = vadd.f32 %v3148, %v3334
      %v3411 = vadd.f32 %v3149, %v3339
      %v3412 = vadd.f32 %v3150, %v3342
      %v3413 = vadd.f32 %v3151, %v3347
      %v3414 = vadd.f32 %v3152, %v3350
      %v3415 = vadd.f32 %v3153, %v3355
      %v3416 = vadd.f32 %v3154, %v3358
      %v3417 = vadd.f32 %v3155, %v3363
      %v3418 = vadd.f32 %v3156, %v3366
      %v3419 = vadd.f32 %v3157, %v3371
      %v3420 = vadd.f32 %v3158, %v3374
      %v3421 = vadd.f32 %v3159, %v3379
      %v3422 = vadd.f32 %v3160, %v3382
      %v3423 = vadd.f32 %v3161, %v3387
      %v3424 = vadd.f32 %v3162, %v3390
      %3425 = vst.msk [vmem:[#allocation3] sm:$0xff] %vm558, %v3393
      %3426 = vst.msk [vmem:[#allocation3 + $0x8] sm:$0xff] %vm558, %v3394
      %3427 = vst.msk [vmem:[#allocation3 + $0x10] sm:$0xff] %vm558, %v3395
      %3428 = vst.msk [vmem:[#allocation3 + $0x18] sm:$0xff] %vm558, %v3396
      %3429 = vst.msk [vmem:[#allocation3 + $0x20] sm:$0xff] %vm558, %v3397
      %3430 = vst.msk [vmem:[#allocation3 + $0x28] sm:$0xff] %vm558, %v3398
      %3431 = vst.msk [vmem:[#allocation3 + $0x30] sm:$0xff] %vm558, %v3399
      %3432 = vst.msk [vmem:[#allocation3 + $0x38] sm:$0xff] %vm558, %v3400
      %3433 = vst.msk [vmem:[#allocation3 + $0x40] sm:$0xff] %vm558, %v3401
      %3434 = vst.msk [vmem:[#allocation3 + $0x48] sm:$0xff] %vm558, %v3402
      %3435 = vst.msk [vmem:[#allocation3 + $0x50] sm:$0xff] %vm558, %v3403
      %3436 = vst.msk [vmem:[#allocation3 + $0x58] sm:$0xff] %vm558, %v3404
      %3437 = vst.msk [vmem:[#allocation3 + $0x60] sm:$0xff] %vm558, %v3405
      %3438 = vst.msk [vmem:[#allocation3 + $0x68] sm:$0xff] %vm558, %v3406
      %3439 = vst.msk [vmem:[#allocation3 + $0x70] sm:$0xff] %vm558, %v3407
      %3440 = vst.msk [vmem:[#allocation3 + $0x78] sm:$0xff] %vm558, %v3408
      %3441 = vst.msk [vmem:[#allocation3 + $0x80] sm:$0xff] %vm558, %v3409
      %3442 = vst.msk [vmem:[#allocation3 + $0x88] sm:$0xff] %vm558, %v3410
      %3443 = vst.msk [vmem:[#allocation3 + $0x90] sm:$0xff] %vm558, %v3411
      %3444 = vst.msk [vmem:[#allocation3 + $0x98] sm:$0xff] %vm558, %v3412
      %3445 = vst.msk [vmem:[#allocation3 + $0xa0] sm:$0xff] %vm558, %v3413
      %3446 = vst.msk [vmem:[#allocation3 + $0xa8] sm:$0xff] %vm558, %v3414
      %3447 = vst.msk [vmem:[#allocation3 + $0xb0] sm:$0xff] %vm558, %v3415
      %3448 = vst.msk [vmem:[#allocation3 + $0xb8] sm:$0xff] %vm558, %v3416
      %3449 = vst.msk [vmem:[#allocation3 + $0xc0] sm:$0xff] %vm558, %v3417
      %3450 = vst.msk [vmem:[#allocation3 + $0xc8] sm:$0xff] %vm558, %v3418
      %3451 = vst.msk [vmem:[#allocation3 + $0xd0] sm:$0xff] %vm558, %v3419
      %3452 = vst.msk [vmem:[#allocation3 + $0xd8] sm:$0xff] %vm558, %v3420
      %3453 = vst.msk [vmem:[#allocation3 + $0xe0] sm:$0xff] %vm558, %v3421
      %3454 = vst.msk [vmem:[#allocation3 + $0xe8] sm:$0xff] %vm558, %v3422
      %3455 = vst.msk [vmem:[#allocation3 + $0xf0] sm:$0xff] %vm558, %v3423
      %3456 = vst.msk [vmem:[#allocation3 + $0xf8] sm:$0xff] %vm558, %v3424
      %v3457 = vld [vmem:[%s2740 + $0x2] sm:$0xff]
      %v3458 = vld [vmem:[%s2740 + $0xa] sm:$0xff]
      %v3459 = vld [vmem:[%s2740 + $0x1a] sm:$0xff]
      %v3460 = vld [vmem:[%s2740 + $0x22] sm:$0xff]
      %v3461 = vld [vmem:[%s2740 + $0x32] sm:$0xff]
      %v3462 = vld [vmem:[%s2740 + $0x3a] sm:$0xff]
      %v3463 = vld [vmem:[%s2740 + $0x4a] sm:$0xff]
      %v3464 = vld [vmem:[%s2740 + $0x52] sm:$0xff]
      %v3465 = vld [vmem:[%s2740 + $0x62] sm:$0xff]
      %v3466 = vld [vmem:[%s2740 + $0x6a] sm:$0xff]
      %v3467 = vld [vmem:[%s2740 + $0x7a] sm:$0xff]
      %v3468 = vld [vmem:[%s2740 + $0x82] sm:$0xff]
      %v3469 = vld [vmem:[%s2740 + $0x92] sm:$0xff]
      %v3470 = vld [vmem:[%s2740 + $0x9a] sm:$0xff]
      %v3471 = vld [vmem:[%s2740 + $0xaa] sm:$0xff]
      %v3472 = vld [vmem:[%s2740 + $0xb2] sm:$0xff]
      %v3473 = vld [vmem:[%s2740 + $0xc2] sm:$0xff]
      %v3474 = vld [vmem:[%s2740 + $0xca] sm:$0xff]
      %v3475 = vld [vmem:[%s2740 + $0xda] sm:$0xff]
      %v3476 = vld [vmem:[%s2740 + $0xe2] sm:$0xff]
      %v3477 = vld [vmem:[%s2740 + $0xf2] sm:$0xff]
      %v3478 = vld [vmem:[%s2740 + $0xfa] sm:$0xff]
      %v3479 = vld [vmem:[%s2740 + $0x10a] sm:$0xff]
      %v3480 = vld [vmem:[%s2740 + $0x112] sm:$0xff]
      %v3481 = vld [vmem:[%s2740 + $0x122] sm:$0xff]
      %v3482 = vld [vmem:[%s2740 + $0x12a] sm:$0xff]
      %v3483 = vld [vmem:[%s2740 + $0x13a] sm:$0xff]
      %v3484 = vld [vmem:[%s2740 + $0x142] sm:$0xff]
      %v3485 = vld [vmem:[%s2740 + $0x152] sm:$0xff]
      %v3486 = vld [vmem:[%s2740 + $0x15a] sm:$0xff]
      %v3487 = vld [vmem:[%s2740 + $0x16a] sm:$0xff]
      %v3488 = vld [vmem:[%s2740 + $0x172] sm:$0xff]
      %v3489 = vld [vmem:[#allocation3] sm:$0xff]
      %v3490 = vld [vmem:[#allocation3 + $0x8] sm:$0xff]
      %v3491 = vld [vmem:[#allocation3 + $0x10] sm:$0xff]
      %v3492 = vld [vmem:[#allocation3 + $0x18] sm:$0xff]
      %v3493 = vld [vmem:[#allocation3 + $0x20] sm:$0xff]
      %v3494 = vld [vmem:[#allocation3 + $0x28] sm:$0xff]
      %v3495 = vld [vmem:[#allocation3 + $0x30] sm:$0xff]
      %v3496 = vld [vmem:[#allocation3 + $0x38] sm:$0xff]
      %v3497 = vld [vmem:[#allocation3 + $0x40] sm:$0xff]
      %v3498 = vld [vmem:[#allocation3 + $0x48] sm:$0xff]
      %v3499 = vld [vmem:[#allocation3 + $0x50] sm:$0xff]
      %v3500 = vld [vmem:[#allocation3 + $0x58] sm:$0xff]
      %v3501 = vld [vmem:[#allocation3 + $0x60] sm:$0xff]
      %v3502 = vld [vmem:[#allocation3 + $0x68] sm:$0xff]
      %v3503 = vld [vmem:[#allocation3 + $0x70] sm:$0xff]
      %v3504 = vld [vmem:[#allocation3 + $0x78] sm:$0xff]
      %v3505 = vld [vmem:[#allocation3 + $0x80] sm:$0xff]
      %v3506 = vld [vmem:[#allocation3 + $0x88] sm:$0xff]
      %v3507 = vld [vmem:[#allocation3 + $0x90] sm:$0xff]
      %v3508 = vld [vmem:[#allocation3 + $0x98] sm:$0xff]
      %v3509 = vld [vmem:[#allocation3 + $0xa0] sm:$0xff]
      %v3510 = vld [vmem:[#allocation3 + $0xa8] sm:$0xff]
      %v3511 = vld [vmem:[#allocation3 + $0xb0] sm:$0xff]
      %v3512 = vld [vmem:[#allocation3 + $0xb8] sm:$0xff]
      %v3513 = vld [vmem:[#allocation3 + $0xc0] sm:$0xff]
      %v3514 = vld [vmem:[#allocation3 + $0xc8] sm:$0xff]
      %v3515 = vld [vmem:[#allocation3 + $0xd0] sm:$0xff]
      %v3516 = vld [vmem:[#allocation3 + $0xd8] sm:$0xff]
      %v3517 = vld [vmem:[#allocation3 + $0xe0] sm:$0xff]
      %v3518 = vld [vmem:[#allocation3 + $0xe8] sm:$0xff]
      %v3519 = vld [vmem:[#allocation3 + $0xf0] sm:$0xff]
      %v3520 = vld [vmem:[#allocation3 + $0xf8] sm:$0xff]
      %v3521 = vpack.c.bf16 %v3458, %v3457
      %v3522 = vpack.c.bf16 %v3460, %v3459
      %v3523 = vpack.c.bf16 %v3462, %v3461
      %v3524 = vpack.c.bf16 %v3464, %v3463
      %v3525 = vpack.c.bf16 %v3466, %v3465
      %v3526 = vpack.c.bf16 %v3468, %v3467
      %v3527 = vpack.c.bf16 %v3470, %v3469
      %v3528 = vpack.c.bf16 %v3472, %v3471
      %v3529 = vpack.c.bf16 %v3474, %v3473
      %v3530 = vpack.c.bf16 %v3476, %v3475
      %v3531 = vpack.c.bf16 %v3478, %v3477
      %v3532 = vpack.c.bf16 %v3480, %v3479
      %v3533 = vpack.c.bf16 %v3482, %v3481
      %v3534 = vpack.c.bf16 %v3484, %v3483
      %v3535 = vpack.c.bf16 %v3486, %v3485
      %v3536 = vpack.c.bf16 %v3488, %v3487
      %s3537 = scalar_lea.vmem %s303, 32
      %v3538 = vld [vmem:[%s3537] sm:$0xf]
      %v3540 = vsel %vm558, %v3521, 0
      %v3543 = vsel %vm558, %v3522, 0
      %v3546 = vsel %vm558, %v3523, 0
      %v3549 = vsel %vm558, %v3524, 0
      %v3552 = vsel %vm558, %v3525, 0
      %v3555 = vsel %vm558, %v3526, 0
      %v3558 = vsel %vm558, %v3527, 0
      %v3561 = vsel %vm558, %v3528, 0
      %v3564 = vsel %vm558, %v3529, 0
      %v3567 = vsel %vm558, %v3530, 0
      %v3570 = vsel %vm558, %v3531, 0
      %v3573 = vsel %vm558, %v3532, 0
      %v3576 = vsel %vm558, %v3533, 0
      %v3579 = vsel %vm558, %v3534, 0
      %v3582 = vsel %vm558, %v3535, 0
      %v3585 = vsel %vm558, %v3536, 0
      %v3588 = vsel %vm720, %v3538, 0
      %3590 = vmatprep.subr.bf16.mxu0 0
      %3591 = vmatpush1.bf16.msra.mxu0 0
      %3592 = vmatprep.subr.bf16.mxu0 0
      %3593 = vmatpush1.bf16.msra.mxu0 0
      %3594 = vmatprep.subr.bf16.mxu0 0
      %3595 = vmatpush1.bf16.msra.mxu0 0
      %3596 = vmatprep.subr.bf16.mxu0 0
      %3597 = vmatpush1.bf16.msra.mxu0 0
      %3598 = vmatprep.subr.bf16.mxu0 0
      %3599 = vmatpush1.bf16.msra.mxu0 0
      %3600 = vmatprep.subr.bf16.mxu0 0
      %3601 = vmatpush1.bf16.msra.mxu0 0
      %3602 = vmatprep.subr.bf16.mxu0 0
      %3603 = vmatpush1.bf16.msra.mxu0 0
      %3604 = vmatprep.subr.bf16.mxu0 0
      %3605 = vmatpush1.bf16.msra.mxu0 %v3588
      %3606 = vmatprep.subr.bf16.mxu0 0
      %3607 = vmatpush2.bf16.msra.mxu0 0
      %3608 = vmatprep.subr.bf16.mxu0 0
      %3609 = vmatpush2.bf16.msra.mxu0 0
      %3610 = vmatprep.subr.bf16.mxu0 0
      %3611 = vmatpush2.bf16.msra.mxu0 0
      %3612 = vmatprep.subr.bf16.mxu0 0
      %3613 = vmatpush2.bf16.msra.mxu0 0
      %3614 = vmatprep.subr.bf16.mxu0 0
      %3615 = vmatpush2.bf16.msra.mxu0 0
      %3616 = vmatprep.subr.bf16.mxu0 0
      %3617 = vmatpush2.bf16.msra.mxu0 0
      %3618 = vmatprep.subr.bf16.mxu0 0
      %3619 = vmatpush2.bf16.msra.mxu0 0
      %3620 = vmatprep.subr.bf16.mxu0 0
      %3621 = vmatpush2.bf16.msra.mxu0 0
      %3622 = vmatprep.mubr.bf16.mxu0 0
      %3623 = vmatmul.mubr.bf16.gmra.mxu0 %v3540
      %v3624 = vpop.f32.mrf.mxu0
      %v3625 = vadd.f32 0.0, %v3624
      %v3626 = vpop.f32.mrf.mxu0
      %v3627 = vpop.f32.mrf.mxu0
      %v3628 = vadd.f32 0.0, %v3627
      %v3629 = vpop.f32.mrf.mxu0
      %3630 = vmatprep.mubr.bf16.mxu0 0
      %3631 = vmatmul.mubr.bf16.gmra.mxu0 %v3543
      %v3632 = vpop.f32.mrf.mxu0
      %v3633 = vadd.f32 0.0, %v3632
      %v3634 = vpop.f32.mrf.mxu0
      %v3635 = vpop.f32.mrf.mxu0
      %v3636 = vadd.f32 0.0, %v3635
      %v3637 = vpop.f32.mrf.mxu0
      %3638 = vmatprep.mubr.bf16.mxu0 0
      %3639 = vmatmul.mubr.bf16.gmra.mxu0 %v3546
      %v3640 = vpop.f32.mrf.mxu0
      %v3641 = vadd.f32 0.0, %v3640
      %v3642 = vpop.f32.mrf.mxu0
      %v3643 = vpop.f32.mrf.mxu0
      %v3644 = vadd.f32 0.0, %v3643
      %v3645 = vpop.f32.mrf.mxu0
      %3646 = vmatprep.mubr.bf16.mxu0 0
      %3647 = vmatmul.mubr.bf16.gmra.mxu0 %v3549
      %v3648 = vpop.f32.mrf.mxu0
      %v3649 = vadd.f32 0.0, %v3648
      %v3650 = vpop.f32.mrf.mxu0
      %v3651 = vpop.f32.mrf.mxu0
      %v3652 = vadd.f32 0.0, %v3651
      %v3653 = vpop.f32.mrf.mxu0
      %3654 = vmatprep.mubr.bf16.mxu0 0
      %3655 = vmatmul.mubr.bf16.gmra.mxu0 %v3552
      %v3656 = vpop.f32.mrf.mxu0
      %v3657 = vadd.f32 0.0, %v3656
      %v3658 = vpop.f32.mrf.mxu0
      %v3659 = vpop.f32.mrf.mxu0
      %v3660 = vadd.f32 0.0, %v3659
      %v3661 = vpop.f32.mrf.mxu0
      %3662 = vmatprep.mubr.bf16.mxu0 0
      %3663 = vmatmul.mubr.bf16.gmra.mxu0 %v3555
      %v3664 = vpop.f32.mrf.mxu0
      %v3665 = vadd.f32 0.0, %v3664
      %v3666 = vpop.f32.mrf.mxu0
      %v3667 = vpop.f32.mrf.mxu0
      %v3668 = vadd.f32 0.0, %v3667
      %v3669 = vpop.f32.mrf.mxu0
      %3670 = vmatprep.mubr.bf16.mxu0 0
      %3671 = vmatmul.mubr.bf16.gmra.mxu0 %v3558
      %v3672 = vpop.f32.mrf.mxu0
      %v3673 = vadd.f32 0.0, %v3672
      %v3674 = vpop.f32.mrf.mxu0
      %v3675 = vpop.f32.mrf.mxu0
      %v3676 = vadd.f32 0.0, %v3675
      %v3677 = vpop.f32.mrf.mxu0
      %3678 = vmatprep.mubr.bf16.mxu0 0
      %3679 = vmatmul.mubr.bf16.gmra.mxu0 %v3561
      %v3680 = vpop.f32.mrf.mxu0
      %v3681 = vadd.f32 0.0, %v3680
      %v3682 = vpop.f32.mrf.mxu0
      %v3683 = vpop.f32.mrf.mxu0
      %v3684 = vadd.f32 0.0, %v3683
      %v3685 = vpop.f32.mrf.mxu0
      %3686 = vmatprep.mubr.bf16.mxu0 0
      %3687 = vmatmul.mubr.bf16.gmra.mxu0 %v3564
      %v3688 = vpop.f32.mrf.mxu0
      %v3689 = vadd.f32 0.0, %v3688
      %v3690 = vpop.f32.mrf.mxu0
      %v3691 = vpop.f32.mrf.mxu0
      %v3692 = vadd.f32 0.0, %v3691
      %v3693 = vpop.f32.mrf.mxu0
      %3694 = vmatprep.mubr.bf16.mxu0 0
      %3695 = vmatmul.mubr.bf16.gmra.mxu0 %v3567
      %v3696 = vpop.f32.mrf.mxu0
      %v3697 = vadd.f32 0.0, %v3696
      %v3698 = vpop.f32.mrf.mxu0
      %v3699 = vpop.f32.mrf.mxu0
      %v3700 = vadd.f32 0.0, %v3699
      %v3701 = vpop.f32.mrf.mxu0
      %3702 = vmatprep.mubr.bf16.mxu0 0
      %3703 = vmatmul.mubr.bf16.gmra.mxu0 %v3570
      %v3704 = vpop.f32.mrf.mxu0
      %v3705 = vadd.f32 0.0, %v3704
      %v3706 = vpop.f32.mrf.mxu0
      %v3707 = vpop.f32.mrf.mxu0
      %v3708 = vadd.f32 0.0, %v3707
      %v3709 = vpop.f32.mrf.mxu0
      %3710 = vmatprep.mubr.bf16.mxu0 0
      %3711 = vmatmul.mubr.bf16.gmra.mxu0 %v3573
      %v3712 = vpop.f32.mrf.mxu0
      %v3713 = vadd.f32 0.0, %v3712
      %v3714 = vpop.f32.mrf.mxu0
      %v3715 = vpop.f32.mrf.mxu0
      %v3716 = vadd.f32 0.0, %v3715
      %v3717 = vpop.f32.mrf.mxu0
      %3718 = vmatprep.mubr.bf16.mxu0 0
      %3719 = vmatmul.mubr.bf16.gmra.mxu0 %v3576
      %v3720 = vpop.f32.mrf.mxu0
      %v3721 = vadd.f32 0.0, %v3720
      %v3722 = vpop.f32.mrf.mxu0
      %v3723 = vpop.f32.mrf.mxu0
      %v3724 = vadd.f32 0.0, %v3723
      %v3725 = vpop.f32.mrf.mxu0
      %3726 = vmatprep.mubr.bf16.mxu0 0
      %3727 = vmatmul.mubr.bf16.gmra.mxu0 %v3579
      %v3728 = vpop.f32.mrf.mxu0
      %v3729 = vadd.f32 0.0, %v3728
      %v3730 = vpop.f32.mrf.mxu0
      %v3731 = vpop.f32.mrf.mxu0
      %v3732 = vadd.f32 0.0, %v3731
      %v3733 = vpop.f32.mrf.mxu0
      %3734 = vmatprep.mubr.bf16.mxu0 0
      %3735 = vmatmul.mubr.bf16.gmra.mxu0 %v3582
      %v3736 = vpop.f32.mrf.mxu0
      %v3737 = vadd.f32 0.0, %v3736
      %v3738 = vpop.f32.mrf.mxu0
      %v3739 = vpop.f32.mrf.mxu0
      %v3740 = vadd.f32 0.0, %v3739
      %v3741 = vpop.f32.mrf.mxu0
      %3742 = vmatprep.mubr.bf16.mxu0 0
      %3743 = vmatmul.mubr.bf16.gmra.mxu0 %v3585
      %v3744 = vpop.f32.mrf.mxu0
      %v3745 = vadd.f32 0.0, %v3744
      %v3746 = vpop.f32.mrf.mxu0
      %v3747 = vpop.f32.mrf.mxu0
      %v3748 = vadd.f32 0.0, %v3747
      %v3749 = vpop.f32.mrf.mxu0
      %3750 = vdwg.mxu0
      %v3751 = vadd.f32 %v3489, %v3625
      %v3752 = vadd.f32 %v3490, %v3628
      %v3753 = vadd.f32 %v3491, %v3633
      %v3754 = vadd.f32 %v3492, %v3636
      %v3755 = vadd.f32 %v3493, %v3641
      %v3756 = vadd.f32 %v3494, %v3644
      %v3757 = vadd.f32 %v3495, %v3649
      %v3758 = vadd.f32 %v3496, %v3652
      %v3759 = vadd.f32 %v3497, %v3657
      %v3760 = vadd.f32 %v3498, %v3660
      %v3761 = vadd.f32 %v3499, %v3665
      %v3762 = vadd.f32 %v3500, %v3668
      %v3763 = vadd.f32 %v3501, %v3673
      %v3764 = vadd.f32 %v3502, %v3676
      %v3765 = vadd.f32 %v3503, %v3681
      %v3766 = vadd.f32 %v3504, %v3684
      %v3767 = vadd.f32 %v3505, %v3689
      %v3768 = vadd.f32 %v3506, %v3692
      %v3769 = vadd.f32 %v3507, %v3697
      %v3770 = vadd.f32 %v3508, %v3700
      %v3771 = vadd.f32 %v3509, %v3705
      %v3772 = vadd.f32 %v3510, %v3708
      %v3773 = vadd.f32 %v3511, %v3713
      %v3774 = vadd.f32 %v3512, %v3716
      %v3775 = vadd.f32 %v3513, %v3721
      %v3776 = vadd.f32 %v3514, %v3724
      %v3777 = vadd.f32 %v3515, %v3729
      %v3778 = vadd.f32 %v3516, %v3732
      %v3779 = vadd.f32 %v3517, %v3737
      %v3780 = vadd.f32 %v3518, %v3740
      %v3781 = vadd.f32 %v3519, %v3745
      %v3782 = vadd.f32 %v3520, %v3748
      %3783 = vst.msk [vmem:[#allocation3] sm:$0xff] %vm558, %v3751
      %3784 = vst.msk [vmem:[#allocation3 + $0x8] sm:$0xff] %vm558, %v3752
      %3785 = vst.msk [vmem:[#allocation3 + $0x10] sm:$0xff] %vm558, %v3753
      %3786 = vst.msk [vmem:[#allocation3 + $0x18] sm:$0xff] %vm558, %v3754
      %3787 = vst.msk [vmem:[#allocation3 + $0x20] sm:$0xff] %vm558, %v3755
      %3788 = vst.msk [vmem:[#allocation3 + $0x28] sm:$0xff] %vm558, %v3756
      %3789 = vst.msk [vmem:[#allocation3 + $0x30] sm:$0xff] %vm558, %v3757
      %3790 = vst.msk [vmem:[#allocation3 + $0x38] sm:$0xff] %vm558, %v3758
      %3791 = vst.msk [vmem:[#allocation3 + $0x40] sm:$0xff] %vm558, %v3759
      %3792 = vst.msk [vmem:[#allocation3 + $0x48] sm:$0xff] %vm558, %v3760
      %3793 = vst.msk [vmem:[#allocation3 + $0x50] sm:$0xff] %vm558, %v3761
      %3794 = vst.msk [vmem:[#allocation3 + $0x58] sm:$0xff] %vm558, %v3762
      %3795 = vst.msk [vmem:[#allocation3 + $0x60] sm:$0xff] %vm558, %v3763
      %3796 = vst.msk [vmem:[#allocation3 + $0x68] sm:$0xff] %vm558, %v3764
      %3797 = vst.msk [vmem:[#allocation3 + $0x70] sm:$0xff] %vm558, %v3765
      %3798 = vst.msk [vmem:[#allocation3 + $0x78] sm:$0xff] %vm558, %v3766
      %3799 = vst.msk [vmem:[#allocation3 + $0x80] sm:$0xff] %vm558, %v3767
      %3800 = vst.msk [vmem:[#allocation3 + $0x88] sm:$0xff] %vm558, %v3768
      %3801 = vst.msk [vmem:[#allocation3 + $0x90] sm:$0xff] %vm558, %v3769
      %3802 = vst.msk [vmem:[#allocation3 + $0x98] sm:$0xff] %vm558, %v3770
      %3803 = vst.msk [vmem:[#allocation3 + $0xa0] sm:$0xff] %vm558, %v3771
      %3804 = vst.msk [vmem:[#allocation3 + $0xa8] sm:$0xff] %vm558, %v3772
      %3805 = vst.msk [vmem:[#allocation3 + $0xb0] sm:$0xff] %vm558, %v3773
      %3806 = vst.msk [vmem:[#allocation3 + $0xb8] sm:$0xff] %vm558, %v3774
      %3807 = vst.msk [vmem:[#allocation3 + $0xc0] sm:$0xff] %vm558, %v3775
      %3808 = vst.msk [vmem:[#allocation3 + $0xc8] sm:$0xff] %vm558, %v3776
      %3809 = vst.msk [vmem:[#allocation3 + $0xd0] sm:$0xff] %vm558, %v3777
      %3810 = vst.msk [vmem:[#allocation3 + $0xd8] sm:$0xff] %vm558, %v3778
      %3811 = vst.msk [vmem:[#allocation3 + $0xe0] sm:$0xff] %vm558, %v3779
      %3812 = vst.msk [vmem:[#allocation3 + $0xe8] sm:$0xff] %vm558, %v3780
      %3813 = vst.msk [vmem:[#allocation3 + $0xf0] sm:$0xff] %vm558, %v3781
      %3814 = vst.msk [vmem:[#allocation3 + $0xf8] sm:$0xff] %vm558, %v3782
      %v3815 = vld [vmem:[#allocation3] sm:$0xff]
      %v3816 = vld [vmem:[#allocation3 + $0x8] sm:$0xff]
      %v3817 = vld [vmem:[#allocation3 + $0x10] sm:$0xff]
      %v3818 = vld [vmem:[#allocation3 + $0x18] sm:$0xff]
      %v3819 = vld [vmem:[#allocation3 + $0x20] sm:$0xff]
      %v3820 = vld [vmem:[#allocation3 + $0x28] sm:$0xff]
      %v3821 = vld [vmem:[#allocation3 + $0x30] sm:$0xff]
      %v3822 = vld [vmem:[#allocation3 + $0x38] sm:$0xff]
      %v3823 = vld [vmem:[#allocation3 + $0x40] sm:$0xff]
      %v3824 = vld [vmem:[#allocation3 + $0x48] sm:$0xff]
      %v3825 = vld [vmem:[#allocation3 + $0x50] sm:$0xff]
      %v3826 = vld [vmem:[#allocation3 + $0x58] sm:$0xff]
      %v3827 = vld [vmem:[#allocation3 + $0x60] sm:$0xff]
      %v3828 = vld [vmem:[#allocation3 + $0x68] sm:$0xff]
      %v3829 = vld [vmem:[#allocation3 + $0x70] sm:$0xff]
      %v3830 = vld [vmem:[#allocation3 + $0x78] sm:$0xff]
      %v3831 = vld [vmem:[#allocation3 + $0x80] sm:$0xff]
      %v3832 = vld [vmem:[#allocation3 + $0x88] sm:$0xff]
      %v3833 = vld [vmem:[#allocation3 + $0x90] sm:$0xff]
      %v3834 = vld [vmem:[#allocation3 + $0x98] sm:$0xff]
      %v3835 = vld [vmem:[#allocation3 + $0xa0] sm:$0xff]
      %v3836 = vld [vmem:[#allocation3 + $0xa8] sm:$0xff]
      %v3837 = vld [vmem:[#allocation3 + $0xb0] sm:$0xff]
      %v3838 = vld [vmem:[#allocation3 + $0xb8] sm:$0xff]
      %v3839 = vld [vmem:[#allocation3 + $0xc0] sm:$0xff]
      %v3840 = vld [vmem:[#allocation3 + $0xc8] sm:$0xff]
      %v3841 = vld [vmem:[#allocation3 + $0xd0] sm:$0xff]
      %v3842 = vld [vmem:[#allocation3 + $0xd8] sm:$0xff]
      %v3843 = vld [vmem:[#allocation3 + $0xe0] sm:$0xff]
      %v3844 = vld [vmem:[#allocation3 + $0xe8] sm:$0xff]
      %v3845 = vld [vmem:[#allocation3 + $0xf0] sm:$0xff]
      %v3846 = vld [vmem:[#allocation3 + $0xf8] sm:$0xff]
      %v3847 = vld [vmem:[%s306] sm:$0x1]
      %v3849 = vlaneseq
      %v3850 = vshrl.u32 %v3849, 7
      %v3851 = vsub.s32 0, %v3850
      %v3852 = vrot.slane %v3847, %v3851
      %v3854 = vadd.f32 %v3815, %v3852
      %v3855 = vadd.f32 %v3816, %v3852
      %v3856 = vadd.f32 %v3817, %v3852
      %v3857 = vadd.f32 %v3818, %v3852
      %v3858 = vadd.f32 %v3819, %v3852
      %v3859 = vadd.f32 %v3820, %v3852
      %v3860 = vadd.f32 %v3821, %v3852
      %v3861 = vadd.f32 %v3822, %v3852
      %v3862 = vadd.f32 %v3823, %v3852
      %v3863 = vadd.f32 %v3824, %v3852
      %v3864 = vadd.f32 %v3825, %v3852
      %v3865 = vadd.f32 %v3826, %v3852
      %v3866 = vadd.f32 %v3827, %v3852
      %v3867 = vadd.f32 %v3828, %v3852
      %v3868 = vadd.f32 %v3829, %v3852
      %v3869 = vadd.f32 %v3830, %v3852
      %v3870 = vadd.f32 %v3831, %v3852
      %v3871 = vadd.f32 %v3832, %v3852
      %v3872 = vadd.f32 %v3833, %v3852
      %v3873 = vadd.f32 %v3834, %v3852
      %v3874 = vadd.f32 %v3835, %v3852
      %v3875 = vadd.f32 %v3836, %v3852
      %v3876 = vadd.f32 %v3837, %v3852
      %v3877 = vadd.f32 %v3838, %v3852
      %v3878 = vadd.f32 %v3839, %v3852
      %v3879 = vadd.f32 %v3840, %v3852
      %v3880 = vadd.f32 %v3841, %v3852
      %v3881 = vadd.f32 %v3842, %v3852
      %v3882 = vadd.f32 %v3843, %v3852
      %v3883 = vadd.f32 %v3844, %v3852
      %v3884 = vadd.f32 %v3845, %v3852
      %v3885 = vadd.f32 %v3846, %v3852
      %3886 = vst.msk [vmem:[%s314] sm:$0xff] %vm558, %v3854
      %3887 = vst.msk [vmem:[%s314 + $0x8] sm:$0xff] %vm558, %v3855
      %3888 = vst.msk [vmem:[%s314 + $0x10] sm:$0xff] %vm558, %v3856
      %3889 = vst.msk [vmem:[%s314 + $0x18] sm:$0xff] %vm558, %v3857
      %3890 = vst.msk [vmem:[%s314 + $0x20] sm:$0xff] %vm558, %v3858
      %3891 = vst.msk [vmem:[%s314 + $0x28] sm:$0xff] %vm558, %v3859
      %3892 = vst.msk [vmem:[%s314 + $0x30] sm:$0xff] %vm558, %v3860
      %3893 = vst.msk [vmem:[%s314 + $0x38] sm:$0xff] %vm558, %v3861
      %3894 = vst.msk [vmem:[%s314 + $0x40] sm:$0xff] %vm558, %v3862
      %3895 = vst.msk [vmem:[%s314 + $0x48] sm:$0xff] %vm558, %v3863
      %3896 = vst.msk [vmem:[%s314 + $0x50] sm:$0xff] %vm558, %v3864
      %3897 = vst.msk [vmem:[%s314 + $0x58] sm:$0xff] %vm558, %v3865
      %3898 = vst.msk [vmem:[%s314 + $0x60] sm:$0xff] %vm558, %v3866
      %3899 = vst.msk [vmem:[%s314 + $0x68] sm:$0xff] %vm558, %v3867
      %3900 = vst.msk [vmem:[%s314 + $0x70] sm:$0xff] %vm558, %v3868
      %3901 = vst.msk [vmem:[%s314 + $0x78] sm:$0xff] %vm558, %v3869
      %3902 = vst.msk [vmem:[%s314 + $0x80] sm:$0xff] %vm558, %v3870
      %3903 = vst.msk [vmem:[%s314 + $0x88] sm:$0xff] %vm558, %v3871
      %3904 = vst.msk [vmem:[%s314 + $0x90] sm:$0xff] %vm558, %v3872
      %3905 = vst.msk [vmem:[%s314 + $0x98] sm:$0xff] %vm558, %v3873
      %3906 = vst.msk [vmem:[%s314 + $0xa0] sm:$0xff] %vm558, %v3874
      %3907 = vst.msk [vmem:[%s314 + $0xa8] sm:$0xff] %vm558, %v3875
      %3908 = vst.msk [vmem:[%s314 + $0xb0] sm:$0xff] %vm558, %v3876
      %3909 = vst.msk [vmem:[%s314 + $0xb8] sm:$0xff] %vm558, %v3877
      %3910 = vst.msk [vmem:[%s314 + $0xc0] sm:$0xff] %vm558, %v3878
      %3911 = vst.msk [vmem:[%s314 + $0xc8] sm:$0xff] %vm558, %v3879
      %3912 = vst.msk [vmem:[%s314 + $0xd0] sm:$0xff] %vm558, %v3880
      %3913 = vst.msk [vmem:[%s314 + $0xd8] sm:$0xff] %vm558, %v3881
      %3914 = vst.msk [vmem:[%s314 + $0xe0] sm:$0xff] %vm558, %v3882
      %3915 = vst.msk [vmem:[%s314 + $0xe8] sm:$0xff] %vm558, %v3883
      %3916 = vst.msk [vmem:[%s314 + $0xf0] sm:$0xff] %vm558, %v3884
      %3917 = vst.msk [vmem:[%s314 + $0xf8] sm:$0xff] %vm558, %v3885
      %v3918 = vsel %vm558, %v3854, 0.0
      %v3919 = vsel %vm558, %v3855, 0.0
      %v3920 = vadd.f32 %v3918, %v3919
      %v3921 = vsel %vm558, %v3856, 0.0
      %v3922 = vadd.f32 %v3920, %v3921
      %v3923 = vsel %vm558, %v3857, 0.0
      %v3924 = vadd.f32 %v3922, %v3923
      %v3925 = vsel %vm558, %v3858, 0.0
      %v3926 = vadd.f32 %v3924, %v3925
      %v3927 = vsel %vm558, %v3859, 0.0
      %v3928 = vadd.f32 %v3926, %v3927
      %v3929 = vsel %vm558, %v3860, 0.0
      %v3930 = vadd.f32 %v3928, %v3929
      %v3931 = vsel %vm558, %v3861, 0.0
      %v3932 = vadd.f32 %v3930, %v3931
      %v3933 = vsel %vm558, %v3862, 0.0
      %v3934 = vadd.f32 %v3932, %v3933
      %v3935 = vsel %vm558, %v3863, 0.0
      %v3936 = vadd.f32 %v3934, %v3935
      %v3937 = vsel %vm558, %v3864, 0.0
      %v3938 = vadd.f32 %v3936, %v3937
      %v3939 = vsel %vm558, %v3865, 0.0
      %v3940 = vadd.f32 %v3938, %v3939
      %v3941 = vsel %vm558, %v3866, 0.0
      %v3942 = vadd.f32 %v3940, %v3941
      %v3943 = vsel %vm558, %v3867, 0.0
      %v3944 = vadd.f32 %v3942, %v3943
      %v3945 = vsel %vm558, %v3868, 0.0
      %v3946 = vadd.f32 %v3944, %v3945
      %v3947 = vsel %vm558, %v3869, 0.0
      %v3948 = vadd.f32 %v3946, %v3947
      %v3949 = vsel %vm558, %v3870, 0.0
      %v3950 = vadd.f32 %v3948, %v3949
      %v3951 = vsel %vm558, %v3871, 0.0
      %v3952 = vadd.f32 %v3950, %v3951
      %v3953 = vsel %vm558, %v3872, 0.0
      %v3954 = vadd.f32 %v3952, %v3953
      %v3955 = vsel %vm558, %v3873, 0.0
      %v3956 = vadd.f32 %v3954, %v3955
      %v3957 = vsel %vm558, %v3874, 0.0
      %v3958 = vadd.f32 %v3956, %v3957
      %v3959 = vsel %vm558, %v3875, 0.0
      %v3960 = vadd.f32 %v3958, %v3959
      %v3961 = vsel %vm558, %v3876, 0.0
      %v3962 = vadd.f32 %v3960, %v3961
      %v3963 = vsel %vm558, %v3877, 0.0
      %v3964 = vadd.f32 %v3962, %v3963
      %v3965 = vsel %vm558, %v3878, 0.0
      %v3966 = vadd.f32 %v3964, %v3965
      %v3967 = vsel %vm558, %v3879, 0.0
      %v3968 = vadd.f32 %v3966, %v3967
      %v3969 = vsel %vm558, %v3880, 0.0
      %v3970 = vadd.f32 %v3968, %v3969
      %v3971 = vsel %vm558, %v3881, 0.0
      %v3972 = vadd.f32 %v3970, %v3971
      %v3973 = vsel %vm558, %v3882, 0.0
      %v3974 = vadd.f32 %v3972, %v3973
      %v3975 = vsel %vm558, %v3883, 0.0
      %v3976 = vadd.f32 %v3974, %v3975
      %v3977 = vsel %vm558, %v3884, 0.0
      %v3978 = vadd.f32 %v3976, %v3977
      %v3979 = vsel %vm558, %v3885, 0.0
      %v3980 = vadd.f32 %v3978, %v3979
      %v3981 = vrot.slane %v3980, 4
      %v3982 = vadd.f32 %v3980, %v3981
      %v3983 = vrot.slane %v3982, 2
      %v3984 = vadd.f32 %v3982, %v3983
      %v3985 = vrot.slane %v3984, 1
      %v3986 = vadd.f32 %v3984, %v3985
      %v3987 = vmul.f32 %v3854, %v3854
      %v3988 = vmul.f32 %v3855, %v3855
      %v3989 = vmul.f32 %v3856, %v3856
      %v3990 = vmul.f32 %v3857, %v3857
      %v3991 = vmul.f32 %v3858, %v3858
      %v3992 = vmul.f32 %v3859, %v3859
      %v3993 = vmul.f32 %v3860, %v3860
      %v3994 = vmul.f32 %v3861, %v3861
      %v3995 = vmul.f32 %v3862, %v3862
      %v3996 = vmul.f32 %v3863, %v3863
      %v3997 = vmul.f32 %v3864, %v3864
      %v3998 = vmul.f32 %v3865, %v3865
      %v3999 = vmul.f32 %v3866, %v3866
      %v4000 = vmul.f32 %v3867, %v3867
      %v4001 = vmul.f32 %v3868, %v3868
      %v4002 = vmul.f32 %v3869, %v3869
      %v4003 = vmul.f32 %v3870, %v3870
      %v4004 = vmul.f32 %v3871, %v3871
      %v4005 = vmul.f32 %v3872, %v3872
      %v4006 = vmul.f32 %v3873, %v3873
      %v4007 = vmul.f32 %v3874, %v3874
      %v4008 = vmul.f32 %v3875, %v3875
      %v4009 = vmul.f32 %v3876, %v3876
      %v4010 = vmul.f32 %v3877, %v3877
      %v4011 = vmul.f32 %v3878, %v3878
      %v4012 = vmul.f32 %v3879, %v3879
      %v4013 = vmul.f32 %v3880, %v3880
      %v4014 = vmul.f32 %v3881, %v3881
      %v4015 = vmul.f32 %v3882, %v3882
      %v4016 = vmul.f32 %v3883, %v3883
      %v4017 = vmul.f32 %v3884, %v3884
      %v4018 = vmul.f32 %v3885, %v3885
      %v4019 = vsel %vm558, %v3987, 0.0
      %v4020 = vsel %vm558, %v3988, 0.0
      %v4021 = vadd.f32 %v4019, %v4020
      %v4022 = vsel %vm558, %v3989, 0.0
      %v4023 = vadd.f32 %v4021, %v4022
      %v4024 = vsel %vm558, %v3990, 0.0
      %v4025 = vadd.f32 %v4023, %v4024
      %v4026 = vsel %vm558, %v3991, 0.0
      %v4027 = vadd.f32 %v4025, %v4026
      %v4028 = vsel %vm558, %v3992, 0.0
      %v4029 = vadd.f32 %v4027, %v4028
      %v4030 = vsel %vm558, %v3993, 0.0
      %v4031 = vadd.f32 %v4029, %v4030
      %v4032 = vsel %vm558, %v3994, 0.0
      %v4033 = vadd.f32 %v4031, %v4032
      %v4034 = vsel %vm558, %v3995, 0.0
      %v4035 = vadd.f32 %v4033, %v4034
      %v4036 = vsel %vm558, %v3996, 0.0
      %v4037 = vadd.f32 %v4035, %v4036
      %v4038 = vsel %vm558, %v3997, 0.0
      %v4039 = vadd.f32 %v4037, %v4038
      %v4040 = vsel %vm558, %v3998, 0.0
      %v4041 = vadd.f32 %v4039, %v4040
      %v4042 = vsel %vm558, %v3999, 0.0
      %v4043 = vadd.f32 %v4041, %v4042
      %v4044 = vsel %vm558, %v4000, 0.0
      %v4045 = vadd.f32 %v4043, %v4044
      %v4046 = vsel %vm558, %v4001, 0.0
      %v4047 = vadd.f32 %v4045, %v4046
      %v4048 = vsel %vm558, %v4002, 0.0
      %v4049 = vadd.f32 %v4047, %v4048
      %v4050 = vsel %vm558, %v4003, 0.0
      %v4051 = vadd.f32 %v4049, %v4050
      %v4052 = vsel %vm558, %v4004, 0.0
      %v4053 = vadd.f32 %v4051, %v4052
      %v4054 = vsel %vm558, %v4005, 0.0
      %v4055 = vadd.f32 %v4053, %v4054
      %v4056 = vsel %vm558, %v4006, 0.0
      %v4057 = vadd.f32 %v4055, %v4056
      %v4058 = vsel %vm558, %v4007, 0.0
      %v4059 = vadd.f32 %v4057, %v4058
      %v4060 = vsel %vm558, %v4008, 0.0
      %v4061 = vadd.f32 %v4059, %v4060
      %v4062 = vsel %vm558, %v4009, 0.0
      %v4063 = vadd.f32 %v4061, %v4062
      %v4064 = vsel %vm558, %v4010, 0.0
      %v4065 = vadd.f32 %v4063, %v4064
      %v4066 = vsel %vm558, %v4011, 0.0
      %v4067 = vadd.f32 %v4065, %v4066
      %v4068 = vsel %vm558, %v4012, 0.0
      %v4069 = vadd.f32 %v4067, %v4068
      %v4070 = vsel %vm558, %v4013, 0.0
      %v4071 = vadd.f32 %v4069, %v4070
      %v4072 = vsel %vm558, %v4014, 0.0
      %v4073 = vadd.f32 %v4071, %v4072
      %v4074 = vsel %vm558, %v4015, 0.0
      %v4075 = vadd.f32 %v4073, %v4074
      %v4076 = vsel %vm558, %v4016, 0.0
      %v4077 = vadd.f32 %v4075, %v4076
      %v4078 = vsel %vm558, %v4017, 0.0
      %v4079 = vadd.f32 %v4077, %v4078
      %v4080 = vsel %vm558, %v4018, 0.0
      %v4081 = vadd.f32 %v4079, %v4080
      %v4082 = vrot.slane %v4081, 4
      %v4083 = vadd.f32 %v4081, %v4082
      %v4084 = vrot.slane %v4083, 2
      %v4085 = vadd.f32 %v4083, %v4084
      %v4086 = vrot.slane %v4085, 1
      %v4087 = vadd.f32 %v4085, %v4086
      %vm4088 = vcmask 1040384
      %v4089 = vsel %vm4088, %v3986, %v4087
      %vm4090 = vcmask 58368
      %4091 = vst.msk [vmem:[%s321] sm:$0x3] %vm4090, %v4089
      %p4092 = scmp.lt.s32.totalorder %s22, 1
      %s4093 = scalar_select %p4092, %s22, 1
      %p4094 = scmp.lt.s32.totalorder %s23, 0
      %s4095 = scalar_select %p4094, %s23, 0
      %s4096 = smul.addr %s4093, 32
      %s4097 = sadd.s32 %s4095, %s4096
      %s4098 = smul.addr %s4097, 8
      %s4099 = scalar_lea.vmem %s5, %s4098
      %p4100 = scmp.lt.s32.totalorder %s22, 1
      %s4101 = scalar_select %p4100, %s22, 1
      %p4102 = scmp.lt.s32.totalorder %s23, 0
      %s4103 = scalar_select %p4102, %s23, 0
      %s4104 = sadd.s32 %s4103, %s4101
      %s4105 = smul.addr %s4104, 2
      %s4106 = scalar_lea.vmem %s6, %s4105
      // Predicated region
      $region45: #{bridgeconv_forward.4} parent=39 // pred_check
        %p4107 = pneg %p170
      $region46: #{bridgeconv_forward.4} parent=39 // pred_check_branch
        %4109 = sbr.rel (%p4107) target = $region48
      $region47: #{bridgeconv_forward.4} parent=39 // pred_region
        _
      $region48: #{bridgeconv_forward.4} parent=39 // pred_fallthru
        _
      // Predicated region
      $region49: #{bridgeconv_forward.4} parent=39 // pred_check
        %p4110 = pneg %p198
      $region50: #{bridgeconv_forward.4} parent=39 // pred_check_branch
        %4112 = sbr.rel (%p4110) target = $region52
      $region51: #{bridgeconv_forward.4} parent=39 // pred_region
        _
      $region52: #{bridgeconv_forward.4} parent=39 // pred_fallthru
        _
    $region40: #{bridgeconv_forward.4} parent=5 // pred_fallthru
      _
    %p4113 = scmp.le.s32.totalorder 2, %s13
    // Predicated region
    $region53: #{bridgeconv_forward.4} parent=5 // pred_check
      %p4114 = pneg %p4113
    $region54: #{bridgeconv_forward.4} parent=5 // pred_check_branch
      %4116 = sbr.rel (%p4114) target = $region56
    $region55: #{bridgeconv_forward.4} parent=5 // pred_region
      %s4117 = ssub.s32 %s13, 2
      // Predicated region
      $region57: #{bridgeconv_forward.4} parent=55 // pred_check
        %p4118 = pneg %p176
      $region58: #{bridgeconv_forward.4} parent=55 // pred_check_branch
        %4120 = sbr.rel (%p4118) target = $region60
      $region59: #{bridgeconv_forward.4} parent=55 // pred_region
        %p4121 = scmp.lt.s32.totalorder %s24, 1
        %s4122 = scalar_select %p4121, %s24, 1
        %p4123 = scmp.lt.s32.totalorder %s25, 0
        %s4124 = scalar_select %p4123, %s25, 0
        %s4125 = smul.addr %s4122, 32
        %s4126 = sadd.s32 %s4124, %s4125
        %s4127 = smul.addr %s4126, 8
        %s4128 = scalar_lea.vmem %s5, %s4127
      $region60: #{bridgeconv_forward.4} parent=55 // pred_fallthru
        _
      // Predicated region
      $region61: #{bridgeconv_forward.4} parent=55 // pred_check
        %p4129 = pneg %p204
      $region62: #{bridgeconv_forward.4} parent=55 // pred_check_branch
        %4131 = sbr.rel (%p4129) target = $region64
      $region63: #{bridgeconv_forward.4} parent=55 // pred_region
        %p4132 = scmp.lt.s32.totalorder %s24, 1
        %s4133 = scalar_select %p4132, %s24, 1
        %p4134 = scmp.lt.s32.totalorder %s25, 0
        %s4135 = scalar_select %p4134, %s25, 0
        %s4136 = sadd.s32 %s4135, %s4133
        %s4137 = smul.addr %s4136, 2
        %s4138 = scalar_lea.vmem %s6, %s4137
      $region64: #{bridgeconv_forward.4} parent=55 // pred_fallthru
        _
    $region56: #{bridgeconv_forward.4} parent=5 // pred_fallthru
      _
  $region6: #{bridgeconv_forward.4} parent=0 // loop_footer
    %s17 = sadd.s32 1, %s13
  $region7: #{bridgeconv_forward.4} parent=0 // loop_footer_branch
    %12 = sbr.rel target = $region3
  $region8: #{bridgeconv_forward.4} parent=0 // loop_exit
    _

</llo_original>
